<compile_context>
chip_gen: v7x
topology: tpu7x:2x2x1
jax: 0.10.0
libtpu: 0.0.40
codegen_flags: <defaults>
</compile_context>

<pallas_src>
import functools

import numpy as np
import jax
import jax.numpy as jnp
from jax.experimental import pallas as pl
from jax.experimental.pallas import tpu as pltpu


def _resblock_kernel(N, H, W, HW, pad, eps,
                     x_ref, w1_ref, b1_ref, g1_ref, be1_ref,
                     w2_ref, b2_ref, g2_ref, be2_ref,
                     o_ref, h_ref, buf_ref, col_ref):
    M, C = x_ref.shape            # M = N * H * W

    # ---- hoisted horizontal-boundary masks (invariant across taps/images/convs)
    wcol = jax.lax.broadcasted_iota(jnp.int32, (HW, 1), 0) % W
    mask_left = wcol >= 1         # reading input column x-1 is valid
    mask_right = wcol < W - 1     # reading input column x+1 is valid

    # ---- zero only the halo rows of the padded flat-image buffer, ONCE
    buf_ref[0:pad, :] = jnp.zeros((pad, C), jnp.float32)
    buf_ref[pad + HW:, :] = jnp.zeros((pad, C), jnp.float32)

    def build_col(src_ref):
        # im2col: col[n*HW + i, (ky*3+kx)*C + c] = shifted pixel, in bf16.
        for n in range(N):                       # N is tiny (static unroll)
            buf_ref[pad:pad + HW, :] = src_ref[n * HW:(n + 1) * HW, :]
            for ky in range(3):
                for kx in range(3):
                    dy, dx = ky - 1, kx - 1
                    s = dy * W + dx              # flat-index shift
                    tap = buf_ref[pad + s: pad + s + HW, :]
                    if dx == -1:
                        tap = jnp.where(mask_left, tap, 0.0)
                    elif dx == 1:
                        tap = jnp.where(mask_right, tap, 0.0)
                    k = ky * 3 + kx
                    col_ref[n * HW:(n + 1) * HW, k * C:(k + 1) * C] = (
                        tap.astype(jnp.bfloat16))

    def conv_into(src_ref, w_ref, b_ref, dst_ref):
        build_col(src_ref)
        # one big MXU matmul per conv: (M, 9C) bf16 @ (9C, C) bf16 -> f32
        dst_ref[...] = jnp.dot(col_ref[...], w_ref[...],
                               preferred_element_type=jnp.float32) + b_ref[...]

    def batchnorm(v, g_ref, be_ref):
        # training-mode BN, one-pass stats (biased variance), f32 throughout.
        inv_cnt = 1.0 / float(M)
        mean = jnp.sum(v, axis=0, keepdims=True) * inv_cnt          # (1, C)
        ex2 = jnp.sum(v * v, axis=0, keepdims=True) * inv_cnt       # (1, C)
        var = ex2 - mean * mean
        scale = jax.lax.rsqrt(var + eps) * g_ref[...]
        return (v - mean) * scale + be_ref[...]

    # conv1 -> bn1 -> relu
    conv_into(x_ref, w1_ref, b1_ref, h_ref)
    h_ref[...] = jnp.maximum(batchnorm(h_ref[...], g1_ref, be1_ref), 0.0)
    # conv2 -> bn2 -> +residual -> relu
    conv_into(h_ref, w2_ref, b2_ref, o_ref)
    o_ref[...] = jnp.maximum(
        batchnorm(o_ref[...], g2_ref, be2_ref) + x_ref[...], 0.0)


def resblock_forward(x_nchw, params, eps=1e-5):
    """x_nchw: (N, C, H, W) float32, PyTorch layout. Returns same layout/shape."""
    w1, b1, g1, be1, w2, b2, g2, be2 = params
    N, C, H, W = x_nchw.shape
    HW = H * W
    M = N * HW

    # NCHW -> (N*H*W, C)
    x = jnp.transpose(x_nchw, (0, 2, 3, 1)).reshape(M, C).astype(jnp.float32)

    # conv weights OIHW -> (kh, kw, Cin, Cout) -> (9*Cin, Cout), bf16 for the MXU
    def wmat(w):
        return jnp.transpose(w, (2, 3, 1, 0)).reshape(9 * C, C).astype(jnp.bfloat16)

    w1m, w2m = wmat(w1), wmat(w2)

    # sublane-aligned halo (>= W+1 rows on each side of the flat image)
    pad = ((W + 1 + 7) // 8) * 8

    kernel = functools.partial(_resblock_kernel, N, H, W, HW, pad, eps)

    flops = 2 * (2 * M * (9 * C) * C)                # two convs
    bytes_accessed = M * C * 4 * 2 + 2 * 9 * C * C * 2 + 8 * C * 4

    out = pl.pallas_call(
        kernel,
        out_shape=jax.ShapeDtypeStruct((M, C), jnp.float32),
        in_specs=[pl.BlockSpec(memory_space=pltpu.MemorySpace.VMEM)] * 9,
        out_specs=pl.BlockSpec(memory_space=pltpu.MemorySpace.VMEM),
        scratch_shapes=[
            pltpu.VMEM((M, C), jnp.float32),                # h (post bn1/relu)
            pltpu.VMEM((HW + 2 * pad, C), jnp.float32),     # zero-padded flat image
            pltpu.VMEM((M, 9 * C), jnp.bfloat16),           # im2col buffer
        ],
        cost_estimate=pl.CostEstimate(flops=flops, transcendentals=2 * C,
                                      bytes_accessed=bytes_accessed),
    )(x, w1m,
      b1.reshape(1, C).astype(jnp.float32),
      g1.reshape(1, C).astype(jnp.float32),
      be1.reshape(1, C).astype(jnp.float32),
      w2m,
      b2.reshape(1, C).astype(jnp.float32),
      g2.reshape(1, C).astype(jnp.float32),
      be2.reshape(1, C).astype(jnp.float32))

    # (N*H*W, C) -> NCHW
    return jnp.transpose(out.reshape(N, H, W, C), (0, 3, 1, 2))


def ref_resblock(x, params, eps=1e-5):
    """Pure-JAX reference matching the PyTorch module (training-mode BN)."""
    w1, b1, g1, be1, w2, b2, g2, be2 = params

    def conv(x, w, b):
        y = jax.lax.conv_general_dilated(
            x, w, window_strides=(1, 1), padding='SAME',
            dimension_numbers=('NCHW', 'OIHW', 'NCHW'))
        return y + b[None, :, None, None]

    def bn(x, g, be):
        mean = jnp.mean(x, axis=(0, 2, 3), keepdims=True)
        var = jnp.mean((x - mean) ** 2, axis=(0, 2, 3), keepdims=True)
        return (g[None, :, None, None] * (x - mean) * jax.lax.rsqrt(var + eps)
                + be[None, :, None, None])

    h = jax.nn.relu(bn(conv(x, w1, b1), g1, be1))
    h = bn(conv(h, w2, b2), g2, be2) + x
    return jax.nn.relu(h)


if __name__ == "__main__":
    key = jax.random.PRNGKey(0)
    N, C, H, W = 2, 32, 16, 16     # num_hidden = 32
    ks = jax.random.split(key, 9)

    x = jax.random.normal(ks[0], (N, C, H, W), jnp.float32)
    fan_in = C * 9
    w1 = jax.random.normal(ks[1], (C, C, 3, 3), jnp.float32) / jnp.sqrt(fan_in)
    b1 = 0.1 * jax.random.normal(ks[2], (C,), jnp.float32)
    w2 = jax.random.normal(ks[3], (C, C, 3, 3), jnp.float32) / jnp.sqrt(fan_in)
    b2 = 0.1 * jax.random.normal(ks[4], (C,), jnp.float32)
    g1 = 1.0 + 0.1 * jax.random.normal(ks[5], (C,), jnp.float32)
    be1 = 0.1 * jax.random.normal(ks[6], (C,), jnp.float32)
    g2 = 1.0 + 0.1 * jax.random.normal(ks[7], (C,), jnp.float32)
    be2 = 0.1 * jax.random.normal(ks[8], (C,), jnp.float32)
    params = (w1, b1, g1, be1, w2, b2, g2, be2)

    out = jax.block_until_ready(resblock_forward(x, params))
    ref = jax.block_until_ready(ref_resblock(x, params))

    assert out.shape == x.shape
    # bf16 MXU operands -> slightly looser tolerance than pure f32.
    np.testing.assert_allclose(np.asarray(out), np.asarray(ref),
                               rtol=3e-2, atol=3e-2)
    print("KERNEL_OK")
</pallas_src>

<mosaic_0001>
module attributes {stable_mosaic.version = 11 : i64} {
  func.func @_resblock_kernel(%arg0: memref<512x32xf32, #tpu.memory_space<vmem>>, %arg1: memref<288x32xbf16, #tpu.memory_space<vmem>>, %arg2: memref<1x32xf32, #tpu.memory_space<vmem>>, %arg3: memref<1x32xf32, #tpu.memory_space<vmem>>, %arg4: memref<1x32xf32, #tpu.memory_space<vmem>>, %arg5: memref<288x32xbf16, #tpu.memory_space<vmem>>, %arg6: memref<1x32xf32, #tpu.memory_space<vmem>>, %arg7: memref<1x32xf32, #tpu.memory_space<vmem>>, %arg8: memref<1x32xf32, #tpu.memory_space<vmem>>, %arg9: memref<512x32xf32, #tpu.memory_space<vmem>>, %arg10: memref<512x32xf32, #tpu.memory_space<vmem>>, %arg11: memref<304x32xf32, #tpu.memory_space<vmem>>, %arg12: memref<512x288xbf16, #tpu.memory_space<vmem>>) attributes {dimension_semantics = [], scalar_prefetch = 0 : i64, scratch_operands = 3 : i64, tpu.core_type = #tpu.core_type<tc>} {
    %0 = tpu.iota {dimensions = array<i32: 0>} : vector<256x1xi32>
    %c16_i32 = arith.constant 16 : i32
    %c0_i32 = arith.constant 0 : i32
    %1 = arith.cmpi eq, %c16_i32, %c0_i32 : i32
    %c1_i32 = arith.constant 1 : i32
    %2 = arith.select %1, %c1_i32, %c16_i32 : i32
    %3 = vector.broadcast %2 : i32 to vector<256x1xi32>
    %4 = arith.remsi %0, %3 : vector<256x1xi32>
    %c0_i32_0 = arith.constant 0 : i32
    %5 = vector.broadcast %c0_i32_0 : i32 to vector<256x1xi32>
    %6 = arith.cmpi ne, %4, %5 : vector<256x1xi32>
    %c0_i32_1 = arith.constant 0 : i32
    %7 = vector.broadcast %c0_i32_1 : i32 to vector<256x1xi32>
    %8 = arith.cmpi slt, %4, %7 : vector<256x1xi32>
    %c0_i32_2 = arith.constant 0 : i32
    %9 = arith.cmpi slt, %2, %c0_i32_2 : i32
    %10 = vector.broadcast %9 : i1 to vector<256x1xi1>
    %11 = vector.broadcast %10 : vector<256x1xi1> to vector<256x1xi1>
    %12 = arith.xori %8, %11 : vector<256x1xi1>
    %13 = arith.andi %12, %6 : vector<256x1xi1>
    %14 = vector.broadcast %2 : i32 to vector<256x1xi32>
    %15 = arith.addi %4, %14 : vector<256x1xi32>
    %16 = arith.select %13, %15, %4 : vector<256x1xi1>, vector<256x1xi32>
    %c1_i32_3 = arith.constant 1 : i32
    %17 = vector.broadcast %c1_i32_3 : i32 to vector<256x1xi32>
    %18 = arith.cmpi sge, %16, %17 : vector<256x1xi32>
    %c15_i32 = arith.constant 15 : i32
    %19 = vector.broadcast %c15_i32 : i32 to vector<256x1xi32>
    %20 = arith.cmpi slt, %16, %19 : vector<256x1xi32>
    %cst = arith.constant 0.000000e+00 : f32
    %21 = vector.broadcast %cst : f32 to vector<24x32xf32>
    %c0 = arith.constant 0 : index
    %c0_4 = arith.constant 0 : index
    %22 = vector.load %arg11[%c0, %c0_4] : memref<304x32xf32, #tpu.memory_space<vmem>>, vector<24x32xf32>
    tpu.vector_store %arg11[%c0, %c0_4], %21 {strides = array<i32>} : memref<304x32xf32, #tpu.memory_space<vmem>>, vector<24x32xf32>,
    %cst_5 = arith.constant 0.000000e+00 : f32
    %23 = vector.broadcast %cst_5 : f32 to vector<24x32xf32>
    %c280 = arith.constant 280 : index
    %c0_6 = arith.constant 0 : index
    %24 = vector.load %arg11[%c280, %c0_6] : memref<304x32xf32, #tpu.memory_space<vmem>>, vector<24x32xf32>
    tpu.vector_store %arg11[%c280, %c0_6], %23 {strides = array<i32>} : memref<304x32xf32, #tpu.memory_space<vmem>>, vector<24x32xf32>,
    %c0_7 = arith.constant 0 : index
    %c0_8 = arith.constant 0 : index
    %25 = vector.load %arg0[%c0_7, %c0_8] : memref<512x32xf32, #tpu.memory_space<vmem>>, vector<256x32xf32>
    %c24 = arith.constant 24 : index
    %c0_9 = arith.constant 0 : index
    %26 = vector.load %arg11[%c24, %c0_9] : memref<304x32xf32, #tpu.memory_space<vmem>>, vector<256x32xf32>
    tpu.vector_store %arg11[%c24, %c0_9], %25 {strides = array<i32>} : memref<304x32xf32, #tpu.memory_space<vmem>>, vector<256x32xf32>,
    %c7 = arith.constant 7 : index
    %c0_10 = arith.constant 0 : index
    %27 = vector.load %arg11[%c7, %c0_10] : memref<304x32xf32, #tpu.memory_space<vmem>>, vector<256x32xf32>
    %cst_11 = arith.constant 0.000000e+00 : f32
    %28 = vector.shape_cast %18 : vector<256x1xi1> to vector<256x1xi1>
    %29 = vector.broadcast %28 : vector<256x1xi1> to vector<256x32xi1>
    %30 = vector.broadcast %cst_11 : f32 to vector<256x32xf32>
    %31 = arith.select %29, %27, %30 : vector<256x32xi1>, vector<256x32xf32>
    %32 = arith.truncf %31 : vector<256x32xf32> to vector<256x32xbf16>
    %c0_12 = arith.constant 0 : index
    %c0_13 = arith.constant 0 : index
    %33 = vector.load %arg12[%c0_12, %c0_13] : memref<512x288xbf16, #tpu.memory_space<vmem>>, vector<256x32xbf16>
    tpu.vector_store %arg12[%c0_12, %c0_13], %32 {strides = array<i32>} : memref<512x288xbf16, #tpu.memory_space<vmem>>, vector<256x32xbf16>,
    %c8 = arith.constant 8 : index
    %c0_14 = arith.constant 0 : index
    %34 = vector.load %arg11[%c8, %c0_14] : memref<304x32xf32, #tpu.memory_space<vmem>>, vector<256x32xf32>
    %35 = arith.truncf %34 : vector<256x32xf32> to vector<256x32xbf16>
    %c0_15 = arith.constant 0 : index
    %c32 = arith.constant 32 : index
    %36 = vector.load %arg12[%c0_15, %c32] : memref<512x288xbf16, #tpu.memory_space<vmem>>, vector<256x32xbf16>
    tpu.vector_store %arg12[%c0_15, %c32], %35 {strides = array<i32>} : memref<512x288xbf16, #tpu.memory_space<vmem>>, vector<256x32xbf16>,
    %c9 = arith.constant 9 : index
    %c0_16 = arith.constant 0 : index
    %37 = vector.load %arg11[%c9, %c0_16] : memref<304x32xf32, #tpu.memory_space<vmem>>, vector<256x32xf32>
    %cst_17 = arith.constant 0.000000e+00 : f32
    %38 = vector.shape_cast %20 : vector<256x1xi1> to vector<256x1xi1>
    %39 = vector.broadcast %38 : vector<256x1xi1> to vector<256x32xi1>
    %40 = vector.broadcast %cst_17 : f32 to vector<256x32xf32>
    %41 = arith.select %39, %37, %40 : vector<256x32xi1>, vector<256x32xf32>
    %42 = arith.truncf %41 : vector<256x32xf32> to vector<256x32xbf16>
    %c0_18 = arith.constant 0 : index
    %c64 = arith.constant 64 : index
    %43 = vector.load %arg12[%c0_18, %c64] : memref<512x288xbf16, #tpu.memory_space<vmem>>, vector<256x32xbf16>
    tpu.vector_store %arg12[%c0_18, %c64], %42 {strides = array<i32>} : memref<512x288xbf16, #tpu.memory_space<vmem>>, vector<256x32xbf16>,
    %c23 = arith.constant 23 : index
    %c0_19 = arith.constant 0 : index
    %44 = vector.load %arg11[%c23, %c0_19] : memref<304x32xf32, #tpu.memory_space<vmem>>, vector<256x32xf32>
    %cst_20 = arith.constant 0.000000e+00 : f32
    %45 = vector.shape_cast %18 : vector<256x1xi1> to vector<256x1xi1>
    %46 = vector.broadcast %45 : vector<256x1xi1> to vector<256x32xi1>
    %47 = vector.broadcast %cst_20 : f32 to vector<256x32xf32>
    %48 = arith.select %46, %44, %47 : vector<256x32xi1>, vector<256x32xf32>
    %49 = arith.truncf %48 : vector<256x32xf32> to vector<256x32xbf16>
    %c0_21 = arith.constant 0 : index
    %c96 = arith.constant 96 : index
    %50 = vector.load %arg12[%c0_21, %c96] : memref<512x288xbf16, #tpu.memory_space<vmem>>, vector<256x32xbf16>
    tpu.vector_store %arg12[%c0_21, %c96], %49 {strides = array<i32>} : memref<512x288xbf16, #tpu.memory_space<vmem>>, vector<256x32xbf16>,
    %c24_22 = arith.constant 24 : index
    %c0_23 = arith.constant 0 : index
    %51 = vector.load %arg11[%c24_22, %c0_23] : memref<304x32xf32, #tpu.memory_space<vmem>>, vector<256x32xf32>
    %52 = arith.truncf %51 : vector<256x32xf32> to vector<256x32xbf16>
    %c0_24 = arith.constant 0 : index
    %c128 = arith.constant 128 : index
    %53 = vector.load %arg12[%c0_24, %c128] : memref<512x288xbf16, #tpu.memory_space<vmem>>, vector<256x32xbf16>
    tpu.vector_store %arg12[%c0_24, %c128], %52 {strides = array<i32>} : memref<512x288xbf16, #tpu.memory_space<vmem>>, vector<256x32xbf16>,
    %c25 = arith.constant 25 : index
    %c0_25 = arith.constant 0 : index
    %54 = vector.load %arg11[%c25, %c0_25] : memref<304x32xf32, #tpu.memory_space<vmem>>, vector<256x32xf32>
    %cst_26 = arith.constant 0.000000e+00 : f32
    %55 = vector.shape_cast %20 : vector<256x1xi1> to vector<256x1xi1>
    %56 = vector.broadcast %55 : vector<256x1xi1> to vector<256x32xi1>
    %57 = vector.broadcast %cst_26 : f32 to vector<256x32xf32>
    %58 = arith.select %56, %54, %57 : vector<256x32xi1>, vector<256x32xf32>
    %59 = arith.truncf %58 : vector<256x32xf32> to vector<256x32xbf16>
    %c0_27 = arith.constant 0 : index
    %c160 = arith.constant 160 : index
    %60 = vector.load %arg12[%c0_27, %c160] : memref<512x288xbf16, #tpu.memory_space<vmem>>, vector<256x32xbf16>
    tpu.vector_store %arg12[%c0_27, %c160], %59 {strides = array<i32>} : memref<512x288xbf16, #tpu.memory_space<vmem>>, vector<256x32xbf16>,
    %c39 = arith.constant 39 : index
    %c0_28 = arith.constant 0 : index
    %61 = vector.load %arg11[%c39, %c0_28] : memref<304x32xf32, #tpu.memory_space<vmem>>, vector<256x32xf32>
    %cst_29 = arith.constant 0.000000e+00 : f32
    %62 = vector.shape_cast %18 : vector<256x1xi1> to vector<256x1xi1>
    %63 = vector.broadcast %62 : vector<256x1xi1> to vector<256x32xi1>
    %64 = vector.broadcast %cst_29 : f32 to vector<256x32xf32>
    %65 = arith.select %63, %61, %64 : vector<256x32xi1>, vector<256x32xf32>
    %66 = arith.truncf %65 : vector<256x32xf32> to vector<256x32xbf16>
    %c0_30 = arith.constant 0 : index
    %c192 = arith.constant 192 : index
    %67 = vector.load %arg12[%c0_30, %c192] : memref<512x288xbf16, #tpu.memory_space<vmem>>, vector<256x32xbf16>
    tpu.vector_store %arg12[%c0_30, %c192], %66 {strides = array<i32>} : memref<512x288xbf16, #tpu.memory_space<vmem>>, vector<256x32xbf16>,
    %c40 = arith.constant 40 : index
    %c0_31 = arith.constant 0 : index
    %68 = vector.load %arg11[%c40, %c0_31] : memref<304x32xf32, #tpu.memory_space<vmem>>, vector<256x32xf32>
    %69 = arith.truncf %68 : vector<256x32xf32> to vector<256x32xbf16>
    %c0_32 = arith.constant 0 : index
    %c224 = arith.constant 224 : index
    %70 = vector.load %arg12[%c0_32, %c224] : memref<512x288xbf16, #tpu.memory_space<vmem>>, vector<256x32xbf16>
    tpu.vector_store %arg12[%c0_32, %c224], %69 {strides = array<i32>} : memref<512x288xbf16, #tpu.memory_space<vmem>>, vector<256x32xbf16>,
    %c41 = arith.constant 41 : index
    %c0_33 = arith.constant 0 : index
    %71 = vector.load %arg11[%c41, %c0_33] : memref<304x32xf32, #tpu.memory_space<vmem>>, vector<256x32xf32>
    %cst_34 = arith.constant 0.000000e+00 : f32
    %72 = vector.shape_cast %20 : vector<256x1xi1> to vector<256x1xi1>
    %73 = vector.broadcast %72 : vector<256x1xi1> to vector<256x32xi1>
    %74 = vector.broadcast %cst_34 : f32 to vector<256x32xf32>
    %75 = arith.select %73, %71, %74 : vector<256x32xi1>, vector<256x32xf32>
    %76 = arith.truncf %75 : vector<256x32xf32> to vector<256x32xbf16>
    %c0_35 = arith.constant 0 : index
    %c256 = arith.constant 256 : index
    %77 = vector.load %arg12[%c0_35, %c256] : memref<512x288xbf16, #tpu.memory_space<vmem>>, vector<256x32xbf16>
    tpu.vector_store %arg12[%c0_35, %c256], %76 {strides = array<i32>} : memref<512x288xbf16, #tpu.memory_space<vmem>>, vector<256x32xbf16>,
    %c256_36 = arith.constant 256 : index
    %c0_37 = arith.constant 0 : index
    %78 = vector.load %arg0[%c256_36, %c0_37] : memref<512x32xf32, #tpu.memory_space<vmem>>, vector<256x32xf32>
    %c24_38 = arith.constant 24 : index
    %c0_39 = arith.constant 0 : index
    %79 = vector.load %arg11[%c24_38, %c0_39] : memref<304x32xf32, #tpu.memory_space<vmem>>, vector<256x32xf32>
    tpu.vector_store %arg11[%c24_38, %c0_39], %78 {strides = array<i32>} : memref<304x32xf32, #tpu.memory_space<vmem>>, vector<256x32xf32>,
    %c7_40 = arith.constant 7 : index
    %c0_41 = arith.constant 0 : index
    %80 = vector.load %arg11[%c7_40, %c0_41] : memref<304x32xf32, #tpu.memory_space<vmem>>, vector<256x32xf32>
    %cst_42 = arith.constant 0.000000e+00 : f32
    %81 = vector.shape_cast %18 : vector<256x1xi1> to vector<256x1xi1>
    %82 = vector.broadcast %81 : vector<256x1xi1> to vector<256x32xi1>
    %83 = vector.broadcast %cst_42 : f32 to vector<256x32xf32>
    %84 = arith.select %82, %80, %83 : vector<256x32xi1>, vector<256x32xf32>
    %85 = arith.truncf %84 : vector<256x32xf32> to vector<256x32xbf16>
    %c256_43 = arith.constant 256 : index
    %c0_44 = arith.constant 0 : index
    %86 = vector.load %arg12[%c256_43, %c0_44] : memref<512x288xbf16, #tpu.memory_space<vmem>>, vector<256x32xbf16>
    tpu.vector_store %arg12[%c256_43, %c0_44], %85 {strides = array<i32>} : memref<512x288xbf16, #tpu.memory_space<vmem>>, vector<256x32xbf16>,
    %c8_45 = arith.constant 8 : index
    %c0_46 = arith.constant 0 : index
    %87 = vector.load %arg11[%c8_45, %c0_46] : memref<304x32xf32, #tpu.memory_space<vmem>>, vector<256x32xf32>
    %88 = arith.truncf %87 : vector<256x32xf32> to vector<256x32xbf16>
    %c256_47 = arith.constant 256 : index
    %c32_48 = arith.constant 32 : index
    %89 = vector.load %arg12[%c256_47, %c32_48] : memref<512x288xbf16, #tpu.memory_space<vmem>>, vector<256x32xbf16>
    tpu.vector_store %arg12[%c256_47, %c32_48], %88 {strides = array<i32>} : memref<512x288xbf16, #tpu.memory_space<vmem>>, vector<256x32xbf16>,
    %c9_49 = arith.constant 9 : index
    %c0_50 = arith.constant 0 : index
    %90 = vector.load %arg11[%c9_49, %c0_50] : memref<304x32xf32, #tpu.memory_space<vmem>>, vector<256x32xf32>
    %cst_51 = arith.constant 0.000000e+00 : f32
    %91 = vector.shape_cast %20 : vector<256x1xi1> to vector<256x1xi1>
    %92 = vector.broadcast %91 : vector<256x1xi1> to vector<256x32xi1>
    %93 = vector.broadcast %cst_51 : f32 to vector<256x32xf32>
    %94 = arith.select %92, %90, %93 : vector<256x32xi1>, vector<256x32xf32>
    %95 = arith.truncf %94 : vector<256x32xf32> to vector<256x32xbf16>
    %c256_52 = arith.constant 256 : index
    %c64_53 = arith.constant 64 : index
    %96 = vector.load %arg12[%c256_52, %c64_53] : memref<512x288xbf16, #tpu.memory_space<vmem>>, vector<256x32xbf16>
    tpu.vector_store %arg12[%c256_52, %c64_53], %95 {strides = array<i32>} : memref<512x288xbf16, #tpu.memory_space<vmem>>, vector<256x32xbf16>,
    %c23_54 = arith.constant 23 : index
    %c0_55 = arith.constant 0 : index
    %97 = vector.load %arg11[%c23_54, %c0_55] : memref<304x32xf32, #tpu.memory_space<vmem>>, vector<256x32xf32>
    %cst_56 = arith.constant 0.000000e+00 : f32
    %98 = vector.shape_cast %18 : vector<256x1xi1> to vector<256x1xi1>
    %99 = vector.broadcast %98 : vector<256x1xi1> to vector<256x32xi1>
    %100 = vector.broadcast %cst_56 : f32 to vector<256x32xf32>
    %101 = arith.select %99, %97, %100 : vector<256x32xi1>, vector<256x32xf32>
    %102 = arith.truncf %101 : vector<256x32xf32> to vector<256x32xbf16>
    %c256_57 = arith.constant 256 : index
    %c96_58 = arith.constant 96 : index
    %103 = vector.load %arg12[%c256_57, %c96_58] : memref<512x288xbf16, #tpu.memory_space<vmem>>, vector<256x32xbf16>
    tpu.vector_store %arg12[%c256_57, %c96_58], %102 {strides = array<i32>} : memref<512x288xbf16, #tpu.memory_space<vmem>>, vector<256x32xbf16>,
    %c24_59 = arith.constant 24 : index
    %c0_60 = arith.constant 0 : index
    %104 = vector.load %arg11[%c24_59, %c0_60] : memref<304x32xf32, #tpu.memory_space<vmem>>, vector<256x32xf32>
    %105 = arith.truncf %104 : vector<256x32xf32> to vector<256x32xbf16>
    %c256_61 = arith.constant 256 : index
    %c128_62 = arith.constant 128 : index
    %106 = vector.load %arg12[%c256_61, %c128_62] : memref<512x288xbf16, #tpu.memory_space<vmem>>, vector<256x32xbf16>
    tpu.vector_store %arg12[%c256_61, %c128_62], %105 {strides = array<i32>} : memref<512x288xbf16, #tpu.memory_space<vmem>>, vector<256x32xbf16>,
    %c25_63 = arith.constant 25 : index
    %c0_64 = arith.constant 0 : index
    %107 = vector.load %arg11[%c25_63, %c0_64] : memref<304x32xf32, #tpu.memory_space<vmem>>, vector<256x32xf32>
    %cst_65 = arith.constant 0.000000e+00 : f32
    %108 = vector.shape_cast %20 : vector<256x1xi1> to vector<256x1xi1>
    %109 = vector.broadcast %108 : vector<256x1xi1> to vector<256x32xi1>
    %110 = vector.broadcast %cst_65 : f32 to vector<256x32xf32>
    %111 = arith.select %109, %107, %110 : vector<256x32xi1>, vector<256x32xf32>
    %112 = arith.truncf %111 : vector<256x32xf32> to vector<256x32xbf16>
    %c256_66 = arith.constant 256 : index
    %c160_67 = arith.constant 160 : index
    %113 = vector.load %arg12[%c256_66, %c160_67] : memref<512x288xbf16, #tpu.memory_space<vmem>>, vector<256x32xbf16>
    tpu.vector_store %arg12[%c256_66, %c160_67], %112 {strides = array<i32>} : memref<512x288xbf16, #tpu.memory_space<vmem>>, vector<256x32xbf16>,
    %c39_68 = arith.constant 39 : index
    %c0_69 = arith.constant 0 : index
    %114 = vector.load %arg11[%c39_68, %c0_69] : memref<304x32xf32, #tpu.memory_space<vmem>>, vector<256x32xf32>
    %cst_70 = arith.constant 0.000000e+00 : f32
    %115 = vector.shape_cast %18 : vector<256x1xi1> to vector<256x1xi1>
    %116 = vector.broadcast %115 : vector<256x1xi1> to vector<256x32xi1>
    %117 = vector.broadcast %cst_70 : f32 to vector<256x32xf32>
    %118 = arith.select %116, %114, %117 : vector<256x32xi1>, vector<256x32xf32>
    %119 = arith.truncf %118 : vector<256x32xf32> to vector<256x32xbf16>
    %c256_71 = arith.constant 256 : index
    %c192_72 = arith.constant 192 : index
    %120 = vector.load %arg12[%c256_71, %c192_72] : memref<512x288xbf16, #tpu.memory_space<vmem>>, vector<256x32xbf16>
    tpu.vector_store %arg12[%c256_71, %c192_72], %119 {strides = array<i32>} : memref<512x288xbf16, #tpu.memory_space<vmem>>, vector<256x32xbf16>,
    %c40_73 = arith.constant 40 : index
    %c0_74 = arith.constant 0 : index
    %121 = vector.load %arg11[%c40_73, %c0_74] : memref<304x32xf32, #tpu.memory_space<vmem>>, vector<256x32xf32>
    %122 = arith.truncf %121 : vector<256x32xf32> to vector<256x32xbf16>
    %c256_75 = arith.constant 256 : index
    %c224_76 = arith.constant 224 : index
    %123 = vector.load %arg12[%c256_75, %c224_76] : memref<512x288xbf16, #tpu.memory_space<vmem>>, vector<256x32xbf16>
    tpu.vector_store %arg12[%c256_75, %c224_76], %122 {strides = array<i32>} : memref<512x288xbf16, #tpu.memory_space<vmem>>, vector<256x32xbf16>,
    %c41_77 = arith.constant 41 : index
    %c0_78 = arith.constant 0 : index
    %124 = vector.load %arg11[%c41_77, %c0_78] : memref<304x32xf32, #tpu.memory_space<vmem>>, vector<256x32xf32>
    %cst_79 = arith.constant 0.000000e+00 : f32
    %125 = vector.shape_cast %20 : vector<256x1xi1> to vector<256x1xi1>
    %126 = vector.broadcast %125 : vector<256x1xi1> to vector<256x32xi1>
    %127 = vector.broadcast %cst_79 : f32 to vector<256x32xf32>
    %128 = arith.select %126, %124, %127 : vector<256x32xi1>, vector<256x32xf32>
    %129 = arith.truncf %128 : vector<256x32xf32> to vector<256x32xbf16>
    %c256_80 = arith.constant 256 : index
    %c256_81 = arith.constant 256 : index
    %130 = vector.load %arg12[%c256_80, %c256_81] : memref<512x288xbf16, #tpu.memory_space<vmem>>, vector<256x32xbf16>
    tpu.vector_store %arg12[%c256_80, %c256_81], %129 {strides = array<i32>} : memref<512x288xbf16, #tpu.memory_space<vmem>>, vector<256x32xbf16>,
    %c0_82 = arith.constant 0 : index
    %c0_83 = arith.constant 0 : index
    %131 = vector.load %arg12[%c0_82, %c0_83] : memref<512x288xbf16, #tpu.memory_space<vmem>>, vector<512x288xbf16>
    %c0_84 = arith.constant 0 : index
    %c0_85 = arith.constant 0 : index
    %132 = vector.load %arg1[%c0_84, %c0_85] : memref<288x32xbf16, #tpu.memory_space<vmem>>, vector<288x32xbf16>
    %cst_86 = arith.constant dense<0.000000e+00> : vector<512x32xf32>
    %133 = tpu.matmul %131, %132, %cst_86 {dimension_numbers = #tpu.dot_dimension_numbers<[1], [0], [0], [1], [0, 0, 1, 1], [], []>} : vector<512x288xbf16>, vector<288x32xbf16>, vector<512x32xf32> -> vector<512x32xf32>
    %c0_87 = arith.constant 0 : index
    %c0_88 = arith.constant 0 : index
    %134 = vector.load %arg2[%c0_87, %c0_88] : memref<1x32xf32, #tpu.memory_space<vmem>>, vector<1x32xf32>
    %135 = vector.broadcast %134 : vector<1x32xf32> to vector<512x32xf32>
    %136 = arith.addf %133, %135 : vector<512x32xf32>
    %c0_89 = arith.constant 0 : index
    %c0_90 = arith.constant 0 : index
    %137 = vector.load %arg10[%c0_89, %c0_90] : memref<512x32xf32, #tpu.memory_space<vmem>>, vector<512x32xf32>
    tpu.vector_store %arg10[%c0_89, %c0_90], %136 {strides = array<i32>} : memref<512x32xf32, #tpu.memory_space<vmem>>, vector<512x32xf32>,
    %c0_91 = arith.constant 0 : index
    %c0_92 = arith.constant 0 : index
    %138 = vector.load %arg10[%c0_91, %c0_92] : memref<512x32xf32, #tpu.memory_space<vmem>>, vector<512x32xf32>
    %cst_93 = arith.constant dense<0.000000e+00> : vector<32xf32>
    %139 = vector.multi_reduction <add>, %138, %cst_93 [0] : vector<512x32xf32> to vector<32xf32>
    %140 = vector.shape_cast %139 : vector<32xf32> to vector<1x32xf32>
    %cst_94 = arith.constant 0.001953125 : f32
    %141 = vector.broadcast %cst_94 : f32 to vector<1x32xf32>
    %142 = arith.mulf %140, %141 : vector<1x32xf32>
    %143 = arith.mulf %138, %138 : vector<512x32xf32>
    %cst_95 = arith.constant dense<0.000000e+00> : vector<32xf32>
    %144 = vector.multi_reduction <add>, %143, %cst_95 [0] : vector<512x32xf32> to vector<32xf32>
    %145 = vector.shape_cast %144 : vector<32xf32> to vector<1x32xf32>
    %cst_96 = arith.constant 0.001953125 : f32
    %146 = vector.broadcast %cst_96 : f32 to vector<1x32xf32>
    %147 = arith.mulf %145, %146 : vector<1x32xf32>
    %148 = arith.mulf %142, %142 : vector<1x32xf32>
    %149 = arith.subf %147, %148 : vector<1x32xf32>
    %cst_97 = arith.constant 9.99999974E-6 : f32
    %150 = vector.broadcast %cst_97 : f32 to vector<1x32xf32>
    %151 = arith.addf %149, %150 : vector<1x32xf32>
    %152 = math.rsqrt %151 : vector<1x32xf32>
    %c0_98 = arith.constant 0 : index
    %c0_99 = arith.constant 0 : index
    %153 = vector.load %arg3[%c0_98, %c0_99] : memref<1x32xf32, #tpu.memory_space<vmem>>, vector<1x32xf32>
    %154 = arith.mulf %152, %153 : vector<1x32xf32>
    %155 = vector.broadcast %142 : vector<1x32xf32> to vector<512x32xf32>
    %156 = arith.subf %138, %155 : vector<512x32xf32>
    %157 = vector.broadcast %154 : vector<1x32xf32> to vector<512x32xf32>
    %158 = arith.mulf %156, %157 : vector<512x32xf32>
    %c0_100 = arith.constant 0 : index
    %c0_101 = arith.constant 0 : index
    %159 = vector.load %arg4[%c0_100, %c0_101] : memref<1x32xf32, #tpu.memory_space<vmem>>, vector<1x32xf32>
    %160 = vector.broadcast %159 : vector<1x32xf32> to vector<512x32xf32>
    %161 = arith.addf %158, %160 : vector<512x32xf32>
    %cst_102 = arith.constant 0.000000e+00 : f32
    %162 = vector.broadcast %cst_102 : f32 to vector<512x32xf32>
    %163 = arith.maximumf %161, %162 : vector<512x32xf32>
    %c0_103 = arith.constant 0 : index
    %c0_104 = arith.constant 0 : index
    %164 = vector.load %arg10[%c0_103, %c0_104] : memref<512x32xf32, #tpu.memory_space<vmem>>, vector<512x32xf32>
    tpu.vector_store %arg10[%c0_103, %c0_104], %163 {strides = array<i32>} : memref<512x32xf32, #tpu.memory_space<vmem>>, vector<512x32xf32>,
    %c0_105 = arith.constant 0 : index
    %c0_106 = arith.constant 0 : index
    %165 = vector.load %arg10[%c0_105, %c0_106] : memref<512x32xf32, #tpu.memory_space<vmem>>, vector<256x32xf32>
    %c24_107 = arith.constant 24 : index
    %c0_108 = arith.constant 0 : index
    %166 = vector.load %arg11[%c24_107, %c0_108] : memref<304x32xf32, #tpu.memory_space<vmem>>, vector<256x32xf32>
    tpu.vector_store %arg11[%c24_107, %c0_108], %165 {strides = array<i32>} : memref<304x32xf32, #tpu.memory_space<vmem>>, vector<256x32xf32>,
    %c7_109 = arith.constant 7 : index
    %c0_110 = arith.constant 0 : index
    %167 = vector.load %arg11[%c7_109, %c0_110] : memref<304x32xf32, #tpu.memory_space<vmem>>, vector<256x32xf32>
    %cst_111 = arith.constant 0.000000e+00 : f32
    %168 = vector.shape_cast %18 : vector<256x1xi1> to vector<256x1xi1>
    %169 = vector.broadcast %168 : vector<256x1xi1> to vector<256x32xi1>
    %170 = vector.broadcast %cst_111 : f32 to vector<256x32xf32>
    %171 = arith.select %169, %167, %170 : vector<256x32xi1>, vector<256x32xf32>
    %172 = arith.truncf %171 : vector<256x32xf32> to vector<256x32xbf16>
    %c0_112 = arith.constant 0 : index
    %c0_113 = arith.constant 0 : index
    %173 = vector.load %arg12[%c0_112, %c0_113] : memref<512x288xbf16, #tpu.memory_space<vmem>>, vector<256x32xbf16>
    tpu.vector_store %arg12[%c0_112, %c0_113], %172 {strides = array<i32>} : memref<512x288xbf16, #tpu.memory_space<vmem>>, vector<256x32xbf16>,
    %c8_114 = arith.constant 8 : index
    %c0_115 = arith.constant 0 : index
    %174 = vector.load %arg11[%c8_114, %c0_115] : memref<304x32xf32, #tpu.memory_space<vmem>>, vector<256x32xf32>
    %175 = arith.truncf %174 : vector<256x32xf32> to vector<256x32xbf16>
    %c0_116 = arith.constant 0 : index
    %c32_117 = arith.constant 32 : index
    %176 = vector.load %arg12[%c0_116, %c32_117] : memref<512x288xbf16, #tpu.memory_space<vmem>>, vector<256x32xbf16>
    tpu.vector_store %arg12[%c0_116, %c32_117], %175 {strides = array<i32>} : memref<512x288xbf16, #tpu.memory_space<vmem>>, vector<256x32xbf16>,
    %c9_118 = arith.constant 9 : index
    %c0_119 = arith.constant 0 : index
    %177 = vector.load %arg11[%c9_118, %c0_119] : memref<304x32xf32, #tpu.memory_space<vmem>>, vector<256x32xf32>
    %cst_120 = arith.constant 0.000000e+00 : f32
    %178 = vector.shape_cast %20 : vector<256x1xi1> to vector<256x1xi1>
    %179 = vector.broadcast %178 : vector<256x1xi1> to vector<256x32xi1>
    %180 = vector.broadcast %cst_120 : f32 to vector<256x32xf32>
    %181 = arith.select %179, %177, %180 : vector<256x32xi1>, vector<256x32xf32>
    %182 = arith.truncf %181 : vector<256x32xf32> to vector<256x32xbf16>
    %c0_121 = arith.constant 0 : index
    %c64_122 = arith.constant 64 : index
    %183 = vector.load %arg12[%c0_121, %c64_122] : memref<512x288xbf16, #tpu.memory_space<vmem>>, vector<256x32xbf16>
    tpu.vector_store %arg12[%c0_121, %c64_122], %182 {strides = array<i32>} : memref<512x288xbf16, #tpu.memory_space<vmem>>, vector<256x32xbf16>,
    %c23_123 = arith.constant 23 : index
    %c0_124 = arith.constant 0 : index
    %184 = vector.load %arg11[%c23_123, %c0_124] : memref<304x32xf32, #tpu.memory_space<vmem>>, vector<256x32xf32>
    %cst_125 = arith.constant 0.000000e+00 : f32
    %185 = vector.shape_cast %18 : vector<256x1xi1> to vector<256x1xi1>
    %186 = vector.broadcast %185 : vector<256x1xi1> to vector<256x32xi1>
    %187 = vector.broadcast %cst_125 : f32 to vector<256x32xf32>
    %188 = arith.select %186, %184, %187 : vector<256x32xi1>, vector<256x32xf32>
    %189 = arith.truncf %188 : vector<256x32xf32> to vector<256x32xbf16>
    %c0_126 = arith.constant 0 : index
    %c96_127 = arith.constant 96 : index
    %190 = vector.load %arg12[%c0_126, %c96_127] : memref<512x288xbf16, #tpu.memory_space<vmem>>, vector<256x32xbf16>
    tpu.vector_store %arg12[%c0_126, %c96_127], %189 {strides = array<i32>} : memref<512x288xbf16, #tpu.memory_space<vmem>>, vector<256x32xbf16>,
    %c24_128 = arith.constant 24 : index
    %c0_129 = arith.constant 0 : index
    %191 = vector.load %arg11[%c24_128, %c0_129] : memref<304x32xf32, #tpu.memory_space<vmem>>, vector<256x32xf32>
    %192 = arith.truncf %191 : vector<256x32xf32> to vector<256x32xbf16>
    %c0_130 = arith.constant 0 : index
    %c128_131 = arith.constant 128 : index
    %193 = vector.load %arg12[%c0_130, %c128_131] : memref<512x288xbf16, #tpu.memory_space<vmem>>, vector<256x32xbf16>
    tpu.vector_store %arg12[%c0_130, %c128_131], %192 {strides = array<i32>} : memref<512x288xbf16, #tpu.memory_space<vmem>>, vector<256x32xbf16>,
    %c25_132 = arith.constant 25 : index
    %c0_133 = arith.constant 0 : index
    %194 = vector.load %arg11[%c25_132, %c0_133] : memref<304x32xf32, #tpu.memory_space<vmem>>, vector<256x32xf32>
    %cst_134 = arith.constant 0.000000e+00 : f32
    %195 = vector.shape_cast %20 : vector<256x1xi1> to vector<256x1xi1>
    %196 = vector.broadcast %195 : vector<256x1xi1> to vector<256x32xi1>
    %197 = vector.broadcast %cst_134 : f32 to vector<256x32xf32>
    %198 = arith.select %196, %194, %197 : vector<256x32xi1>, vector<256x32xf32>
    %199 = arith.truncf %198 : vector<256x32xf32> to vector<256x32xbf16>
    %c0_135 = arith.constant 0 : index
    %c160_136 = arith.constant 160 : index
    %200 = vector.load %arg12[%c0_135, %c160_136] : memref<512x288xbf16, #tpu.memory_space<vmem>>, vector<256x32xbf16>
    tpu.vector_store %arg12[%c0_135, %c160_136], %199 {strides = array<i32>} : memref<512x288xbf16, #tpu.memory_space<vmem>>, vector<256x32xbf16>,
    %c39_137 = arith.constant 39 : index
    %c0_138 = arith.constant 0 : index
    %201 = vector.load %arg11[%c39_137, %c0_138] : memref<304x32xf32, #tpu.memory_space<vmem>>, vector<256x32xf32>
    %cst_139 = arith.constant 0.000000e+00 : f32
    %202 = vector.shape_cast %18 : vector<256x1xi1> to vector<256x1xi1>
    %203 = vector.broadcast %202 : vector<256x1xi1> to vector<256x32xi1>
    %204 = vector.broadcast %cst_139 : f32 to vector<256x32xf32>
    %205 = arith.select %203, %201, %204 : vector<256x32xi1>, vector<256x32xf32>
    %206 = arith.truncf %205 : vector<256x32xf32> to vector<256x32xbf16>
    %c0_140 = arith.constant 0 : index
    %c192_141 = arith.constant 192 : index
    %207 = vector.load %arg12[%c0_140, %c192_141] : memref<512x288xbf16, #tpu.memory_space<vmem>>, vector<256x32xbf16>
    tpu.vector_store %arg12[%c0_140, %c192_141], %206 {strides = array<i32>} : memref<512x288xbf16, #tpu.memory_space<vmem>>, vector<256x32xbf16>,
    %c40_142 = arith.constant 40 : index
    %c0_143 = arith.constant 0 : index
    %208 = vector.load %arg11[%c40_142, %c0_143] : memref<304x32xf32, #tpu.memory_space<vmem>>, vector<256x32xf32>
    %209 = arith.truncf %208 : vector<256x32xf32> to vector<256x32xbf16>
    %c0_144 = arith.constant 0 : index
    %c224_145 = arith.constant 224 : index
    %210 = vector.load %arg12[%c0_144, %c224_145] : memref<512x288xbf16, #tpu.memory_space<vmem>>, vector<256x32xbf16>
    tpu.vector_store %arg12[%c0_144, %c224_145], %209 {strides = array<i32>} : memref<512x288xbf16, #tpu.memory_space<vmem>>, vector<256x32xbf16>,
    %c41_146 = arith.constant 41 : index
    %c0_147 = arith.constant 0 : index
    %211 = vector.load %arg11[%c41_146, %c0_147] : memref<304x32xf32, #tpu.memory_space<vmem>>, vector<256x32xf32>
    %cst_148 = arith.constant 0.000000e+00 : f32
    %212 = vector.shape_cast %20 : vector<256x1xi1> to vector<256x1xi1>
    %213 = vector.broadcast %212 : vector<256x1xi1> to vector<256x32xi1>
    %214 = vector.broadcast %cst_148 : f32 to vector<256x32xf32>
    %215 = arith.select %213, %211, %214 : vector<256x32xi1>, vector<256x32xf32>
    %216 = arith.truncf %215 : vector<256x32xf32> to vector<256x32xbf16>
    %c0_149 = arith.constant 0 : index
    %c256_150 = arith.constant 256 : index
    %217 = vector.load %arg12[%c0_149, %c256_150] : memref<512x288xbf16, #tpu.memory_space<vmem>>, vector<256x32xbf16>
    tpu.vector_store %arg12[%c0_149, %c256_150], %216 {strides = array<i32>} : memref<512x288xbf16, #tpu.memory_space<vmem>>, vector<256x32xbf16>,
    %c256_151 = arith.constant 256 : index
    %c0_152 = arith.constant 0 : index
    %218 = vector.load %arg10[%c256_151, %c0_152] : memref<512x32xf32, #tpu.memory_space<vmem>>, vector<256x32xf32>
    %c24_153 = arith.constant 24 : index
    %c0_154 = arith.constant 0 : index
    %219 = vector.load %arg11[%c24_153, %c0_154] : memref<304x32xf32, #tpu.memory_space<vmem>>, vector<256x32xf32>
    tpu.vector_store %arg11[%c24_153, %c0_154], %218 {strides = array<i32>} : memref<304x32xf32, #tpu.memory_space<vmem>>, vector<256x32xf32>,
    %c7_155 = arith.constant 7 : index
    %c0_156 = arith.constant 0 : index
    %220 = vector.load %arg11[%c7_155, %c0_156] : memref<304x32xf32, #tpu.memory_space<vmem>>, vector<256x32xf32>
    %cst_157 = arith.constant 0.000000e+00 : f32
    %221 = vector.shape_cast %18 : vector<256x1xi1> to vector<256x1xi1>
    %222 = vector.broadcast %221 : vector<256x1xi1> to vector<256x32xi1>
    %223 = vector.broadcast %cst_157 : f32 to vector<256x32xf32>
    %224 = arith.select %222, %220, %223 : vector<256x32xi1>, vector<256x32xf32>
    %225 = arith.truncf %224 : vector<256x32xf32> to vector<256x32xbf16>
    %c256_158 = arith.constant 256 : index
    %c0_159 = arith.constant 0 : index
    %226 = vector.load %arg12[%c256_158, %c0_159] : memref<512x288xbf16, #tpu.memory_space<vmem>>, vector<256x32xbf16>
    tpu.vector_store %arg12[%c256_158, %c0_159], %225 {strides = array<i32>} : memref<512x288xbf16, #tpu.memory_space<vmem>>, vector<256x32xbf16>,
    %c8_160 = arith.constant 8 : index
    %c0_161 = arith.constant 0 : index
    %227 = vector.load %arg11[%c8_160, %c0_161] : memref<304x32xf32, #tpu.memory_space<vmem>>, vector<256x32xf32>
    %228 = arith.truncf %227 : vector<256x32xf32> to vector<256x32xbf16>
    %c256_162 = arith.constant 256 : index
    %c32_163 = arith.constant 32 : index
    %229 = vector.load %arg12[%c256_162, %c32_163] : memref<512x288xbf16, #tpu.memory_space<vmem>>, vector<256x32xbf16>
    tpu.vector_store %arg12[%c256_162, %c32_163], %228 {strides = array<i32>} : memref<512x288xbf16, #tpu.memory_space<vmem>>, vector<256x32xbf16>,
    %c9_164 = arith.constant 9 : index
    %c0_165 = arith.constant 0 : index
    %230 = vector.load %arg11[%c9_164, %c0_165] : memref<304x32xf32, #tpu.memory_space<vmem>>, vector<256x32xf32>
    %cst_166 = arith.constant 0.000000e+00 : f32
    %231 = vector.shape_cast %20 : vector<256x1xi1> to vector<256x1xi1>
    %232 = vector.broadcast %231 : vector<256x1xi1> to vector<256x32xi1>
    %233 = vector.broadcast %cst_166 : f32 to vector<256x32xf32>
    %234 = arith.select %232, %230, %233 : vector<256x32xi1>, vector<256x32xf32>
    %235 = arith.truncf %234 : vector<256x32xf32> to vector<256x32xbf16>
    %c256_167 = arith.constant 256 : index
    %c64_168 = arith.constant 64 : index
    %236 = vector.load %arg12[%c256_167, %c64_168] : memref<512x288xbf16, #tpu.memory_space<vmem>>, vector<256x32xbf16>
    tpu.vector_store %arg12[%c256_167, %c64_168], %235 {strides = array<i32>} : memref<512x288xbf16, #tpu.memory_space<vmem>>, vector<256x32xbf16>,
    %c23_169 = arith.constant 23 : index
    %c0_170 = arith.constant 0 : index
    %237 = vector.load %arg11[%c23_169, %c0_170] : memref<304x32xf32, #tpu.memory_space<vmem>>, vector<256x32xf32>
    %cst_171 = arith.constant 0.000000e+00 : f32
    %238 = vector.shape_cast %18 : vector<256x1xi1> to vector<256x1xi1>
    %239 = vector.broadcast %238 : vector<256x1xi1> to vector<256x32xi1>
    %240 = vector.broadcast %cst_171 : f32 to vector<256x32xf32>
    %241 = arith.select %239, %237, %240 : vector<256x32xi1>, vector<256x32xf32>
    %242 = arith.truncf %241 : vector<256x32xf32> to vector<256x32xbf16>
    %c256_172 = arith.constant 256 : index
    %c96_173 = arith.constant 96 : index
    %243 = vector.load %arg12[%c256_172, %c96_173] : memref<512x288xbf16, #tpu.memory_space<vmem>>, vector<256x32xbf16>
    tpu.vector_store %arg12[%c256_172, %c96_173], %242 {strides = array<i32>} : memref<512x288xbf16, #tpu.memory_space<vmem>>, vector<256x32xbf16>,
    %c24_174 = arith.constant 24 : index
    %c0_175 = arith.constant 0 : index
    %244 = vector.load %arg11[%c24_174, %c0_175] : memref<304x32xf32, #tpu.memory_space<vmem>>, vector<256x32xf32>
    %245 = arith.truncf %244 : vector<256x32xf32> to vector<256x32xbf16>
    %c256_176 = arith.constant 256 : index
    %c128_177 = arith.constant 128 : index
    %246 = vector.load %arg12[%c256_176, %c128_177] : memref<512x288xbf16, #tpu.memory_space<vmem>>, vector<256x32xbf16>
    tpu.vector_store %arg12[%c256_176, %c128_177], %245 {strides = array<i32>} : memref<512x288xbf16, #tpu.memory_space<vmem>>, vector<256x32xbf16>,
    %c25_178 = arith.constant 25 : index
    %c0_179 = arith.constant 0 : index
    %247 = vector.load %arg11[%c25_178, %c0_179] : memref<304x32xf32, #tpu.memory_space<vmem>>, vector<256x32xf32>
    %cst_180 = arith.constant 0.000000e+00 : f32
    %248 = vector.shape_cast %20 : vector<256x1xi1> to vector<256x1xi1>
    %249 = vector.broadcast %248 : vector<256x1xi1> to vector<256x32xi1>
    %250 = vector.broadcast %cst_180 : f32 to vector<256x32xf32>
    %251 = arith.select %249, %247, %250 : vector<256x32xi1>, vector<256x32xf32>
    %252 = arith.truncf %251 : vector<256x32xf32> to vector<256x32xbf16>
    %c256_181 = arith.constant 256 : index
    %c160_182 = arith.constant 160 : index
    %253 = vector.load %arg12[%c256_181, %c160_182] : memref<512x288xbf16, #tpu.memory_space<vmem>>, vector<256x32xbf16>
    tpu.vector_store %arg12[%c256_181, %c160_182], %252 {strides = array<i32>} : memref<512x288xbf16, #tpu.memory_space<vmem>>, vector<256x32xbf16>,
    %c39_183 = arith.constant 39 : index
    %c0_184 = arith.constant 0 : index
    %254 = vector.load %arg11[%c39_183, %c0_184] : memref<304x32xf32, #tpu.memory_space<vmem>>, vector<256x32xf32>
    %cst_185 = arith.constant 0.000000e+00 : f32
    %255 = vector.shape_cast %18 : vector<256x1xi1> to vector<256x1xi1>
    %256 = vector.broadcast %255 : vector<256x1xi1> to vector<256x32xi1>
    %257 = vector.broadcast %cst_185 : f32 to vector<256x32xf32>
    %258 = arith.select %256, %254, %257 : vector<256x32xi1>, vector<256x32xf32>
    %259 = arith.truncf %258 : vector<256x32xf32> to vector<256x32xbf16>
    %c256_186 = arith.constant 256 : index
    %c192_187 = arith.constant 192 : index
    %260 = vector.load %arg12[%c256_186, %c192_187] : memref<512x288xbf16, #tpu.memory_space<vmem>>, vector<256x32xbf16>
    tpu.vector_store %arg12[%c256_186, %c192_187], %259 {strides = array<i32>} : memref<512x288xbf16, #tpu.memory_space<vmem>>, vector<256x32xbf16>,
    %c40_188 = arith.constant 40 : index
    %c0_189 = arith.constant 0 : index
    %261 = vector.load %arg11[%c40_188, %c0_189] : memref<304x32xf32, #tpu.memory_space<vmem>>, vector<256x32xf32>
    %262 = arith.truncf %261 : vector<256x32xf32> to vector<256x32xbf16>
    %c256_190 = arith.constant 256 : index
    %c224_191 = arith.constant 224 : index
    %263 = vector.load %arg12[%c256_190, %c224_191] : memref<512x288xbf16, #tpu.memory_space<vmem>>, vector<256x32xbf16>
    tpu.vector_store %arg12[%c256_190, %c224_191], %262 {strides = array<i32>} : memref<512x288xbf16, #tpu.memory_space<vmem>>, vector<256x32xbf16>,
    %c41_192 = arith.constant 41 : index
    %c0_193 = arith.constant 0 : index
    %264 = vector.load %arg11[%c41_192, %c0_193] : memref<304x32xf32, #tpu.memory_space<vmem>>, vector<256x32xf32>
    %cst_194 = arith.constant 0.000000e+00 : f32
    %265 = vector.shape_cast %20 : vector<256x1xi1> to vector<256x1xi1>
    %266 = vector.broadcast %265 : vector<256x1xi1> to vector<256x32xi1>
    %267 = vector.broadcast %cst_194 : f32 to vector<256x32xf32>
    %268 = arith.select %266, %264, %267 : vector<256x32xi1>, vector<256x32xf32>
    %269 = arith.truncf %268 : vector<256x32xf32> to vector<256x32xbf16>
    %c256_195 = arith.constant 256 : index
    %c256_196 = arith.constant 256 : index
    %270 = vector.load %arg12[%c256_195, %c256_196] : memref<512x288xbf16, #tpu.memory_space<vmem>>, vector<256x32xbf16>
    tpu.vector_store %arg12[%c256_195, %c256_196], %269 {strides = array<i32>} : memref<512x288xbf16, #tpu.memory_space<vmem>>, vector<256x32xbf16>,
    %c0_197 = arith.constant 0 : index
    %c0_198 = arith.constant 0 : index
    %271 = vector.load %arg12[%c0_197, %c0_198] : memref<512x288xbf16, #tpu.memory_space<vmem>>, vector<512x288xbf16>
    %c0_199 = arith.constant 0 : index
    %c0_200 = arith.constant 0 : index
    %272 = vector.load %arg5[%c0_199, %c0_200] : memref<288x32xbf16, #tpu.memory_space<vmem>>, vector<288x32xbf16>
    %cst_201 = arith.constant dense<0.000000e+00> : vector<512x32xf32>
    %273 = tpu.matmul %271, %272, %cst_201 {dimension_numbers = #tpu.dot_dimension_numbers<[1], [0], [0], [1], [0, 0, 1, 1], [], []>} : vector<512x288xbf16>, vector<288x32xbf16>, vector<512x32xf32> -> vector<512x32xf32>
    %c0_202 = arith.constant 0 : index
    %c0_203 = arith.constant 0 : index
    %274 = vector.load %arg6[%c0_202, %c0_203] : memref<1x32xf32, #tpu.memory_space<vmem>>, vector<1x32xf32>
    %275 = vector.broadcast %274 : vector<1x32xf32> to vector<512x32xf32>
    %276 = arith.addf %273, %275 : vector<512x32xf32>
    %c0_204 = arith.constant 0 : index
    %c0_205 = arith.constant 0 : index
    %277 = vector.load %arg9[%c0_204, %c0_205] : memref<512x32xf32, #tpu.memory_space<vmem>>, vector<512x32xf32>
    tpu.vector_store %arg9[%c0_204, %c0_205], %276 {strides = array<i32>} : memref<512x32xf32, #tpu.memory_space<vmem>>, vector<512x32xf32>,
    %c0_206 = arith.constant 0 : index
    %c0_207 = arith.constant 0 : index
    %278 = vector.load %arg9[%c0_206, %c0_207] : memref<512x32xf32, #tpu.memory_space<vmem>>, vector<512x32xf32>
    %cst_208 = arith.constant dense<0.000000e+00> : vector<32xf32>
    %279 = vector.multi_reduction <add>, %278, %cst_208 [0] : vector<512x32xf32> to vector<32xf32>
    %280 = vector.shape_cast %279 : vector<32xf32> to vector<1x32xf32>
    %cst_209 = arith.constant 0.001953125 : f32
    %281 = vector.broadcast %cst_209 : f32 to vector<1x32xf32>
    %282 = arith.mulf %280, %281 : vector<1x32xf32>
    %283 = arith.mulf %278, %278 : vector<512x32xf32>
    %cst_210 = arith.constant dense<0.000000e+00> : vector<32xf32>
    %284 = vector.multi_reduction <add>, %283, %cst_210 [0] : vector<512x32xf32> to vector<32xf32>
    %285 = vector.shape_cast %284 : vector<32xf32> to vector<1x32xf32>
    %cst_211 = arith.constant 0.001953125 : f32
    %286 = vector.broadcast %cst_211 : f32 to vector<1x32xf32>
    %287 = arith.mulf %285, %286 : vector<1x32xf32>
    %288 = arith.mulf %282, %282 : vector<1x32xf32>
    %289 = arith.subf %287, %288 : vector<1x32xf32>
    %cst_212 = arith.constant 9.99999974E-6 : f32
    %290 = vector.broadcast %cst_212 : f32 to vector<1x32xf32>
    %291 = arith.addf %289, %290 : vector<1x32xf32>
    %292 = math.rsqrt %291 : vector<1x32xf32>
    %c0_213 = arith.constant 0 : index
    %c0_214 = arith.constant 0 : index
    %293 = vector.load %arg7[%c0_213, %c0_214] : memref<1x32xf32, #tpu.memory_space<vmem>>, vector<1x32xf32>
    %294 = arith.mulf %292, %293 : vector<1x32xf32>
    %295 = vector.broadcast %282 : vector<1x32xf32> to vector<512x32xf32>
    %296 = arith.subf %278, %295 : vector<512x32xf32>
    %297 = vector.broadcast %294 : vector<1x32xf32> to vector<512x32xf32>
    %298 = arith.mulf %296, %297 : vector<512x32xf32>
    %c0_215 = arith.constant 0 : index
    %c0_216 = arith.constant 0 : index
    %299 = vector.load %arg8[%c0_215, %c0_216] : memref<1x32xf32, #tpu.memory_space<vmem>>, vector<1x32xf32>
    %300 = vector.broadcast %299 : vector<1x32xf32> to vector<512x32xf32>
    %301 = arith.addf %298, %300 : vector<512x32xf32>
    %c0_217 = arith.constant 0 : index
    %c0_218 = arith.constant 0 : index
    %302 = vector.load %arg0[%c0_217, %c0_218] : memref<512x32xf32, #tpu.memory_space<vmem>>, vector<512x32xf32>
    %303 = arith.addf %301, %302 : vector<512x32xf32>
    %cst_219 = arith.constant 0.000000e+00 : f32
    %304 = vector.broadcast %cst_219 : f32 to vector<512x32xf32>
    %305 = arith.maximumf %303, %304 : vector<512x32xf32>
    %c0_220 = arith.constant 0 : index
    %c0_221 = arith.constant 0 : index
    %306 = vector.load %arg9[%c0_220, %c0_221] : memref<512x32xf32, #tpu.memory_space<vmem>>, vector<512x32xf32>
    tpu.vector_store %arg9[%c0_220, %c0_221], %305 {strides = array<i32>} : memref<512x32xf32, #tpu.memory_space<vmem>>, vector<512x32xf32>,
    return
  }
}

</mosaic_0001>

<llo_original>
// kernel: tpu_custom_call.1
$region0: #{tpu_custom_call.1}
  #allocation0 [shape = 'u32[]', space=smem, size = 0x4, offset = 0x4, fixed_abs, tag = 'smem constant byte address 0x4 - core index']
  #allocation1 [shape = 'u32[144,128]{1,0:T(1,128)}', space=vmem, size = 0x12000, scoped, tag = 'internal scratch']
  #allocation2 [shape = 'f32[512,32]{1,0:T(8,128)}', space=vmem, size = 0x40000, scoped, tag = 'scratch operand']
  #allocation3 [shape = 'f32[304,32]{1,0:T(8,128)}', space=vmem, size = 0x26000, scoped, tag = 'scratch operand']
  #allocation4 [shape = 'bf16[512,288]{1,0:T(16,128)(2,1)}', space=vmem, size = 0x60000, scoped, tag = 'scratch operand']
  %s0 = inlined_call_operand.vmem [shape: f32[512,32], index: 0, kind: input, shape index: {}]
  %s1 = inlined_call_operand.vmem [shape: bf16[288,32], index: 1, kind: input, shape index: {}]
  %s2 = inlined_call_operand.vmem [shape: f32[1,32], index: 2, kind: input, shape index: {}]
  %s3 = inlined_call_operand.vmem [shape: f32[1,32], index: 3, kind: input, shape index: {}]
  %s4 = inlined_call_operand.vmem [shape: f32[1,32], index: 4, kind: input, shape index: {}]
  %s5 = inlined_call_operand.vmem [shape: bf16[288,32], index: 5, kind: input, shape index: {}]
  %s6 = inlined_call_operand.vmem [shape: f32[1,32], index: 6, kind: input, shape index: {}]
  %s7 = inlined_call_operand.vmem [shape: f32[1,32], index: 7, kind: input, shape index: {}]
  %s8 = inlined_call_operand.vmem [shape: f32[1,32], index: 8, kind: input, shape index: {}]
  %s9 = inlined_call_operand.vmem [shape: f32[512,32], index: 9, kind: output, shape index: {}]
  %s10 = sld [smem:[#allocation0]]
  $region46: #{tpu_custom_call.1} parent=0
    _
  %s12 = ssub.s32 1, %s10
  %s13 = scalar_select 0, %s12, %s10
  // Predicated region
  $region2: #{tpu_custom_call.1} parent=0 // pred_check
    _
  $region3: #{tpu_custom_call.1} parent=0 // pred_check_branch
    %15 = sbr.rel (0) target = $region5
  $region4: #{tpu_custom_call.1} parent=0 // pred_region
    _
  $region5: #{tpu_custom_call.1} parent=0 // pred_fallthru
    _
  // Predicated region
  $region6: #{tpu_custom_call.1} parent=0 // pred_check
    _
  $region7: #{tpu_custom_call.1} parent=0 // pred_check_branch
    %17 = sbr.rel (0) target = $region9
  $region8: #{tpu_custom_call.1} parent=0 // pred_region
    _
  $region9: #{tpu_custom_call.1} parent=0 // pred_fallthru
    _
  // Predicated region
  $region10: #{tpu_custom_call.1} parent=0 // pred_check
    _
  $region11: #{tpu_custom_call.1} parent=0 // pred_check_branch
    %19 = sbr.rel (0) target = $region13
  $region12: #{tpu_custom_call.1} parent=0 // pred_region
    _
  $region13: #{tpu_custom_call.1} parent=0 // pred_fallthru
    _
  // Predicated region
  $region14: #{tpu_custom_call.1} parent=0 // pred_check
    _
  $region15: #{tpu_custom_call.1} parent=0 // pred_check_branch
    %21 = sbr.rel (0) target = $region17
  $region16: #{tpu_custom_call.1} parent=0 // pred_region
    _
  $region17: #{tpu_custom_call.1} parent=0 // pred_fallthru
    _
  // Predicated region
  $region18: #{tpu_custom_call.1} parent=0 // pred_check
    _
  $region19: #{tpu_custom_call.1} parent=0 // pred_check_branch
    %23 = sbr.rel (0) target = $region21
  $region20: #{tpu_custom_call.1} parent=0 // pred_region
    _
  $region21: #{tpu_custom_call.1} parent=0 // pred_fallthru
    _
  // Predicated region
  $region22: #{tpu_custom_call.1} parent=0 // pred_check
    _
  $region23: #{tpu_custom_call.1} parent=0 // pred_check_branch
    %25 = sbr.rel (0) target = $region25
  $region24: #{tpu_custom_call.1} parent=0 // pred_region
    _
  $region25: #{tpu_custom_call.1} parent=0 // pred_fallthru
    _
  // Predicated region
  $region26: #{tpu_custom_call.1} parent=0 // pred_check
    _
  $region27: #{tpu_custom_call.1} parent=0 // pred_check_branch
    %27 = sbr.rel (0) target = $region29
  $region28: #{tpu_custom_call.1} parent=0 // pred_region
    _
  $region29: #{tpu_custom_call.1} parent=0 // pred_fallthru
    _
  // Predicated region
  $region30: #{tpu_custom_call.1} parent=0 // pred_check
    _
  $region31: #{tpu_custom_call.1} parent=0 // pred_check_branch
    %29 = sbr.rel (0) target = $region33
  $region32: #{tpu_custom_call.1} parent=0 // pred_region
    _
  $region33: #{tpu_custom_call.1} parent=0 // pred_fallthru
    _
  // Predicated region
  $region34: #{tpu_custom_call.1} parent=0 // pred_check
    _
  $region35: #{tpu_custom_call.1} parent=0 // pred_check_branch
    %31 = sbr.rel (0) target = $region37
  $region36: #{tpu_custom_call.1} parent=0 // pred_region
    _
  $region37: #{tpu_custom_call.1} parent=0 // pred_fallthru
    _
  %v33 = vlaneseq
  %v34 = vshrl.u32 %v33, 7
  %v35 = vadd.s32 %v34, 8
  %v36 = vadd.s32 %v34, 16
  %v37 = vadd.s32 %v34, 24
  %v38 = vadd.s32 %v34, 32
  %v39 = vadd.s32 %v34, 40
  %v40 = vadd.s32 %v34, 48
  %v41 = vadd.s32 %v34, 56
  %v42 = vadd.s32 %v34, 64
  %v43 = vadd.s32 %v34, 72
  %v44 = vadd.s32 %v34, 80
  %v45 = vadd.s32 %v34, 88
  %v46 = vadd.s32 %v34, 96
  %v47 = vadd.s32 %v34, 104
  %v48 = vadd.s32 %v34, 112
  %v49 = vadd.s32 %v34, 120
  %v50 = vadd.s32 %v34, 128
  %v51 = vadd.s32 %v34, 136
  %v52 = vadd.s32 %v34, 144
  %v53 = vadd.s32 %v34, 152
  %v54 = vadd.s32 %v34, 160
  %v55 = vadd.s32 %v34, 168
  %v56 = vadd.s32 %v34, 176
  %v57 = vadd.s32 %v34, 184
  %v58 = vadd.s32 %v34, 192
  %v59 = vadd.s32 %v34, 200
  %v60 = vadd.s32 %v34, 208
  %v61 = vadd.s32 %v34, 216
  %v62 = vadd.s32 %v34, 224
  %v63 = vadd.s32 %v34, 232
  %v64 = vadd.s32 %v34, 240
  %v65 = vadd.s32 %v34, 248
  %vm66 = vcmp.lt.s32.totalorder %v34, 0
  %v67 = vsub.s32 0, %v34
  %v68 = vsel %vm66, %v67, %v34
  %v69 = vshrl.u32 %v68, 4
  %v70 = vand.u32 %v68, 15
  %v71 = vsub.s32 0, %v70
  %v72 = vsel %vm66, %v71, %v70
  %vm73 = vcmp.lt.s32.totalorder %v35, 0
  %v74 = vsub.s32 0, %v35
  %v75 = vsel %vm73, %v74, %v35
  %v76 = vshrl.u32 %v75, 4
  %v77 = vand.u32 %v75, 15
  %v78 = vsub.s32 0, %v77
  %v79 = vsel %vm73, %v78, %v77
  %vm80 = vcmp.lt.s32.totalorder %v36, 0
  %v81 = vsub.s32 0, %v36
  %v82 = vsel %vm80, %v81, %v36
  %v83 = vshrl.u32 %v82, 4
  %v84 = vand.u32 %v82, 15
  %v85 = vsub.s32 0, %v84
  %v86 = vsel %vm80, %v85, %v84
  %vm87 = vcmp.lt.s32.totalorder %v37, 0
  %v88 = vsub.s32 0, %v37
  %v89 = vsel %vm87, %v88, %v37
  %v90 = vshrl.u32 %v89, 4
  %v91 = vand.u32 %v89, 15
  %v92 = vsub.s32 0, %v91
  %v93 = vsel %vm87, %v92, %v91
  %vm94 = vcmp.lt.s32.totalorder %v38, 0
  %v95 = vsub.s32 0, %v38
  %v96 = vsel %vm94, %v95, %v38
  %v97 = vshrl.u32 %v96, 4
  %v98 = vand.u32 %v96, 15
  %v99 = vsub.s32 0, %v98
  %v100 = vsel %vm94, %v99, %v98
  %vm101 = vcmp.lt.s32.totalorder %v39, 0
  %v102 = vsub.s32 0, %v39
  %v103 = vsel %vm101, %v102, %v39
  %v104 = vshrl.u32 %v103, 4
  %v105 = vand.u32 %v103, 15
  %v106 = vsub.s32 0, %v105
  %v107 = vsel %vm101, %v106, %v105
  %vm108 = vcmp.lt.s32.totalorder %v40, 0
  %v109 = vsub.s32 0, %v40
  %v110 = vsel %vm108, %v109, %v40
  %v111 = vshrl.u32 %v110, 4
  %v112 = vand.u32 %v110, 15
  %v113 = vsub.s32 0, %v112
  %v114 = vsel %vm108, %v113, %v112
  %vm115 = vcmp.lt.s32.totalorder %v41, 0
  %v116 = vsub.s32 0, %v41
  %v117 = vsel %vm115, %v116, %v41
  %v118 = vshrl.u32 %v117, 4
  %v119 = vand.u32 %v117, 15
  %v120 = vsub.s32 0, %v119
  %v121 = vsel %vm115, %v120, %v119
  %vm122 = vcmp.lt.s32.totalorder %v42, 0
  %v123 = vsub.s32 0, %v42
  %v124 = vsel %vm122, %v123, %v42
  %v125 = vshrl.u32 %v124, 4
  %v126 = vand.u32 %v124, 15
  %v127 = vsub.s32 0, %v126
  %v128 = vsel %vm122, %v127, %v126
  %vm129 = vcmp.lt.s32.totalorder %v43, 0
  %v130 = vsub.s32 0, %v43
  %v131 = vsel %vm129, %v130, %v43
  %v132 = vshrl.u32 %v131, 4
  %v133 = vand.u32 %v131, 15
  %v134 = vsub.s32 0, %v133
  %v135 = vsel %vm129, %v134, %v133
  %vm136 = vcmp.lt.s32.totalorder %v44, 0
  %v137 = vsub.s32 0, %v44
  %v138 = vsel %vm136, %v137, %v44
  %v139 = vshrl.u32 %v138, 4
  %v140 = vand.u32 %v138, 15
  %v141 = vsub.s32 0, %v140
  %v142 = vsel %vm136, %v141, %v140
  %vm143 = vcmp.lt.s32.totalorder %v45, 0
  %v144 = vsub.s32 0, %v45
  %v145 = vsel %vm143, %v144, %v45
  %v146 = vshrl.u32 %v145, 4
  %v147 = vand.u32 %v145, 15
  %v148 = vsub.s32 0, %v147
  %v149 = vsel %vm143, %v148, %v147
  %vm150 = vcmp.lt.s32.totalorder %v46, 0
  %v151 = vsub.s32 0, %v46
  %v152 = vsel %vm150, %v151, %v46
  %v153 = vshrl.u32 %v152, 4
  %v154 = vand.u32 %v152, 15
  %v155 = vsub.s32 0, %v154
  %v156 = vsel %vm150, %v155, %v154
  %vm157 = vcmp.lt.s32.totalorder %v47, 0
  %v158 = vsub.s32 0, %v47
  %v159 = vsel %vm157, %v158, %v47
  %v160 = vshrl.u32 %v159, 4
  %v161 = vand.u32 %v159, 15
  %v162 = vsub.s32 0, %v161
  %v163 = vsel %vm157, %v162, %v161
  %vm164 = vcmp.lt.s32.totalorder %v48, 0
  %v165 = vsub.s32 0, %v48
  %v166 = vsel %vm164, %v165, %v48
  %v167 = vshrl.u32 %v166, 4
  %v168 = vand.u32 %v166, 15
  %v169 = vsub.s32 0, %v168
  %v170 = vsel %vm164, %v169, %v168
  %vm171 = vcmp.lt.s32.totalorder %v49, 0
  %v172 = vsub.s32 0, %v49
  %v173 = vsel %vm171, %v172, %v49
  %v174 = vshrl.u32 %v173, 4
  %v175 = vand.u32 %v173, 15
  %v176 = vsub.s32 0, %v175
  %v177 = vsel %vm171, %v176, %v175
  %vm178 = vcmp.lt.s32.totalorder %v50, 0
  %v179 = vsub.s32 0, %v50
  %v180 = vsel %vm178, %v179, %v50
  %v181 = vshrl.u32 %v180, 4
  %v182 = vand.u32 %v180, 15
  %v183 = vsub.s32 0, %v182
  %v184 = vsel %vm178, %v183, %v182
  %vm185 = vcmp.lt.s32.totalorder %v51, 0
  %v186 = vsub.s32 0, %v51
  %v187 = vsel %vm185, %v186, %v51
  %v188 = vshrl.u32 %v187, 4
  %v189 = vand.u32 %v187, 15
  %v190 = vsub.s32 0, %v189
  %v191 = vsel %vm185, %v190, %v189
  %vm192 = vcmp.lt.s32.totalorder %v52, 0
  %v193 = vsub.s32 0, %v52
  %v194 = vsel %vm192, %v193, %v52
  %v195 = vshrl.u32 %v194, 4
  %v196 = vand.u32 %v194, 15
  %v197 = vsub.s32 0, %v196
  %v198 = vsel %vm192, %v197, %v196
  %vm199 = vcmp.lt.s32.totalorder %v53, 0
  %v200 = vsub.s32 0, %v53
  %v201 = vsel %vm199, %v200, %v53
  %v202 = vshrl.u32 %v201, 4
  %v203 = vand.u32 %v201, 15
  %v204 = vsub.s32 0, %v203
  %v205 = vsel %vm199, %v204, %v203
  %vm206 = vcmp.lt.s32.totalorder %v54, 0
  %v207 = vsub.s32 0, %v54
  %v208 = vsel %vm206, %v207, %v54
  %v209 = vshrl.u32 %v208, 4
  %v210 = vand.u32 %v208, 15
  %v211 = vsub.s32 0, %v210
  %v212 = vsel %vm206, %v211, %v210
  %vm213 = vcmp.lt.s32.totalorder %v55, 0
  %v214 = vsub.s32 0, %v55
  %v215 = vsel %vm213, %v214, %v55
  %v216 = vshrl.u32 %v215, 4
  %v217 = vand.u32 %v215, 15
  %v218 = vsub.s32 0, %v217
  %v219 = vsel %vm213, %v218, %v217
  %vm220 = vcmp.lt.s32.totalorder %v56, 0
  %v221 = vsub.s32 0, %v56
  %v222 = vsel %vm220, %v221, %v56
  %v223 = vshrl.u32 %v222, 4
  %v224 = vand.u32 %v222, 15
  %v225 = vsub.s32 0, %v224
  %v226 = vsel %vm220, %v225, %v224
  %vm227 = vcmp.lt.s32.totalorder %v57, 0
  %v228 = vsub.s32 0, %v57
  %v229 = vsel %vm227, %v228, %v57
  %v230 = vshrl.u32 %v229, 4
  %v231 = vand.u32 %v229, 15
  %v232 = vsub.s32 0, %v231
  %v233 = vsel %vm227, %v232, %v231
  %vm234 = vcmp.lt.s32.totalorder %v58, 0
  %v235 = vsub.s32 0, %v58
  %v236 = vsel %vm234, %v235, %v58
  %v237 = vshrl.u32 %v236, 4
  %v238 = vand.u32 %v236, 15
  %v239 = vsub.s32 0, %v238
  %v240 = vsel %vm234, %v239, %v238
  %vm241 = vcmp.lt.s32.totalorder %v59, 0
  %v242 = vsub.s32 0, %v59
  %v243 = vsel %vm241, %v242, %v59
  %v244 = vshrl.u32 %v243, 4
  %v245 = vand.u32 %v243, 15
  %v246 = vsub.s32 0, %v245
  %v247 = vsel %vm241, %v246, %v245
  %vm248 = vcmp.lt.s32.totalorder %v60, 0
  %v249 = vsub.s32 0, %v60
  %v250 = vsel %vm248, %v249, %v60
  %v251 = vshrl.u32 %v250, 4
  %v252 = vand.u32 %v250, 15
  %v253 = vsub.s32 0, %v252
  %v254 = vsel %vm248, %v253, %v252
  %vm255 = vcmp.lt.s32.totalorder %v61, 0
  %v256 = vsub.s32 0, %v61
  %v257 = vsel %vm255, %v256, %v61
  %v258 = vshrl.u32 %v257, 4
  %v259 = vand.u32 %v257, 15
  %v260 = vsub.s32 0, %v259
  %v261 = vsel %vm255, %v260, %v259
  %vm262 = vcmp.lt.s32.totalorder %v62, 0
  %v263 = vsub.s32 0, %v62
  %v264 = vsel %vm262, %v263, %v62
  %v265 = vshrl.u32 %v264, 4
  %v266 = vand.u32 %v264, 15
  %v267 = vsub.s32 0, %v266
  %v268 = vsel %vm262, %v267, %v266
  %vm269 = vcmp.lt.s32.totalorder %v63, 0
  %v270 = vsub.s32 0, %v63
  %v271 = vsel %vm269, %v270, %v63
  %v272 = vshrl.u32 %v271, 4
  %v273 = vand.u32 %v271, 15
  %v274 = vsub.s32 0, %v273
  %v275 = vsel %vm269, %v274, %v273
  %vm276 = vcmp.lt.s32.totalorder %v64, 0
  %v277 = vsub.s32 0, %v64
  %v278 = vsel %vm276, %v277, %v64
  %v279 = vshrl.u32 %v278, 4
  %v280 = vand.u32 %v278, 15
  %v281 = vsub.s32 0, %v280
  %v282 = vsel %vm276, %v281, %v280
  %vm283 = vcmp.lt.s32.totalorder %v65, 0
  %v284 = vsub.s32 0, %v65
  %v285 = vsel %vm283, %v284, %v65
  %v286 = vshrl.u32 %v285, 4
  %v287 = vand.u32 %v285, 15
  %v288 = vsub.s32 0, %v287
  %v289 = vsel %vm283, %v288, %v287
  %vm290 = vcmp.ne.s32.totalorder %v72, 0
  %vm291 = vcmp.ne.s32.totalorder %v79, 0
  %vm292 = vcmp.ne.s32.totalorder %v86, 0
  %vm293 = vcmp.ne.s32.totalorder %v93, 0
  %vm294 = vcmp.ne.s32.totalorder %v100, 0
  %vm295 = vcmp.ne.s32.totalorder %v107, 0
  %vm296 = vcmp.ne.s32.totalorder %v114, 0
  %vm297 = vcmp.ne.s32.totalorder %v121, 0
  %vm298 = vcmp.ne.s32.totalorder %v128, 0
  %vm299 = vcmp.ne.s32.totalorder %v135, 0
  %vm300 = vcmp.ne.s32.totalorder %v142, 0
  %vm301 = vcmp.ne.s32.totalorder %v149, 0
  %vm302 = vcmp.ne.s32.totalorder %v156, 0
  %vm303 = vcmp.ne.s32.totalorder %v163, 0
  %vm304 = vcmp.ne.s32.totalorder %v170, 0
  %vm305 = vcmp.ne.s32.totalorder %v177, 0
  %vm306 = vcmp.ne.s32.totalorder %v184, 0
  %vm307 = vcmp.ne.s32.totalorder %v191, 0
  %vm308 = vcmp.ne.s32.totalorder %v198, 0
  %vm309 = vcmp.ne.s32.totalorder %v205, 0
  %vm310 = vcmp.ne.s32.totalorder %v212, 0
  %vm311 = vcmp.ne.s32.totalorder %v219, 0
  %vm312 = vcmp.ne.s32.totalorder %v226, 0
  %vm313 = vcmp.ne.s32.totalorder %v233, 0
  %vm314 = vcmp.ne.s32.totalorder %v240, 0
  %vm315 = vcmp.ne.s32.totalorder %v247, 0
  %vm316 = vcmp.ne.s32.totalorder %v254, 0
  %vm317 = vcmp.ne.s32.totalorder %v261, 0
  %vm318 = vcmp.ne.s32.totalorder %v268, 0
  %vm319 = vcmp.ne.s32.totalorder %v275, 0
  %vm320 = vcmp.ne.s32.totalorder %v282, 0
  %vm321 = vcmp.ne.s32.totalorder %v289, 0
  %vm322 = vcmp.lt.s32.totalorder %v72, 0
  %vm323 = vcmp.lt.s32.totalorder %v79, 0
  %vm324 = vcmp.lt.s32.totalorder %v86, 0
  %vm325 = vcmp.lt.s32.totalorder %v93, 0
  %vm326 = vcmp.lt.s32.totalorder %v100, 0
  %vm327 = vcmp.lt.s32.totalorder %v107, 0
  %vm328 = vcmp.lt.s32.totalorder %v114, 0
  %vm329 = vcmp.lt.s32.totalorder %v121, 0
  %vm330 = vcmp.lt.s32.totalorder %v128, 0
  %vm331 = vcmp.lt.s32.totalorder %v135, 0
  %vm332 = vcmp.lt.s32.totalorder %v142, 0
  %vm333 = vcmp.lt.s32.totalorder %v149, 0
  %vm334 = vcmp.lt.s32.totalorder %v156, 0
  %vm335 = vcmp.lt.s32.totalorder %v163, 0
  %vm336 = vcmp.lt.s32.totalorder %v170, 0
  %vm337 = vcmp.lt.s32.totalorder %v177, 0
  %vm338 = vcmp.lt.s32.totalorder %v184, 0
  %vm339 = vcmp.lt.s32.totalorder %v191, 0
  %vm340 = vcmp.lt.s32.totalorder %v198, 0
  %vm341 = vcmp.lt.s32.totalorder %v205, 0
  %vm342 = vcmp.lt.s32.totalorder %v212, 0
  %vm343 = vcmp.lt.s32.totalorder %v219, 0
  %vm344 = vcmp.lt.s32.totalorder %v226, 0
  %vm345 = vcmp.lt.s32.totalorder %v233, 0
  %vm346 = vcmp.lt.s32.totalorder %v240, 0
  %vm347 = vcmp.lt.s32.totalorder %v247, 0
  %vm348 = vcmp.lt.s32.totalorder %v254, 0
  %vm349 = vcmp.lt.s32.totalorder %v261, 0
  %vm350 = vcmp.lt.s32.totalorder %v268, 0
  %vm351 = vcmp.lt.s32.totalorder %v275, 0
  %vm352 = vcmp.lt.s32.totalorder %v282, 0
  %vm353 = vcmp.lt.s32.totalorder %v289, 0
  %vm354 = vmand %vm322, %vm290
  %vm355 = vmand %vm323, %vm291
  %vm356 = vmand %vm324, %vm292
  %vm357 = vmand %vm325, %vm293
  %vm358 = vmand %vm326, %vm294
  %vm359 = vmand %vm327, %vm295
  %vm360 = vmand %vm328, %vm296
  %vm361 = vmand %vm329, %vm297
  %vm362 = vmand %vm330, %vm298
  %vm363 = vmand %vm331, %vm299
  %vm364 = vmand %vm332, %vm300
  %vm365 = vmand %vm333, %vm301
  %vm366 = vmand %vm334, %vm302
  %vm367 = vmand %vm335, %vm303
  %vm368 = vmand %vm336, %vm304
  %vm369 = vmand %vm337, %vm305
  %vm370 = vmand %vm338, %vm306
  %vm371 = vmand %vm339, %vm307
  %vm372 = vmand %vm340, %vm308
  %vm373 = vmand %vm341, %vm309
  %vm374 = vmand %vm342, %vm310
  %vm375 = vmand %vm343, %vm311
  %vm376 = vmand %vm344, %vm312
  %vm377 = vmand %vm345, %vm313
  %vm378 = vmand %vm346, %vm314
  %vm379 = vmand %vm347, %vm315
  %vm380 = vmand %vm348, %vm316
  %vm381 = vmand %vm349, %vm317
  %vm382 = vmand %vm350, %vm318
  %vm383 = vmand %vm351, %vm319
  %vm384 = vmand %vm352, %vm320
  %vm385 = vmand %vm353, %vm321
  %v386 = vadd.s32 %v72, 16
  %v387 = vadd.s32 %v79, 16
  %v388 = vadd.s32 %v86, 16
  %v389 = vadd.s32 %v93, 16
  %v390 = vadd.s32 %v100, 16
  %v391 = vadd.s32 %v107, 16
  %v392 = vadd.s32 %v114, 16
  %v393 = vadd.s32 %v121, 16
  %v394 = vadd.s32 %v128, 16
  %v395 = vadd.s32 %v135, 16
  %v396 = vadd.s32 %v142, 16
  %v397 = vadd.s32 %v149, 16
  %v398 = vadd.s32 %v156, 16
  %v399 = vadd.s32 %v163, 16
  %v400 = vadd.s32 %v170, 16
  %v401 = vadd.s32 %v177, 16
  %v402 = vadd.s32 %v184, 16
  %v403 = vadd.s32 %v191, 16
  %v404 = vadd.s32 %v198, 16
  %v405 = vadd.s32 %v205, 16
  %v406 = vadd.s32 %v212, 16
  %v407 = vadd.s32 %v219, 16
  %v408 = vadd.s32 %v226, 16
  %v409 = vadd.s32 %v233, 16
  %v410 = vadd.s32 %v240, 16
  %v411 = vadd.s32 %v247, 16
  %v412 = vadd.s32 %v254, 16
  %v413 = vadd.s32 %v261, 16
  %v414 = vadd.s32 %v268, 16
  %v415 = vadd.s32 %v275, 16
  %v416 = vadd.s32 %v282, 16
  %v417 = vadd.s32 %v289, 16
  %v418 = vsel %vm354, %v386, %v72
  %v419 = vsel %vm355, %v387, %v79
  %v420 = vsel %vm356, %v388, %v86
  %v421 = vsel %vm357, %v389, %v93
  %v422 = vsel %vm358, %v390, %v100
  %v423 = vsel %vm359, %v391, %v107
  %v424 = vsel %vm360, %v392, %v114
  %v425 = vsel %vm361, %v393, %v121
  %v426 = vsel %vm362, %v394, %v128
  %v427 = vsel %vm363, %v395, %v135
  %v428 = vsel %vm364, %v396, %v142
  %v429 = vsel %vm365, %v397, %v149
  %v430 = vsel %vm366, %v398, %v156
  %v431 = vsel %vm367, %v399, %v163
  %v432 = vsel %vm368, %v400, %v170
  %v433 = vsel %vm369, %v401, %v177
  %v434 = vsel %vm370, %v402, %v184
  %v435 = vsel %vm371, %v403, %v191
  %v436 = vsel %vm372, %v404, %v198
  %v437 = vsel %vm373, %v405, %v205
  %v438 = vsel %vm374, %v406, %v212
  %v439 = vsel %vm375, %v407, %v219
  %v440 = vsel %vm376, %v408, %v226
  %v441 = vsel %vm377, %v409, %v233
  %v442 = vsel %vm378, %v410, %v240
  %v443 = vsel %vm379, %v411, %v247
  %v444 = vsel %vm380, %v412, %v254
  %v445 = vsel %vm381, %v413, %v261
  %v446 = vsel %vm382, %v414, %v268
  %v447 = vsel %vm383, %v415, %v275
  %v448 = vsel %vm384, %v416, %v282
  %v449 = vsel %vm385, %v417, %v289
  %vm450 = vcmp.ge.s32.totalorder %v418, 1
  %vm451 = vcmp.ge.s32.totalorder %v419, 1
  %vm452 = vcmp.ge.s32.totalorder %v420, 1
  %vm453 = vcmp.ge.s32.totalorder %v421, 1
  %vm454 = vcmp.ge.s32.totalorder %v422, 1
  %vm455 = vcmp.ge.s32.totalorder %v423, 1
  %vm456 = vcmp.ge.s32.totalorder %v424, 1
  %vm457 = vcmp.ge.s32.totalorder %v425, 1
  %vm458 = vcmp.ge.s32.totalorder %v426, 1
  %vm459 = vcmp.ge.s32.totalorder %v427, 1
  %vm460 = vcmp.ge.s32.totalorder %v428, 1
  %vm461 = vcmp.ge.s32.totalorder %v429, 1
  %vm462 = vcmp.ge.s32.totalorder %v430, 1
  %vm463 = vcmp.ge.s32.totalorder %v431, 1
  %vm464 = vcmp.ge.s32.totalorder %v432, 1
  %vm465 = vcmp.ge.s32.totalorder %v433, 1
  %vm466 = vcmp.ge.s32.totalorder %v434, 1
  %vm467 = vcmp.ge.s32.totalorder %v435, 1
  %vm468 = vcmp.ge.s32.totalorder %v436, 1
  %vm469 = vcmp.ge.s32.totalorder %v437, 1
  %vm470 = vcmp.ge.s32.totalorder %v438, 1
  %vm471 = vcmp.ge.s32.totalorder %v439, 1
  %vm472 = vcmp.ge.s32.totalorder %v440, 1
  %vm473 = vcmp.ge.s32.totalorder %v441, 1
  %vm474 = vcmp.ge.s32.totalorder %v442, 1
  %vm475 = vcmp.ge.s32.totalorder %v443, 1
  %vm476 = vcmp.ge.s32.totalorder %v444, 1
  %vm477 = vcmp.ge.s32.totalorder %v445, 1
  %vm478 = vcmp.ge.s32.totalorder %v446, 1
  %vm479 = vcmp.ge.s32.totalorder %v447, 1
  %vm480 = vcmp.ge.s32.totalorder %v448, 1
  %vm481 = vcmp.ge.s32.totalorder %v449, 1
  %vm482 = vcmp.lt.s32.totalorder %v418, 15
  %vm483 = vcmp.lt.s32.totalorder %v419, 15
  %vm484 = vcmp.lt.s32.totalorder %v420, 15
  %vm485 = vcmp.lt.s32.totalorder %v421, 15
  %vm486 = vcmp.lt.s32.totalorder %v422, 15
  %vm487 = vcmp.lt.s32.totalorder %v423, 15
  %vm488 = vcmp.lt.s32.totalorder %v424, 15
  %vm489 = vcmp.lt.s32.totalorder %v425, 15
  %vm490 = vcmp.lt.s32.totalorder %v426, 15
  %vm491 = vcmp.lt.s32.totalorder %v427, 15
  %vm492 = vcmp.lt.s32.totalorder %v428, 15
  %vm493 = vcmp.lt.s32.totalorder %v429, 15
  %vm494 = vcmp.lt.s32.totalorder %v430, 15
  %vm495 = vcmp.lt.s32.totalorder %v431, 15
  %vm496 = vcmp.lt.s32.totalorder %v432, 15
  %vm497 = vcmp.lt.s32.totalorder %v433, 15
  %vm498 = vcmp.lt.s32.totalorder %v434, 15
  %vm499 = vcmp.lt.s32.totalorder %v435, 15
  %vm500 = vcmp.lt.s32.totalorder %v436, 15
  %vm501 = vcmp.lt.s32.totalorder %v437, 15
  %vm502 = vcmp.lt.s32.totalorder %v438, 15
  %vm503 = vcmp.lt.s32.totalorder %v439, 15
  %vm504 = vcmp.lt.s32.totalorder %v440, 15
  %vm505 = vcmp.lt.s32.totalorder %v441, 15
  %vm506 = vcmp.lt.s32.totalorder %v442, 15
  %vm507 = vcmp.lt.s32.totalorder %v443, 15
  %vm508 = vcmp.lt.s32.totalorder %v444, 15
  %vm509 = vcmp.lt.s32.totalorder %v445, 15
  %vm510 = vcmp.lt.s32.totalorder %v446, 15
  %vm511 = vcmp.lt.s32.totalorder %v447, 15
  %vm512 = vcmp.lt.s32.totalorder %v448, 15
  %vm513 = vcmp.lt.s32.totalorder %v449, 15
  %vm514 = vcmask 261120
  %515 = vst.msk [vmem:[#allocation3] sm:$0xff] %vm514, 0.0
  %516 = vst.msk [vmem:[#allocation3 + $0x8] sm:$0xff] %vm514, 0.0
  %517 = vst.msk [vmem:[#allocation3 + $0x10] sm:$0xff] %vm514, 0.0
  %518 = vst.msk [vmem:[#allocation3 + $0x118] sm:$0xff] %vm514, 0.0
  %519 = vst.msk [vmem:[#allocation3 + $0x120] sm:$0xff] %vm514, 0.0
  %520 = vst.msk [vmem:[#allocation3 + $0x128] sm:$0xff] %vm514, 0.0
  %v521 = vld [vmem:[%s0] sm:$0xff]
  %v522 = vld [vmem:[%s0 + $0x8] sm:$0xff]
  %v523 = vld [vmem:[%s0 + $0x10] sm:$0xff]
  %v524 = vld [vmem:[%s0 + $0x18] sm:$0xff]
  %v525 = vld [vmem:[%s0 + $0x20] sm:$0xff]
  %v526 = vld [vmem:[%s0 + $0x28] sm:$0xff]
  %v527 = vld [vmem:[%s0 + $0x30] sm:$0xff]
  %v528 = vld [vmem:[%s0 + $0x38] sm:$0xff]
  %v529 = vld [vmem:[%s0 + $0x40] sm:$0xff]
  %v530 = vld [vmem:[%s0 + $0x48] sm:$0xff]
  %v531 = vld [vmem:[%s0 + $0x50] sm:$0xff]
  %v532 = vld [vmem:[%s0 + $0x58] sm:$0xff]
  %v533 = vld [vmem:[%s0 + $0x60] sm:$0xff]
  %v534 = vld [vmem:[%s0 + $0x68] sm:$0xff]
  %v535 = vld [vmem:[%s0 + $0x70] sm:$0xff]
  %v536 = vld [vmem:[%s0 + $0x78] sm:$0xff]
  %v537 = vld [vmem:[%s0 + $0x80] sm:$0xff]
  %v538 = vld [vmem:[%s0 + $0x88] sm:$0xff]
  %v539 = vld [vmem:[%s0 + $0x90] sm:$0xff]
  %v540 = vld [vmem:[%s0 + $0x98] sm:$0xff]
  %v541 = vld [vmem:[%s0 + $0xa0] sm:$0xff]
  %v542 = vld [vmem:[%s0 + $0xa8] sm:$0xff]
  %v543 = vld [vmem:[%s0 + $0xb0] sm:$0xff]
  %v544 = vld [vmem:[%s0 + $0xb8] sm:$0xff]
  %v545 = vld [vmem:[%s0 + $0xc0] sm:$0xff]
  %v546 = vld [vmem:[%s0 + $0xc8] sm:$0xff]
  %v547 = vld [vmem:[%s0 + $0xd0] sm:$0xff]
  %v548 = vld [vmem:[%s0 + $0xd8] sm:$0xff]
  %v549 = vld [vmem:[%s0 + $0xe0] sm:$0xff]
  %v550 = vld [vmem:[%s0 + $0xe8] sm:$0xff]
  %v551 = vld [vmem:[%s0 + $0xf0] sm:$0xff]
  %v552 = vld [vmem:[%s0 + $0xf8] sm:$0xff]
  %553 = vst.msk [vmem:[#allocation3 + $0x18] sm:$0xff] %vm514, %v521
  %554 = vst.msk [vmem:[#allocation3 + $0x20] sm:$0xff] %vm514, %v522
  %555 = vst.msk [vmem:[#allocation3 + $0x28] sm:$0xff] %vm514, %v523
  %556 = vst.msk [vmem:[#allocation3 + $0x30] sm:$0xff] %vm514, %v524
  %557 = vst.msk [vmem:[#allocation3 + $0x38] sm:$0xff] %vm514, %v525
  %558 = vst.msk [vmem:[#allocation3 + $0x40] sm:$0xff] %vm514, %v526
  %559 = vst.msk [vmem:[#allocation3 + $0x48] sm:$0xff] %vm514, %v527
  %560 = vst.msk [vmem:[#allocation3 + $0x50] sm:$0xff] %vm514, %v528
  %561 = vst.msk [vmem:[#allocation3 + $0x58] sm:$0xff] %vm514, %v529
  %562 = vst.msk [vmem:[#allocation3 + $0x60] sm:$0xff] %vm514, %v530
  %563 = vst.msk [vmem:[#allocation3 + $0x68] sm:$0xff] %vm514, %v531
  %564 = vst.msk [vmem:[#allocation3 + $0x70] sm:$0xff] %vm514, %v532
  %565 = vst.msk [vmem:[#allocation3 + $0x78] sm:$0xff] %vm514, %v533
  %566 = vst.msk [vmem:[#allocation3 + $0x80] sm:$0xff] %vm514, %v534
  %567 = vst.msk [vmem:[#allocation3 + $0x88] sm:$0xff] %vm514, %v535
  %568 = vst.msk [vmem:[#allocation3 + $0x90] sm:$0xff] %vm514, %v536
  %569 = vst.msk [vmem:[#allocation3 + $0x98] sm:$0xff] %vm514, %v537
  %570 = vst.msk [vmem:[#allocation3 + $0xa0] sm:$0xff] %vm514, %v538
  %571 = vst.msk [vmem:[#allocation3 + $0xa8] sm:$0xff] %vm514, %v539
  %572 = vst.msk [vmem:[#allocation3 + $0xb0] sm:$0xff] %vm514, %v540
  %573 = vst.msk [vmem:[#allocation3 + $0xb8] sm:$0xff] %vm514, %v541
  %574 = vst.msk [vmem:[#allocation3 + $0xc0] sm:$0xff] %vm514, %v542
  %575 = vst.msk [vmem:[#allocation3 + $0xc8] sm:$0xff] %vm514, %v543
  %576 = vst.msk [vmem:[#allocation3 + $0xd0] sm:$0xff] %vm514, %v544
  %577 = vst.msk [vmem:[#allocation3 + $0xd8] sm:$0xff] %vm514, %v545
  %578 = vst.msk [vmem:[#allocation3 + $0xe0] sm:$0xff] %vm514, %v546
  %579 = vst.msk [vmem:[#allocation3 + $0xe8] sm:$0xff] %vm514, %v547
  %580 = vst.msk [vmem:[#allocation3 + $0xf0] sm:$0xff] %vm514, %v548
  %581 = vst.msk [vmem:[#allocation3 + $0xf8] sm:$0xff] %vm514, %v549
  %582 = vst.msk [vmem:[#allocation3 + $0x100] sm:$0xff] %vm514, %v550
  %583 = vst.msk [vmem:[#allocation3 + $0x108] sm:$0xff] %vm514, %v551
  %584 = vst.msk [vmem:[#allocation3 + $0x110] sm:$0xff] %vm514, %v552
  %v585 = vld [vmem:[#allocation3 + $0x7] sm:$0xff]
  %v586 = vld [vmem:[#allocation3 + $0xf] sm:$0xff]
  %v587 = vld [vmem:[#allocation3 + $0x17] sm:$0xff]
  %v588 = vld [vmem:[#allocation3 + $0x1f] sm:$0xff]
  %v589 = vld [vmem:[#allocation3 + $0x27] sm:$0xff]
  %v590 = vld [vmem:[#allocation3 + $0x2f] sm:$0xff]
  %v591 = vld [vmem:[#allocation3 + $0x37] sm:$0xff]
  %v592 = vld [vmem:[#allocation3 + $0x3f] sm:$0xff]
  %v593 = vld [vmem:[#allocation3 + $0x47] sm:$0xff]
  %v594 = vld [vmem:[#allocation3 + $0x4f] sm:$0xff]
  %v595 = vld [vmem:[#allocation3 + $0x57] sm:$0xff]
  %v596 = vld [vmem:[#allocation3 + $0x5f] sm:$0xff]
  %v597 = vld [vmem:[#allocation3 + $0x67] sm:$0xff]
  %v598 = vld [vmem:[#allocation3 + $0x6f] sm:$0xff]
  %v599 = vld [vmem:[#allocation3 + $0x77] sm:$0xff]
  %v600 = vld [vmem:[#allocation3 + $0x7f] sm:$0xff]
  %v601 = vld [vmem:[#allocation3 + $0x87] sm:$0xff]
  %v602 = vld [vmem:[#allocation3 + $0x8f] sm:$0xff]
  %v603 = vld [vmem:[#allocation3 + $0x97] sm:$0xff]
  %v604 = vld [vmem:[#allocation3 + $0x9f] sm:$0xff]
  %v605 = vld [vmem:[#allocation3 + $0xa7] sm:$0xff]
  %v606 = vld [vmem:[#allocation3 + $0xaf] sm:$0xff]
  %v607 = vld [vmem:[#allocation3 + $0xb7] sm:$0xff]
  %v608 = vld [vmem:[#allocation3 + $0xbf] sm:$0xff]
  %v609 = vld [vmem:[#allocation3 + $0xc7] sm:$0xff]
  %v610 = vld [vmem:[#allocation3 + $0xcf] sm:$0xff]
  %v611 = vld [vmem:[#allocation3 + $0xd7] sm:$0xff]
  %v612 = vld [vmem:[#allocation3 + $0xdf] sm:$0xff]
  %v613 = vld [vmem:[#allocation3 + $0xe7] sm:$0xff]
  %v614 = vld [vmem:[#allocation3 + $0xef] sm:$0xff]
  %v615 = vld [vmem:[#allocation3 + $0xf7] sm:$0xff]
  %v616 = vld [vmem:[#allocation3 + $0xff] sm:$0xff]
  %v617 = vsel %vm450, 1, 0
  %v618 = vsel %vm451, 1, 0
  %v619 = vsel %vm452, 1, 0
  %v620 = vsel %vm453, 1, 0
  %v621 = vsel %vm454, 1, 0
  %v622 = vsel %vm455, 1, 0
  %v623 = vsel %vm456, 1, 0
  %v624 = vsel %vm457, 1, 0
  %v625 = vsel %vm458, 1, 0
  %v626 = vsel %vm459, 1, 0
  %v627 = vsel %vm460, 1, 0
  %v628 = vsel %vm461, 1, 0
  %v629 = vsel %vm462, 1, 0
  %v630 = vsel %vm463, 1, 0
  %v631 = vsel %vm464, 1, 0
  %v632 = vsel %vm465, 1, 0
  %v633 = vsel %vm466, 1, 0
  %v634 = vsel %vm467, 1, 0
  %v635 = vsel %vm468, 1, 0
  %v636 = vsel %vm469, 1, 0
  %v637 = vsel %vm470, 1, 0
  %v638 = vsel %vm471, 1, 0
  %v639 = vsel %vm472, 1, 0
  %v640 = vsel %vm473, 1, 0
  %v641 = vsel %vm474, 1, 0
  %v642 = vsel %vm475, 1, 0
  %v643 = vsel %vm476, 1, 0
  %v644 = vsel %vm477, 1, 0
  %v645 = vsel %vm478, 1, 0
  %v646 = vsel %vm479, 1, 0
  %v647 = vsel %vm480, 1, 0
  %v648 = vsel %vm481, 1, 0
  %vm649 = vcmp.eq.s32.totalorder %v617, 1
  %vm650 = vcmp.eq.s32.totalorder %v618, 1
  %vm651 = vcmp.eq.s32.totalorder %v619, 1
  %vm652 = vcmp.eq.s32.totalorder %v620, 1
  %vm653 = vcmp.eq.s32.totalorder %v621, 1
  %vm654 = vcmp.eq.s32.totalorder %v622, 1
  %vm655 = vcmp.eq.s32.totalorder %v623, 1
  %vm656 = vcmp.eq.s32.totalorder %v624, 1
  %vm657 = vcmp.eq.s32.totalorder %v625, 1
  %vm658 = vcmp.eq.s32.totalorder %v626, 1
  %vm659 = vcmp.eq.s32.totalorder %v627, 1
  %vm660 = vcmp.eq.s32.totalorder %v628, 1
  %vm661 = vcmp.eq.s32.totalorder %v629, 1
  %vm662 = vcmp.eq.s32.totalorder %v630, 1
  %vm663 = vcmp.eq.s32.totalorder %v631, 1
  %vm664 = vcmp.eq.s32.totalorder %v632, 1
  %vm665 = vcmp.eq.s32.totalorder %v633, 1
  %vm666 = vcmp.eq.s32.totalorder %v634, 1
  %vm667 = vcmp.eq.s32.totalorder %v635, 1
  %vm668 = vcmp.eq.s32.totalorder %v636, 1
  %vm669 = vcmp.eq.s32.totalorder %v637, 1
  %vm670 = vcmp.eq.s32.totalorder %v638, 1
  %vm671 = vcmp.eq.s32.totalorder %v639, 1
  %vm672 = vcmp.eq.s32.totalorder %v640, 1
  %vm673 = vcmp.eq.s32.totalorder %v641, 1
  %vm674 = vcmp.eq.s32.totalorder %v642, 1
  %vm675 = vcmp.eq.s32.totalorder %v643, 1
  %vm676 = vcmp.eq.s32.totalorder %v644, 1
  %vm677 = vcmp.eq.s32.totalorder %v645, 1
  %vm678 = vcmp.eq.s32.totalorder %v646, 1
  %vm679 = vcmp.eq.s32.totalorder %v647, 1
  %vm680 = vcmp.eq.s32.totalorder %v648, 1
  %v681 = vsel %vm649, %v585, 0.0
  %v682 = vsel %vm650, %v586, 0.0
  %v683 = vsel %vm651, %v587, 0.0
  %v684 = vsel %vm652, %v588, 0.0
  %v685 = vsel %vm653, %v589, 0.0
  %v686 = vsel %vm654, %v590, 0.0
  %v687 = vsel %vm655, %v591, 0.0
  %v688 = vsel %vm656, %v592, 0.0
  %v689 = vsel %vm657, %v593, 0.0
  %v690 = vsel %vm658, %v594, 0.0
  %v691 = vsel %vm659, %v595, 0.0
  %v692 = vsel %vm660, %v596, 0.0
  %v693 = vsel %vm661, %v597, 0.0
  %v694 = vsel %vm662, %v598, 0.0
  %v695 = vsel %vm663, %v599, 0.0
  %v696 = vsel %vm664, %v600, 0.0
  %v697 = vsel %vm665, %v601, 0.0
  %v698 = vsel %vm666, %v602, 0.0
  %v699 = vsel %vm667, %v603, 0.0
  %v700 = vsel %vm668, %v604, 0.0
  %v701 = vsel %vm669, %v605, 0.0
  %v702 = vsel %vm670, %v606, 0.0
  %v703 = vsel %vm671, %v607, 0.0
  %v704 = vsel %vm672, %v608, 0.0
  %v705 = vsel %vm673, %v609, 0.0
  %v706 = vsel %vm674, %v610, 0.0
  %v707 = vsel %vm675, %v611, 0.0
  %v708 = vsel %vm676, %v612, 0.0
  %v709 = vsel %vm677, %v613, 0.0
  %v710 = vsel %vm678, %v614, 0.0
  %v711 = vsel %vm679, %v615, 0.0
  %v712 = vsel %vm680, %v616, 0.0
  %v713 = vpack.c.bf16 %v682, %v681
  %v714 = vpack.c.bf16 %v684, %v683
  %v715 = vpack.c.bf16 %v686, %v685
  %v716 = vpack.c.bf16 %v688, %v687
  %v717 = vpack.c.bf16 %v690, %v689
  %v718 = vpack.c.bf16 %v692, %v691
  %v719 = vpack.c.bf16 %v694, %v693
  %v720 = vpack.c.bf16 %v696, %v695
  %v721 = vpack.c.bf16 %v698, %v697
  %v722 = vpack.c.bf16 %v700, %v699
  %v723 = vpack.c.bf16 %v702, %v701
  %v724 = vpack.c.bf16 %v704, %v703
  %v725 = vpack.c.bf16 %v706, %v705
  %v726 = vpack.c.bf16 %v708, %v707
  %v727 = vpack.c.bf16 %v710, %v709
  %v728 = vpack.c.bf16 %v712, %v711
  %729 = vst.msk [vmem:[#allocation4] sm:$0xff] %vm514, %v713
  %730 = vst.msk [vmem:[#allocation4 + $0x18] sm:$0xff] %vm514, %v714
  %731 = vst.msk [vmem:[#allocation4 + $0x30] sm:$0xff] %vm514, %v715
  %732 = vst.msk [vmem:[#allocation4 + $0x48] sm:$0xff] %vm514, %v716
  %733 = vst.msk [vmem:[#allocation4 + $0x60] sm:$0xff] %vm514, %v717
  %734 = vst.msk [vmem:[#allocation4 + $0x78] sm:$0xff] %vm514, %v718
  %735 = vst.msk [vmem:[#allocation4 + $0x90] sm:$0xff] %vm514, %v719
  %736 = vst.msk [vmem:[#allocation4 + $0xa8] sm:$0xff] %vm514, %v720
  %737 = vst.msk [vmem:[#allocation4 + $0xc0] sm:$0xff] %vm514, %v721
  %738 = vst.msk [vmem:[#allocation4 + $0xd8] sm:$0xff] %vm514, %v722
  %739 = vst.msk [vmem:[#allocation4 + $0xf0] sm:$0xff] %vm514, %v723
  %740 = vst.msk [vmem:[#allocation4 + $0x108] sm:$0xff] %vm514, %v724
  %741 = vst.msk [vmem:[#allocation4 + $0x120] sm:$0xff] %vm514, %v725
  %742 = vst.msk [vmem:[#allocation4 + $0x138] sm:$0xff] %vm514, %v726
  %743 = vst.msk [vmem:[#allocation4 + $0x150] sm:$0xff] %vm514, %v727
  %744 = vst.msk [vmem:[#allocation4 + $0x168] sm:$0xff] %vm514, %v728
  %v745 = vld [vmem:[#allocation3 + $0x8] sm:$0xff]
  %v746 = vld [vmem:[#allocation3 + $0x10] sm:$0xff]
  %v747 = vld [vmem:[#allocation3 + $0x18] sm:$0xff]
  %v748 = vld [vmem:[#allocation3 + $0x20] sm:$0xff]
  %v749 = vld [vmem:[#allocation3 + $0x28] sm:$0xff]
  %v750 = vld [vmem:[#allocation3 + $0x30] sm:$0xff]
  %v751 = vld [vmem:[#allocation3 + $0x38] sm:$0xff]
  %v752 = vld [vmem:[#allocation3 + $0x40] sm:$0xff]
  %v753 = vld [vmem:[#allocation3 + $0x48] sm:$0xff]
  %v754 = vld [vmem:[#allocation3 + $0x50] sm:$0xff]
  %v755 = vld [vmem:[#allocation3 + $0x58] sm:$0xff]
  %v756 = vld [vmem:[#allocation3 + $0x60] sm:$0xff]
  %v757 = vld [vmem:[#allocation3 + $0x68] sm:$0xff]
  %v758 = vld [vmem:[#allocation3 + $0x70] sm:$0xff]
  %v759 = vld [vmem:[#allocation3 + $0x78] sm:$0xff]
  %v760 = vld [vmem:[#allocation3 + $0x80] sm:$0xff]
  %v761 = vld [vmem:[#allocation3 + $0x88] sm:$0xff]
  %v762 = vld [vmem:[#allocation3 + $0x90] sm:$0xff]
  %v763 = vld [vmem:[#allocation3 + $0x98] sm:$0xff]
  %v764 = vld [vmem:[#allocation3 + $0xa0] sm:$0xff]
  %v765 = vld [vmem:[#allocation3 + $0xa8] sm:$0xff]
  %v766 = vld [vmem:[#allocation3 + $0xb0] sm:$0xff]
  %v767 = vld [vmem:[#allocation3 + $0xb8] sm:$0xff]
  %v768 = vld [vmem:[#allocation3 + $0xc0] sm:$0xff]
  %v769 = vld [vmem:[#allocation3 + $0xc8] sm:$0xff]
  %v770 = vld [vmem:[#allocation3 + $0xd0] sm:$0xff]
  %v771 = vld [vmem:[#allocation3 + $0xd8] sm:$0xff]
  %v772 = vld [vmem:[#allocation3 + $0xe0] sm:$0xff]
  %v773 = vld [vmem:[#allocation3 + $0xe8] sm:$0xff]
  %v774 = vld [vmem:[#allocation3 + $0xf0] sm:$0xff]
  %v775 = vld [vmem:[#allocation3 + $0xf8] sm:$0xff]
  %v776 = vld [vmem:[#allocation3 + $0x100] sm:$0xff]
  %v777 = vpack.c.bf16 %v746, %v745
  %v778 = vpack.c.bf16 %v748, %v747
  %v779 = vpack.c.bf16 %v750, %v749
  %v780 = vpack.c.bf16 %v752, %v751
  %v781 = vpack.c.bf16 %v754, %v753
  %v782 = vpack.c.bf16 %v756, %v755
  %v783 = vpack.c.bf16 %v758, %v757
  %v784 = vpack.c.bf16 %v760, %v759
  %v785 = vpack.c.bf16 %v762, %v761
  %v786 = vpack.c.bf16 %v764, %v763
  %v787 = vpack.c.bf16 %v766, %v765
  %v788 = vpack.c.bf16 %v768, %v767
  %v789 = vpack.c.bf16 %v770, %v769
  %v790 = vpack.c.bf16 %v772, %v771
  %v791 = vpack.c.bf16 %v774, %v773
  %v792 = vpack.c.bf16 %v776, %v775
  %809 = vrot.lane.b32.xlu0 %v777, 32
  %v810 = vpop.permute.xlu0 %809
  %811 = vrot.lane.b32.xlu0 %v778, 32
  %v812 = vpop.permute.xlu0 %811
  %813 = vrot.lane.b32.xlu0 %v779, 32
  %v814 = vpop.permute.xlu0 %813
  %815 = vrot.lane.b32.xlu0 %v780, 32
  %v816 = vpop.permute.xlu0 %815
  %817 = vrot.lane.b32.xlu0 %v781, 32
  %v818 = vpop.permute.xlu0 %817
  %819 = vrot.lane.b32.xlu0 %v782, 32
  %v820 = vpop.permute.xlu0 %819
  %821 = vrot.lane.b32.xlu0 %v783, 32
  %v822 = vpop.permute.xlu0 %821
  %823 = vrot.lane.b32.xlu0 %v784, 32
  %v824 = vpop.permute.xlu0 %823
  %825 = vrot.lane.b32.xlu0 %v785, 32
  %v826 = vpop.permute.xlu0 %825
  %827 = vrot.lane.b32.xlu0 %v786, 32
  %v828 = vpop.permute.xlu0 %827
  %829 = vrot.lane.b32.xlu0 %v787, 32
  %v830 = vpop.permute.xlu0 %829
  %831 = vrot.lane.b32.xlu0 %v788, 32
  %v832 = vpop.permute.xlu0 %831
  %833 = vrot.lane.b32.xlu0 %v789, 32
  %v834 = vpop.permute.xlu0 %833
  %835 = vrot.lane.b32.xlu0 %v790, 32
  %v836 = vpop.permute.xlu0 %835
  %837 = vrot.lane.b32.xlu0 %v791, 32
  %v838 = vpop.permute.xlu0 %837
  %839 = vrot.lane.b32.xlu0 %v792, 32
  %v840 = vpop.permute.xlu0 %839
  %vm857 = vcmask 523520
  %858 = vst.msk [vmem:[#allocation4] sm:$0xff] %vm857, %v810
  %859 = vst.msk [vmem:[#allocation4 + $0x18] sm:$0xff] %vm857, %v812
  %860 = vst.msk [vmem:[#allocation4 + $0x30] sm:$0xff] %vm857, %v814
  %861 = vst.msk [vmem:[#allocation4 + $0x48] sm:$0xff] %vm857, %v816
  %862 = vst.msk [vmem:[#allocation4 + $0x60] sm:$0xff] %vm857, %v818
  %863 = vst.msk [vmem:[#allocation4 + $0x78] sm:$0xff] %vm857, %v820
  %864 = vst.msk [vmem:[#allocation4 + $0x90] sm:$0xff] %vm857, %v822
  %865 = vst.msk [vmem:[#allocation4 + $0xa8] sm:$0xff] %vm857, %v824
  %866 = vst.msk [vmem:[#allocation4 + $0xc0] sm:$0xff] %vm857, %v826
  %867 = vst.msk [vmem:[#allocation4 + $0xd8] sm:$0xff] %vm857, %v828
  %868 = vst.msk [vmem:[#allocation4 + $0xf0] sm:$0xff] %vm857, %v830
  %869 = vst.msk [vmem:[#allocation4 + $0x108] sm:$0xff] %vm857, %v832
  %870 = vst.msk [vmem:[#allocation4 + $0x120] sm:$0xff] %vm857, %v834
  %871 = vst.msk [vmem:[#allocation4 + $0x138] sm:$0xff] %vm857, %v836
  %872 = vst.msk [vmem:[#allocation4 + $0x150] sm:$0xff] %vm857, %v838
  %873 = vst.msk [vmem:[#allocation4 + $0x168] sm:$0xff] %vm857, %v840
  %v874 = vld [vmem:[#allocation3 + $0x9] sm:$0xff]
  %v875 = vld [vmem:[#allocation3 + $0x11] sm:$0xff]
  %v876 = vld [vmem:[#allocation3 + $0x19] sm:$0xff]
  %v877 = vld [vmem:[#allocation3 + $0x21] sm:$0xff]
  %v878 = vld [vmem:[#allocation3 + $0x29] sm:$0xff]
  %v879 = vld [vmem:[#allocation3 + $0x31] sm:$0xff]
  %v880 = vld [vmem:[#allocation3 + $0x39] sm:$0xff]
  %v881 = vld [vmem:[#allocation3 + $0x41] sm:$0xff]
  %v882 = vld [vmem:[#allocation3 + $0x49] sm:$0xff]
  %v883 = vld [vmem:[#allocation3 + $0x51] sm:$0xff]
  %v884 = vld [vmem:[#allocation3 + $0x59] sm:$0xff]
  %v885 = vld [vmem:[#allocation3 + $0x61] sm:$0xff]
  %v886 = vld [vmem:[#allocation3 + $0x69] sm:$0xff]
  %v887 = vld [vmem:[#allocation3 + $0x71] sm:$0xff]
  %v888 = vld [vmem:[#allocation3 + $0x79] sm:$0xff]
  %v889 = vld [vmem:[#allocation3 + $0x81] sm:$0xff]
  %v890 = vld [vmem:[#allocation3 + $0x89] sm:$0xff]
  %v891 = vld [vmem:[#allocation3 + $0x91] sm:$0xff]
  %v892 = vld [vmem:[#allocation3 + $0x99] sm:$0xff]
  %v893 = vld [vmem:[#allocation3 + $0xa1] sm:$0xff]
  %v894 = vld [vmem:[#allocation3 + $0xa9] sm:$0xff]
  %v895 = vld [vmem:[#allocation3 + $0xb1] sm:$0xff]
  %v896 = vld [vmem:[#allocation3 + $0xb9] sm:$0xff]
  %v897 = vld [vmem:[#allocation3 + $0xc1] sm:$0xff]
  %v898 = vld [vmem:[#allocation3 + $0xc9] sm:$0xff]
  %v899 = vld [vmem:[#allocation3 + $0xd1] sm:$0xff]
  %v900 = vld [vmem:[#allocation3 + $0xd9] sm:$0xff]
  %v901 = vld [vmem:[#allocation3 + $0xe1] sm:$0xff]
  %v902 = vld [vmem:[#allocation3 + $0xe9] sm:$0xff]
  %v903 = vld [vmem:[#allocation3 + $0xf1] sm:$0xff]
  %v904 = vld [vmem:[#allocation3 + $0xf9] sm:$0xff]
  %v905 = vld [vmem:[#allocation3 + $0x101] sm:$0xff]
  %v906 = vsel %vm482, 1, 0
  %v907 = vsel %vm483, 1, 0
  %v908 = vsel %vm484, 1, 0
  %v909 = vsel %vm485, 1, 0
  %v910 = vsel %vm486, 1, 0
  %v911 = vsel %vm487, 1, 0
  %v912 = vsel %vm488, 1, 0
  %v913 = vsel %vm489, 1, 0
  %v914 = vsel %vm490, 1, 0
  %v915 = vsel %vm491, 1, 0
  %v916 = vsel %vm492, 1, 0
  %v917 = vsel %vm493, 1, 0
  %v918 = vsel %vm494, 1, 0
  %v919 = vsel %vm495, 1, 0
  %v920 = vsel %vm496, 1, 0
  %v921 = vsel %vm497, 1, 0
  %v922 = vsel %vm498, 1, 0
  %v923 = vsel %vm499, 1, 0
  %v924 = vsel %vm500, 1, 0
  %v925 = vsel %vm501, 1, 0
  %v926 = vsel %vm502, 1, 0
  %v927 = vsel %vm503, 1, 0
  %v928 = vsel %vm504, 1, 0
  %v929 = vsel %vm505, 1, 0
  %v930 = vsel %vm506, 1, 0
  %v931 = vsel %vm507, 1, 0
  %v932 = vsel %vm508, 1, 0
  %v933 = vsel %vm509, 1, 0
  %v934 = vsel %vm510, 1, 0
  %v935 = vsel %vm511, 1, 0
  %v936 = vsel %vm512, 1, 0
  %v937 = vsel %vm513, 1, 0
  %vm938 = vcmp.eq.s32.totalorder %v906, 1
  %vm939 = vcmp.eq.s32.totalorder %v907, 1
  %vm940 = vcmp.eq.s32.totalorder %v908, 1
  %vm941 = vcmp.eq.s32.totalorder %v909, 1
  %vm942 = vcmp.eq.s32.totalorder %v910, 1
  %vm943 = vcmp.eq.s32.totalorder %v911, 1
  %vm944 = vcmp.eq.s32.totalorder %v912, 1
  %vm945 = vcmp.eq.s32.totalorder %v913, 1
  %vm946 = vcmp.eq.s32.totalorder %v914, 1
  %vm947 = vcmp.eq.s32.totalorder %v915, 1
  %vm948 = vcmp.eq.s32.totalorder %v916, 1
  %vm949 = vcmp.eq.s32.totalorder %v917, 1
  %vm950 = vcmp.eq.s32.totalorder %v918, 1
  %vm951 = vcmp.eq.s32.totalorder %v919, 1
  %vm952 = vcmp.eq.s32.totalorder %v920, 1
  %vm953 = vcmp.eq.s32.totalorder %v921, 1
  %vm954 = vcmp.eq.s32.totalorder %v922, 1
  %vm955 = vcmp.eq.s32.totalorder %v923, 1
  %vm956 = vcmp.eq.s32.totalorder %v924, 1
  %vm957 = vcmp.eq.s32.totalorder %v925, 1
  %vm958 = vcmp.eq.s32.totalorder %v926, 1
  %vm959 = vcmp.eq.s32.totalorder %v927, 1
  %vm960 = vcmp.eq.s32.totalorder %v928, 1
  %vm961 = vcmp.eq.s32.totalorder %v929, 1
  %vm962 = vcmp.eq.s32.totalorder %v930, 1
  %vm963 = vcmp.eq.s32.totalorder %v931, 1
  %vm964 = vcmp.eq.s32.totalorder %v932, 1
  %vm965 = vcmp.eq.s32.totalorder %v933, 1
  %vm966 = vcmp.eq.s32.totalorder %v934, 1
  %vm967 = vcmp.eq.s32.totalorder %v935, 1
  %vm968 = vcmp.eq.s32.totalorder %v936, 1
  %vm969 = vcmp.eq.s32.totalorder %v937, 1
  %v970 = vsel %vm938, %v874, 0.0
  %v971 = vsel %vm939, %v875, 0.0
  %v972 = vsel %vm940, %v876, 0.0
  %v973 = vsel %vm941, %v877, 0.0
  %v974 = vsel %vm942, %v878, 0.0
  %v975 = vsel %vm943, %v879, 0.0
  %v976 = vsel %vm944, %v880, 0.0
  %v977 = vsel %vm945, %v881, 0.0
  %v978 = vsel %vm946, %v882, 0.0
  %v979 = vsel %vm947, %v883, 0.0
  %v980 = vsel %vm948, %v884, 0.0
  %v981 = vsel %vm949, %v885, 0.0
  %v982 = vsel %vm950, %v886, 0.0
  %v983 = vsel %vm951, %v887, 0.0
  %v984 = vsel %vm952, %v888, 0.0
  %v985 = vsel %vm953, %v889, 0.0
  %v986 = vsel %vm954, %v890, 0.0
  %v987 = vsel %vm955, %v891, 0.0
  %v988 = vsel %vm956, %v892, 0.0
  %v989 = vsel %vm957, %v893, 0.0
  %v990 = vsel %vm958, %v894, 0.0
  %v991 = vsel %vm959, %v895, 0.0
  %v992 = vsel %vm960, %v896, 0.0
  %v993 = vsel %vm961, %v897, 0.0
  %v994 = vsel %vm962, %v898, 0.0
  %v995 = vsel %vm963, %v899, 0.0
  %v996 = vsel %vm964, %v900, 0.0
  %v997 = vsel %vm965, %v901, 0.0
  %v998 = vsel %vm966, %v902, 0.0
  %v999 = vsel %vm967, %v903, 0.0
  %v1000 = vsel %vm968, %v904, 0.0
  %v1001 = vsel %vm969, %v905, 0.0
  %v1002 = vpack.c.bf16 %v971, %v970
  %v1003 = vpack.c.bf16 %v973, %v972
  %v1004 = vpack.c.bf16 %v975, %v974
  %v1005 = vpack.c.bf16 %v977, %v976
  %v1006 = vpack.c.bf16 %v979, %v978
  %v1007 = vpack.c.bf16 %v981, %v980
  %v1008 = vpack.c.bf16 %v983, %v982
  %v1009 = vpack.c.bf16 %v985, %v984
  %v1010 = vpack.c.bf16 %v987, %v986
  %v1011 = vpack.c.bf16 %v989, %v988
  %v1012 = vpack.c.bf16 %v991, %v990
  %v1013 = vpack.c.bf16 %v993, %v992
  %v1014 = vpack.c.bf16 %v995, %v994
  %v1015 = vpack.c.bf16 %v997, %v996
  %v1016 = vpack.c.bf16 %v999, %v998
  %v1017 = vpack.c.bf16 %v1001, %v1000
  %1034 = vrot.lane.b32.xlu0 %v1002, 64
  %v1035 = vpop.permute.xlu0 %1034
  %1036 = vrot.lane.b32.xlu0 %v1003, 64
  %v1037 = vpop.permute.xlu0 %1036
  %1038 = vrot.lane.b32.xlu0 %v1004, 64
  %v1039 = vpop.permute.xlu0 %1038
  %1040 = vrot.lane.b32.xlu0 %v1005, 64
  %v1041 = vpop.permute.xlu0 %1040
  %1042 = vrot.lane.b32.xlu0 %v1006, 64
  %v1043 = vpop.permute.xlu0 %1042
  %1044 = vrot.lane.b32.xlu0 %v1007, 64
  %v1045 = vpop.permute.xlu0 %1044
  %1046 = vrot.lane.b32.xlu0 %v1008, 64
  %v1047 = vpop.permute.xlu0 %1046
  %1048 = vrot.lane.b32.xlu0 %v1009, 64
  %v1049 = vpop.permute.xlu0 %1048
  %1050 = vrot.lane.b32.xlu0 %v1010, 64
  %v1051 = vpop.permute.xlu0 %1050
  %1052 = vrot.lane.b32.xlu0 %v1011, 64
  %v1053 = vpop.permute.xlu0 %1052
  %1054 = vrot.lane.b32.xlu0 %v1012, 64
  %v1055 = vpop.permute.xlu0 %1054
  %1056 = vrot.lane.b32.xlu0 %v1013, 64
  %v1057 = vpop.permute.xlu0 %1056
  %1058 = vrot.lane.b32.xlu0 %v1014, 64
  %v1059 = vpop.permute.xlu0 %1058
  %1060 = vrot.lane.b32.xlu0 %v1015, 64
  %v1061 = vpop.permute.xlu0 %1060
  %1062 = vrot.lane.b32.xlu0 %v1016, 64
  %v1063 = vpop.permute.xlu0 %1062
  %1064 = vrot.lane.b32.xlu0 %v1017, 64
  %v1065 = vpop.permute.xlu0 %1064
  %vm1082 = vcmask 785920
  %1083 = vst.msk [vmem:[#allocation4] sm:$0xff] %vm1082, %v1035
  %1084 = vst.msk [vmem:[#allocation4 + $0x18] sm:$0xff] %vm1082, %v1037
  %1085 = vst.msk [vmem:[#allocation4 + $0x30] sm:$0xff] %vm1082, %v1039
  %1086 = vst.msk [vmem:[#allocation4 + $0x48] sm:$0xff] %vm1082, %v1041
  %1087 = vst.msk [vmem:[#allocation4 + $0x60] sm:$0xff] %vm1082, %v1043
  %1088 = vst.msk [vmem:[#allocation4 + $0x78] sm:$0xff] %vm1082, %v1045
  %1089 = vst.msk [vmem:[#allocation4 + $0x90] sm:$0xff] %vm1082, %v1047
  %1090 = vst.msk [vmem:[#allocation4 + $0xa8] sm:$0xff] %vm1082, %v1049
  %1091 = vst.msk [vmem:[#allocation4 + $0xc0] sm:$0xff] %vm1082, %v1051
  %1092 = vst.msk [vmem:[#allocation4 + $0xd8] sm:$0xff] %vm1082, %v1053
  %1093 = vst.msk [vmem:[#allocation4 + $0xf0] sm:$0xff] %vm1082, %v1055
  %1094 = vst.msk [vmem:[#allocation4 + $0x108] sm:$0xff] %vm1082, %v1057
  %1095 = vst.msk [vmem:[#allocation4 + $0x120] sm:$0xff] %vm1082, %v1059
  %1096 = vst.msk [vmem:[#allocation4 + $0x138] sm:$0xff] %vm1082, %v1061
  %1097 = vst.msk [vmem:[#allocation4 + $0x150] sm:$0xff] %vm1082, %v1063
  %1098 = vst.msk [vmem:[#allocation4 + $0x168] sm:$0xff] %vm1082, %v1065
  %v1099 = vld [vmem:[#allocation3 + $0x17] sm:$0xff]
  %v1100 = vld [vmem:[#allocation3 + $0x1f] sm:$0xff]
  %v1101 = vld [vmem:[#allocation3 + $0x27] sm:$0xff]
  %v1102 = vld [vmem:[#allocation3 + $0x2f] sm:$0xff]
  %v1103 = vld [vmem:[#allocation3 + $0x37] sm:$0xff]
  %v1104 = vld [vmem:[#allocation3 + $0x3f] sm:$0xff]
  %v1105 = vld [vmem:[#allocation3 + $0x47] sm:$0xff]
  %v1106 = vld [vmem:[#allocation3 + $0x4f] sm:$0xff]
  %v1107 = vld [vmem:[#allocation3 + $0x57] sm:$0xff]
  %v1108 = vld [vmem:[#allocation3 + $0x5f] sm:$0xff]
  %v1109 = vld [vmem:[#allocation3 + $0x67] sm:$0xff]
  %v1110 = vld [vmem:[#allocation3 + $0x6f] sm:$0xff]
  %v1111 = vld [vmem:[#allocation3 + $0x77] sm:$0xff]
  %v1112 = vld [vmem:[#allocation3 + $0x7f] sm:$0xff]
  %v1113 = vld [vmem:[#allocation3 + $0x87] sm:$0xff]
  %v1114 = vld [vmem:[#allocation3 + $0x8f] sm:$0xff]
  %v1115 = vld [vmem:[#allocation3 + $0x97] sm:$0xff]
  %v1116 = vld [vmem:[#allocation3 + $0x9f] sm:$0xff]
  %v1117 = vld [vmem:[#allocation3 + $0xa7] sm:$0xff]
  %v1118 = vld [vmem:[#allocation3 + $0xaf] sm:$0xff]
  %v1119 = vld [vmem:[#allocation3 + $0xb7] sm:$0xff]
  %v1120 = vld [vmem:[#allocation3 + $0xbf] sm:$0xff]
  %v1121 = vld [vmem:[#allocation3 + $0xc7] sm:$0xff]
  %v1122 = vld [vmem:[#allocation3 + $0xcf] sm:$0xff]
  %v1123 = vld [vmem:[#allocation3 + $0xd7] sm:$0xff]
  %v1124 = vld [vmem:[#allocation3 + $0xdf] sm:$0xff]
  %v1125 = vld [vmem:[#allocation3 + $0xe7] sm:$0xff]
  %v1126 = vld [vmem:[#allocation3 + $0xef] sm:$0xff]
  %v1127 = vld [vmem:[#allocation3 + $0xf7] sm:$0xff]
  %v1128 = vld [vmem:[#allocation3 + $0xff] sm:$0xff]
  %v1129 = vld [vmem:[#allocation3 + $0x107] sm:$0xff]
  %v1130 = vld [vmem:[#allocation3 + $0x10f] sm:$0xff]
  %v1131 = vsel %vm649, %v1099, 0.0
  %v1132 = vsel %vm650, %v1100, 0.0
  %v1133 = vsel %vm651, %v1101, 0.0
  %v1134 = vsel %vm652, %v1102, 0.0
  %v1135 = vsel %vm653, %v1103, 0.0
  %v1136 = vsel %vm654, %v1104, 0.0
  %v1137 = vsel %vm655, %v1105, 0.0
  %v1138 = vsel %vm656, %v1106, 0.0
  %v1139 = vsel %vm657, %v1107, 0.0
  %v1140 = vsel %vm658, %v1108, 0.0
  %v1141 = vsel %vm659, %v1109, 0.0
  %v1142 = vsel %vm660, %v1110, 0.0
  %v1143 = vsel %vm661, %v1111, 0.0
  %v1144 = vsel %vm662, %v1112, 0.0
  %v1145 = vsel %vm663, %v1113, 0.0
  %v1146 = vsel %vm664, %v1114, 0.0
  %v1147 = vsel %vm665, %v1115, 0.0
  %v1148 = vsel %vm666, %v1116, 0.0
  %v1149 = vsel %vm667, %v1117, 0.0
  %v1150 = vsel %vm668, %v1118, 0.0
  %v1151 = vsel %vm669, %v1119, 0.0
  %v1152 = vsel %vm670, %v1120, 0.0
  %v1153 = vsel %vm671, %v1121, 0.0
  %v1154 = vsel %vm672, %v1122, 0.0
  %v1155 = vsel %vm673, %v1123, 0.0
  %v1156 = vsel %vm674, %v1124, 0.0
  %v1157 = vsel %vm675, %v1125, 0.0
  %v1158 = vsel %vm676, %v1126, 0.0
  %v1159 = vsel %vm677, %v1127, 0.0
  %v1160 = vsel %vm678, %v1128, 0.0
  %v1161 = vsel %vm679, %v1129, 0.0
  %v1162 = vsel %vm680, %v1130, 0.0
  %v1163 = vpack.c.bf16 %v1132, %v1131
  %v1164 = vpack.c.bf16 %v1134, %v1133
  %v1165 = vpack.c.bf16 %v1136, %v1135
  %v1166 = vpack.c.bf16 %v1138, %v1137
  %v1167 = vpack.c.bf16 %v1140, %v1139
  %v1168 = vpack.c.bf16 %v1142, %v1141
  %v1169 = vpack.c.bf16 %v1144, %v1143
  %v1170 = vpack.c.bf16 %v1146, %v1145
  %v1171 = vpack.c.bf16 %v1148, %v1147
  %v1172 = vpack.c.bf16 %v1150, %v1149
  %v1173 = vpack.c.bf16 %v1152, %v1151
  %v1174 = vpack.c.bf16 %v1154, %v1153
  %v1175 = vpack.c.bf16 %v1156, %v1155
  %v1176 = vpack.c.bf16 %v1158, %v1157
  %v1177 = vpack.c.bf16 %v1160, %v1159
  %v1178 = vpack.c.bf16 %v1162, %v1161
  %1195 = vrot.lane.b32.xlu0 %v1163, 96
  %v1196 = vpop.permute.xlu0 %1195
  %1197 = vrot.lane.b32.xlu0 %v1164, 96
  %v1198 = vpop.permute.xlu0 %1197
  %1199 = vrot.lane.b32.xlu0 %v1165, 96
  %v1200 = vpop.permute.xlu0 %1199
  %1201 = vrot.lane.b32.xlu0 %v1166, 96
  %v1202 = vpop.permute.xlu0 %1201
  %1203 = vrot.lane.b32.xlu0 %v1167, 96
  %v1204 = vpop.permute.xlu0 %1203
  %1205 = vrot.lane.b32.xlu0 %v1168, 96
  %v1206 = vpop.permute.xlu0 %1205
  %1207 = vrot.lane.b32.xlu0 %v1169, 96
  %v1208 = vpop.permute.xlu0 %1207
  %1209 = vrot.lane.b32.xlu0 %v1170, 96
  %v1210 = vpop.permute.xlu0 %1209
  %1211 = vrot.lane.b32.xlu0 %v1171, 96
  %v1212 = vpop.permute.xlu0 %1211
  %1213 = vrot.lane.b32.xlu0 %v1172, 96
  %v1214 = vpop.permute.xlu0 %1213
  %1215 = vrot.lane.b32.xlu0 %v1173, 96
  %v1216 = vpop.permute.xlu0 %1215
  %1217 = vrot.lane.b32.xlu0 %v1174, 96
  %v1218 = vpop.permute.xlu0 %1217
  %1219 = vrot.lane.b32.xlu0 %v1175, 96
  %v1220 = vpop.permute.xlu0 %1219
  %1221 = vrot.lane.b32.xlu0 %v1176, 96
  %v1222 = vpop.permute.xlu0 %1221
  %1223 = vrot.lane.b32.xlu0 %v1177, 96
  %v1224 = vpop.permute.xlu0 %1223
  %1225 = vrot.lane.b32.xlu0 %v1178, 96
  %v1226 = vpop.permute.xlu0 %1225
  %vm1243 = vcmask 1048320
  %1244 = vst.msk [vmem:[#allocation4] sm:$0xff] %vm1243, %v1196
  %1245 = vst.msk [vmem:[#allocation4 + $0x18] sm:$0xff] %vm1243, %v1198
  %1246 = vst.msk [vmem:[#allocation4 + $0x30] sm:$0xff] %vm1243, %v1200
  %1247 = vst.msk [vmem:[#allocation4 + $0x48] sm:$0xff] %vm1243, %v1202
  %1248 = vst.msk [vmem:[#allocation4 + $0x60] sm:$0xff] %vm1243, %v1204
  %1249 = vst.msk [vmem:[#allocation4 + $0x78] sm:$0xff] %vm1243, %v1206
  %1250 = vst.msk [vmem:[#allocation4 + $0x90] sm:$0xff] %vm1243, %v1208
  %1251 = vst.msk [vmem:[#allocation4 + $0xa8] sm:$0xff] %vm1243, %v1210
  %1252 = vst.msk [vmem:[#allocation4 + $0xc0] sm:$0xff] %vm1243, %v1212
  %1253 = vst.msk [vmem:[#allocation4 + $0xd8] sm:$0xff] %vm1243, %v1214
  %1254 = vst.msk [vmem:[#allocation4 + $0xf0] sm:$0xff] %vm1243, %v1216
  %1255 = vst.msk [vmem:[#allocation4 + $0x108] sm:$0xff] %vm1243, %v1218
  %1256 = vst.msk [vmem:[#allocation4 + $0x120] sm:$0xff] %vm1243, %v1220
  %1257 = vst.msk [vmem:[#allocation4 + $0x138] sm:$0xff] %vm1243, %v1222
  %1258 = vst.msk [vmem:[#allocation4 + $0x150] sm:$0xff] %vm1243, %v1224
  %1259 = vst.msk [vmem:[#allocation4 + $0x168] sm:$0xff] %vm1243, %v1226
  %v1260 = vld [vmem:[#allocation3 + $0x18] sm:$0xff]
  %v1261 = vld [vmem:[#allocation3 + $0x20] sm:$0xff]
  %v1262 = vld [vmem:[#allocation3 + $0x28] sm:$0xff]
  %v1263 = vld [vmem:[#allocation3 + $0x30] sm:$0xff]
  %v1264 = vld [vmem:[#allocation3 + $0x38] sm:$0xff]
  %v1265 = vld [vmem:[#allocation3 + $0x40] sm:$0xff]
  %v1266 = vld [vmem:[#allocation3 + $0x48] sm:$0xff]
  %v1267 = vld [vmem:[#allocation3 + $0x50] sm:$0xff]
  %v1268 = vld [vmem:[#allocation3 + $0x58] sm:$0xff]
  %v1269 = vld [vmem:[#allocation3 + $0x60] sm:$0xff]
  %v1270 = vld [vmem:[#allocation3 + $0x68] sm:$0xff]
  %v1271 = vld [vmem:[#allocation3 + $0x70] sm:$0xff]
  %v1272 = vld [vmem:[#allocation3 + $0x78] sm:$0xff]
  %v1273 = vld [vmem:[#allocation3 + $0x80] sm:$0xff]
  %v1274 = vld [vmem:[#allocation3 + $0x88] sm:$0xff]
  %v1275 = vld [vmem:[#allocation3 + $0x90] sm:$0xff]
  %v1276 = vld [vmem:[#allocation3 + $0x98] sm:$0xff]
  %v1277 = vld [vmem:[#allocation3 + $0xa0] sm:$0xff]
  %v1278 = vld [vmem:[#allocation3 + $0xa8] sm:$0xff]
  %v1279 = vld [vmem:[#allocation3 + $0xb0] sm:$0xff]
  %v1280 = vld [vmem:[#allocation3 + $0xb8] sm:$0xff]
  %v1281 = vld [vmem:[#allocation3 + $0xc0] sm:$0xff]
  %v1282 = vld [vmem:[#allocation3 + $0xc8] sm:$0xff]
  %v1283 = vld [vmem:[#allocation3 + $0xd0] sm:$0xff]
  %v1284 = vld [vmem:[#allocation3 + $0xd8] sm:$0xff]
  %v1285 = vld [vmem:[#allocation3 + $0xe0] sm:$0xff]
  %v1286 = vld [vmem:[#allocation3 + $0xe8] sm:$0xff]
  %v1287 = vld [vmem:[#allocation3 + $0xf0] sm:$0xff]
  %v1288 = vld [vmem:[#allocation3 + $0xf8] sm:$0xff]
  %v1289 = vld [vmem:[#allocation3 + $0x100] sm:$0xff]
  %v1290 = vld [vmem:[#allocation3 + $0x108] sm:$0xff]
  %v1291 = vld [vmem:[#allocation3 + $0x110] sm:$0xff]
  %v1292 = vpack.c.bf16 %v1261, %v1260
  %v1293 = vpack.c.bf16 %v1263, %v1262
  %v1294 = vpack.c.bf16 %v1265, %v1264
  %v1295 = vpack.c.bf16 %v1267, %v1266
  %v1296 = vpack.c.bf16 %v1269, %v1268
  %v1297 = vpack.c.bf16 %v1271, %v1270
  %v1298 = vpack.c.bf16 %v1273, %v1272
  %v1299 = vpack.c.bf16 %v1275, %v1274
  %v1300 = vpack.c.bf16 %v1277, %v1276
  %v1301 = vpack.c.bf16 %v1279, %v1278
  %v1302 = vpack.c.bf16 %v1281, %v1280
  %v1303 = vpack.c.bf16 %v1283, %v1282
  %v1304 = vpack.c.bf16 %v1285, %v1284
  %v1305 = vpack.c.bf16 %v1287, %v1286
  %v1306 = vpack.c.bf16 %v1289, %v1288
  %v1307 = vpack.c.bf16 %v1291, %v1290
  %1308 = vst.msk [vmem:[#allocation4 + $0x8] sm:$0xff] %vm514, %v1292
  %1309 = vst.msk [vmem:[#allocation4 + $0x20] sm:$0xff] %vm514, %v1293
  %1310 = vst.msk [vmem:[#allocation4 + $0x38] sm:$0xff] %vm514, %v1294
  %1311 = vst.msk [vmem:[#allocation4 + $0x50] sm:$0xff] %vm514, %v1295
  %1312 = vst.msk [vmem:[#allocation4 + $0x68] sm:$0xff] %vm514, %v1296
  %1313 = vst.msk [vmem:[#allocation4 + $0x80] sm:$0xff] %vm514, %v1297
  %1314 = vst.msk [vmem:[#allocation4 + $0x98] sm:$0xff] %vm514, %v1298
  %1315 = vst.msk [vmem:[#allocation4 + $0xb0] sm:$0xff] %vm514, %v1299
  %1316 = vst.msk [vmem:[#allocation4 + $0xc8] sm:$0xff] %vm514, %v1300
  %1317 = vst.msk [vmem:[#allocation4 + $0xe0] sm:$0xff] %vm514, %v1301
  %1318 = vst.msk [vmem:[#allocation4 + $0xf8] sm:$0xff] %vm514, %v1302
  %1319 = vst.msk [vmem:[#allocation4 + $0x110] sm:$0xff] %vm514, %v1303
  %1320 = vst.msk [vmem:[#allocation4 + $0x128] sm:$0xff] %vm514, %v1304
  %1321 = vst.msk [vmem:[#allocation4 + $0x140] sm:$0xff] %vm514, %v1305
  %1322 = vst.msk [vmem:[#allocation4 + $0x158] sm:$0xff] %vm514, %v1306
  %1323 = vst.msk [vmem:[#allocation4 + $0x170] sm:$0xff] %vm514, %v1307
  %v1324 = vld [vmem:[#allocation3 + $0x19] sm:$0xff]
  %v1325 = vld [vmem:[#allocation3 + $0x21] sm:$0xff]
  %v1326 = vld [vmem:[#allocation3 + $0x29] sm:$0xff]
  %v1327 = vld [vmem:[#allocation3 + $0x31] sm:$0xff]
  %v1328 = vld [vmem:[#allocation3 + $0x39] sm:$0xff]
  %v1329 = vld [vmem:[#allocation3 + $0x41] sm:$0xff]
  %v1330 = vld [vmem:[#allocation3 + $0x49] sm:$0xff]
  %v1331 = vld [vmem:[#allocation3 + $0x51] sm:$0xff]
  %v1332 = vld [vmem:[#allocation3 + $0x59] sm:$0xff]
  %v1333 = vld [vmem:[#allocation3 + $0x61] sm:$0xff]
  %v1334 = vld [vmem:[#allocation3 + $0x69] sm:$0xff]
  %v1335 = vld [vmem:[#allocation3 + $0x71] sm:$0xff]
  %v1336 = vld [vmem:[#allocation3 + $0x79] sm:$0xff]
  %v1337 = vld [vmem:[#allocation3 + $0x81] sm:$0xff]
  %v1338 = vld [vmem:[#allocation3 + $0x89] sm:$0xff]
  %v1339 = vld [vmem:[#allocation3 + $0x91] sm:$0xff]
  %v1340 = vld [vmem:[#allocation3 + $0x99] sm:$0xff]
  %v1341 = vld [vmem:[#allocation3 + $0xa1] sm:$0xff]
  %v1342 = vld [vmem:[#allocation3 + $0xa9] sm:$0xff]
  %v1343 = vld [vmem:[#allocation3 + $0xb1] sm:$0xff]
  %v1344 = vld [vmem:[#allocation3 + $0xb9] sm:$0xff]
  %v1345 = vld [vmem:[#allocation3 + $0xc1] sm:$0xff]
  %v1346 = vld [vmem:[#allocation3 + $0xc9] sm:$0xff]
  %v1347 = vld [vmem:[#allocation3 + $0xd1] sm:$0xff]
  %v1348 = vld [vmem:[#allocation3 + $0xd9] sm:$0xff]
  %v1349 = vld [vmem:[#allocation3 + $0xe1] sm:$0xff]
  %v1350 = vld [vmem:[#allocation3 + $0xe9] sm:$0xff]
  %v1351 = vld [vmem:[#allocation3 + $0xf1] sm:$0xff]
  %v1352 = vld [vmem:[#allocation3 + $0xf9] sm:$0xff]
  %v1353 = vld [vmem:[#allocation3 + $0x101] sm:$0xff]
  %v1354 = vld [vmem:[#allocation3 + $0x109] sm:$0xff]
  %v1355 = vld [vmem:[#allocation3 + $0x111] sm:$0xff]
  %v1356 = vsel %vm938, %v1324, 0.0
  %v1357 = vsel %vm939, %v1325, 0.0
  %v1358 = vsel %vm940, %v1326, 0.0
  %v1359 = vsel %vm941, %v1327, 0.0
  %v1360 = vsel %vm942, %v1328, 0.0
  %v1361 = vsel %vm943, %v1329, 0.0
  %v1362 = vsel %vm944, %v1330, 0.0
  %v1363 = vsel %vm945, %v1331, 0.0
  %v1364 = vsel %vm946, %v1332, 0.0
  %v1365 = vsel %vm947, %v1333, 0.0
  %v1366 = vsel %vm948, %v1334, 0.0
  %v1367 = vsel %vm949, %v1335, 0.0
  %v1368 = vsel %vm950, %v1336, 0.0
  %v1369 = vsel %vm951, %v1337, 0.0
  %v1370 = vsel %vm952, %v1338, 0.0
  %v1371 = vsel %vm953, %v1339, 0.0
  %v1372 = vsel %vm954, %v1340, 0.0
  %v1373 = vsel %vm955, %v1341, 0.0
  %v1374 = vsel %vm956, %v1342, 0.0
  %v1375 = vsel %vm957, %v1343, 0.0
  %v1376 = vsel %vm958, %v1344, 0.0
  %v1377 = vsel %vm959, %v1345, 0.0
  %v1378 = vsel %vm960, %v1346, 0.0
  %v1379 = vsel %vm961, %v1347, 0.0
  %v1380 = vsel %vm962, %v1348, 0.0
  %v1381 = vsel %vm963, %v1349, 0.0
  %v1382 = vsel %vm964, %v1350, 0.0
  %v1383 = vsel %vm965, %v1351, 0.0
  %v1384 = vsel %vm966, %v1352, 0.0
  %v1385 = vsel %vm967, %v1353, 0.0
  %v1386 = vsel %vm968, %v1354, 0.0
  %v1387 = vsel %vm969, %v1355, 0.0
  %v1388 = vpack.c.bf16 %v1357, %v1356
  %v1389 = vpack.c.bf16 %v1359, %v1358
  %v1390 = vpack.c.bf16 %v1361, %v1360
  %v1391 = vpack.c.bf16 %v1363, %v1362
  %v1392 = vpack.c.bf16 %v1365, %v1364
  %v1393 = vpack.c.bf16 %v1367, %v1366
  %v1394 = vpack.c.bf16 %v1369, %v1368
  %v1395 = vpack.c.bf16 %v1371, %v1370
  %v1396 = vpack.c.bf16 %v1373, %v1372
  %v1397 = vpack.c.bf16 %v1375, %v1374
  %v1398 = vpack.c.bf16 %v1377, %v1376
  %v1399 = vpack.c.bf16 %v1379, %v1378
  %v1400 = vpack.c.bf16 %v1381, %v1380
  %v1401 = vpack.c.bf16 %v1383, %v1382
  %v1402 = vpack.c.bf16 %v1385, %v1384
  %v1403 = vpack.c.bf16 %v1387, %v1386
  %1420 = vrot.lane.b32.xlu0 %v1388, 32
  %v1421 = vpop.permute.xlu0 %1420
  %1422 = vrot.lane.b32.xlu0 %v1389, 32
  %v1423 = vpop.permute.xlu0 %1422
  %1424 = vrot.lane.b32.xlu0 %v1390, 32
  %v1425 = vpop.permute.xlu0 %1424
  %1426 = vrot.lane.b32.xlu0 %v1391, 32
  %v1427 = vpop.permute.xlu0 %1426
  %1428 = vrot.lane.b32.xlu0 %v1392, 32
  %v1429 = vpop.permute.xlu0 %1428
  %1430 = vrot.lane.b32.xlu0 %v1393, 32
  %v1431 = vpop.permute.xlu0 %1430
  %1432 = vrot.lane.b32.xlu0 %v1394, 32
  %v1433 = vpop.permute.xlu0 %1432
  %1434 = vrot.lane.b32.xlu0 %v1395, 32
  %v1435 = vpop.permute.xlu0 %1434
  %1436 = vrot.lane.b32.xlu0 %v1396, 32
  %v1437 = vpop.permute.xlu0 %1436
  %1438 = vrot.lane.b32.xlu0 %v1397, 32
  %v1439 = vpop.permute.xlu0 %1438
  %1440 = vrot.lane.b32.xlu0 %v1398, 32
  %v1441 = vpop.permute.xlu0 %1440
  %1442 = vrot.lane.b32.xlu0 %v1399, 32
  %v1443 = vpop.permute.xlu0 %1442
  %1444 = vrot.lane.b32.xlu0 %v1400, 32
  %v1445 = vpop.permute.xlu0 %1444
  %1446 = vrot.lane.b32.xlu0 %v1401, 32
  %v1447 = vpop.permute.xlu0 %1446
  %1448 = vrot.lane.b32.xlu0 %v1402, 32
  %v1449 = vpop.permute.xlu0 %1448
  %1450 = vrot.lane.b32.xlu0 %v1403, 32
  %v1451 = vpop.permute.xlu0 %1450
  %1468 = vst.msk [vmem:[#allocation4 + $0x8] sm:$0xff] %vm857, %v1421
  %1469 = vst.msk [vmem:[#allocation4 + $0x20] sm:$0xff] %vm857, %v1423
  %1470 = vst.msk [vmem:[#allocation4 + $0x38] sm:$0xff] %vm857, %v1425
  %1471 = vst.msk [vmem:[#allocation4 + $0x50] sm:$0xff] %vm857, %v1427
  %1472 = vst.msk [vmem:[#allocation4 + $0x68] sm:$0xff] %vm857, %v1429
  %1473 = vst.msk [vmem:[#allocation4 + $0x80] sm:$0xff] %vm857, %v1431
  %1474 = vst.msk [vmem:[#allocation4 + $0x98] sm:$0xff] %vm857, %v1433
  %1475 = vst.msk [vmem:[#allocation4 + $0xb0] sm:$0xff] %vm857, %v1435
  %1476 = vst.msk [vmem:[#allocation4 + $0xc8] sm:$0xff] %vm857, %v1437
  %1477 = vst.msk [vmem:[#allocation4 + $0xe0] sm:$0xff] %vm857, %v1439
  %1478 = vst.msk [vmem:[#allocation4 + $0xf8] sm:$0xff] %vm857, %v1441
  %1479 = vst.msk [vmem:[#allocation4 + $0x110] sm:$0xff] %vm857, %v1443
  %1480 = vst.msk [vmem:[#allocation4 + $0x128] sm:$0xff] %vm857, %v1445
  %1481 = vst.msk [vmem:[#allocation4 + $0x140] sm:$0xff] %vm857, %v1447
  %1482 = vst.msk [vmem:[#allocation4 + $0x158] sm:$0xff] %vm857, %v1449
  %1483 = vst.msk [vmem:[#allocation4 + $0x170] sm:$0xff] %vm857, %v1451
  %v1484 = vld [vmem:[#allocation3 + $0x27] sm:$0xff]
  %v1485 = vld [vmem:[#allocation3 + $0x2f] sm:$0xff]
  %v1486 = vld [vmem:[#allocation3 + $0x37] sm:$0xff]
  %v1487 = vld [vmem:[#allocation3 + $0x3f] sm:$0xff]
  %v1488 = vld [vmem:[#allocation3 + $0x47] sm:$0xff]
  %v1489 = vld [vmem:[#allocation3 + $0x4f] sm:$0xff]
  %v1490 = vld [vmem:[#allocation3 + $0x57] sm:$0xff]
  %v1491 = vld [vmem:[#allocation3 + $0x5f] sm:$0xff]
  %v1492 = vld [vmem:[#allocation3 + $0x67] sm:$0xff]
  %v1493 = vld [vmem:[#allocation3 + $0x6f] sm:$0xff]
  %v1494 = vld [vmem:[#allocation3 + $0x77] sm:$0xff]
  %v1495 = vld [vmem:[#allocation3 + $0x7f] sm:$0xff]
  %v1496 = vld [vmem:[#allocation3 + $0x87] sm:$0xff]
  %v1497 = vld [vmem:[#allocation3 + $0x8f] sm:$0xff]
  %v1498 = vld [vmem:[#allocation3 + $0x97] sm:$0xff]
  %v1499 = vld [vmem:[#allocation3 + $0x9f] sm:$0xff]
  %v1500 = vld [vmem:[#allocation3 + $0xa7] sm:$0xff]
  %v1501 = vld [vmem:[#allocation3 + $0xaf] sm:$0xff]
  %v1502 = vld [vmem:[#allocation3 + $0xb7] sm:$0xff]
  %v1503 = vld [vmem:[#allocation3 + $0xbf] sm:$0xff]
  %v1504 = vld [vmem:[#allocation3 + $0xc7] sm:$0xff]
  %v1505 = vld [vmem:[#allocation3 + $0xcf] sm:$0xff]
  %v1506 = vld [vmem:[#allocation3 + $0xd7] sm:$0xff]
  %v1507 = vld [vmem:[#allocation3 + $0xdf] sm:$0xff]
  %v1508 = vld [vmem:[#allocation3 + $0xe7] sm:$0xff]
  %v1509 = vld [vmem:[#allocation3 + $0xef] sm:$0xff]
  %v1510 = vld [vmem:[#allocation3 + $0xf7] sm:$0xff]
  %v1511 = vld [vmem:[#allocation3 + $0xff] sm:$0xff]
  %v1512 = vld [vmem:[#allocation3 + $0x107] sm:$0xff]
  %v1513 = vld [vmem:[#allocation3 + $0x10f] sm:$0xff]
  %v1514 = vld [vmem:[#allocation3 + $0x117] sm:$0xff]
  %v1515 = vld [vmem:[#allocation3 + $0x11f] sm:$0xff]
  %v1516 = vsel %vm649, %v1484, 0.0
  %v1517 = vsel %vm650, %v1485, 0.0
  %v1518 = vsel %vm651, %v1486, 0.0
  %v1519 = vsel %vm652, %v1487, 0.0
  %v1520 = vsel %vm653, %v1488, 0.0
  %v1521 = vsel %vm654, %v1489, 0.0
  %v1522 = vsel %vm655, %v1490, 0.0
  %v1523 = vsel %vm656, %v1491, 0.0
  %v1524 = vsel %vm657, %v1492, 0.0
  %v1525 = vsel %vm658, %v1493, 0.0
  %v1526 = vsel %vm659, %v1494, 0.0
  %v1527 = vsel %vm660, %v1495, 0.0
  %v1528 = vsel %vm661, %v1496, 0.0
  %v1529 = vsel %vm662, %v1497, 0.0
  %v1530 = vsel %vm663, %v1498, 0.0
  %v1531 = vsel %vm664, %v1499, 0.0
  %v1532 = vsel %vm665, %v1500, 0.0
  %v1533 = vsel %vm666, %v1501, 0.0
  %v1534 = vsel %vm667, %v1502, 0.0
  %v1535 = vsel %vm668, %v1503, 0.0
  %v1536 = vsel %vm669, %v1504, 0.0
  %v1537 = vsel %vm670, %v1505, 0.0
  %v1538 = vsel %vm671, %v1506, 0.0
  %v1539 = vsel %vm672, %v1507, 0.0
  %v1540 = vsel %vm673, %v1508, 0.0
  %v1541 = vsel %vm674, %v1509, 0.0
  %v1542 = vsel %vm675, %v1510, 0.0
  %v1543 = vsel %vm676, %v1511, 0.0
  %v1544 = vsel %vm677, %v1512, 0.0
  %v1545 = vsel %vm678, %v1513, 0.0
  %v1546 = vsel %vm679, %v1514, 0.0
  %v1547 = vsel %vm680, %v1515, 0.0
  %v1548 = vpack.c.bf16 %v1517, %v1516
  %v1549 = vpack.c.bf16 %v1519, %v1518
  %v1550 = vpack.c.bf16 %v1521, %v1520
  %v1551 = vpack.c.bf16 %v1523, %v1522
  %v1552 = vpack.c.bf16 %v1525, %v1524
  %v1553 = vpack.c.bf16 %v1527, %v1526
  %v1554 = vpack.c.bf16 %v1529, %v1528
  %v1555 = vpack.c.bf16 %v1531, %v1530
  %v1556 = vpack.c.bf16 %v1533, %v1532
  %v1557 = vpack.c.bf16 %v1535, %v1534
  %v1558 = vpack.c.bf16 %v1537, %v1536
  %v1559 = vpack.c.bf16 %v1539, %v1538
  %v1560 = vpack.c.bf16 %v1541, %v1540
  %v1561 = vpack.c.bf16 %v1543, %v1542
  %v1562 = vpack.c.bf16 %v1545, %v1544
  %v1563 = vpack.c.bf16 %v1547, %v1546
  %1580 = vrot.lane.b32.xlu0 %v1548, 64
  %v1581 = vpop.permute.xlu0 %1580
  %1582 = vrot.lane.b32.xlu0 %v1549, 64
  %v1583 = vpop.permute.xlu0 %1582
  %1584 = vrot.lane.b32.xlu0 %v1550, 64
  %v1585 = vpop.permute.xlu0 %1584
  %1586 = vrot.lane.b32.xlu0 %v1551, 64
  %v1587 = vpop.permute.xlu0 %1586
  %1588 = vrot.lane.b32.xlu0 %v1552, 64
  %v1589 = vpop.permute.xlu0 %1588
  %1590 = vrot.lane.b32.xlu0 %v1553, 64
  %v1591 = vpop.permute.xlu0 %1590
  %1592 = vrot.lane.b32.xlu0 %v1554, 64
  %v1593 = vpop.permute.xlu0 %1592
  %1594 = vrot.lane.b32.xlu0 %v1555, 64
  %v1595 = vpop.permute.xlu0 %1594
  %1596 = vrot.lane.b32.xlu0 %v1556, 64
  %v1597 = vpop.permute.xlu0 %1596
  %1598 = vrot.lane.b32.xlu0 %v1557, 64
  %v1599 = vpop.permute.xlu0 %1598
  %1600 = vrot.lane.b32.xlu0 %v1558, 64
  %v1601 = vpop.permute.xlu0 %1600
  %1602 = vrot.lane.b32.xlu0 %v1559, 64
  %v1603 = vpop.permute.xlu0 %1602
  %1604 = vrot.lane.b32.xlu0 %v1560, 64
  %v1605 = vpop.permute.xlu0 %1604
  %1606 = vrot.lane.b32.xlu0 %v1561, 64
  %v1607 = vpop.permute.xlu0 %1606
  %1608 = vrot.lane.b32.xlu0 %v1562, 64
  %v1609 = vpop.permute.xlu0 %1608
  %1610 = vrot.lane.b32.xlu0 %v1563, 64
  %v1611 = vpop.permute.xlu0 %1610
  %1628 = vst.msk [vmem:[#allocation4 + $0x8] sm:$0xff] %vm1082, %v1581
  %1629 = vst.msk [vmem:[#allocation4 + $0x20] sm:$0xff] %vm1082, %v1583
  %1630 = vst.msk [vmem:[#allocation4 + $0x38] sm:$0xff] %vm1082, %v1585
  %1631 = vst.msk [vmem:[#allocation4 + $0x50] sm:$0xff] %vm1082, %v1587
  %1632 = vst.msk [vmem:[#allocation4 + $0x68] sm:$0xff] %vm1082, %v1589
  %1633 = vst.msk [vmem:[#allocation4 + $0x80] sm:$0xff] %vm1082, %v1591
  %1634 = vst.msk [vmem:[#allocation4 + $0x98] sm:$0xff] %vm1082, %v1593
  %1635 = vst.msk [vmem:[#allocation4 + $0xb0] sm:$0xff] %vm1082, %v1595
  %1636 = vst.msk [vmem:[#allocation4 + $0xc8] sm:$0xff] %vm1082, %v1597
  %1637 = vst.msk [vmem:[#allocation4 + $0xe0] sm:$0xff] %vm1082, %v1599
  %1638 = vst.msk [vmem:[#allocation4 + $0xf8] sm:$0xff] %vm1082, %v1601
  %1639 = vst.msk [vmem:[#allocation4 + $0x110] sm:$0xff] %vm1082, %v1603
  %1640 = vst.msk [vmem:[#allocation4 + $0x128] sm:$0xff] %vm1082, %v1605
  %1641 = vst.msk [vmem:[#allocation4 + $0x140] sm:$0xff] %vm1082, %v1607
  %1642 = vst.msk [vmem:[#allocation4 + $0x158] sm:$0xff] %vm1082, %v1609
  %1643 = vst.msk [vmem:[#allocation4 + $0x170] sm:$0xff] %vm1082, %v1611
  %v1644 = vld [vmem:[#allocation3 + $0x28] sm:$0xff]
  %v1645 = vld [vmem:[#allocation3 + $0x30] sm:$0xff]
  %v1646 = vld [vmem:[#allocation3 + $0x38] sm:$0xff]
  %v1647 = vld [vmem:[#allocation3 + $0x40] sm:$0xff]
  %v1648 = vld [vmem:[#allocation3 + $0x48] sm:$0xff]
  %v1649 = vld [vmem:[#allocation3 + $0x50] sm:$0xff]
  %v1650 = vld [vmem:[#allocation3 + $0x58] sm:$0xff]
  %v1651 = vld [vmem:[#allocation3 + $0x60] sm:$0xff]
  %v1652 = vld [vmem:[#allocation3 + $0x68] sm:$0xff]
  %v1653 = vld [vmem:[#allocation3 + $0x70] sm:$0xff]
  %v1654 = vld [vmem:[#allocation3 + $0x78] sm:$0xff]
  %v1655 = vld [vmem:[#allocation3 + $0x80] sm:$0xff]
  %v1656 = vld [vmem:[#allocation3 + $0x88] sm:$0xff]
  %v1657 = vld [vmem:[#allocation3 + $0x90] sm:$0xff]
  %v1658 = vld [vmem:[#allocation3 + $0x98] sm:$0xff]
  %v1659 = vld [vmem:[#allocation3 + $0xa0] sm:$0xff]
  %v1660 = vld [vmem:[#allocation3 + $0xa8] sm:$0xff]
  %v1661 = vld [vmem:[#allocation3 + $0xb0] sm:$0xff]
  %v1662 = vld [vmem:[#allocation3 + $0xb8] sm:$0xff]
  %v1663 = vld [vmem:[#allocation3 + $0xc0] sm:$0xff]
  %v1664 = vld [vmem:[#allocation3 + $0xc8] sm:$0xff]
  %v1665 = vld [vmem:[#allocation3 + $0xd0] sm:$0xff]
  %v1666 = vld [vmem:[#allocation3 + $0xd8] sm:$0xff]
  %v1667 = vld [vmem:[#allocation3 + $0xe0] sm:$0xff]
  %v1668 = vld [vmem:[#allocation3 + $0xe8] sm:$0xff]
  %v1669 = vld [vmem:[#allocation3 + $0xf0] sm:$0xff]
  %v1670 = vld [vmem:[#allocation3 + $0xf8] sm:$0xff]
  %v1671 = vld [vmem:[#allocation3 + $0x100] sm:$0xff]
  %v1672 = vld [vmem:[#allocation3 + $0x108] sm:$0xff]
  %v1673 = vld [vmem:[#allocation3 + $0x110] sm:$0xff]
  %v1674 = vld [vmem:[#allocation3 + $0x118] sm:$0xff]
  %v1675 = vld [vmem:[#allocation3 + $0x120] sm:$0xff]
  %v1676 = vpack.c.bf16 %v1645, %v1644
  %v1677 = vpack.c.bf16 %v1647, %v1646
  %v1678 = vpack.c.bf16 %v1649, %v1648
  %v1679 = vpack.c.bf16 %v1651, %v1650
  %v1680 = vpack.c.bf16 %v1653, %v1652
  %v1681 = vpack.c.bf16 %v1655, %v1654
  %v1682 = vpack.c.bf16 %v1657, %v1656
  %v1683 = vpack.c.bf16 %v1659, %v1658
  %v1684 = vpack.c.bf16 %v1661, %v1660
  %v1685 = vpack.c.bf16 %v1663, %v1662
  %v1686 = vpack.c.bf16 %v1665, %v1664
  %v1687 = vpack.c.bf16 %v1667, %v1666
  %v1688 = vpack.c.bf16 %v1669, %v1668
  %v1689 = vpack.c.bf16 %v1671, %v1670
  %v1690 = vpack.c.bf16 %v1673, %v1672
  %v1691 = vpack.c.bf16 %v1675, %v1674
  %1708 = vrot.lane.b32.xlu0 %v1676, 96
  %v1709 = vpop.permute.xlu0 %1708
  %1710 = vrot.lane.b32.xlu0 %v1677, 96
  %v1711 = vpop.permute.xlu0 %1710
  %1712 = vrot.lane.b32.xlu0 %v1678, 96
  %v1713 = vpop.permute.xlu0 %1712
  %1714 = vrot.lane.b32.xlu0 %v1679, 96
  %v1715 = vpop.permute.xlu0 %1714
  %1716 = vrot.lane.b32.xlu0 %v1680, 96
  %v1717 = vpop.permute.xlu0 %1716
  %1718 = vrot.lane.b32.xlu0 %v1681, 96
  %v1719 = vpop.permute.xlu0 %1718
  %1720 = vrot.lane.b32.xlu0 %v1682, 96
  %v1721 = vpop.permute.xlu0 %1720
  %1722 = vrot.lane.b32.xlu0 %v1683, 96
  %v1723 = vpop.permute.xlu0 %1722
  %1724 = vrot.lane.b32.xlu0 %v1684, 96
  %v1725 = vpop.permute.xlu0 %1724
  %1726 = vrot.lane.b32.xlu0 %v1685, 96
  %v1727 = vpop.permute.xlu0 %1726
  %1728 = vrot.lane.b32.xlu0 %v1686, 96
  %v1729 = vpop.permute.xlu0 %1728
  %1730 = vrot.lane.b32.xlu0 %v1687, 96
  %v1731 = vpop.permute.xlu0 %1730
  %1732 = vrot.lane.b32.xlu0 %v1688, 96
  %v1733 = vpop.permute.xlu0 %1732
  %1734 = vrot.lane.b32.xlu0 %v1689, 96
  %v1735 = vpop.permute.xlu0 %1734
  %1736 = vrot.lane.b32.xlu0 %v1690, 96
  %v1737 = vpop.permute.xlu0 %1736
  %1738 = vrot.lane.b32.xlu0 %v1691, 96
  %v1739 = vpop.permute.xlu0 %1738
  %1756 = vst.msk [vmem:[#allocation4 + $0x8] sm:$0xff] %vm1243, %v1709
  %1757 = vst.msk [vmem:[#allocation4 + $0x20] sm:$0xff] %vm1243, %v1711
  %1758 = vst.msk [vmem:[#allocation4 + $0x38] sm:$0xff] %vm1243, %v1713
  %1759 = vst.msk [vmem:[#allocation4 + $0x50] sm:$0xff] %vm1243, %v1715
  %1760 = vst.msk [vmem:[#allocation4 + $0x68] sm:$0xff] %vm1243, %v1717
  %1761 = vst.msk [vmem:[#allocation4 + $0x80] sm:$0xff] %vm1243, %v1719
  %1762 = vst.msk [vmem:[#allocation4 + $0x98] sm:$0xff] %vm1243, %v1721
  %1763 = vst.msk [vmem:[#allocation4 + $0xb0] sm:$0xff] %vm1243, %v1723
  %1764 = vst.msk [vmem:[#allocation4 + $0xc8] sm:$0xff] %vm1243, %v1725
  %1765 = vst.msk [vmem:[#allocation4 + $0xe0] sm:$0xff] %vm1243, %v1727
  %1766 = vst.msk [vmem:[#allocation4 + $0xf8] sm:$0xff] %vm1243, %v1729
  %1767 = vst.msk [vmem:[#allocation4 + $0x110] sm:$0xff] %vm1243, %v1731
  %1768 = vst.msk [vmem:[#allocation4 + $0x128] sm:$0xff] %vm1243, %v1733
  %1769 = vst.msk [vmem:[#allocation4 + $0x140] sm:$0xff] %vm1243, %v1735
  %1770 = vst.msk [vmem:[#allocation4 + $0x158] sm:$0xff] %vm1243, %v1737
  %1771 = vst.msk [vmem:[#allocation4 + $0x170] sm:$0xff] %vm1243, %v1739
  %v1772 = vld [vmem:[#allocation3 + $0x29] sm:$0xff]
  %v1773 = vld [vmem:[#allocation3 + $0x31] sm:$0xff]
  %v1774 = vld [vmem:[#allocation3 + $0x39] sm:$0xff]
  %v1775 = vld [vmem:[#allocation3 + $0x41] sm:$0xff]
  %v1776 = vld [vmem:[#allocation3 + $0x49] sm:$0xff]
  %v1777 = vld [vmem:[#allocation3 + $0x51] sm:$0xff]
  %v1778 = vld [vmem:[#allocation3 + $0x59] sm:$0xff]
  %v1779 = vld [vmem:[#allocation3 + $0x61] sm:$0xff]
  %v1780 = vld [vmem:[#allocation3 + $0x69] sm:$0xff]
  %v1781 = vld [vmem:[#allocation3 + $0x71] sm:$0xff]
  %v1782 = vld [vmem:[#allocation3 + $0x79] sm:$0xff]
  %v1783 = vld [vmem:[#allocation3 + $0x81] sm:$0xff]
  %v1784 = vld [vmem:[#allocation3 + $0x89] sm:$0xff]
  %v1785 = vld [vmem:[#allocation3 + $0x91] sm:$0xff]
  %v1786 = vld [vmem:[#allocation3 + $0x99] sm:$0xff]
  %v1787 = vld [vmem:[#allocation3 + $0xa1] sm:$0xff]
  %v1788 = vld [vmem:[#allocation3 + $0xa9] sm:$0xff]
  %v1789 = vld [vmem:[#allocation3 + $0xb1] sm:$0xff]
  %v1790 = vld [vmem:[#allocation3 + $0xb9] sm:$0xff]
  %v1791 = vld [vmem:[#allocation3 + $0xc1] sm:$0xff]
  %v1792 = vld [vmem:[#allocation3 + $0xc9] sm:$0xff]
  %v1793 = vld [vmem:[#allocation3 + $0xd1] sm:$0xff]
  %v1794 = vld [vmem:[#allocation3 + $0xd9] sm:$0xff]
  %v1795 = vld [vmem:[#allocation3 + $0xe1] sm:$0xff]
  %v1796 = vld [vmem:[#allocation3 + $0xe9] sm:$0xff]
  %v1797 = vld [vmem:[#allocation3 + $0xf1] sm:$0xff]
  %v1798 = vld [vmem:[#allocation3 + $0xf9] sm:$0xff]
  %v1799 = vld [vmem:[#allocation3 + $0x101] sm:$0xff]
  %v1800 = vld [vmem:[#allocation3 + $0x109] sm:$0xff]
  %v1801 = vld [vmem:[#allocation3 + $0x111] sm:$0xff]
  %v1802 = vld [vmem:[#allocation3 + $0x119] sm:$0xff]
  %v1803 = vld [vmem:[#allocation3 + $0x121] sm:$0xff]
  %v1804 = vsel %vm938, %v1772, 0.0
  %v1805 = vsel %vm939, %v1773, 0.0
  %v1806 = vsel %vm940, %v1774, 0.0
  %v1807 = vsel %vm941, %v1775, 0.0
  %v1808 = vsel %vm942, %v1776, 0.0
  %v1809 = vsel %vm943, %v1777, 0.0
  %v1810 = vsel %vm944, %v1778, 0.0
  %v1811 = vsel %vm945, %v1779, 0.0
  %v1812 = vsel %vm946, %v1780, 0.0
  %v1813 = vsel %vm947, %v1781, 0.0
  %v1814 = vsel %vm948, %v1782, 0.0
  %v1815 = vsel %vm949, %v1783, 0.0
  %v1816 = vsel %vm950, %v1784, 0.0
  %v1817 = vsel %vm951, %v1785, 0.0
  %v1818 = vsel %vm952, %v1786, 0.0
  %v1819 = vsel %vm953, %v1787, 0.0
  %v1820 = vsel %vm954, %v1788, 0.0
  %v1821 = vsel %vm955, %v1789, 0.0
  %v1822 = vsel %vm956, %v1790, 0.0
  %v1823 = vsel %vm957, %v1791, 0.0
  %v1824 = vsel %vm958, %v1792, 0.0
  %v1825 = vsel %vm959, %v1793, 0.0
  %v1826 = vsel %vm960, %v1794, 0.0
  %v1827 = vsel %vm961, %v1795, 0.0
  %v1828 = vsel %vm962, %v1796, 0.0
  %v1829 = vsel %vm963, %v1797, 0.0
  %v1830 = vsel %vm964, %v1798, 0.0
  %v1831 = vsel %vm965, %v1799, 0.0
  %v1832 = vsel %vm966, %v1800, 0.0
  %v1833 = vsel %vm967, %v1801, 0.0
  %v1834 = vsel %vm968, %v1802, 0.0
  %v1835 = vsel %vm969, %v1803, 0.0
  %v1836 = vpack.c.bf16 %v1805, %v1804
  %v1837 = vpack.c.bf16 %v1807, %v1806
  %v1838 = vpack.c.bf16 %v1809, %v1808
  %v1839 = vpack.c.bf16 %v1811, %v1810
  %v1840 = vpack.c.bf16 %v1813, %v1812
  %v1841 = vpack.c.bf16 %v1815, %v1814
  %v1842 = vpack.c.bf16 %v1817, %v1816
  %v1843 = vpack.c.bf16 %v1819, %v1818
  %v1844 = vpack.c.bf16 %v1821, %v1820
  %v1845 = vpack.c.bf16 %v1823, %v1822
  %v1846 = vpack.c.bf16 %v1825, %v1824
  %v1847 = vpack.c.bf16 %v1827, %v1826
  %v1848 = vpack.c.bf16 %v1829, %v1828
  %v1849 = vpack.c.bf16 %v1831, %v1830
  %v1850 = vpack.c.bf16 %v1833, %v1832
  %v1851 = vpack.c.bf16 %v1835, %v1834
  %1852 = vst.msk [vmem:[#allocation4 + $0x10] sm:$0xff] %vm514, %v1836
  %1853 = vst.msk [vmem:[#allocation4 + $0x28] sm:$0xff] %vm514, %v1837
  %1854 = vst.msk [vmem:[#allocation4 + $0x40] sm:$0xff] %vm514, %v1838
  %1855 = vst.msk [vmem:[#allocation4 + $0x58] sm:$0xff] %vm514, %v1839
  %1856 = vst.msk [vmem:[#allocation4 + $0x70] sm:$0xff] %vm514, %v1840
  %1857 = vst.msk [vmem:[#allocation4 + $0x88] sm:$0xff] %vm514, %v1841
  %1858 = vst.msk [vmem:[#allocation4 + $0xa0] sm:$0xff] %vm514, %v1842
  %1859 = vst.msk [vmem:[#allocation4 + $0xb8] sm:$0xff] %vm514, %v1843
  %1860 = vst.msk [vmem:[#allocation4 + $0xd0] sm:$0xff] %vm514, %v1844
  %1861 = vst.msk [vmem:[#allocation4 + $0xe8] sm:$0xff] %vm514, %v1845
  %1862 = vst.msk [vmem:[#allocation4 + $0x100] sm:$0xff] %vm514, %v1846
  %1863 = vst.msk [vmem:[#allocation4 + $0x118] sm:$0xff] %vm514, %v1847
  %1864 = vst.msk [vmem:[#allocation4 + $0x130] sm:$0xff] %vm514, %v1848
  %1865 = vst.msk [vmem:[#allocation4 + $0x148] sm:$0xff] %vm514, %v1849
  %1866 = vst.msk [vmem:[#allocation4 + $0x160] sm:$0xff] %vm514, %v1850
  %1867 = vst.msk [vmem:[#allocation4 + $0x178] sm:$0xff] %vm514, %v1851
  %v1868 = vld [vmem:[%s0 + $0x100] sm:$0xff]
  %v1869 = vld [vmem:[%s0 + $0x108] sm:$0xff]
  %v1870 = vld [vmem:[%s0 + $0x110] sm:$0xff]
  %v1871 = vld [vmem:[%s0 + $0x118] sm:$0xff]
  %v1872 = vld [vmem:[%s0 + $0x120] sm:$0xff]
  %v1873 = vld [vmem:[%s0 + $0x128] sm:$0xff]
  %v1874 = vld [vmem:[%s0 + $0x130] sm:$0xff]
  %v1875 = vld [vmem:[%s0 + $0x138] sm:$0xff]
  %v1876 = vld [vmem:[%s0 + $0x140] sm:$0xff]
  %v1877 = vld [vmem:[%s0 + $0x148] sm:$0xff]
  %v1878 = vld [vmem:[%s0 + $0x150] sm:$0xff]
  %v1879 = vld [vmem:[%s0 + $0x158] sm:$0xff]
  %v1880 = vld [vmem:[%s0 + $0x160] sm:$0xff]
  %v1881 = vld [vmem:[%s0 + $0x168] sm:$0xff]
  %v1882 = vld [vmem:[%s0 + $0x170] sm:$0xff]
  %v1883 = vld [vmem:[%s0 + $0x178] sm:$0xff]
  %v1884 = vld [vmem:[%s0 + $0x180] sm:$0xff]
  %v1885 = vld [vmem:[%s0 + $0x188] sm:$0xff]
  %v1886 = vld [vmem:[%s0 + $0x190] sm:$0xff]
  %v1887 = vld [vmem:[%s0 + $0x198] sm:$0xff]
  %v1888 = vld [vmem:[%s0 + $0x1a0] sm:$0xff]
  %v1889 = vld [vmem:[%s0 + $0x1a8] sm:$0xff]
  %v1890 = vld [vmem:[%s0 + $0x1b0] sm:$0xff]
  %v1891 = vld [vmem:[%s0 + $0x1b8] sm:$0xff]
  %v1892 = vld [vmem:[%s0 + $0x1c0] sm:$0xff]
  %v1893 = vld [vmem:[%s0 + $0x1c8] sm:$0xff]
  %v1894 = vld [vmem:[%s0 + $0x1d0] sm:$0xff]
  %v1895 = vld [vmem:[%s0 + $0x1d8] sm:$0xff]
  %v1896 = vld [vmem:[%s0 + $0x1e0] sm:$0xff]
  %v1897 = vld [vmem:[%s0 + $0x1e8] sm:$0xff]
  %v1898 = vld [vmem:[%s0 + $0x1f0] sm:$0xff]
  %v1899 = vld [vmem:[%s0 + $0x1f8] sm:$0xff]
  %1900 = vst.msk [vmem:[#allocation3 + $0x18] sm:$0xff] %vm514, %v1868
  %1901 = vst.msk [vmem:[#allocation3 + $0x20] sm:$0xff] %vm514, %v1869
  %1902 = vst.msk [vmem:[#allocation3 + $0x28] sm:$0xff] %vm514, %v1870
  %1903 = vst.msk [vmem:[#allocation3 + $0x30] sm:$0xff] %vm514, %v1871
  %1904 = vst.msk [vmem:[#allocation3 + $0x38] sm:$0xff] %vm514, %v1872
  %1905 = vst.msk [vmem:[#allocation3 + $0x40] sm:$0xff] %vm514, %v1873
  %1906 = vst.msk [vmem:[#allocation3 + $0x48] sm:$0xff] %vm514, %v1874
  %1907 = vst.msk [vmem:[#allocation3 + $0x50] sm:$0xff] %vm514, %v1875
  %1908 = vst.msk [vmem:[#allocation3 + $0x58] sm:$0xff] %vm514, %v1876
  %1909 = vst.msk [vmem:[#allocation3 + $0x60] sm:$0xff] %vm514, %v1877
  %1910 = vst.msk [vmem:[#allocation3 + $0x68] sm:$0xff] %vm514, %v1878
  %1911 = vst.msk [vmem:[#allocation3 + $0x70] sm:$0xff] %vm514, %v1879
  %1912 = vst.msk [vmem:[#allocation3 + $0x78] sm:$0xff] %vm514, %v1880
  %1913 = vst.msk [vmem:[#allocation3 + $0x80] sm:$0xff] %vm514, %v1881
  %1914 = vst.msk [vmem:[#allocation3 + $0x88] sm:$0xff] %vm514, %v1882
  %1915 = vst.msk [vmem:[#allocation3 + $0x90] sm:$0xff] %vm514, %v1883
  %1916 = vst.msk [vmem:[#allocation3 + $0x98] sm:$0xff] %vm514, %v1884
  %1917 = vst.msk [vmem:[#allocation3 + $0xa0] sm:$0xff] %vm514, %v1885
  %1918 = vst.msk [vmem:[#allocation3 + $0xa8] sm:$0xff] %vm514, %v1886
  %1919 = vst.msk [vmem:[#allocation3 + $0xb0] sm:$0xff] %vm514, %v1887
  %1920 = vst.msk [vmem:[#allocation3 + $0xb8] sm:$0xff] %vm514, %v1888
  %1921 = vst.msk [vmem:[#allocation3 + $0xc0] sm:$0xff] %vm514, %v1889
  %1922 = vst.msk [vmem:[#allocation3 + $0xc8] sm:$0xff] %vm514, %v1890
  %1923 = vst.msk [vmem:[#allocation3 + $0xd0] sm:$0xff] %vm514, %v1891
  %1924 = vst.msk [vmem:[#allocation3 + $0xd8] sm:$0xff] %vm514, %v1892
  %1925 = vst.msk [vmem:[#allocation3 + $0xe0] sm:$0xff] %vm514, %v1893
  %1926 = vst.msk [vmem:[#allocation3 + $0xe8] sm:$0xff] %vm514, %v1894
  %1927 = vst.msk [vmem:[#allocation3 + $0xf0] sm:$0xff] %vm514, %v1895
  %1928 = vst.msk [vmem:[#allocation3 + $0xf8] sm:$0xff] %vm514, %v1896
  %1929 = vst.msk [vmem:[#allocation3 + $0x100] sm:$0xff] %vm514, %v1897
  %1930 = vst.msk [vmem:[#allocation3 + $0x108] sm:$0xff] %vm514, %v1898
  %1931 = vst.msk [vmem:[#allocation3 + $0x110] sm:$0xff] %vm514, %v1899
  %v1932 = vld [vmem:[#allocation3 + $0x7] sm:$0xff]
  %v1933 = vld [vmem:[#allocation3 + $0xf] sm:$0xff]
  %v1934 = vld [vmem:[#allocation3 + $0x17] sm:$0xff]
  %v1935 = vld [vmem:[#allocation3 + $0x1f] sm:$0xff]
  %v1936 = vld [vmem:[#allocation3 + $0x27] sm:$0xff]
  %v1937 = vld [vmem:[#allocation3 + $0x2f] sm:$0xff]
  %v1938 = vld [vmem:[#allocation3 + $0x37] sm:$0xff]
  %v1939 = vld [vmem:[#allocation3 + $0x3f] sm:$0xff]
  %v1940 = vld [vmem:[#allocation3 + $0x47] sm:$0xff]
  %v1941 = vld [vmem:[#allocation3 + $0x4f] sm:$0xff]
  %v1942 = vld [vmem:[#allocation3 + $0x57] sm:$0xff]
  %v1943 = vld [vmem:[#allocation3 + $0x5f] sm:$0xff]
  %v1944 = vld [vmem:[#allocation3 + $0x67] sm:$0xff]
  %v1945 = vld [vmem:[#allocation3 + $0x6f] sm:$0xff]
  %v1946 = vld [vmem:[#allocation3 + $0x77] sm:$0xff]
  %v1947 = vld [vmem:[#allocation3 + $0x7f] sm:$0xff]
  %v1948 = vld [vmem:[#allocation3 + $0x87] sm:$0xff]
  %v1949 = vld [vmem:[#allocation3 + $0x8f] sm:$0xff]
  %v1950 = vld [vmem:[#allocation3 + $0x97] sm:$0xff]
  %v1951 = vld [vmem:[#allocation3 + $0x9f] sm:$0xff]
  %v1952 = vld [vmem:[#allocation3 + $0xa7] sm:$0xff]
  %v1953 = vld [vmem:[#allocation3 + $0xaf] sm:$0xff]
  %v1954 = vld [vmem:[#allocation3 + $0xb7] sm:$0xff]
  %v1955 = vld [vmem:[#allocation3 + $0xbf] sm:$0xff]
  %v1956 = vld [vmem:[#allocation3 + $0xc7] sm:$0xff]
  %v1957 = vld [vmem:[#allocation3 + $0xcf] sm:$0xff]
  %v1958 = vld [vmem:[#allocation3 + $0xd7] sm:$0xff]
  %v1959 = vld [vmem:[#allocation3 + $0xdf] sm:$0xff]
  %v1960 = vld [vmem:[#allocation3 + $0xe7] sm:$0xff]
  %v1961 = vld [vmem:[#allocation3 + $0xef] sm:$0xff]
  %v1962 = vld [vmem:[#allocation3 + $0xf7] sm:$0xff]
  %v1963 = vld [vmem:[#allocation3 + $0xff] sm:$0xff]
  %v1964 = vsel %vm649, %v1932, 0.0
  %v1965 = vsel %vm650, %v1933, 0.0
  %v1966 = vsel %vm651, %v1934, 0.0
  %v1967 = vsel %vm652, %v1935, 0.0
  %v1968 = vsel %vm653, %v1936, 0.0
  %v1969 = vsel %vm654, %v1937, 0.0
  %v1970 = vsel %vm655, %v1938, 0.0
  %v1971 = vsel %vm656, %v1939, 0.0
  %v1972 = vsel %vm657, %v1940, 0.0
  %v1973 = vsel %vm658, %v1941, 0.0
  %v1974 = vsel %vm659, %v1942, 0.0
  %v1975 = vsel %vm660, %v1943, 0.0
  %v1976 = vsel %vm661, %v1944, 0.0
  %v1977 = vsel %vm662, %v1945, 0.0
  %v1978 = vsel %vm663, %v1946, 0.0
  %v1979 = vsel %vm664, %v1947, 0.0
  %v1980 = vsel %vm665, %v1948, 0.0
  %v1981 = vsel %vm666, %v1949, 0.0
  %v1982 = vsel %vm667, %v1950, 0.0
  %v1983 = vsel %vm668, %v1951, 0.0
  %v1984 = vsel %vm669, %v1952, 0.0
  %v1985 = vsel %vm670, %v1953, 0.0
  %v1986 = vsel %vm671, %v1954, 0.0
  %v1987 = vsel %vm672, %v1955, 0.0
  %v1988 = vsel %vm673, %v1956, 0.0
  %v1989 = vsel %vm674, %v1957, 0.0
  %v1990 = vsel %vm675, %v1958, 0.0
  %v1991 = vsel %vm676, %v1959, 0.0
  %v1992 = vsel %vm677, %v1960, 0.0
  %v1993 = vsel %vm678, %v1961, 0.0
  %v1994 = vsel %vm679, %v1962, 0.0
  %v1995 = vsel %vm680, %v1963, 0.0
  %v1996 = vpack.c.bf16 %v1965, %v1964
  %v1997 = vpack.c.bf16 %v1967, %v1966
  %v1998 = vpack.c.bf16 %v1969, %v1968
  %v1999 = vpack.c.bf16 %v1971, %v1970
  %v2000 = vpack.c.bf16 %v1973, %v1972
  %v2001 = vpack.c.bf16 %v1975, %v1974
  %v2002 = vpack.c.bf16 %v1977, %v1976
  %v2003 = vpack.c.bf16 %v1979, %v1978
  %v2004 = vpack.c.bf16 %v1981, %v1980
  %v2005 = vpack.c.bf16 %v1983, %v1982
  %v2006 = vpack.c.bf16 %v1985, %v1984
  %v2007 = vpack.c.bf16 %v1987, %v1986
  %v2008 = vpack.c.bf16 %v1989, %v1988
  %v2009 = vpack.c.bf16 %v1991, %v1990
  %v2010 = vpack.c.bf16 %v1993, %v1992
  %v2011 = vpack.c.bf16 %v1995, %v1994
  %2012 = vst.msk [vmem:[#allocation4 + $0x180] sm:$0xff] %vm514, %v1996
  %2013 = vst.msk [vmem:[#allocation4 + $0x198] sm:$0xff] %vm514, %v1997
  %2014 = vst.msk [vmem:[#allocation4 + $0x1b0] sm:$0xff] %vm514, %v1998
  %2015 = vst.msk [vmem:[#allocation4 + $0x1c8] sm:$0xff] %vm514, %v1999
  %2016 = vst.msk [vmem:[#allocation4 + $0x1e0] sm:$0xff] %vm514, %v2000
  %2017 = vst.msk [vmem:[#allocation4 + $0x1f8] sm:$0xff] %vm514, %v2001
  %2018 = vst.msk [vmem:[#allocation4 + $0x210] sm:$0xff] %vm514, %v2002
  %2019 = vst.msk [vmem:[#allocation4 + $0x228] sm:$0xff] %vm514, %v2003
  %2020 = vst.msk [vmem:[#allocation4 + $0x240] sm:$0xff] %vm514, %v2004
  %2021 = vst.msk [vmem:[#allocation4 + $0x258] sm:$0xff] %vm514, %v2005
  %2022 = vst.msk [vmem:[#allocation4 + $0x270] sm:$0xff] %vm514, %v2006
  %2023 = vst.msk [vmem:[#allocation4 + $0x288] sm:$0xff] %vm514, %v2007
  %2024 = vst.msk [vmem:[#allocation4 + $0x2a0] sm:$0xff] %vm514, %v2008
  %2025 = vst.msk [vmem:[#allocation4 + $0x2b8] sm:$0xff] %vm514, %v2009
  %2026 = vst.msk [vmem:[#allocation4 + $0x2d0] sm:$0xff] %vm514, %v2010
  %2027 = vst.msk [vmem:[#allocation4 + $0x2e8] sm:$0xff] %vm514, %v2011
  %v2028 = vld [vmem:[#allocation3 + $0x8] sm:$0xff]
  %v2029 = vld [vmem:[#allocation3 + $0x10] sm:$0xff]
  %v2030 = vld [vmem:[#allocation3 + $0x18] sm:$0xff]
  %v2031 = vld [vmem:[#allocation3 + $0x20] sm:$0xff]
  %v2032 = vld [vmem:[#allocation3 + $0x28] sm:$0xff]
  %v2033 = vld [vmem:[#allocation3 + $0x30] sm:$0xff]
  %v2034 = vld [vmem:[#allocation3 + $0x38] sm:$0xff]
  %v2035 = vld [vmem:[#allocation3 + $0x40] sm:$0xff]
  %v2036 = vld [vmem:[#allocation3 + $0x48] sm:$0xff]
  %v2037 = vld [vmem:[#allocation3 + $0x50] sm:$0xff]
  %v2038 = vld [vmem:[#allocation3 + $0x58] sm:$0xff]
  %v2039 = vld [vmem:[#allocation3 + $0x60] sm:$0xff]
  %v2040 = vld [vmem:[#allocation3 + $0x68] sm:$0xff]
  %v2041 = vld [vmem:[#allocation3 + $0x70] sm:$0xff]
  %v2042 = vld [vmem:[#allocation3 + $0x78] sm:$0xff]
  %v2043 = vld [vmem:[#allocation3 + $0x80] sm:$0xff]
  %v2044 = vld [vmem:[#allocation3 + $0x88] sm:$0xff]
  %v2045 = vld [vmem:[#allocation3 + $0x90] sm:$0xff]
  %v2046 = vld [vmem:[#allocation3 + $0x98] sm:$0xff]
  %v2047 = vld [vmem:[#allocation3 + $0xa0] sm:$0xff]
  %v2048 = vld [vmem:[#allocation3 + $0xa8] sm:$0xff]
  %v2049 = vld [vmem:[#allocation3 + $0xb0] sm:$0xff]
  %v2050 = vld [vmem:[#allocation3 + $0xb8] sm:$0xff]
  %v2051 = vld [vmem:[#allocation3 + $0xc0] sm:$0xff]
  %v2052 = vld [vmem:[#allocation3 + $0xc8] sm:$0xff]
  %v2053 = vld [vmem:[#allocation3 + $0xd0] sm:$0xff]
  %v2054 = vld [vmem:[#allocation3 + $0xd8] sm:$0xff]
  %v2055 = vld [vmem:[#allocation3 + $0xe0] sm:$0xff]
  %v2056 = vld [vmem:[#allocation3 + $0xe8] sm:$0xff]
  %v2057 = vld [vmem:[#allocation3 + $0xf0] sm:$0xff]
  %v2058 = vld [vmem:[#allocation3 + $0xf8] sm:$0xff]
  %v2059 = vld [vmem:[#allocation3 + $0x100] sm:$0xff]
  %v2060 = vpack.c.bf16 %v2029, %v2028
  %v2061 = vpack.c.bf16 %v2031, %v2030
  %v2062 = vpack.c.bf16 %v2033, %v2032
  %v2063 = vpack.c.bf16 %v2035, %v2034
  %v2064 = vpack.c.bf16 %v2037, %v2036
  %v2065 = vpack.c.bf16 %v2039, %v2038
  %v2066 = vpack.c.bf16 %v2041, %v2040
  %v2067 = vpack.c.bf16 %v2043, %v2042
  %v2068 = vpack.c.bf16 %v2045, %v2044
  %v2069 = vpack.c.bf16 %v2047, %v2046
  %v2070 = vpack.c.bf16 %v2049, %v2048
  %v2071 = vpack.c.bf16 %v2051, %v2050
  %v2072 = vpack.c.bf16 %v2053, %v2052
  %v2073 = vpack.c.bf16 %v2055, %v2054
  %v2074 = vpack.c.bf16 %v2057, %v2056
  %v2075 = vpack.c.bf16 %v2059, %v2058
  %2092 = vrot.lane.b32.xlu0 %v2060, 32
  %v2093 = vpop.permute.xlu0 %2092
  %2094 = vrot.lane.b32.xlu0 %v2061, 32
  %v2095 = vpop.permute.xlu0 %2094
  %2096 = vrot.lane.b32.xlu0 %v2062, 32
  %v2097 = vpop.permute.xlu0 %2096
  %2098 = vrot.lane.b32.xlu0 %v2063, 32
  %v2099 = vpop.permute.xlu0 %2098
  %2100 = vrot.lane.b32.xlu0 %v2064, 32
  %v2101 = vpop.permute.xlu0 %2100
  %2102 = vrot.lane.b32.xlu0 %v2065, 32
  %v2103 = vpop.permute.xlu0 %2102
  %2104 = vrot.lane.b32.xlu0 %v2066, 32
  %v2105 = vpop.permute.xlu0 %2104
  %2106 = vrot.lane.b32.xlu0 %v2067, 32
  %v2107 = vpop.permute.xlu0 %2106
  %2108 = vrot.lane.b32.xlu0 %v2068, 32
  %v2109 = vpop.permute.xlu0 %2108
  %2110 = vrot.lane.b32.xlu0 %v2069, 32
  %v2111 = vpop.permute.xlu0 %2110
  %2112 = vrot.lane.b32.xlu0 %v2070, 32
  %v2113 = vpop.permute.xlu0 %2112
  %2114 = vrot.lane.b32.xlu0 %v2071, 32
  %v2115 = vpop.permute.xlu0 %2114
  %2116 = vrot.lane.b32.xlu0 %v2072, 32
  %v2117 = vpop.permute.xlu0 %2116
  %2118 = vrot.lane.b32.xlu0 %v2073, 32
  %v2119 = vpop.permute.xlu0 %2118
  %2120 = vrot.lane.b32.xlu0 %v2074, 32
  %v2121 = vpop.permute.xlu0 %2120
  %2122 = vrot.lane.b32.xlu0 %v2075, 32
  %v2123 = vpop.permute.xlu0 %2122
  %2140 = vst.msk [vmem:[#allocation4 + $0x180] sm:$0xff] %vm857, %v2093
  %2141 = vst.msk [vmem:[#allocation4 + $0x198] sm:$0xff] %vm857, %v2095
  %2142 = vst.msk [vmem:[#allocation4 + $0x1b0] sm:$0xff] %vm857, %v2097
  %2143 = vst.msk [vmem:[#allocation4 + $0x1c8] sm:$0xff] %vm857, %v2099
  %2144 = vst.msk [vmem:[#allocation4 + $0x1e0] sm:$0xff] %vm857, %v2101
  %2145 = vst.msk [vmem:[#allocation4 + $0x1f8] sm:$0xff] %vm857, %v2103
  %2146 = vst.msk [vmem:[#allocation4 + $0x210] sm:$0xff] %vm857, %v2105
  %2147 = vst.msk [vmem:[#allocation4 + $0x228] sm:$0xff] %vm857, %v2107
  %2148 = vst.msk [vmem:[#allocation4 + $0x240] sm:$0xff] %vm857, %v2109
  %2149 = vst.msk [vmem:[#allocation4 + $0x258] sm:$0xff] %vm857, %v2111
  %2150 = vst.msk [vmem:[#allocation4 + $0x270] sm:$0xff] %vm857, %v2113
  %2151 = vst.msk [vmem:[#allocation4 + $0x288] sm:$0xff] %vm857, %v2115
  %2152 = vst.msk [vmem:[#allocation4 + $0x2a0] sm:$0xff] %vm857, %v2117
  %2153 = vst.msk [vmem:[#allocation4 + $0x2b8] sm:$0xff] %vm857, %v2119
  %2154 = vst.msk [vmem:[#allocation4 + $0x2d0] sm:$0xff] %vm857, %v2121
  %2155 = vst.msk [vmem:[#allocation4 + $0x2e8] sm:$0xff] %vm857, %v2123
  %v2156 = vld [vmem:[#allocation3 + $0x9] sm:$0xff]
  %v2157 = vld [vmem:[#allocation3 + $0x11] sm:$0xff]
  %v2158 = vld [vmem:[#allocation3 + $0x19] sm:$0xff]
  %v2159 = vld [vmem:[#allocation3 + $0x21] sm:$0xff]
  %v2160 = vld [vmem:[#allocation3 + $0x29] sm:$0xff]
  %v2161 = vld [vmem:[#allocation3 + $0x31] sm:$0xff]
  %v2162 = vld [vmem:[#allocation3 + $0x39] sm:$0xff]
  %v2163 = vld [vmem:[#allocation3 + $0x41] sm:$0xff]
  %v2164 = vld [vmem:[#allocation3 + $0x49] sm:$0xff]
  %v2165 = vld [vmem:[#allocation3 + $0x51] sm:$0xff]
  %v2166 = vld [vmem:[#allocation3 + $0x59] sm:$0xff]
  %v2167 = vld [vmem:[#allocation3 + $0x61] sm:$0xff]
  %v2168 = vld [vmem:[#allocation3 + $0x69] sm:$0xff]
  %v2169 = vld [vmem:[#allocation3 + $0x71] sm:$0xff]
  %v2170 = vld [vmem:[#allocation3 + $0x79] sm:$0xff]
  %v2171 = vld [vmem:[#allocation3 + $0x81] sm:$0xff]
  %v2172 = vld [vmem:[#allocation3 + $0x89] sm:$0xff]
  %v2173 = vld [vmem:[#allocation3 + $0x91] sm:$0xff]
  %v2174 = vld [vmem:[#allocation3 + $0x99] sm:$0xff]
  %v2175 = vld [vmem:[#allocation3 + $0xa1] sm:$0xff]
  %v2176 = vld [vmem:[#allocation3 + $0xa9] sm:$0xff]
  %v2177 = vld [vmem:[#allocation3 + $0xb1] sm:$0xff]
  %v2178 = vld [vmem:[#allocation3 + $0xb9] sm:$0xff]
  %v2179 = vld [vmem:[#allocation3 + $0xc1] sm:$0xff]
  %v2180 = vld [vmem:[#allocation3 + $0xc9] sm:$0xff]
  %v2181 = vld [vmem:[#allocation3 + $0xd1] sm:$0xff]
  %v2182 = vld [vmem:[#allocation3 + $0xd9] sm:$0xff]
  %v2183 = vld [vmem:[#allocation3 + $0xe1] sm:$0xff]
  %v2184 = vld [vmem:[#allocation3 + $0xe9] sm:$0xff]
  %v2185 = vld [vmem:[#allocation3 + $0xf1] sm:$0xff]
  %v2186 = vld [vmem:[#allocation3 + $0xf9] sm:$0xff]
  %v2187 = vld [vmem:[#allocation3 + $0x101] sm:$0xff]
  %v2188 = vsel %vm938, %v2156, 0.0
  %v2189 = vsel %vm939, %v2157, 0.0
  %v2190 = vsel %vm940, %v2158, 0.0
  %v2191 = vsel %vm941, %v2159, 0.0
  %v2192 = vsel %vm942, %v2160, 0.0
  %v2193 = vsel %vm943, %v2161, 0.0
  %v2194 = vsel %vm944, %v2162, 0.0
  %v2195 = vsel %vm945, %v2163, 0.0
  %v2196 = vsel %vm946, %v2164, 0.0
  %v2197 = vsel %vm947, %v2165, 0.0
  %v2198 = vsel %vm948, %v2166, 0.0
  %v2199 = vsel %vm949, %v2167, 0.0
  %v2200 = vsel %vm950, %v2168, 0.0
  %v2201 = vsel %vm951, %v2169, 0.0
  %v2202 = vsel %vm952, %v2170, 0.0
  %v2203 = vsel %vm953, %v2171, 0.0
  %v2204 = vsel %vm954, %v2172, 0.0
  %v2205 = vsel %vm955, %v2173, 0.0
  %v2206 = vsel %vm956, %v2174, 0.0
  %v2207 = vsel %vm957, %v2175, 0.0
  %v2208 = vsel %vm958, %v2176, 0.0
  %v2209 = vsel %vm959, %v2177, 0.0
  %v2210 = vsel %vm960, %v2178, 0.0
  %v2211 = vsel %vm961, %v2179, 0.0
  %v2212 = vsel %vm962, %v2180, 0.0
  %v2213 = vsel %vm963, %v2181, 0.0
  %v2214 = vsel %vm964, %v2182, 0.0
  %v2215 = vsel %vm965, %v2183, 0.0
  %v2216 = vsel %vm966, %v2184, 0.0
  %v2217 = vsel %vm967, %v2185, 0.0
  %v2218 = vsel %vm968, %v2186, 0.0
  %v2219 = vsel %vm969, %v2187, 0.0
  %v2220 = vpack.c.bf16 %v2189, %v2188
  %v2221 = vpack.c.bf16 %v2191, %v2190
  %v2222 = vpack.c.bf16 %v2193, %v2192
  %v2223 = vpack.c.bf16 %v2195, %v2194
  %v2224 = vpack.c.bf16 %v2197, %v2196
  %v2225 = vpack.c.bf16 %v2199, %v2198
  %v2226 = vpack.c.bf16 %v2201, %v2200
  %v2227 = vpack.c.bf16 %v2203, %v2202
  %v2228 = vpack.c.bf16 %v2205, %v2204
  %v2229 = vpack.c.bf16 %v2207, %v2206
  %v2230 = vpack.c.bf16 %v2209, %v2208
  %v2231 = vpack.c.bf16 %v2211, %v2210
  %v2232 = vpack.c.bf16 %v2213, %v2212
  %v2233 = vpack.c.bf16 %v2215, %v2214
  %v2234 = vpack.c.bf16 %v2217, %v2216
  %v2235 = vpack.c.bf16 %v2219, %v2218
  %2252 = vrot.lane.b32.xlu0 %v2220, 64
  %v2253 = vpop.permute.xlu0 %2252
  %2254 = vrot.lane.b32.xlu0 %v2221, 64
  %v2255 = vpop.permute.xlu0 %2254
  %2256 = vrot.lane.b32.xlu0 %v2222, 64
  %v2257 = vpop.permute.xlu0 %2256
  %2258 = vrot.lane.b32.xlu0 %v2223, 64
  %v2259 = vpop.permute.xlu0 %2258
  %2260 = vrot.lane.b32.xlu0 %v2224, 64
  %v2261 = vpop.permute.xlu0 %2260
  %2262 = vrot.lane.b32.xlu0 %v2225, 64
  %v2263 = vpop.permute.xlu0 %2262
  %2264 = vrot.lane.b32.xlu0 %v2226, 64
  %v2265 = vpop.permute.xlu0 %2264
  %2266 = vrot.lane.b32.xlu0 %v2227, 64
  %v2267 = vpop.permute.xlu0 %2266
  %2268 = vrot.lane.b32.xlu0 %v2228, 64
  %v2269 = vpop.permute.xlu0 %2268
  %2270 = vrot.lane.b32.xlu0 %v2229, 64
  %v2271 = vpop.permute.xlu0 %2270
  %2272 = vrot.lane.b32.xlu0 %v2230, 64
  %v2273 = vpop.permute.xlu0 %2272
  %2274 = vrot.lane.b32.xlu0 %v2231, 64
  %v2275 = vpop.permute.xlu0 %2274
  %2276 = vrot.lane.b32.xlu0 %v2232, 64
  %v2277 = vpop.permute.xlu0 %2276
  %2278 = vrot.lane.b32.xlu0 %v2233, 64
  %v2279 = vpop.permute.xlu0 %2278
  %2280 = vrot.lane.b32.xlu0 %v2234, 64
  %v2281 = vpop.permute.xlu0 %2280
  %2282 = vrot.lane.b32.xlu0 %v2235, 64
  %v2283 = vpop.permute.xlu0 %2282
  %2300 = vst.msk [vmem:[#allocation4 + $0x180] sm:$0xff] %vm1082, %v2253
  %2301 = vst.msk [vmem:[#allocation4 + $0x198] sm:$0xff] %vm1082, %v2255
  %2302 = vst.msk [vmem:[#allocation4 + $0x1b0] sm:$0xff] %vm1082, %v2257
  %2303 = vst.msk [vmem:[#allocation4 + $0x1c8] sm:$0xff] %vm1082, %v2259
  %2304 = vst.msk [vmem:[#allocation4 + $0x1e0] sm:$0xff] %vm1082, %v2261
  %2305 = vst.msk [vmem:[#allocation4 + $0x1f8] sm:$0xff] %vm1082, %v2263
  %2306 = vst.msk [vmem:[#allocation4 + $0x210] sm:$0xff] %vm1082, %v2265
  %2307 = vst.msk [vmem:[#allocation4 + $0x228] sm:$0xff] %vm1082, %v2267
  %2308 = vst.msk [vmem:[#allocation4 + $0x240] sm:$0xff] %vm1082, %v2269
  %2309 = vst.msk [vmem:[#allocation4 + $0x258] sm:$0xff] %vm1082, %v2271
  %2310 = vst.msk [vmem:[#allocation4 + $0x270] sm:$0xff] %vm1082, %v2273
  %2311 = vst.msk [vmem:[#allocation4 + $0x288] sm:$0xff] %vm1082, %v2275
  %2312 = vst.msk [vmem:[#allocation4 + $0x2a0] sm:$0xff] %vm1082, %v2277
  %2313 = vst.msk [vmem:[#allocation4 + $0x2b8] sm:$0xff] %vm1082, %v2279
  %2314 = vst.msk [vmem:[#allocation4 + $0x2d0] sm:$0xff] %vm1082, %v2281
  %2315 = vst.msk [vmem:[#allocation4 + $0x2e8] sm:$0xff] %vm1082, %v2283
  %v2316 = vld [vmem:[#allocation3 + $0x17] sm:$0xff]
  %v2317 = vld [vmem:[#allocation3 + $0x1f] sm:$0xff]
  %v2318 = vld [vmem:[#allocation3 + $0x27] sm:$0xff]
  %v2319 = vld [vmem:[#allocation3 + $0x2f] sm:$0xff]
  %v2320 = vld [vmem:[#allocation3 + $0x37] sm:$0xff]
  %v2321 = vld [vmem:[#allocation3 + $0x3f] sm:$0xff]
  %v2322 = vld [vmem:[#allocation3 + $0x47] sm:$0xff]
  %v2323 = vld [vmem:[#allocation3 + $0x4f] sm:$0xff]
  %v2324 = vld [vmem:[#allocation3 + $0x57] sm:$0xff]
  %v2325 = vld [vmem:[#allocation3 + $0x5f] sm:$0xff]
  %v2326 = vld [vmem:[#allocation3 + $0x67] sm:$0xff]
  %v2327 = vld [vmem:[#allocation3 + $0x6f] sm:$0xff]
  %v2328 = vld [vmem:[#allocation3 + $0x77] sm:$0xff]
  %v2329 = vld [vmem:[#allocation3 + $0x7f] sm:$0xff]
  %v2330 = vld [vmem:[#allocation3 + $0x87] sm:$0xff]
  %v2331 = vld [vmem:[#allocation3 + $0x8f] sm:$0xff]
  %v2332 = vld [vmem:[#allocation3 + $0x97] sm:$0xff]
  %v2333 = vld [vmem:[#allocation3 + $0x9f] sm:$0xff]
  %v2334 = vld [vmem:[#allocation3 + $0xa7] sm:$0xff]
  %v2335 = vld [vmem:[#allocation3 + $0xaf] sm:$0xff]
  %v2336 = vld [vmem:[#allocation3 + $0xb7] sm:$0xff]
  %v2337 = vld [vmem:[#allocation3 + $0xbf] sm:$0xff]
  %v2338 = vld [vmem:[#allocation3 + $0xc7] sm:$0xff]
  %v2339 = vld [vmem:[#allocation3 + $0xcf] sm:$0xff]
  %v2340 = vld [vmem:[#allocation3 + $0xd7] sm:$0xff]
  %v2341 = vld [vmem:[#allocation3 + $0xdf] sm:$0xff]
  %v2342 = vld [vmem:[#allocation3 + $0xe7] sm:$0xff]
  %v2343 = vld [vmem:[#allocation3 + $0xef] sm:$0xff]
  %v2344 = vld [vmem:[#allocation3 + $0xf7] sm:$0xff]
  %v2345 = vld [vmem:[#allocation3 + $0xff] sm:$0xff]
  %v2346 = vld [vmem:[#allocation3 + $0x107] sm:$0xff]
  %v2347 = vld [vmem:[#allocation3 + $0x10f] sm:$0xff]
  %v2348 = vsel %vm649, %v2316, 0.0
  %v2349 = vsel %vm650, %v2317, 0.0
  %v2350 = vsel %vm651, %v2318, 0.0
  %v2351 = vsel %vm652, %v2319, 0.0
  %v2352 = vsel %vm653, %v2320, 0.0
  %v2353 = vsel %vm654, %v2321, 0.0
  %v2354 = vsel %vm655, %v2322, 0.0
  %v2355 = vsel %vm656, %v2323, 0.0
  %v2356 = vsel %vm657, %v2324, 0.0
  %v2357 = vsel %vm658, %v2325, 0.0
  %v2358 = vsel %vm659, %v2326, 0.0
  %v2359 = vsel %vm660, %v2327, 0.0
  %v2360 = vsel %vm661, %v2328, 0.0
  %v2361 = vsel %vm662, %v2329, 0.0
  %v2362 = vsel %vm663, %v2330, 0.0
  %v2363 = vsel %vm664, %v2331, 0.0
  %v2364 = vsel %vm665, %v2332, 0.0
  %v2365 = vsel %vm666, %v2333, 0.0
  %v2366 = vsel %vm667, %v2334, 0.0
  %v2367 = vsel %vm668, %v2335, 0.0
  %v2368 = vsel %vm669, %v2336, 0.0
  %v2369 = vsel %vm670, %v2337, 0.0
  %v2370 = vsel %vm671, %v2338, 0.0
  %v2371 = vsel %vm672, %v2339, 0.0
  %v2372 = vsel %vm673, %v2340, 0.0
  %v2373 = vsel %vm674, %v2341, 0.0
  %v2374 = vsel %vm675, %v2342, 0.0
  %v2375 = vsel %vm676, %v2343, 0.0
  %v2376 = vsel %vm677, %v2344, 0.0
  %v2377 = vsel %vm678, %v2345, 0.0
  %v2378 = vsel %vm679, %v2346, 0.0
  %v2379 = vsel %vm680, %v2347, 0.0
  %v2380 = vpack.c.bf16 %v2349, %v2348
  %v2381 = vpack.c.bf16 %v2351, %v2350
  %v2382 = vpack.c.bf16 %v2353, %v2352
  %v2383 = vpack.c.bf16 %v2355, %v2354
  %v2384 = vpack.c.bf16 %v2357, %v2356
  %v2385 = vpack.c.bf16 %v2359, %v2358
  %v2386 = vpack.c.bf16 %v2361, %v2360
  %v2387 = vpack.c.bf16 %v2363, %v2362
  %v2388 = vpack.c.bf16 %v2365, %v2364
  %v2389 = vpack.c.bf16 %v2367, %v2366
  %v2390 = vpack.c.bf16 %v2369, %v2368
  %v2391 = vpack.c.bf16 %v2371, %v2370
  %v2392 = vpack.c.bf16 %v2373, %v2372
  %v2393 = vpack.c.bf16 %v2375, %v2374
  %v2394 = vpack.c.bf16 %v2377, %v2376
  %v2395 = vpack.c.bf16 %v2379, %v2378
  %2412 = vrot.lane.b32.xlu0 %v2380, 96
  %v2413 = vpop.permute.xlu0 %2412
  %2414 = vrot.lane.b32.xlu0 %v2381, 96
  %v2415 = vpop.permute.xlu0 %2414
  %2416 = vrot.lane.b32.xlu0 %v2382, 96
  %v2417 = vpop.permute.xlu0 %2416
  %2418 = vrot.lane.b32.xlu0 %v2383, 96
  %v2419 = vpop.permute.xlu0 %2418
  %2420 = vrot.lane.b32.xlu0 %v2384, 96
  %v2421 = vpop.permute.xlu0 %2420
  %2422 = vrot.lane.b32.xlu0 %v2385, 96
  %v2423 = vpop.permute.xlu0 %2422
  %2424 = vrot.lane.b32.xlu0 %v2386, 96
  %v2425 = vpop.permute.xlu0 %2424
  %2426 = vrot.lane.b32.xlu0 %v2387, 96
  %v2427 = vpop.permute.xlu0 %2426
  %2428 = vrot.lane.b32.xlu0 %v2388, 96
  %v2429 = vpop.permute.xlu0 %2428
  %2430 = vrot.lane.b32.xlu0 %v2389, 96
  %v2431 = vpop.permute.xlu0 %2430
  %2432 = vrot.lane.b32.xlu0 %v2390, 96
  %v2433 = vpop.permute.xlu0 %2432
  %2434 = vrot.lane.b32.xlu0 %v2391, 96
  %v2435 = vpop.permute.xlu0 %2434
  %2436 = vrot.lane.b32.xlu0 %v2392, 96
  %v2437 = vpop.permute.xlu0 %2436
  %2438 = vrot.lane.b32.xlu0 %v2393, 96
  %v2439 = vpop.permute.xlu0 %2438
  %2440 = vrot.lane.b32.xlu0 %v2394, 96
  %v2441 = vpop.permute.xlu0 %2440
  %2442 = vrot.lane.b32.xlu0 %v2395, 96
  %v2443 = vpop.permute.xlu0 %2442
  %2460 = vst.msk [vmem:[#allocation4 + $0x180] sm:$0xff] %vm1243, %v2413
  %2461 = vst.msk [vmem:[#allocation4 + $0x198] sm:$0xff] %vm1243, %v2415
  %2462 = vst.msk [vmem:[#allocation4 + $0x1b0] sm:$0xff] %vm1243, %v2417
  %2463 = vst.msk [vmem:[#allocation4 + $0x1c8] sm:$0xff] %vm1243, %v2419
  %2464 = vst.msk [vmem:[#allocation4 + $0x1e0] sm:$0xff] %vm1243, %v2421
  %2465 = vst.msk [vmem:[#allocation4 + $0x1f8] sm:$0xff] %vm1243, %v2423
  %2466 = vst.msk [vmem:[#allocation4 + $0x210] sm:$0xff] %vm1243, %v2425
  %2467 = vst.msk [vmem:[#allocation4 + $0x228] sm:$0xff] %vm1243, %v2427
  %2468 = vst.msk [vmem:[#allocation4 + $0x240] sm:$0xff] %vm1243, %v2429
  %2469 = vst.msk [vmem:[#allocation4 + $0x258] sm:$0xff] %vm1243, %v2431
  %2470 = vst.msk [vmem:[#allocation4 + $0x270] sm:$0xff] %vm1243, %v2433
  %2471 = vst.msk [vmem:[#allocation4 + $0x288] sm:$0xff] %vm1243, %v2435
  %2472 = vst.msk [vmem:[#allocation4 + $0x2a0] sm:$0xff] %vm1243, %v2437
  %2473 = vst.msk [vmem:[#allocation4 + $0x2b8] sm:$0xff] %vm1243, %v2439
  %2474 = vst.msk [vmem:[#allocation4 + $0x2d0] sm:$0xff] %vm1243, %v2441
  %2475 = vst.msk [vmem:[#allocation4 + $0x2e8] sm:$0xff] %vm1243, %v2443
  %v2476 = vld [vmem:[#allocation3 + $0x18] sm:$0xff]
  %v2477 = vld [vmem:[#allocation3 + $0x20] sm:$0xff]
  %v2478 = vld [vmem:[#allocation3 + $0x28] sm:$0xff]
  %v2479 = vld [vmem:[#allocation3 + $0x30] sm:$0xff]
  %v2480 = vld [vmem:[#allocation3 + $0x38] sm:$0xff]
  %v2481 = vld [vmem:[#allocation3 + $0x40] sm:$0xff]
  %v2482 = vld [vmem:[#allocation3 + $0x48] sm:$0xff]
  %v2483 = vld [vmem:[#allocation3 + $0x50] sm:$0xff]
  %v2484 = vld [vmem:[#allocation3 + $0x58] sm:$0xff]
  %v2485 = vld [vmem:[#allocation3 + $0x60] sm:$0xff]
  %v2486 = vld [vmem:[#allocation3 + $0x68] sm:$0xff]
  %v2487 = vld [vmem:[#allocation3 + $0x70] sm:$0xff]
  %v2488 = vld [vmem:[#allocation3 + $0x78] sm:$0xff]
  %v2489 = vld [vmem:[#allocation3 + $0x80] sm:$0xff]
  %v2490 = vld [vmem:[#allocation3 + $0x88] sm:$0xff]
  %v2491 = vld [vmem:[#allocation3 + $0x90] sm:$0xff]
  %v2492 = vld [vmem:[#allocation3 + $0x98] sm:$0xff]
  %v2493 = vld [vmem:[#allocation3 + $0xa0] sm:$0xff]
  %v2494 = vld [vmem:[#allocation3 + $0xa8] sm:$0xff]
  %v2495 = vld [vmem:[#allocation3 + $0xb0] sm:$0xff]
  %v2496 = vld [vmem:[#allocation3 + $0xb8] sm:$0xff]
  %v2497 = vld [vmem:[#allocation3 + $0xc0] sm:$0xff]
  %v2498 = vld [vmem:[#allocation3 + $0xc8] sm:$0xff]
  %v2499 = vld [vmem:[#allocation3 + $0xd0] sm:$0xff]
  %v2500 = vld [vmem:[#allocation3 + $0xd8] sm:$0xff]
  %v2501 = vld [vmem:[#allocation3 + $0xe0] sm:$0xff]
  %v2502 = vld [vmem:[#allocation3 + $0xe8] sm:$0xff]
  %v2503 = vld [vmem:[#allocation3 + $0xf0] sm:$0xff]
  %v2504 = vld [vmem:[#allocation3 + $0xf8] sm:$0xff]
  %v2505 = vld [vmem:[#allocation3 + $0x100] sm:$0xff]
  %v2506 = vld [vmem:[#allocation3 + $0x108] sm:$0xff]
  %v2507 = vld [vmem:[#allocation3 + $0x110] sm:$0xff]
  %v2508 = vpack.c.bf16 %v2477, %v2476
  %v2509 = vpack.c.bf16 %v2479, %v2478
  %v2510 = vpack.c.bf16 %v2481, %v2480
  %v2511 = vpack.c.bf16 %v2483, %v2482
  %v2512 = vpack.c.bf16 %v2485, %v2484
  %v2513 = vpack.c.bf16 %v2487, %v2486
  %v2514 = vpack.c.bf16 %v2489, %v2488
  %v2515 = vpack.c.bf16 %v2491, %v2490
  %v2516 = vpack.c.bf16 %v2493, %v2492
  %v2517 = vpack.c.bf16 %v2495, %v2494
  %v2518 = vpack.c.bf16 %v2497, %v2496
  %v2519 = vpack.c.bf16 %v2499, %v2498
  %v2520 = vpack.c.bf16 %v2501, %v2500
  %v2521 = vpack.c.bf16 %v2503, %v2502
  %v2522 = vpack.c.bf16 %v2505, %v2504
  %v2523 = vpack.c.bf16 %v2507, %v2506
  %2524 = vst.msk [vmem:[#allocation4 + $0x188] sm:$0xff] %vm514, %v2508
  %2525 = vst.msk [vmem:[#allocation4 + $0x1a0] sm:$0xff] %vm514, %v2509
  %2526 = vst.msk [vmem:[#allocation4 + $0x1b8] sm:$0xff] %vm514, %v2510
  %2527 = vst.msk [vmem:[#allocation4 + $0x1d0] sm:$0xff] %vm514, %v2511
  %2528 = vst.msk [vmem:[#allocation4 + $0x1e8] sm:$0xff] %vm514, %v2512
  %2529 = vst.msk [vmem:[#allocation4 + $0x200] sm:$0xff] %vm514, %v2513
  %2530 = vst.msk [vmem:[#allocation4 + $0x218] sm:$0xff] %vm514, %v2514
  %2531 = vst.msk [vmem:[#allocation4 + $0x230] sm:$0xff] %vm514, %v2515
  %2532 = vst.msk [vmem:[#allocation4 + $0x248] sm:$0xff] %vm514, %v2516
  %2533 = vst.msk [vmem:[#allocation4 + $0x260] sm:$0xff] %vm514, %v2517
  %2534 = vst.msk [vmem:[#allocation4 + $0x278] sm:$0xff] %vm514, %v2518
  %2535 = vst.msk [vmem:[#allocation4 + $0x290] sm:$0xff] %vm514, %v2519
  %2536 = vst.msk [vmem:[#allocation4 + $0x2a8] sm:$0xff] %vm514, %v2520
  %2537 = vst.msk [vmem:[#allocation4 + $0x2c0] sm:$0xff] %vm514, %v2521
  %2538 = vst.msk [vmem:[#allocation4 + $0x2d8] sm:$0xff] %vm514, %v2522
  %2539 = vst.msk [vmem:[#allocation4 + $0x2f0] sm:$0xff] %vm514, %v2523
  %v2540 = vld [vmem:[#allocation3 + $0x19] sm:$0xff]
  %v2541 = vld [vmem:[#allocation3 + $0x21] sm:$0xff]
  %v2542 = vld [vmem:[#allocation3 + $0x29] sm:$0xff]
  %v2543 = vld [vmem:[#allocation3 + $0x31] sm:$0xff]
  %v2544 = vld [vmem:[#allocation3 + $0x39] sm:$0xff]
  %v2545 = vld [vmem:[#allocation3 + $0x41] sm:$0xff]
  %v2546 = vld [vmem:[#allocation3 + $0x49] sm:$0xff]
  %v2547 = vld [vmem:[#allocation3 + $0x51] sm:$0xff]
  %v2548 = vld [vmem:[#allocation3 + $0x59] sm:$0xff]
  %v2549 = vld [vmem:[#allocation3 + $0x61] sm:$0xff]
  %v2550 = vld [vmem:[#allocation3 + $0x69] sm:$0xff]
  %v2551 = vld [vmem:[#allocation3 + $0x71] sm:$0xff]
  %v2552 = vld [vmem:[#allocation3 + $0x79] sm:$0xff]
  %v2553 = vld [vmem:[#allocation3 + $0x81] sm:$0xff]
  %v2554 = vld [vmem:[#allocation3 + $0x89] sm:$0xff]
  %v2555 = vld [vmem:[#allocation3 + $0x91] sm:$0xff]
  %v2556 = vld [vmem:[#allocation3 + $0x99] sm:$0xff]
  %v2557 = vld [vmem:[#allocation3 + $0xa1] sm:$0xff]
  %v2558 = vld [vmem:[#allocation3 + $0xa9] sm:$0xff]
  %v2559 = vld [vmem:[#allocation3 + $0xb1] sm:$0xff]
  %v2560 = vld [vmem:[#allocation3 + $0xb9] sm:$0xff]
  %v2561 = vld [vmem:[#allocation3 + $0xc1] sm:$0xff]
  %v2562 = vld [vmem:[#allocation3 + $0xc9] sm:$0xff]
  %v2563 = vld [vmem:[#allocation3 + $0xd1] sm:$0xff]
  %v2564 = vld [vmem:[#allocation3 + $0xd9] sm:$0xff]
  %v2565 = vld [vmem:[#allocation3 + $0xe1] sm:$0xff]
  %v2566 = vld [vmem:[#allocation3 + $0xe9] sm:$0xff]
  %v2567 = vld [vmem:[#allocation3 + $0xf1] sm:$0xff]
  %v2568 = vld [vmem:[#allocation3 + $0xf9] sm:$0xff]
  %v2569 = vld [vmem:[#allocation3 + $0x101] sm:$0xff]
  %v2570 = vld [vmem:[#allocation3 + $0x109] sm:$0xff]
  %v2571 = vld [vmem:[#allocation3 + $0x111] sm:$0xff]
  %v2572 = vsel %vm938, %v2540, 0.0
  %v2573 = vsel %vm939, %v2541, 0.0
  %v2574 = vsel %vm940, %v2542, 0.0
  %v2575 = vsel %vm941, %v2543, 0.0
  %v2576 = vsel %vm942, %v2544, 0.0
  %v2577 = vsel %vm943, %v2545, 0.0
  %v2578 = vsel %vm944, %v2546, 0.0
  %v2579 = vsel %vm945, %v2547, 0.0
  %v2580 = vsel %vm946, %v2548, 0.0
  %v2581 = vsel %vm947, %v2549, 0.0
  %v2582 = vsel %vm948, %v2550, 0.0
  %v2583 = vsel %vm949, %v2551, 0.0
  %v2584 = vsel %vm950, %v2552, 0.0
  %v2585 = vsel %vm951, %v2553, 0.0
  %v2586 = vsel %vm952, %v2554, 0.0
  %v2587 = vsel %vm953, %v2555, 0.0
  %v2588 = vsel %vm954, %v2556, 0.0
  %v2589 = vsel %vm955, %v2557, 0.0
  %v2590 = vsel %vm956, %v2558, 0.0
  %v2591 = vsel %vm957, %v2559, 0.0
  %v2592 = vsel %vm958, %v2560, 0.0
  %v2593 = vsel %vm959, %v2561, 0.0
  %v2594 = vsel %vm960, %v2562, 0.0
  %v2595 = vsel %vm961, %v2563, 0.0
  %v2596 = vsel %vm962, %v2564, 0.0
  %v2597 = vsel %vm963, %v2565, 0.0
  %v2598 = vsel %vm964, %v2566, 0.0
  %v2599 = vsel %vm965, %v2567, 0.0
  %v2600 = vsel %vm966, %v2568, 0.0
  %v2601 = vsel %vm967, %v2569, 0.0
  %v2602 = vsel %vm968, %v2570, 0.0
  %v2603 = vsel %vm969, %v2571, 0.0
  %v2604 = vpack.c.bf16 %v2573, %v2572
  %v2605 = vpack.c.bf16 %v2575, %v2574
  %v2606 = vpack.c.bf16 %v2577, %v2576
  %v2607 = vpack.c.bf16 %v2579, %v2578
  %v2608 = vpack.c.bf16 %v2581, %v2580
  %v2609 = vpack.c.bf16 %v2583, %v2582
  %v2610 = vpack.c.bf16 %v2585, %v2584
  %v2611 = vpack.c.bf16 %v2587, %v2586
  %v2612 = vpack.c.bf16 %v2589, %v2588
  %v2613 = vpack.c.bf16 %v2591, %v2590
  %v2614 = vpack.c.bf16 %v2593, %v2592
  %v2615 = vpack.c.bf16 %v2595, %v2594
  %v2616 = vpack.c.bf16 %v2597, %v2596
  %v2617 = vpack.c.bf16 %v2599, %v2598
  %v2618 = vpack.c.bf16 %v2601, %v2600
  %v2619 = vpack.c.bf16 %v2603, %v2602
  %2636 = vrot.lane.b32.xlu0 %v2604, 32
  %v2637 = vpop.permute.xlu0 %2636
  %2638 = vrot.lane.b32.xlu0 %v2605, 32
  %v2639 = vpop.permute.xlu0 %2638
  %2640 = vrot.lane.b32.xlu0 %v2606, 32
  %v2641 = vpop.permute.xlu0 %2640
  %2642 = vrot.lane.b32.xlu0 %v2607, 32
  %v2643 = vpop.permute.xlu0 %2642
  %2644 = vrot.lane.b32.xlu0 %v2608, 32
  %v2645 = vpop.permute.xlu0 %2644
  %2646 = vrot.lane.b32.xlu0 %v2609, 32
  %v2647 = vpop.permute.xlu0 %2646
  %2648 = vrot.lane.b32.xlu0 %v2610, 32
  %v2649 = vpop.permute.xlu0 %2648
  %2650 = vrot.lane.b32.xlu0 %v2611, 32
  %v2651 = vpop.permute.xlu0 %2650
  %2652 = vrot.lane.b32.xlu0 %v2612, 32
  %v2653 = vpop.permute.xlu0 %2652
  %2654 = vrot.lane.b32.xlu0 %v2613, 32
  %v2655 = vpop.permute.xlu0 %2654
  %2656 = vrot.lane.b32.xlu0 %v2614, 32
  %v2657 = vpop.permute.xlu0 %2656
  %2658 = vrot.lane.b32.xlu0 %v2615, 32
  %v2659 = vpop.permute.xlu0 %2658
  %2660 = vrot.lane.b32.xlu0 %v2616, 32
  %v2661 = vpop.permute.xlu0 %2660
  %2662 = vrot.lane.b32.xlu0 %v2617, 32
  %v2663 = vpop.permute.xlu0 %2662
  %2664 = vrot.lane.b32.xlu0 %v2618, 32
  %v2665 = vpop.permute.xlu0 %2664
  %2666 = vrot.lane.b32.xlu0 %v2619, 32
  %v2667 = vpop.permute.xlu0 %2666
  %2684 = vst.msk [vmem:[#allocation4 + $0x188] sm:$0xff] %vm857, %v2637
  %2685 = vst.msk [vmem:[#allocation4 + $0x1a0] sm:$0xff] %vm857, %v2639
  %2686 = vst.msk [vmem:[#allocation4 + $0x1b8] sm:$0xff] %vm857, %v2641
  %2687 = vst.msk [vmem:[#allocation4 + $0x1d0] sm:$0xff] %vm857, %v2643
  %2688 = vst.msk [vmem:[#allocation4 + $0x1e8] sm:$0xff] %vm857, %v2645
  %2689 = vst.msk [vmem:[#allocation4 + $0x200] sm:$0xff] %vm857, %v2647
  %2690 = vst.msk [vmem:[#allocation4 + $0x218] sm:$0xff] %vm857, %v2649
  %2691 = vst.msk [vmem:[#allocation4 + $0x230] sm:$0xff] %vm857, %v2651
  %2692 = vst.msk [vmem:[#allocation4 + $0x248] sm:$0xff] %vm857, %v2653
  %2693 = vst.msk [vmem:[#allocation4 + $0x260] sm:$0xff] %vm857, %v2655
  %2694 = vst.msk [vmem:[#allocation4 + $0x278] sm:$0xff] %vm857, %v2657
  %2695 = vst.msk [vmem:[#allocation4 + $0x290] sm:$0xff] %vm857, %v2659
  %2696 = vst.msk [vmem:[#allocation4 + $0x2a8] sm:$0xff] %vm857, %v2661
  %2697 = vst.msk [vmem:[#allocation4 + $0x2c0] sm:$0xff] %vm857, %v2663
  %2698 = vst.msk [vmem:[#allocation4 + $0x2d8] sm:$0xff] %vm857, %v2665
  %2699 = vst.msk [vmem:[#allocation4 + $0x2f0] sm:$0xff] %vm857, %v2667
  %v2700 = vld [vmem:[#allocation3 + $0x27] sm:$0xff]
  %v2701 = vld [vmem:[#allocation3 + $0x2f] sm:$0xff]
  %v2702 = vld [vmem:[#allocation3 + $0x37] sm:$0xff]
  %v2703 = vld [vmem:[#allocation3 + $0x3f] sm:$0xff]
  %v2704 = vld [vmem:[#allocation3 + $0x47] sm:$0xff]
  %v2705 = vld [vmem:[#allocation3 + $0x4f] sm:$0xff]
  %v2706 = vld [vmem:[#allocation3 + $0x57] sm:$0xff]
  %v2707 = vld [vmem:[#allocation3 + $0x5f] sm:$0xff]
  %v2708 = vld [vmem:[#allocation3 + $0x67] sm:$0xff]
  %v2709 = vld [vmem:[#allocation3 + $0x6f] sm:$0xff]
  %v2710 = vld [vmem:[#allocation3 + $0x77] sm:$0xff]
  %v2711 = vld [vmem:[#allocation3 + $0x7f] sm:$0xff]
  %v2712 = vld [vmem:[#allocation3 + $0x87] sm:$0xff]
  %v2713 = vld [vmem:[#allocation3 + $0x8f] sm:$0xff]
  %v2714 = vld [vmem:[#allocation3 + $0x97] sm:$0xff]
  %v2715 = vld [vmem:[#allocation3 + $0x9f] sm:$0xff]
  %v2716 = vld [vmem:[#allocation3 + $0xa7] sm:$0xff]
  %v2717 = vld [vmem:[#allocation3 + $0xaf] sm:$0xff]
  %v2718 = vld [vmem:[#allocation3 + $0xb7] sm:$0xff]
  %v2719 = vld [vmem:[#allocation3 + $0xbf] sm:$0xff]
  %v2720 = vld [vmem:[#allocation3 + $0xc7] sm:$0xff]
  %v2721 = vld [vmem:[#allocation3 + $0xcf] sm:$0xff]
  %v2722 = vld [vmem:[#allocation3 + $0xd7] sm:$0xff]
  %v2723 = vld [vmem:[#allocation3 + $0xdf] sm:$0xff]
  %v2724 = vld [vmem:[#allocation3 + $0xe7] sm:$0xff]
  %v2725 = vld [vmem:[#allocation3 + $0xef] sm:$0xff]
  %v2726 = vld [vmem:[#allocation3 + $0xf7] sm:$0xff]
  %v2727 = vld [vmem:[#allocation3 + $0xff] sm:$0xff]
  %v2728 = vld [vmem:[#allocation3 + $0x107] sm:$0xff]
  %v2729 = vld [vmem:[#allocation3 + $0x10f] sm:$0xff]
  %v2730 = vld [vmem:[#allocation3 + $0x117] sm:$0xff]
  %v2731 = vld [vmem:[#allocation3 + $0x11f] sm:$0xff]
  %v2732 = vsel %vm649, %v2700, 0.0
  %v2733 = vsel %vm650, %v2701, 0.0
  %v2734 = vsel %vm651, %v2702, 0.0
  %v2735 = vsel %vm652, %v2703, 0.0
  %v2736 = vsel %vm653, %v2704, 0.0
  %v2737 = vsel %vm654, %v2705, 0.0
  %v2738 = vsel %vm655, %v2706, 0.0
  %v2739 = vsel %vm656, %v2707, 0.0
  %v2740 = vsel %vm657, %v2708, 0.0
  %v2741 = vsel %vm658, %v2709, 0.0
  %v2742 = vsel %vm659, %v2710, 0.0
  %v2743 = vsel %vm660, %v2711, 0.0
  %v2744 = vsel %vm661, %v2712, 0.0
  %v2745 = vsel %vm662, %v2713, 0.0
  %v2746 = vsel %vm663, %v2714, 0.0
  %v2747 = vsel %vm664, %v2715, 0.0
  %v2748 = vsel %vm665, %v2716, 0.0
  %v2749 = vsel %vm666, %v2717, 0.0
  %v2750 = vsel %vm667, %v2718, 0.0
  %v2751 = vsel %vm668, %v2719, 0.0
  %v2752 = vsel %vm669, %v2720, 0.0
  %v2753 = vsel %vm670, %v2721, 0.0
  %v2754 = vsel %vm671, %v2722, 0.0
  %v2755 = vsel %vm672, %v2723, 0.0
  %v2756 = vsel %vm673, %v2724, 0.0
  %v2757 = vsel %vm674, %v2725, 0.0
  %v2758 = vsel %vm675, %v2726, 0.0
  %v2759 = vsel %vm676, %v2727, 0.0
  %v2760 = vsel %vm677, %v2728, 0.0
  %v2761 = vsel %vm678, %v2729, 0.0
  %v2762 = vsel %vm679, %v2730, 0.0
  %v2763 = vsel %vm680, %v2731, 0.0
  %v2764 = vpack.c.bf16 %v2733, %v2732
  %v2765 = vpack.c.bf16 %v2735, %v2734
  %v2766 = vpack.c.bf16 %v2737, %v2736
  %v2767 = vpack.c.bf16 %v2739, %v2738
  %v2768 = vpack.c.bf16 %v2741, %v2740
  %v2769 = vpack.c.bf16 %v2743, %v2742
  %v2770 = vpack.c.bf16 %v2745, %v2744
  %v2771 = vpack.c.bf16 %v2747, %v2746
  %v2772 = vpack.c.bf16 %v2749, %v2748
  %v2773 = vpack.c.bf16 %v2751, %v2750
  %v2774 = vpack.c.bf16 %v2753, %v2752
  %v2775 = vpack.c.bf16 %v2755, %v2754
  %v2776 = vpack.c.bf16 %v2757, %v2756
  %v2777 = vpack.c.bf16 %v2759, %v2758
  %v2778 = vpack.c.bf16 %v2761, %v2760
  %v2779 = vpack.c.bf16 %v2763, %v2762
  %2796 = vrot.lane.b32.xlu0 %v2764, 64
  %v2797 = vpop.permute.xlu0 %2796
  %2798 = vrot.lane.b32.xlu0 %v2765, 64
  %v2799 = vpop.permute.xlu0 %2798
  %2800 = vrot.lane.b32.xlu0 %v2766, 64
  %v2801 = vpop.permute.xlu0 %2800
  %2802 = vrot.lane.b32.xlu0 %v2767, 64
  %v2803 = vpop.permute.xlu0 %2802
  %2804 = vrot.lane.b32.xlu0 %v2768, 64
  %v2805 = vpop.permute.xlu0 %2804
  %2806 = vrot.lane.b32.xlu0 %v2769, 64
  %v2807 = vpop.permute.xlu0 %2806
  %2808 = vrot.lane.b32.xlu0 %v2770, 64
  %v2809 = vpop.permute.xlu0 %2808
  %2810 = vrot.lane.b32.xlu0 %v2771, 64
  %v2811 = vpop.permute.xlu0 %2810
  %2812 = vrot.lane.b32.xlu0 %v2772, 64
  %v2813 = vpop.permute.xlu0 %2812
  %2814 = vrot.lane.b32.xlu0 %v2773, 64
  %v2815 = vpop.permute.xlu0 %2814
  %2816 = vrot.lane.b32.xlu0 %v2774, 64
  %v2817 = vpop.permute.xlu0 %2816
  %2818 = vrot.lane.b32.xlu0 %v2775, 64
  %v2819 = vpop.permute.xlu0 %2818
  %2820 = vrot.lane.b32.xlu0 %v2776, 64
  %v2821 = vpop.permute.xlu0 %2820
  %2822 = vrot.lane.b32.xlu0 %v2777, 64
  %v2823 = vpop.permute.xlu0 %2822
  %2824 = vrot.lane.b32.xlu0 %v2778, 64
  %v2825 = vpop.permute.xlu0 %2824
  %2826 = vrot.lane.b32.xlu0 %v2779, 64
  %v2827 = vpop.permute.xlu0 %2826
  %2844 = vst.msk [vmem:[#allocation4 + $0x188] sm:$0xff] %vm1082, %v2797
  %2845 = vst.msk [vmem:[#allocation4 + $0x1a0] sm:$0xff] %vm1082, %v2799
  %2846 = vst.msk [vmem:[#allocation4 + $0x1b8] sm:$0xff] %vm1082, %v2801
  %2847 = vst.msk [vmem:[#allocation4 + $0x1d0] sm:$0xff] %vm1082, %v2803
  %2848 = vst.msk [vmem:[#allocation4 + $0x1e8] sm:$0xff] %vm1082, %v2805
  %2849 = vst.msk [vmem:[#allocation4 + $0x200] sm:$0xff] %vm1082, %v2807
  %2850 = vst.msk [vmem:[#allocation4 + $0x218] sm:$0xff] %vm1082, %v2809
  %2851 = vst.msk [vmem:[#allocation4 + $0x230] sm:$0xff] %vm1082, %v2811
  %2852 = vst.msk [vmem:[#allocation4 + $0x248] sm:$0xff] %vm1082, %v2813
  %2853 = vst.msk [vmem:[#allocation4 + $0x260] sm:$0xff] %vm1082, %v2815
  %2854 = vst.msk [vmem:[#allocation4 + $0x278] sm:$0xff] %vm1082, %v2817
  %2855 = vst.msk [vmem:[#allocation4 + $0x290] sm:$0xff] %vm1082, %v2819
  %2856 = vst.msk [vmem:[#allocation4 + $0x2a8] sm:$0xff] %vm1082, %v2821
  %2857 = vst.msk [vmem:[#allocation4 + $0x2c0] sm:$0xff] %vm1082, %v2823
  %2858 = vst.msk [vmem:[#allocation4 + $0x2d8] sm:$0xff] %vm1082, %v2825
  %2859 = vst.msk [vmem:[#allocation4 + $0x2f0] sm:$0xff] %vm1082, %v2827
  %v2860 = vld [vmem:[#allocation3 + $0x28] sm:$0xff]
  %v2861 = vld [vmem:[#allocation3 + $0x30] sm:$0xff]
  %v2862 = vld [vmem:[#allocation3 + $0x38] sm:$0xff]
  %v2863 = vld [vmem:[#allocation3 + $0x40] sm:$0xff]
  %v2864 = vld [vmem:[#allocation3 + $0x48] sm:$0xff]
  %v2865 = vld [vmem:[#allocation3 + $0x50] sm:$0xff]
  %v2866 = vld [vmem:[#allocation3 + $0x58] sm:$0xff]
  %v2867 = vld [vmem:[#allocation3 + $0x60] sm:$0xff]
  %v2868 = vld [vmem:[#allocation3 + $0x68] sm:$0xff]
  %v2869 = vld [vmem:[#allocation3 + $0x70] sm:$0xff]
  %v2870 = vld [vmem:[#allocation3 + $0x78] sm:$0xff]
  %v2871 = vld [vmem:[#allocation3 + $0x80] sm:$0xff]
  %v2872 = vld [vmem:[#allocation3 + $0x88] sm:$0xff]
  %v2873 = vld [vmem:[#allocation3 + $0x90] sm:$0xff]
  %v2874 = vld [vmem:[#allocation3 + $0x98] sm:$0xff]
  %v2875 = vld [vmem:[#allocation3 + $0xa0] sm:$0xff]
  %v2876 = vld [vmem:[#allocation3 + $0xa8] sm:$0xff]
  %v2877 = vld [vmem:[#allocation3 + $0xb0] sm:$0xff]
  %v2878 = vld [vmem:[#allocation3 + $0xb8] sm:$0xff]
  %v2879 = vld [vmem:[#allocation3 + $0xc0] sm:$0xff]
  %v2880 = vld [vmem:[#allocation3 + $0xc8] sm:$0xff]
  %v2881 = vld [vmem:[#allocation3 + $0xd0] sm:$0xff]
  %v2882 = vld [vmem:[#allocation3 + $0xd8] sm:$0xff]
  %v2883 = vld [vmem:[#allocation3 + $0xe0] sm:$0xff]
  %v2884 = vld [vmem:[#allocation3 + $0xe8] sm:$0xff]
  %v2885 = vld [vmem:[#allocation3 + $0xf0] sm:$0xff]
  %v2886 = vld [vmem:[#allocation3 + $0xf8] sm:$0xff]
  %v2887 = vld [vmem:[#allocation3 + $0x100] sm:$0xff]
  %v2888 = vld [vmem:[#allocation3 + $0x108] sm:$0xff]
  %v2889 = vld [vmem:[#allocation3 + $0x110] sm:$0xff]
  %v2890 = vld [vmem:[#allocation3 + $0x118] sm:$0xff]
  %v2891 = vld [vmem:[#allocation3 + $0x120] sm:$0xff]
  %v2892 = vpack.c.bf16 %v2861, %v2860
  %v2893 = vpack.c.bf16 %v2863, %v2862
  %v2894 = vpack.c.bf16 %v2865, %v2864
  %v2895 = vpack.c.bf16 %v2867, %v2866
  %v2896 = vpack.c.bf16 %v2869, %v2868
  %v2897 = vpack.c.bf16 %v2871, %v2870
  %v2898 = vpack.c.bf16 %v2873, %v2872
  %v2899 = vpack.c.bf16 %v2875, %v2874
  %v2900 = vpack.c.bf16 %v2877, %v2876
  %v2901 = vpack.c.bf16 %v2879, %v2878
  %v2902 = vpack.c.bf16 %v2881, %v2880
  %v2903 = vpack.c.bf16 %v2883, %v2882
  %v2904 = vpack.c.bf16 %v2885, %v2884
  %v2905 = vpack.c.bf16 %v2887, %v2886
  %v2906 = vpack.c.bf16 %v2889, %v2888
  %v2907 = vpack.c.bf16 %v2891, %v2890
  %2924 = vrot.lane.b32.xlu0 %v2892, 96
  %v2925 = vpop.permute.xlu0 %2924
  %2926 = vrot.lane.b32.xlu0 %v2893, 96
  %v2927 = vpop.permute.xlu0 %2926
  %2928 = vrot.lane.b32.xlu0 %v2894, 96
  %v2929 = vpop.permute.xlu0 %2928
  %2930 = vrot.lane.b32.xlu0 %v2895, 96
  %v2931 = vpop.permute.xlu0 %2930
  %2932 = vrot.lane.b32.xlu0 %v2896, 96
  %v2933 = vpop.permute.xlu0 %2932
  %2934 = vrot.lane.b32.xlu0 %v2897, 96
  %v2935 = vpop.permute.xlu0 %2934
  %2936 = vrot.lane.b32.xlu0 %v2898, 96
  %v2937 = vpop.permute.xlu0 %2936
  %2938 = vrot.lane.b32.xlu0 %v2899, 96
  %v2939 = vpop.permute.xlu0 %2938
  %2940 = vrot.lane.b32.xlu0 %v2900, 96
  %v2941 = vpop.permute.xlu0 %2940
  %2942 = vrot.lane.b32.xlu0 %v2901, 96
  %v2943 = vpop.permute.xlu0 %2942
  %2944 = vrot.lane.b32.xlu0 %v2902, 96
  %v2945 = vpop.permute.xlu0 %2944
  %2946 = vrot.lane.b32.xlu0 %v2903, 96
  %v2947 = vpop.permute.xlu0 %2946
  %2948 = vrot.lane.b32.xlu0 %v2904, 96
  %v2949 = vpop.permute.xlu0 %2948
  %2950 = vrot.lane.b32.xlu0 %v2905, 96
  %v2951 = vpop.permute.xlu0 %2950
  %2952 = vrot.lane.b32.xlu0 %v2906, 96
  %v2953 = vpop.permute.xlu0 %2952
  %2954 = vrot.lane.b32.xlu0 %v2907, 96
  %v2955 = vpop.permute.xlu0 %2954
  %2972 = vst.msk [vmem:[#allocation4 + $0x188] sm:$0xff] %vm1243, %v2925
  %2973 = vst.msk [vmem:[#allocation4 + $0x1a0] sm:$0xff] %vm1243, %v2927
  %2974 = vst.msk [vmem:[#allocation4 + $0x1b8] sm:$0xff] %vm1243, %v2929
  %2975 = vst.msk [vmem:[#allocation4 + $0x1d0] sm:$0xff] %vm1243, %v2931
  %2976 = vst.msk [vmem:[#allocation4 + $0x1e8] sm:$0xff] %vm1243, %v2933
  %2977 = vst.msk [vmem:[#allocation4 + $0x200] sm:$0xff] %vm1243, %v2935
  %2978 = vst.msk [vmem:[#allocation4 + $0x218] sm:$0xff] %vm1243, %v2937
  %2979 = vst.msk [vmem:[#allocation4 + $0x230] sm:$0xff] %vm1243, %v2939
  %2980 = vst.msk [vmem:[#allocation4 + $0x248] sm:$0xff] %vm1243, %v2941
  %2981 = vst.msk [vmem:[#allocation4 + $0x260] sm:$0xff] %vm1243, %v2943
  %2982 = vst.msk [vmem:[#allocation4 + $0x278] sm:$0xff] %vm1243, %v2945
  %2983 = vst.msk [vmem:[#allocation4 + $0x290] sm:$0xff] %vm1243, %v2947
  %2984 = vst.msk [vmem:[#allocation4 + $0x2a8] sm:$0xff] %vm1243, %v2949
  %2985 = vst.msk [vmem:[#allocation4 + $0x2c0] sm:$0xff] %vm1243, %v2951
  %2986 = vst.msk [vmem:[#allocation4 + $0x2d8] sm:$0xff] %vm1243, %v2953
  %2987 = vst.msk [vmem:[#allocation4 + $0x2f0] sm:$0xff] %vm1243, %v2955
  %v2988 = vld [vmem:[#allocation3 + $0x29] sm:$0xff]
  %v2989 = vld [vmem:[#allocation3 + $0x31] sm:$0xff]
  %v2990 = vld [vmem:[#allocation3 + $0x39] sm:$0xff]
  %v2991 = vld [vmem:[#allocation3 + $0x41] sm:$0xff]
  %v2992 = vld [vmem:[#allocation3 + $0x49] sm:$0xff]
  %v2993 = vld [vmem:[#allocation3 + $0x51] sm:$0xff]
  %v2994 = vld [vmem:[#allocation3 + $0x59] sm:$0xff]
  %v2995 = vld [vmem:[#allocation3 + $0x61] sm:$0xff]
  %v2996 = vld [vmem:[#allocation3 + $0x69] sm:$0xff]
  %v2997 = vld [vmem:[#allocation3 + $0x71] sm:$0xff]
  %v2998 = vld [vmem:[#allocation3 + $0x79] sm:$0xff]
  %v2999 = vld [vmem:[#allocation3 + $0x81] sm:$0xff]
  %v3000 = vld [vmem:[#allocation3 + $0x89] sm:$0xff]
  %v3001 = vld [vmem:[#allocation3 + $0x91] sm:$0xff]
  %v3002 = vld [vmem:[#allocation3 + $0x99] sm:$0xff]
  %v3003 = vld [vmem:[#allocation3 + $0xa1] sm:$0xff]
  %v3004 = vld [vmem:[#allocation3 + $0xa9] sm:$0xff]
  %v3005 = vld [vmem:[#allocation3 + $0xb1] sm:$0xff]
  %v3006 = vld [vmem:[#allocation3 + $0xb9] sm:$0xff]
  %v3007 = vld [vmem:[#allocation3 + $0xc1] sm:$0xff]
  %v3008 = vld [vmem:[#allocation3 + $0xc9] sm:$0xff]
  %v3009 = vld [vmem:[#allocation3 + $0xd1] sm:$0xff]
  %v3010 = vld [vmem:[#allocation3 + $0xd9] sm:$0xff]
  %v3011 = vld [vmem:[#allocation3 + $0xe1] sm:$0xff]
  %v3012 = vld [vmem:[#allocation3 + $0xe9] sm:$0xff]
  %v3013 = vld [vmem:[#allocation3 + $0xf1] sm:$0xff]
  %v3014 = vld [vmem:[#allocation3 + $0xf9] sm:$0xff]
  %v3015 = vld [vmem:[#allocation3 + $0x101] sm:$0xff]
  %v3016 = vld [vmem:[#allocation3 + $0x109] sm:$0xff]
  %v3017 = vld [vmem:[#allocation3 + $0x111] sm:$0xff]
  %v3018 = vld [vmem:[#allocation3 + $0x119] sm:$0xff]
  %v3019 = vld [vmem:[#allocation3 + $0x121] sm:$0xff]
  %v3020 = vsel %vm938, %v2988, 0.0
  %v3021 = vsel %vm939, %v2989, 0.0
  %v3022 = vsel %vm940, %v2990, 0.0
  %v3023 = vsel %vm941, %v2991, 0.0
  %v3024 = vsel %vm942, %v2992, 0.0
  %v3025 = vsel %vm943, %v2993, 0.0
  %v3026 = vsel %vm944, %v2994, 0.0
  %v3027 = vsel %vm945, %v2995, 0.0
  %v3028 = vsel %vm946, %v2996, 0.0
  %v3029 = vsel %vm947, %v2997, 0.0
  %v3030 = vsel %vm948, %v2998, 0.0
  %v3031 = vsel %vm949, %v2999, 0.0
  %v3032 = vsel %vm950, %v3000, 0.0
  %v3033 = vsel %vm951, %v3001, 0.0
  %v3034 = vsel %vm952, %v3002, 0.0
  %v3035 = vsel %vm953, %v3003, 0.0
  %v3036 = vsel %vm954, %v3004, 0.0
  %v3037 = vsel %vm955, %v3005, 0.0
  %v3038 = vsel %vm956, %v3006, 0.0
  %v3039 = vsel %vm957, %v3007, 0.0
  %v3040 = vsel %vm958, %v3008, 0.0
  %v3041 = vsel %vm959, %v3009, 0.0
  %v3042 = vsel %vm960, %v3010, 0.0
  %v3043 = vsel %vm961, %v3011, 0.0
  %v3044 = vsel %vm962, %v3012, 0.0
  %v3045 = vsel %vm963, %v3013, 0.0
  %v3046 = vsel %vm964, %v3014, 0.0
  %v3047 = vsel %vm965, %v3015, 0.0
  %v3048 = vsel %vm966, %v3016, 0.0
  %v3049 = vsel %vm967, %v3017, 0.0
  %v3050 = vsel %vm968, %v3018, 0.0
  %v3051 = vsel %vm969, %v3019, 0.0
  %v3052 = vpack.c.bf16 %v3021, %v3020
  %v3053 = vpack.c.bf16 %v3023, %v3022
  %v3054 = vpack.c.bf16 %v3025, %v3024
  %v3055 = vpack.c.bf16 %v3027, %v3026
  %v3056 = vpack.c.bf16 %v3029, %v3028
  %v3057 = vpack.c.bf16 %v3031, %v3030
  %v3058 = vpack.c.bf16 %v3033, %v3032
  %v3059 = vpack.c.bf16 %v3035, %v3034
  %v3060 = vpack.c.bf16 %v3037, %v3036
  %v3061 = vpack.c.bf16 %v3039, %v3038
  %v3062 = vpack.c.bf16 %v3041, %v3040
  %v3063 = vpack.c.bf16 %v3043, %v3042
  %v3064 = vpack.c.bf16 %v3045, %v3044
  %v3065 = vpack.c.bf16 %v3047, %v3046
  %v3066 = vpack.c.bf16 %v3049, %v3048
  %v3067 = vpack.c.bf16 %v3051, %v3050
  %3068 = vst.msk [vmem:[#allocation4 + $0x190] sm:$0xff] %vm514, %v3052
  %3069 = vst.msk [vmem:[#allocation4 + $0x1a8] sm:$0xff] %vm514, %v3053
  %3070 = vst.msk [vmem:[#allocation4 + $0x1c0] sm:$0xff] %vm514, %v3054
  %3071 = vst.msk [vmem:[#allocation4 + $0x1d8] sm:$0xff] %vm514, %v3055
  %3072 = vst.msk [vmem:[#allocation4 + $0x1f0] sm:$0xff] %vm514, %v3056
  %3073 = vst.msk [vmem:[#allocation4 + $0x208] sm:$0xff] %vm514, %v3057
  %3074 = vst.msk [vmem:[#allocation4 + $0x220] sm:$0xff] %vm514, %v3058
  %3075 = vst.msk [vmem:[#allocation4 + $0x238] sm:$0xff] %vm514, %v3059
  %3076 = vst.msk [vmem:[#allocation4 + $0x250] sm:$0xff] %vm514, %v3060
  %3077 = vst.msk [vmem:[#allocation4 + $0x268] sm:$0xff] %vm514, %v3061
  %3078 = vst.msk [vmem:[#allocation4 + $0x280] sm:$0xff] %vm514, %v3062
  %3079 = vst.msk [vmem:[#allocation4 + $0x298] sm:$0xff] %vm514, %v3063
  %3080 = vst.msk [vmem:[#allocation4 + $0x2b0] sm:$0xff] %vm514, %v3064
  %3081 = vst.msk [vmem:[#allocation4 + $0x2c8] sm:$0xff] %vm514, %v3065
  %3082 = vst.msk [vmem:[#allocation4 + $0x2e0] sm:$0xff] %vm514, %v3066
  %3083 = vst.msk [vmem:[#allocation4 + $0x2f8] sm:$0xff] %vm514, %v3067
  %v3084 = vld [vmem:[#allocation4] sm:$0xff]
  %v3085 = vld [vmem:[#allocation4 + $0x8] sm:$0xff]
  %v3086 = vld [vmem:[#allocation4 + $0x10] sm:$0xff]
  %v3087 = vld [vmem:[#allocation4 + $0x18] sm:$0xff]
  %v3088 = vld [vmem:[#allocation4 + $0x20] sm:$0xff]
  %v3089 = vld [vmem:[#allocation4 + $0x28] sm:$0xff]
  %v3090 = vld [vmem:[#allocation4 + $0x30] sm:$0xff]
  %v3091 = vld [vmem:[#allocation4 + $0x38] sm:$0xff]
  %v3092 = vld [vmem:[#allocation4 + $0x40] sm:$0xff]
  %v3093 = vld [vmem:[#allocation4 + $0x48] sm:$0xff]
  %v3094 = vld [vmem:[#allocation4 + $0x50] sm:$0xff]
  %v3095 = vld [vmem:[#allocation4 + $0x58] sm:$0xff]
  %v3096 = vld [vmem:[#allocation4 + $0x60] sm:$0xff]
  %v3097 = vld [vmem:[#allocation4 + $0x68] sm:$0xff]
  %v3098 = vld [vmem:[#allocation4 + $0x70] sm:$0xff]
  %v3099 = vld [vmem:[#allocation4 + $0x78] sm:$0xff]
  %v3100 = vld [vmem:[#allocation4 + $0x80] sm:$0xff]
  %v3101 = vld [vmem:[#allocation4 + $0x88] sm:$0xff]
  %v3102 = vld [vmem:[#allocation4 + $0x90] sm:$0xff]
  %v3103 = vld [vmem:[#allocation4 + $0x98] sm:$0xff]
  %v3104 = vld [vmem:[#allocation4 + $0xa0] sm:$0xff]
  %v3105 = vld [vmem:[#allocation4 + $0xa8] sm:$0xff]
  %v3106 = vld [vmem:[#allocation4 + $0xb0] sm:$0xff]
  %v3107 = vld [vmem:[#allocation4 + $0xb8] sm:$0xff]
  %v3108 = vld [vmem:[#allocation4 + $0xc0] sm:$0xff]
  %v3109 = vld [vmem:[#allocation4 + $0xc8] sm:$0xff]
  %v3110 = vld [vmem:[#allocation4 + $0xd0] sm:$0xff]
  %v3111 = vld [vmem:[#allocation4 + $0xd8] sm:$0xff]
  %v3112 = vld [vmem:[#allocation4 + $0xe0] sm:$0xff]
  %v3113 = vld [vmem:[#allocation4 + $0xe8] sm:$0xff]
  %v3114 = vld [vmem:[#allocation4 + $0xf0] sm:$0xff]
  %v3115 = vld [vmem:[#allocation4 + $0xf8] sm:$0xff]
  %v3116 = vld [vmem:[#allocation4 + $0x100] sm:$0xff]
  %v3117 = vld [vmem:[#allocation4 + $0x108] sm:$0xff]
  %v3118 = vld [vmem:[#allocation4 + $0x110] sm:$0xff]
  %v3119 = vld [vmem:[#allocation4 + $0x118] sm:$0xff]
  %v3120 = vld [vmem:[#allocation4 + $0x120] sm:$0xff]
  %v3121 = vld [vmem:[#allocation4 + $0x128] sm:$0xff]
  %v3122 = vld [vmem:[#allocation4 + $0x130] sm:$0xff]
  %v3123 = vld [vmem:[#allocation4 + $0x138] sm:$0xff]
  %v3124 = vld [vmem:[#allocation4 + $0x140] sm:$0xff]
  %v3125 = vld [vmem:[#allocation4 + $0x148] sm:$0xff]
  %v3126 = vld [vmem:[#allocation4 + $0x150] sm:$0xff]
  %v3127 = vld [vmem:[#allocation4 + $0x158] sm:$0xff]
  %v3128 = vld [vmem:[#allocation4 + $0x160] sm:$0xff]
  %v3129 = vld [vmem:[#allocation4 + $0x168] sm:$0xff]
  %v3130 = vld [vmem:[#allocation4 + $0x170] sm:$0xff]
  %v3131 = vld [vmem:[#allocation4 + $0x178] sm:$0xff]
  %v3132 = vld [vmem:[#allocation4 + $0x180] sm:$0xff]
  %v3133 = vld [vmem:[#allocation4 + $0x188] sm:$0xff]
  %v3134 = vld [vmem:[#allocation4 + $0x190] sm:$0xff]
  %v3135 = vld [vmem:[#allocation4 + $0x198] sm:$0xff]
  %v3136 = vld [vmem:[#allocation4 + $0x1a0] sm:$0xff]
  %v3137 = vld [vmem:[#allocation4 + $0x1a8] sm:$0xff]
  %v3138 = vld [vmem:[#allocation4 + $0x1b0] sm:$0xff]
  %v3139 = vld [vmem:[#allocation4 + $0x1b8] sm:$0xff]
  %v3140 = vld [vmem:[#allocation4 + $0x1c0] sm:$0xff]
  %v3141 = vld [vmem:[#allocation4 + $0x1c8] sm:$0xff]
  %v3142 = vld [vmem:[#allocation4 + $0x1d0] sm:$0xff]
  %v3143 = vld [vmem:[#allocation4 + $0x1d8] sm:$0xff]
  %v3144 = vld [vmem:[#allocation4 + $0x1e0] sm:$0xff]
  %v3145 = vld [vmem:[#allocation4 + $0x1e8] sm:$0xff]
  %v3146 = vld [vmem:[#allocation4 + $0x1f0] sm:$0xff]
  %v3147 = vld [vmem:[#allocation4 + $0x1f8] sm:$0xff]
  %v3148 = vld [vmem:[#allocation4 + $0x200] sm:$0xff]
  %v3149 = vld [vmem:[#allocation4 + $0x208] sm:$0xff]
  %v3150 = vld [vmem:[#allocation4 + $0x210] sm:$0xff]
  %v3151 = vld [vmem:[#allocation4 + $0x218] sm:$0xff]
  %v3152 = vld [vmem:[#allocation4 + $0x220] sm:$0xff]
  %v3153 = vld [vmem:[#allocation4 + $0x228] sm:$0xff]
  %v3154 = vld [vmem:[#allocation4 + $0x230] sm:$0xff]
  %v3155 = vld [vmem:[#allocation4 + $0x238] sm:$0xff]
  %v3156 = vld [vmem:[#allocation4 + $0x240] sm:$0xff]
  %v3157 = vld [vmem:[#allocation4 + $0x248] sm:$0xff]
  %v3158 = vld [vmem:[#allocation4 + $0x250] sm:$0xff]
  %v3159 = vld [vmem:[#allocation4 + $0x258] sm:$0xff]
  %v3160 = vld [vmem:[#allocation4 + $0x260] sm:$0xff]
  %v3161 = vld [vmem:[#allocation4 + $0x268] sm:$0xff]
  %v3162 = vld [vmem:[#allocation4 + $0x270] sm:$0xff]
  %v3163 = vld [vmem:[#allocation4 + $0x278] sm:$0xff]
  %v3164 = vld [vmem:[#allocation4 + $0x280] sm:$0xff]
  %v3165 = vld [vmem:[#allocation4 + $0x288] sm:$0xff]
  %v3166 = vld [vmem:[#allocation4 + $0x290] sm:$0xff]
  %v3167 = vld [vmem:[#allocation4 + $0x298] sm:$0xff]
  %v3168 = vld [vmem:[#allocation4 + $0x2a0] sm:$0xff]
  %v3169 = vld [vmem:[#allocation4 + $0x2a8] sm:$0xff]
  %v3170 = vld [vmem:[#allocation4 + $0x2b0] sm:$0xff]
  %v3171 = vld [vmem:[#allocation4 + $0x2b8] sm:$0xff]
  %v3172 = vld [vmem:[#allocation4 + $0x2c0] sm:$0xff]
  %v3173 = vld [vmem:[#allocation4 + $0x2c8] sm:$0xff]
  %v3174 = vld [vmem:[#allocation4 + $0x2d0] sm:$0xff]
  %v3175 = vld [vmem:[#allocation4 + $0x2d8] sm:$0xff]
  %v3176 = vld [vmem:[#allocation4 + $0x2e0] sm:$0xff]
  %v3177 = vld [vmem:[#allocation4 + $0x2e8] sm:$0xff]
  %v3178 = vld [vmem:[#allocation4 + $0x2f0] sm:$0xff]
  %v3179 = vld [vmem:[#allocation4 + $0x2f8] sm:$0xff]
  %v3180 = vld [vmem:[%s1] sm:$0xf]
  %v3181 = vld [vmem:[%s1 + $0x4] sm:$0xf]
  %v3182 = vld [vmem:[%s1 + $0x8] sm:$0xf]
  %v3183 = vld [vmem:[%s1 + $0xc] sm:$0xf]
  %v3184 = vld [vmem:[%s1 + $0x10] sm:$0xf]
  %v3185 = vld [vmem:[%s1 + $0x14] sm:$0xf]
  %v3186 = vld [vmem:[%s1 + $0x18] sm:$0xf]
  %v3187 = vld [vmem:[%s1 + $0x1c] sm:$0xf]
  %v3188 = vld [vmem:[%s1 + $0x20] sm:$0xf]
  %v3189 = vld [vmem:[%s1 + $0x24] sm:$0xf]
  %v3190 = vld [vmem:[%s1 + $0x28] sm:$0xf]
  %v3191 = vld [vmem:[%s1 + $0x2c] sm:$0xf]
  %v3192 = vld [vmem:[%s1 + $0x30] sm:$0xf]
  %v3193 = vld [vmem:[%s1 + $0x34] sm:$0xf]
  %v3194 = vld [vmem:[%s1 + $0x38] sm:$0xf]
  %v3195 = vld [vmem:[%s1 + $0x3c] sm:$0xf]
  %v3196 = vld [vmem:[%s1 + $0x40] sm:$0xf]
  %v3197 = vld [vmem:[%s1 + $0x44] sm:$0xf]
  %v3198 = vld [vmem:[%s1 + $0x48] sm:$0xf]
  %v3199 = vld [vmem:[%s1 + $0x4c] sm:$0xf]
  %v3200 = vld [vmem:[%s1 + $0x50] sm:$0xf]
  %v3201 = vld [vmem:[%s1 + $0x54] sm:$0xf]
  %v3202 = vld [vmem:[%s1 + $0x58] sm:$0xf]
  %v3203 = vld [vmem:[%s1 + $0x5c] sm:$0xf]
  %v3204 = vld [vmem:[%s1 + $0x60] sm:$0xf]
  %v3205 = vld [vmem:[%s1 + $0x64] sm:$0xf]
  %v3206 = vld [vmem:[%s1 + $0x68] sm:$0xf]
  %v3207 = vld [vmem:[%s1 + $0x6c] sm:$0xf]
  %v3208 = vld [vmem:[%s1 + $0x70] sm:$0xf]
  %v3209 = vld [vmem:[%s1 + $0x74] sm:$0xf]
  %v3210 = vld [vmem:[%s1 + $0x78] sm:$0xf]
  %v3211 = vld [vmem:[%s1 + $0x7c] sm:$0xf]
  %v3212 = vld [vmem:[%s1 + $0x80] sm:$0xf]
  %v3213 = vld [vmem:[%s1 + $0x84] sm:$0xf]
  %v3214 = vld [vmem:[%s1 + $0x88] sm:$0xf]
  %v3215 = vld [vmem:[%s1 + $0x8c] sm:$0xf]
  %v3216 = vld [vmem:[%s2] sm:$0x1]
  %v3218 = vlaneseq
  %v3219 = vshrl.u32 %v3218, 7
  %v3220 = vsub.s32 0, %v3219
  %v3221 = vrot.slane %v3216, %v3220
  %v3259 = vunpack.c.l.b16 %v3180
  %v3260 = vunpack.c.l.b16 %v3181
  %v3261 = vunpack.c.l.b16 %v3182
  %v3262 = vunpack.c.l.b16 %v3183
  %v3263 = vunpack.c.l.b16 %v3184
  %v3264 = vunpack.c.l.b16 %v3185
  %v3265 = vunpack.c.l.b16 %v3186
  %v3266 = vunpack.c.l.b16 %v3187
  %v3267 = vunpack.c.l.b16 %v3188
  %v3268 = vunpack.c.l.b16 %v3189
  %v3269 = vunpack.c.l.b16 %v3190
  %v3270 = vunpack.c.l.b16 %v3191
  %v3271 = vunpack.c.l.b16 %v3192
  %v3272 = vunpack.c.l.b16 %v3193
  %v3273 = vunpack.c.l.b16 %v3194
  %v3274 = vunpack.c.l.b16 %v3195
  %v3275 = vunpack.c.l.b16 %v3196
  %v3276 = vunpack.c.l.b16 %v3197
  %v3277 = vunpack.c.l.b16 %v3198
  %v3278 = vunpack.c.l.b16 %v3199
  %v3279 = vunpack.c.l.b16 %v3200
  %v3280 = vunpack.c.l.b16 %v3201
  %v3281 = vunpack.c.l.b16 %v3202
  %v3282 = vunpack.c.l.b16 %v3203
  %v3283 = vunpack.c.l.b16 %v3204
  %v3284 = vunpack.c.l.b16 %v3205
  %v3285 = vunpack.c.l.b16 %v3206
  %v3286 = vunpack.c.l.b16 %v3207
  %v3287 = vunpack.c.l.b16 %v3208
  %v3288 = vunpack.c.l.b16 %v3209
  %v3289 = vunpack.c.l.b16 %v3210
  %v3290 = vunpack.c.l.b16 %v3211
  %v3291 = vunpack.c.l.b16 %v3212
  %v3292 = vunpack.c.l.b16 %v3213
  %v3293 = vunpack.c.l.b16 %v3214
  %v3294 = vunpack.c.l.b16 %v3215
  %v3295 = vpack.c.b16 %v3260, %v3259
  %v3296 = vpack.c.b16 %v3262, %v3261
  %v3297 = vpack.c.b16 %v3264, %v3263
  %v3298 = vpack.c.b16 %v3266, %v3265
  %v3299 = vpack.c.b16 %v3268, %v3267
  %v3300 = vpack.c.b16 %v3270, %v3269
  %v3301 = vpack.c.b16 %v3272, %v3271
  %v3302 = vpack.c.b16 %v3274, %v3273
  %v3303 = vpack.c.b16 %v3276, %v3275
  %v3304 = vpack.c.b16 %v3278, %v3277
  %v3305 = vpack.c.b16 %v3280, %v3279
  %v3306 = vpack.c.b16 %v3282, %v3281
  %v3307 = vpack.c.b16 %v3284, %v3283
  %v3308 = vpack.c.b16 %v3286, %v3285
  %v3309 = vpack.c.b16 %v3288, %v3287
  %v3310 = vpack.c.b16 %v3290, %v3289
  %v3311 = vpack.c.b16 %v3292, %v3291
  %v3312 = vpack.c.b16 %v3294, %v3293
  %v3332 = vsel %vm514, %v3086, 0
  %v3335 = vsel %vm514, %v3089, 0
  %v3338 = vsel %vm514, %v3092, 0
  %v3341 = vsel %vm514, %v3095, 0
  %v3344 = vsel %vm514, %v3098, 0
  %v3347 = vsel %vm514, %v3101, 0
  %v3350 = vsel %vm514, %v3104, 0
  %v3353 = vsel %vm514, %v3107, 0
  %v3356 = vsel %vm514, %v3110, 0
  %v3359 = vsel %vm514, %v3113, 0
  %v3362 = vsel %vm514, %v3116, 0
  %v3365 = vsel %vm514, %v3119, 0
  %v3368 = vsel %vm514, %v3122, 0
  %v3371 = vsel %vm514, %v3125, 0
  %v3374 = vsel %vm514, %v3128, 0
  %v3377 = vsel %vm514, %v3131, 0
  %v3380 = vsel %vm514, %v3134, 0
  %v3383 = vsel %vm514, %v3137, 0
  %v3386 = vsel %vm514, %v3140, 0
  %v3389 = vsel %vm514, %v3143, 0
  %v3392 = vsel %vm514, %v3146, 0
  %v3395 = vsel %vm514, %v3149, 0
  %v3398 = vsel %vm514, %v3152, 0
  %v3401 = vsel %vm514, %v3155, 0
  %v3404 = vsel %vm514, %v3158, 0
  %v3407 = vsel %vm514, %v3161, 0
  %v3410 = vsel %vm514, %v3164, 0
  %v3413 = vsel %vm514, %v3167, 0
  %v3416 = vsel %vm514, %v3170, 0
  %v3419 = vsel %vm514, %v3173, 0
  %v3422 = vsel %vm514, %v3176, 0
  %v3425 = vsel %vm514, %v3179, 0
  %3427 = vmatprep.subr.bf16.mxu0 0
  %3428 = vmatpush1.bf16.msra.mxu0 %v3295
  %3429 = vmatprep.subr.bf16.mxu0 0
  %3430 = vmatpush1.bf16.msra.mxu0 %v3296
  %3431 = vmatprep.subr.bf16.mxu0 0
  %3432 = vmatpush1.bf16.msra.mxu0 %v3297
  %3433 = vmatprep.subr.bf16.mxu0 0
  %3434 = vmatpush1.bf16.msra.mxu0 %v3298
  %3435 = vmatprep.subr.bf16.mxu0 0
  %3436 = vmatpush1.bf16.msra.mxu0 %v3299
  %3437 = vmatprep.subr.bf16.mxu0 0
  %3438 = vmatpush1.bf16.msra.mxu0 %v3300
  %3439 = vmatprep.subr.bf16.mxu0 0
  %3440 = vmatpush1.bf16.msra.mxu0 %v3301
  %3441 = vmatprep.subr.bf16.mxu0 0
  %3442 = vmatpush1.bf16.msra.mxu0 %v3302
  %3443 = vmatprep.subr.bf16.mxu0 0
  %3444 = vmatpush1.bf16.msra.mxu0 %v3303
  %3445 = vmatprep.subr.bf16.mxu0 0
  %3446 = vmatpush1.bf16.msra.mxu0 %v3304
  %3447 = vmatprep.subr.bf16.mxu0 0
  %3448 = vmatpush1.bf16.msra.mxu0 %v3305
  %3449 = vmatprep.subr.bf16.mxu0 0
  %3450 = vmatpush1.bf16.msra.mxu0 %v3306
  %3451 = vmatprep.subr.bf16.mxu0 0
  %3452 = vmatpush1.bf16.msra.mxu0 %v3307
  %3453 = vmatprep.subr.bf16.mxu0 0
  %3454 = vmatpush1.bf16.msra.mxu0 %v3308
  %3455 = vmatprep.subr.bf16.mxu0 0
  %3456 = vmatpush1.bf16.msra.mxu0 %v3309
  %3457 = vmatprep.subr.bf16.mxu0 0
  %3458 = vmatpush1.bf16.msra.mxu0 %v3310
  %3459 = vmatprep.mubr.bf16.mxu0 %v3085
  %3460 = vmatmul.mubr.bf16.gmra.mrb[0].mxu0 %v3084
  %v3461 = vpop.f32.mrb[0].mxu0
  %v3462 = vadd.f32 %v3221, %v3461
  %v3463 = vpop.f32.mrb[0].mxu0
  %v3464 = vpop.f32.mrb[0].mxu0
  %v3465 = vadd.f32 %v3221, %v3464
  %v3466 = vpop.f32.mrb[0].mxu0
  %3467 = vmatprep.mubr.bf16.mxu0 %v3088
  %3468 = vmatmul.mubr.bf16.gmra.mrb[0].mxu0 %v3087
  %v3469 = vpop.f32.mrb[0].mxu0
  %v3470 = vadd.f32 %v3221, %v3469
  %v3471 = vpop.f32.mrb[0].mxu0
  %v3472 = vpop.f32.mrb[0].mxu0
  %v3473 = vadd.f32 %v3221, %v3472
  %v3474 = vpop.f32.mrb[0].mxu0
  %3475 = vmatprep.mubr.bf16.mxu0 %v3091
  %3476 = vmatmul.mubr.bf16.gmra.mrb[0].mxu0 %v3090
  %v3477 = vpop.f32.mrb[0].mxu0
  %v3478 = vadd.f32 %v3221, %v3477
  %v3479 = vpop.f32.mrb[0].mxu0
  %v3480 = vpop.f32.mrb[0].mxu0
  %v3481 = vadd.f32 %v3221, %v3480
  %v3482 = vpop.f32.mrb[0].mxu0
  %3483 = vmatprep.mubr.bf16.mxu0 %v3094
  %3484 = vmatmul.mubr.bf16.gmra.mrb[0].mxu0 %v3093
  %v3485 = vpop.f32.mrb[0].mxu0
  %v3486 = vadd.f32 %v3221, %v3485
  %v3487 = vpop.f32.mrb[0].mxu0
  %v3488 = vpop.f32.mrb[0].mxu0
  %v3489 = vadd.f32 %v3221, %v3488
  %v3490 = vpop.f32.mrb[0].mxu0
  %3491 = vmatprep.mubr.bf16.mxu0 %v3097
  %3492 = vmatmul.mubr.bf16.gmra.mrb[0].mxu0 %v3096
  %v3493 = vpop.f32.mrb[0].mxu0
  %v3494 = vadd.f32 %v3221, %v3493
  %v3495 = vpop.f32.mrb[0].mxu0
  %v3496 = vpop.f32.mrb[0].mxu0
  %v3497 = vadd.f32 %v3221, %v3496
  %v3498 = vpop.f32.mrb[0].mxu0
  %3499 = vmatprep.mubr.bf16.mxu0 %v3100
  %3500 = vmatmul.mubr.bf16.gmra.mrb[0].mxu0 %v3099
  %v3501 = vpop.f32.mrb[0].mxu0
  %v3502 = vadd.f32 %v3221, %v3501
  %v3503 = vpop.f32.mrb[0].mxu0
  %v3504 = vpop.f32.mrb[0].mxu0
  %v3505 = vadd.f32 %v3221, %v3504
  %v3506 = vpop.f32.mrb[0].mxu0
  %3507 = vmatprep.mubr.bf16.mxu0 %v3103
  %3508 = vmatmul.mubr.bf16.gmra.mrb[0].mxu0 %v3102
  %v3509 = vpop.f32.mrb[0].mxu0
  %v3510 = vadd.f32 %v3221, %v3509
  %v3511 = vpop.f32.mrb[0].mxu0
  %v3512 = vpop.f32.mrb[0].mxu0
  %v3513 = vadd.f32 %v3221, %v3512
  %v3514 = vpop.f32.mrb[0].mxu0
  %3515 = vmatprep.mubr.bf16.mxu0 %v3106
  %3516 = vmatmul.mubr.bf16.gmra.mrb[0].mxu0 %v3105
  %v3517 = vpop.f32.mrb[0].mxu0
  %v3518 = vadd.f32 %v3221, %v3517
  %v3519 = vpop.f32.mrb[0].mxu0
  %v3520 = vpop.f32.mrb[0].mxu0
  %v3521 = vadd.f32 %v3221, %v3520
  %v3522 = vpop.f32.mrb[0].mxu0
  %3523 = vmatprep.mubr.bf16.mxu0 %v3109
  %3524 = vmatmul.mubr.bf16.gmra.mrb[0].mxu0 %v3108
  %v3525 = vpop.f32.mrb[0].mxu0
  %v3526 = vadd.f32 %v3221, %v3525
  %v3527 = vpop.f32.mrb[0].mxu0
  %v3528 = vpop.f32.mrb[0].mxu0
  %v3529 = vadd.f32 %v3221, %v3528
  %v3530 = vpop.f32.mrb[0].mxu0
  %3531 = vmatprep.mubr.bf16.mxu0 %v3112
  %3532 = vmatmul.mubr.bf16.gmra.mrb[0].mxu0 %v3111
  %v3533 = vpop.f32.mrb[0].mxu0
  %v3534 = vadd.f32 %v3221, %v3533
  %v3535 = vpop.f32.mrb[0].mxu0
  %v3536 = vpop.f32.mrb[0].mxu0
  %v3537 = vadd.f32 %v3221, %v3536
  %v3538 = vpop.f32.mrb[0].mxu0
  %3539 = vmatprep.mubr.bf16.mxu0 %v3115
  %3540 = vmatmul.mubr.bf16.gmra.mrb[0].mxu0 %v3114
  %v3541 = vpop.f32.mrb[0].mxu0
  %v3542 = vadd.f32 %v3221, %v3541
  %v3543 = vpop.f32.mrb[0].mxu0
  %v3544 = vpop.f32.mrb[0].mxu0
  %v3545 = vadd.f32 %v3221, %v3544
  %v3546 = vpop.f32.mrb[0].mxu0
  %3547 = vmatprep.mubr.bf16.mxu0 %v3118
  %3548 = vmatmul.mubr.bf16.gmra.mrb[0].mxu0 %v3117
  %v3549 = vpop.f32.mrb[0].mxu0
  %v3550 = vadd.f32 %v3221, %v3549
  %v3551 = vpop.f32.mrb[0].mxu0
  %v3552 = vpop.f32.mrb[0].mxu0
  %v3553 = vadd.f32 %v3221, %v3552
  %v3554 = vpop.f32.mrb[0].mxu0
  %3555 = vmatprep.mubr.bf16.mxu0 %v3121
  %3556 = vmatmul.mubr.bf16.gmra.mrb[0].mxu0 %v3120
  %v3557 = vpop.f32.mrb[0].mxu0
  %v3558 = vadd.f32 %v3221, %v3557
  %v3559 = vpop.f32.mrb[0].mxu0
  %v3560 = vpop.f32.mrb[0].mxu0
  %v3561 = vadd.f32 %v3221, %v3560
  %v3562 = vpop.f32.mrb[0].mxu0
  %3563 = vmatprep.mubr.bf16.mxu0 %v3124
  %3564 = vmatmul.mubr.bf16.gmra.mrb[0].mxu0 %v3123
  %v3565 = vpop.f32.mrb[0].mxu0
  %v3566 = vadd.f32 %v3221, %v3565
  %v3567 = vpop.f32.mrb[0].mxu0
  %v3568 = vpop.f32.mrb[0].mxu0
  %v3569 = vadd.f32 %v3221, %v3568
  %v3570 = vpop.f32.mrb[0].mxu0
  %3571 = vmatprep.mubr.bf16.mxu0 %v3127
  %3572 = vmatmul.mubr.bf16.gmra.mrb[0].mxu0 %v3126
  %v3573 = vpop.f32.mrb[0].mxu0
  %v3574 = vadd.f32 %v3221, %v3573
  %v3575 = vpop.f32.mrb[0].mxu0
  %v3576 = vpop.f32.mrb[0].mxu0
  %v3577 = vadd.f32 %v3221, %v3576
  %v3578 = vpop.f32.mrb[0].mxu0
  %3579 = vmatprep.mubr.bf16.mxu0 %v3130
  %3580 = vmatmul.mubr.bf16.gmra.mrb[0].mxu0 %v3129
  %v3581 = vpop.f32.mrb[0].mxu0
  %v3582 = vadd.f32 %v3221, %v3581
  %v3583 = vpop.f32.mrb[0].mxu0
  %v3584 = vpop.f32.mrb[0].mxu0
  %v3585 = vadd.f32 %v3221, %v3584
  %v3586 = vpop.f32.mrb[0].mxu0
  %3587 = vmatprep.mubr.bf16.mxu0 %v3133
  %3588 = vmatmul.mubr.bf16.gmra.mrb[0].mxu0 %v3132
  %v3589 = vpop.f32.mrb[0].mxu0
  %v3590 = vadd.f32 %v3221, %v3589
  %v3591 = vpop.f32.mrb[0].mxu0
  %v3592 = vpop.f32.mrb[0].mxu0
  %v3593 = vadd.f32 %v3221, %v3592
  %v3594 = vpop.f32.mrb[0].mxu0
  %3595 = vmatprep.mubr.bf16.mxu0 %v3136
  %3596 = vmatmul.mubr.bf16.gmra.mrb[0].mxu0 %v3135
  %v3597 = vpop.f32.mrb[0].mxu0
  %v3598 = vadd.f32 %v3221, %v3597
  %v3599 = vpop.f32.mrb[0].mxu0
  %v3600 = vpop.f32.mrb[0].mxu0
  %v3601 = vadd.f32 %v3221, %v3600
  %v3602 = vpop.f32.mrb[0].mxu0
  %3603 = vmatprep.mubr.bf16.mxu0 %v3139
  %3604 = vmatmul.mubr.bf16.gmra.mrb[0].mxu0 %v3138
  %v3605 = vpop.f32.mrb[0].mxu0
  %v3606 = vadd.f32 %v3221, %v3605
  %v3607 = vpop.f32.mrb[0].mxu0
  %v3608 = vpop.f32.mrb[0].mxu0
  %v3609 = vadd.f32 %v3221, %v3608
  %v3610 = vpop.f32.mrb[0].mxu0
  %3611 = vmatprep.mubr.bf16.mxu0 %v3142
  %3612 = vmatmul.mubr.bf16.gmra.mrb[0].mxu0 %v3141
  %v3613 = vpop.f32.mrb[0].mxu0
  %v3614 = vadd.f32 %v3221, %v3613
  %v3615 = vpop.f32.mrb[0].mxu0
  %v3616 = vpop.f32.mrb[0].mxu0
  %v3617 = vadd.f32 %v3221, %v3616
  %v3618 = vpop.f32.mrb[0].mxu0
  %3619 = vmatprep.mubr.bf16.mxu0 %v3145
  %3620 = vmatmul.mubr.bf16.gmra.mrb[0].mxu0 %v3144
  %v3621 = vpop.f32.mrb[0].mxu0
  %v3622 = vadd.f32 %v3221, %v3621
  %v3623 = vpop.f32.mrb[0].mxu0
  %v3624 = vpop.f32.mrb[0].mxu0
  %v3625 = vadd.f32 %v3221, %v3624
  %v3626 = vpop.f32.mrb[0].mxu0
  %3627 = vmatprep.mubr.bf16.mxu0 %v3148
  %3628 = vmatmul.mubr.bf16.gmra.mrb[0].mxu0 %v3147
  %v3629 = vpop.f32.mrb[0].mxu0
  %v3630 = vadd.f32 %v3221, %v3629
  %v3631 = vpop.f32.mrb[0].mxu0
  %v3632 = vpop.f32.mrb[0].mxu0
  %v3633 = vadd.f32 %v3221, %v3632
  %v3634 = vpop.f32.mrb[0].mxu0
  %3635 = vmatprep.mubr.bf16.mxu0 %v3151
  %3636 = vmatmul.mubr.bf16.gmra.mrb[0].mxu0 %v3150
  %v3637 = vpop.f32.mrb[0].mxu0
  %v3638 = vadd.f32 %v3221, %v3637
  %v3639 = vpop.f32.mrb[0].mxu0
  %v3640 = vpop.f32.mrb[0].mxu0
  %v3641 = vadd.f32 %v3221, %v3640
  %v3642 = vpop.f32.mrb[0].mxu0
  %3643 = vmatprep.mubr.bf16.mxu0 %v3154
  %3644 = vmatmul.mubr.bf16.gmra.mrb[0].mxu0 %v3153
  %v3645 = vpop.f32.mrb[0].mxu0
  %v3646 = vadd.f32 %v3221, %v3645
  %v3647 = vpop.f32.mrb[0].mxu0
  %v3648 = vpop.f32.mrb[0].mxu0
  %v3649 = vadd.f32 %v3221, %v3648
  %v3650 = vpop.f32.mrb[0].mxu0
  %3651 = vmatprep.mubr.bf16.mxu0 %v3157
  %3652 = vmatmul.mubr.bf16.gmra.mrb[0].mxu0 %v3156
  %v3653 = vpop.f32.mrb[0].mxu0
  %v3654 = vadd.f32 %v3221, %v3653
  %v3655 = vpop.f32.mrb[0].mxu0
  %v3656 = vpop.f32.mrb[0].mxu0
  %v3657 = vadd.f32 %v3221, %v3656
  %v3658 = vpop.f32.mrb[0].mxu0
  %3659 = vmatprep.mubr.bf16.mxu0 %v3160
  %3660 = vmatmul.mubr.bf16.gmra.mrb[0].mxu0 %v3159
  %v3661 = vpop.f32.mrb[0].mxu0
  %v3662 = vadd.f32 %v3221, %v3661
  %v3663 = vpop.f32.mrb[0].mxu0
  %v3664 = vpop.f32.mrb[0].mxu0
  %v3665 = vadd.f32 %v3221, %v3664
  %v3666 = vpop.f32.mrb[0].mxu0
  %3667 = vmatprep.mubr.bf16.mxu0 %v3163
  %3668 = vmatmul.mubr.bf16.gmra.mrb[0].mxu0 %v3162
  %v3669 = vpop.f32.mrb[0].mxu0
  %v3670 = vadd.f32 %v3221, %v3669
  %v3671 = vpop.f32.mrb[0].mxu0
  %v3672 = vpop.f32.mrb[0].mxu0
  %v3673 = vadd.f32 %v3221, %v3672
  %v3674 = vpop.f32.mrb[0].mxu0
  %3675 = vmatprep.mubr.bf16.mxu0 %v3166
  %3676 = vmatmul.mubr.bf16.gmra.mrb[0].mxu0 %v3165
  %v3677 = vpop.f32.mrb[0].mxu0
  %v3678 = vadd.f32 %v3221, %v3677
  %v3679 = vpop.f32.mrb[0].mxu0
  %v3680 = vpop.f32.mrb[0].mxu0
  %v3681 = vadd.f32 %v3221, %v3680
  %v3682 = vpop.f32.mrb[0].mxu0
  %3683 = vmatprep.mubr.bf16.mxu0 %v3169
  %3684 = vmatmul.mubr.bf16.gmra.mrb[0].mxu0 %v3168
  %v3685 = vpop.f32.mrb[0].mxu0
  %v3686 = vadd.f32 %v3221, %v3685
  %v3687 = vpop.f32.mrb[0].mxu0
  %v3688 = vpop.f32.mrb[0].mxu0
  %v3689 = vadd.f32 %v3221, %v3688
  %v3690 = vpop.f32.mrb[0].mxu0
  %3691 = vmatprep.mubr.bf16.mxu0 %v3172
  %3692 = vmatmul.mubr.bf16.gmra.mrb[0].mxu0 %v3171
  %v3693 = vpop.f32.mrb[0].mxu0
  %v3694 = vadd.f32 %v3221, %v3693
  %v3695 = vpop.f32.mrb[0].mxu0
  %v3696 = vpop.f32.mrb[0].mxu0
  %v3697 = vadd.f32 %v3221, %v3696
  %v3698 = vpop.f32.mrb[0].mxu0
  %3699 = vmatprep.mubr.bf16.mxu0 %v3175
  %3700 = vmatmul.mubr.bf16.gmra.mrb[0].mxu0 %v3174
  %v3701 = vpop.f32.mrb[0].mxu0
  %v3702 = vadd.f32 %v3221, %v3701
  %v3703 = vpop.f32.mrb[0].mxu0
  %v3704 = vpop.f32.mrb[0].mxu0
  %v3705 = vadd.f32 %v3221, %v3704
  %v3706 = vpop.f32.mrb[0].mxu0
  %3707 = vmatprep.mubr.bf16.mxu0 %v3178
  %3708 = vmatmul.mubr.bf16.gmra.mrb[0].mxu0 %v3177
  %v3709 = vpop.f32.mrb[0].mxu0
  %v3710 = vadd.f32 %v3221, %v3709
  %v3711 = vpop.f32.mrb[0].mxu0
  %v3712 = vpop.f32.mrb[0].mxu0
  %v3713 = vadd.f32 %v3221, %v3712
  %v3714 = vpop.f32.mrb[0].mxu0
  %3715 = vdwg.mxu0
  %3716 = vmatprep.subr.bf16.mxu0 0
  %3717 = vmatpush1.bf16.msra.mxu0 %v3311
  %3718 = vmatprep.subr.bf16.mxu0 0
  %3719 = vmatpush1.bf16.msra.mxu0 %v3312
  %3720 = vmatprep.subr.bf16.mxu0 0
  %3721 = vmatpush1.bf16.msra.mxu0 0
  %3722 = vmatprep.subr.bf16.mxu0 0
  %3723 = vmatpush1.bf16.msra.mxu0 0
  %3724 = vmatprep.subr.bf16.mxu0 0
  %3725 = vmatpush1.bf16.msra.mxu0 0
  %3726 = vmatprep.subr.bf16.mxu0 0
  %3727 = vmatpush1.bf16.msra.mxu0 0
  %3728 = vmatprep.subr.bf16.mxu0 0
  %3729 = vmatpush1.bf16.msra.mxu0 0
  %3730 = vmatprep.subr.bf16.mxu0 0
  %3731 = vmatpush1.bf16.msra.mxu0 0
  %3732 = vmatprep.subr.bf16.mxu0 0
  %3733 = vmatpush1.bf16.msra.mxu0 0
  %3734 = vmatprep.subr.bf16.mxu0 0
  %3735 = vmatpush1.bf16.msra.mxu0 0
  %3736 = vmatprep.subr.bf16.mxu0 0
  %3737 = vmatpush1.bf16.msra.mxu0 0
  %3738 = vmatprep.subr.bf16.mxu0 0
  %3739 = vmatpush1.bf16.msra.mxu0 0
  %3740 = vmatprep.subr.bf16.mxu0 0
  %3741 = vmatpush1.bf16.msra.mxu0 0
  %3742 = vmatprep.subr.bf16.mxu0 0
  %3743 = vmatpush1.bf16.msra.mxu0 0
  %3744 = vmatprep.subr.bf16.mxu0 0
  %3745 = vmatpush1.bf16.msra.mxu0 0
  %3746 = vmatprep.subr.bf16.mxu0 0
  %3747 = vmatpush1.bf16.msra.mxu0 0
  %3748 = vmatprep.mubr.bf16.mxu0 0
  %3749 = vmatmul.mubr.bf16.gmra.mrb[0].mxu0 %v3332
  %v3750 = vpop.f32.mrb[0].mxu0
  %v3751 = vadd.f32 %v3462, %v3750
  %v3752 = vpop.f32.mrb[0].mxu0
  %v3753 = vpop.f32.mrb[0].mxu0
  %v3754 = vadd.f32 %v3465, %v3753
  %v3755 = vpop.f32.mrb[0].mxu0
  %3756 = vmatprep.mubr.bf16.mxu0 0
  %3757 = vmatmul.mubr.bf16.gmra.mrb[0].mxu0 %v3335
  %v3758 = vpop.f32.mrb[0].mxu0
  %v3759 = vadd.f32 %v3470, %v3758
  %v3760 = vpop.f32.mrb[0].mxu0
  %v3761 = vpop.f32.mrb[0].mxu0
  %v3762 = vadd.f32 %v3473, %v3761
  %v3763 = vpop.f32.mrb[0].mxu0
  %3764 = vmatprep.mubr.bf16.mxu0 0
  %3765 = vmatmul.mubr.bf16.gmra.mrb[0].mxu0 %v3338
  %v3766 = vpop.f32.mrb[0].mxu0
  %v3767 = vadd.f32 %v3478, %v3766
  %v3768 = vpop.f32.mrb[0].mxu0
  %v3769 = vpop.f32.mrb[0].mxu0
  %v3770 = vadd.f32 %v3481, %v3769
  %v3771 = vpop.f32.mrb[0].mxu0
  %3772 = vmatprep.mubr.bf16.mxu0 0
  %3773 = vmatmul.mubr.bf16.gmra.mrb[0].mxu0 %v3341
  %v3774 = vpop.f32.mrb[0].mxu0
  %v3775 = vadd.f32 %v3486, %v3774
  %v3776 = vpop.f32.mrb[0].mxu0
  %v3777 = vpop.f32.mrb[0].mxu0
  %v3778 = vadd.f32 %v3489, %v3777
  %v3779 = vpop.f32.mrb[0].mxu0
  %3780 = vmatprep.mubr.bf16.mxu0 0
  %3781 = vmatmul.mubr.bf16.gmra.mrb[0].mxu0 %v3344
  %v3782 = vpop.f32.mrb[0].mxu0
  %v3783 = vadd.f32 %v3494, %v3782
  %v3784 = vpop.f32.mrb[0].mxu0
  %v3785 = vpop.f32.mrb[0].mxu0
  %v3786 = vadd.f32 %v3497, %v3785
  %v3787 = vpop.f32.mrb[0].mxu0
  %3788 = vmatprep.mubr.bf16.mxu0 0
  %3789 = vmatmul.mubr.bf16.gmra.mrb[0].mxu0 %v3347
  %v3790 = vpop.f32.mrb[0].mxu0
  %v3791 = vadd.f32 %v3502, %v3790
  %v3792 = vpop.f32.mrb[0].mxu0
  %v3793 = vpop.f32.mrb[0].mxu0
  %v3794 = vadd.f32 %v3505, %v3793
  %v3795 = vpop.f32.mrb[0].mxu0
  %3796 = vmatprep.mubr.bf16.mxu0 0
  %3797 = vmatmul.mubr.bf16.gmra.mrb[0].mxu0 %v3350
  %v3798 = vpop.f32.mrb[0].mxu0
  %v3799 = vadd.f32 %v3510, %v3798
  %v3800 = vpop.f32.mrb[0].mxu0
  %v3801 = vpop.f32.mrb[0].mxu0
  %v3802 = vadd.f32 %v3513, %v3801
  %v3803 = vpop.f32.mrb[0].mxu0
  %3804 = vmatprep.mubr.bf16.mxu0 0
  %3805 = vmatmul.mubr.bf16.gmra.mrb[0].mxu0 %v3353
  %v3806 = vpop.f32.mrb[0].mxu0
  %v3807 = vadd.f32 %v3518, %v3806
  %v3808 = vpop.f32.mrb[0].mxu0
  %v3809 = vpop.f32.mrb[0].mxu0
  %v3810 = vadd.f32 %v3521, %v3809
  %v3811 = vpop.f32.mrb[0].mxu0
  %3812 = vmatprep.mubr.bf16.mxu0 0
  %3813 = vmatmul.mubr.bf16.gmra.mrb[0].mxu0 %v3356
  %v3814 = vpop.f32.mrb[0].mxu0
  %v3815 = vadd.f32 %v3526, %v3814
  %v3816 = vpop.f32.mrb[0].mxu0
  %v3817 = vpop.f32.mrb[0].mxu0
  %v3818 = vadd.f32 %v3529, %v3817
  %v3819 = vpop.f32.mrb[0].mxu0
  %3820 = vmatprep.mubr.bf16.mxu0 0
  %3821 = vmatmul.mubr.bf16.gmra.mrb[0].mxu0 %v3359
  %v3822 = vpop.f32.mrb[0].mxu0
  %v3823 = vadd.f32 %v3534, %v3822
  %v3824 = vpop.f32.mrb[0].mxu0
  %v3825 = vpop.f32.mrb[0].mxu0
  %v3826 = vadd.f32 %v3537, %v3825
  %v3827 = vpop.f32.mrb[0].mxu0
  %3828 = vmatprep.mubr.bf16.mxu0 0
  %3829 = vmatmul.mubr.bf16.gmra.mrb[0].mxu0 %v3362
  %v3830 = vpop.f32.mrb[0].mxu0
  %v3831 = vadd.f32 %v3542, %v3830
  %v3832 = vpop.f32.mrb[0].mxu0
  %v3833 = vpop.f32.mrb[0].mxu0
  %v3834 = vadd.f32 %v3545, %v3833
  %v3835 = vpop.f32.mrb[0].mxu0
  %3836 = vmatprep.mubr.bf16.mxu0 0
  %3837 = vmatmul.mubr.bf16.gmra.mrb[0].mxu0 %v3365
  %v3838 = vpop.f32.mrb[0].mxu0
  %v3839 = vadd.f32 %v3550, %v3838
  %v3840 = vpop.f32.mrb[0].mxu0
  %v3841 = vpop.f32.mrb[0].mxu0
  %v3842 = vadd.f32 %v3553, %v3841
  %v3843 = vpop.f32.mrb[0].mxu0
  %3844 = vmatprep.mubr.bf16.mxu0 0
  %3845 = vmatmul.mubr.bf16.gmra.mrb[0].mxu0 %v3368
  %v3846 = vpop.f32.mrb[0].mxu0
  %v3847 = vadd.f32 %v3558, %v3846
  %v3848 = vpop.f32.mrb[0].mxu0
  %v3849 = vpop.f32.mrb[0].mxu0
  %v3850 = vadd.f32 %v3561, %v3849
  %v3851 = vpop.f32.mrb[0].mxu0
  %3852 = vmatprep.mubr.bf16.mxu0 0
  %3853 = vmatmul.mubr.bf16.gmra.mrb[0].mxu0 %v3371
  %v3854 = vpop.f32.mrb[0].mxu0
  %v3855 = vadd.f32 %v3566, %v3854
  %v3856 = vpop.f32.mrb[0].mxu0
  %v3857 = vpop.f32.mrb[0].mxu0
  %v3858 = vadd.f32 %v3569, %v3857
  %v3859 = vpop.f32.mrb[0].mxu0
  %3860 = vmatprep.mubr.bf16.mxu0 0
  %3861 = vmatmul.mubr.bf16.gmra.mrb[0].mxu0 %v3374
  %v3862 = vpop.f32.mrb[0].mxu0
  %v3863 = vadd.f32 %v3574, %v3862
  %v3864 = vpop.f32.mrb[0].mxu0
  %v3865 = vpop.f32.mrb[0].mxu0
  %v3866 = vadd.f32 %v3577, %v3865
  %v3867 = vpop.f32.mrb[0].mxu0
  %3868 = vmatprep.mubr.bf16.mxu0 0
  %3869 = vmatmul.mubr.bf16.gmra.mrb[0].mxu0 %v3377
  %v3870 = vpop.f32.mrb[0].mxu0
  %v3871 = vadd.f32 %v3582, %v3870
  %v3872 = vpop.f32.mrb[0].mxu0
  %v3873 = vpop.f32.mrb[0].mxu0
  %v3874 = vadd.f32 %v3585, %v3873
  %v3875 = vpop.f32.mrb[0].mxu0
  %3876 = vmatprep.mubr.bf16.mxu0 0
  %3877 = vmatmul.mubr.bf16.gmra.mrb[0].mxu0 %v3380
  %v3878 = vpop.f32.mrb[0].mxu0
  %v3879 = vadd.f32 %v3590, %v3878
  %v3880 = vpop.f32.mrb[0].mxu0
  %v3881 = vpop.f32.mrb[0].mxu0
  %v3882 = vadd.f32 %v3593, %v3881
  %v3883 = vpop.f32.mrb[0].mxu0
  %3884 = vmatprep.mubr.bf16.mxu0 0
  %3885 = vmatmul.mubr.bf16.gmra.mrb[0].mxu0 %v3383
  %v3886 = vpop.f32.mrb[0].mxu0
  %v3887 = vadd.f32 %v3598, %v3886
  %v3888 = vpop.f32.mrb[0].mxu0
  %v3889 = vpop.f32.mrb[0].mxu0
  %v3890 = vadd.f32 %v3601, %v3889
  %v3891 = vpop.f32.mrb[0].mxu0
  %3892 = vmatprep.mubr.bf16.mxu0 0
  %3893 = vmatmul.mubr.bf16.gmra.mrb[0].mxu0 %v3386
  %v3894 = vpop.f32.mrb[0].mxu0
  %v3895 = vadd.f32 %v3606, %v3894
  %v3896 = vpop.f32.mrb[0].mxu0
  %v3897 = vpop.f32.mrb[0].mxu0
  %v3898 = vadd.f32 %v3609, %v3897
  %v3899 = vpop.f32.mrb[0].mxu0
  %3900 = vmatprep.mubr.bf16.mxu0 0
  %3901 = vmatmul.mubr.bf16.gmra.mrb[0].mxu0 %v3389
  %v3902 = vpop.f32.mrb[0].mxu0
  %v3903 = vadd.f32 %v3614, %v3902
  %v3904 = vpop.f32.mrb[0].mxu0
  %v3905 = vpop.f32.mrb[0].mxu0
  %v3906 = vadd.f32 %v3617, %v3905
  %v3907 = vpop.f32.mrb[0].mxu0
  %3908 = vmatprep.mubr.bf16.mxu0 0
  %3909 = vmatmul.mubr.bf16.gmra.mrb[0].mxu0 %v3392
  %v3910 = vpop.f32.mrb[0].mxu0
  %v3911 = vadd.f32 %v3622, %v3910
  %v3912 = vpop.f32.mrb[0].mxu0
  %v3913 = vpop.f32.mrb[0].mxu0
  %v3914 = vadd.f32 %v3625, %v3913
  %v3915 = vpop.f32.mrb[0].mxu0
  %3916 = vmatprep.mubr.bf16.mxu0 0
  %3917 = vmatmul.mubr.bf16.gmra.mrb[0].mxu0 %v3395
  %v3918 = vpop.f32.mrb[0].mxu0
  %v3919 = vadd.f32 %v3630, %v3918
  %v3920 = vpop.f32.mrb[0].mxu0
  %v3921 = vpop.f32.mrb[0].mxu0
  %v3922 = vadd.f32 %v3633, %v3921
  %v3923 = vpop.f32.mrb[0].mxu0
  %3924 = vmatprep.mubr.bf16.mxu0 0
  %3925 = vmatmul.mubr.bf16.gmra.mrb[0].mxu0 %v3398
  %v3926 = vpop.f32.mrb[0].mxu0
  %v3927 = vadd.f32 %v3638, %v3926
  %v3928 = vpop.f32.mrb[0].mxu0
  %v3929 = vpop.f32.mrb[0].mxu0
  %v3930 = vadd.f32 %v3641, %v3929
  %v3931 = vpop.f32.mrb[0].mxu0
  %3932 = vmatprep.mubr.bf16.mxu0 0
  %3933 = vmatmul.mubr.bf16.gmra.mrb[0].mxu0 %v3401
  %v3934 = vpop.f32.mrb[0].mxu0
  %v3935 = vadd.f32 %v3646, %v3934
  %v3936 = vpop.f32.mrb[0].mxu0
  %v3937 = vpop.f32.mrb[0].mxu0
  %v3938 = vadd.f32 %v3649, %v3937
  %v3939 = vpop.f32.mrb[0].mxu0
  %3940 = vmatprep.mubr.bf16.mxu0 0
  %3941 = vmatmul.mubr.bf16.gmra.mrb[0].mxu0 %v3404
  %v3942 = vpop.f32.mrb[0].mxu0
  %v3943 = vadd.f32 %v3654, %v3942
  %v3944 = vpop.f32.mrb[0].mxu0
  %v3945 = vpop.f32.mrb[0].mxu0
  %v3946 = vadd.f32 %v3657, %v3945
  %v3947 = vpop.f32.mrb[0].mxu0
  %3948 = vmatprep.mubr.bf16.mxu0 0
  %3949 = vmatmul.mubr.bf16.gmra.mrb[0].mxu0 %v3407
  %v3950 = vpop.f32.mrb[0].mxu0
  %v3951 = vadd.f32 %v3662, %v3950
  %v3952 = vpop.f32.mrb[0].mxu0
  %v3953 = vpop.f32.mrb[0].mxu0
  %v3954 = vadd.f32 %v3665, %v3953
  %v3955 = vpop.f32.mrb[0].mxu0
  %3956 = vmatprep.mubr.bf16.mxu0 0
  %3957 = vmatmul.mubr.bf16.gmra.mrb[0].mxu0 %v3410
  %v3958 = vpop.f32.mrb[0].mxu0
  %v3959 = vadd.f32 %v3670, %v3958
  %v3960 = vpop.f32.mrb[0].mxu0
  %v3961 = vpop.f32.mrb[0].mxu0
  %v3962 = vadd.f32 %v3673, %v3961
  %v3963 = vpop.f32.mrb[0].mxu0
  %3964 = vmatprep.mubr.bf16.mxu0 0
  %3965 = vmatmul.mubr.bf16.gmra.mrb[0].mxu0 %v3413
  %v3966 = vpop.f32.mrb[0].mxu0
  %v3967 = vadd.f32 %v3678, %v3966
  %v3968 = vpop.f32.mrb[0].mxu0
  %v3969 = vpop.f32.mrb[0].mxu0
  %v3970 = vadd.f32 %v3681, %v3969
  %v3971 = vpop.f32.mrb[0].mxu0
  %3972 = vmatprep.mubr.bf16.mxu0 0
  %3973 = vmatmul.mubr.bf16.gmra.mrb[0].mxu0 %v3416
  %v3974 = vpop.f32.mrb[0].mxu0
  %v3975 = vadd.f32 %v3686, %v3974
  %v3976 = vpop.f32.mrb[0].mxu0
  %v3977 = vpop.f32.mrb[0].mxu0
  %v3978 = vadd.f32 %v3689, %v3977
  %v3979 = vpop.f32.mrb[0].mxu0
  %3980 = vmatprep.mubr.bf16.mxu0 0
  %3981 = vmatmul.mubr.bf16.gmra.mrb[0].mxu0 %v3419
  %v3982 = vpop.f32.mrb[0].mxu0
  %v3983 = vadd.f32 %v3694, %v3982
  %v3984 = vpop.f32.mrb[0].mxu0
  %v3985 = vpop.f32.mrb[0].mxu0
  %v3986 = vadd.f32 %v3697, %v3985
  %v3987 = vpop.f32.mrb[0].mxu0
  %3988 = vmatprep.mubr.bf16.mxu0 0
  %3989 = vmatmul.mubr.bf16.gmra.mrb[0].mxu0 %v3422
  %v3990 = vpop.f32.mrb[0].mxu0
  %v3991 = vadd.f32 %v3702, %v3990
  %v3992 = vpop.f32.mrb[0].mxu0
  %v3993 = vpop.f32.mrb[0].mxu0
  %v3994 = vadd.f32 %v3705, %v3993
  %v3995 = vpop.f32.mrb[0].mxu0
  %3996 = vmatprep.mubr.bf16.mxu0 0
  %3997 = vmatmul.mubr.bf16.gmra.mrb[0].mxu0 %v3425
  %v3998 = vpop.f32.mrb[0].mxu0
  %v3999 = vadd.f32 %v3710, %v3998
  %v4000 = vpop.f32.mrb[0].mxu0
  %v4001 = vpop.f32.mrb[0].mxu0
  %v4002 = vadd.f32 %v3713, %v4001
  %v4003 = vpop.f32.mrb[0].mxu0
  %4004 = vdwg.mxu0
  %4005 = vst.msk [vmem:[#allocation2] sm:$0xff] %vm514, %v3751
  %4006 = vst.msk [vmem:[#allocation2 + $0x8] sm:$0xff] %vm514, %v3754
  %4007 = vst.msk [vmem:[#allocation2 + $0x10] sm:$0xff] %vm514, %v3759
  %4008 = vst.msk [vmem:[#allocation2 + $0x18] sm:$0xff] %vm514, %v3762
  %4009 = vst.msk [vmem:[#allocation2 + $0x20] sm:$0xff] %vm514, %v3767
  %4010 = vst.msk [vmem:[#allocation2 + $0x28] sm:$0xff] %vm514, %v3770
  %4011 = vst.msk [vmem:[#allocation2 + $0x30] sm:$0xff] %vm514, %v3775
  %4012 = vst.msk [vmem:[#allocation2 + $0x38] sm:$0xff] %vm514, %v3778
  %4013 = vst.msk [vmem:[#allocation2 + $0x40] sm:$0xff] %vm514, %v3783
  %4014 = vst.msk [vmem:[#allocation2 + $0x48] sm:$0xff] %vm514, %v3786
  %4015 = vst.msk [vmem:[#allocation2 + $0x50] sm:$0xff] %vm514, %v3791
  %4016 = vst.msk [vmem:[#allocation2 + $0x58] sm:$0xff] %vm514, %v3794
  %4017 = vst.msk [vmem:[#allocation2 + $0x60] sm:$0xff] %vm514, %v3799
  %4018 = vst.msk [vmem:[#allocation2 + $0x68] sm:$0xff] %vm514, %v3802
  %4019 = vst.msk [vmem:[#allocation2 + $0x70] sm:$0xff] %vm514, %v3807
  %4020 = vst.msk [vmem:[#allocation2 + $0x78] sm:$0xff] %vm514, %v3810
  %4021 = vst.msk [vmem:[#allocation2 + $0x80] sm:$0xff] %vm514, %v3815
  %4022 = vst.msk [vmem:[#allocation2 + $0x88] sm:$0xff] %vm514, %v3818
  %4023 = vst.msk [vmem:[#allocation2 + $0x90] sm:$0xff] %vm514, %v3823
  %4024 = vst.msk [vmem:[#allocation2 + $0x98] sm:$0xff] %vm514, %v3826
  %4025 = vst.msk [vmem:[#allocation2 + $0xa0] sm:$0xff] %vm514, %v3831
  %4026 = vst.msk [vmem:[#allocation2 + $0xa8] sm:$0xff] %vm514, %v3834
  %4027 = vst.msk [vmem:[#allocation2 + $0xb0] sm:$0xff] %vm514, %v3839
  %4028 = vst.msk [vmem:[#allocation2 + $0xb8] sm:$0xff] %vm514, %v3842
  %4029 = vst.msk [vmem:[#allocation2 + $0xc0] sm:$0xff] %vm514, %v3847
  %4030 = vst.msk [vmem:[#allocation2 + $0xc8] sm:$0xff] %vm514, %v3850
  %4031 = vst.msk [vmem:[#allocation2 + $0xd0] sm:$0xff] %vm514, %v3855
  %4032 = vst.msk [vmem:[#allocation2 + $0xd8] sm:$0xff] %vm514, %v3858
  %4033 = vst.msk [vmem:[#allocation2 + $0xe0] sm:$0xff] %vm514, %v3863
  %4034 = vst.msk [vmem:[#allocation2 + $0xe8] sm:$0xff] %vm514, %v3866
  %4035 = vst.msk [vmem:[#allocation2 + $0xf0] sm:$0xff] %vm514, %v3871
  %4036 = vst.msk [vmem:[#allocation2 + $0xf8] sm:$0xff] %vm514, %v3874
  %4037 = vst.msk [vmem:[#allocation2 + $0x100] sm:$0xff] %vm514, %v3879
  %4038 = vst.msk [vmem:[#allocation2 + $0x108] sm:$0xff] %vm514, %v3882
  %4039 = vst.msk [vmem:[#allocation2 + $0x110] sm:$0xff] %vm514, %v3887
  %4040 = vst.msk [vmem:[#allocation2 + $0x118] sm:$0xff] %vm514, %v3890
  %4041 = vst.msk [vmem:[#allocation2 + $0x120] sm:$0xff] %vm514, %v3895
  %4042 = vst.msk [vmem:[#allocation2 + $0x128] sm:$0xff] %vm514, %v3898
  %4043 = vst.msk [vmem:[#allocation2 + $0x130] sm:$0xff] %vm514, %v3903
  %4044 = vst.msk [vmem:[#allocation2 + $0x138] sm:$0xff] %vm514, %v3906
  %4045 = vst.msk [vmem:[#allocation2 + $0x140] sm:$0xff] %vm514, %v3911
  %4046 = vst.msk [vmem:[#allocation2 + $0x148] sm:$0xff] %vm514, %v3914
  %4047 = vst.msk [vmem:[#allocation2 + $0x150] sm:$0xff] %vm514, %v3919
  %4048 = vst.msk [vmem:[#allocation2 + $0x158] sm:$0xff] %vm514, %v3922
  %4049 = vst.msk [vmem:[#allocation2 + $0x160] sm:$0xff] %vm514, %v3927
  %4050 = vst.msk [vmem:[#allocation2 + $0x168] sm:$0xff] %vm514, %v3930
  %4051 = vst.msk [vmem:[#allocation2 + $0x170] sm:$0xff] %vm514, %v3935
  %4052 = vst.msk [vmem:[#allocation2 + $0x178] sm:$0xff] %vm514, %v3938
  %4053 = vst.msk [vmem:[#allocation2 + $0x180] sm:$0xff] %vm514, %v3943
  %4054 = vst.msk [vmem:[#allocation2 + $0x188] sm:$0xff] %vm514, %v3946
  %4055 = vst.msk [vmem:[#allocation2 + $0x190] sm:$0xff] %vm514, %v3951
  %4056 = vst.msk [vmem:[#allocation2 + $0x198] sm:$0xff] %vm514, %v3954
  %4057 = vst.msk [vmem:[#allocation2 + $0x1a0] sm:$0xff] %vm514, %v3959
  %4058 = vst.msk [vmem:[#allocation2 + $0x1a8] sm:$0xff] %vm514, %v3962
  %4059 = vst.msk [vmem:[#allocation2 + $0x1b0] sm:$0xff] %vm514, %v3967
  %4060 = vst.msk [vmem:[#allocation2 + $0x1b8] sm:$0xff] %vm514, %v3970
  %4061 = vst.msk [vmem:[#allocation2 + $0x1c0] sm:$0xff] %vm514, %v3975
  %4062 = vst.msk [vmem:[#allocation2 + $0x1c8] sm:$0xff] %vm514, %v3978
  %4063 = vst.msk [vmem:[#allocation2 + $0x1d0] sm:$0xff] %vm514, %v3983
  %4064 = vst.msk [vmem:[#allocation2 + $0x1d8] sm:$0xff] %vm514, %v3986
  %4065 = vst.msk [vmem:[#allocation2 + $0x1e0] sm:$0xff] %vm514, %v3991
  %4066 = vst.msk [vmem:[#allocation2 + $0x1e8] sm:$0xff] %vm514, %v3994
  %4067 = vst.msk [vmem:[#allocation2 + $0x1f0] sm:$0xff] %vm514, %v3999
  %4068 = vst.msk [vmem:[#allocation2 + $0x1f8] sm:$0xff] %vm514, %v4002
  %v4069 = vld [vmem:[#allocation2] sm:$0xff]
  %v4070 = vld [vmem:[#allocation2 + $0x8] sm:$0xff]
  %v4071 = vld [vmem:[#allocation2 + $0x10] sm:$0xff]
  %v4072 = vld [vmem:[#allocation2 + $0x18] sm:$0xff]
  %v4073 = vld [vmem:[#allocation2 + $0x20] sm:$0xff]
  %v4074 = vld [vmem:[#allocation2 + $0x28] sm:$0xff]
  %v4075 = vld [vmem:[#allocation2 + $0x30] sm:$0xff]
  %v4076 = vld [vmem:[#allocation2 + $0x38] sm:$0xff]
  %v4077 = vld [vmem:[#allocation2 + $0x40] sm:$0xff]
  %v4078 = vld [vmem:[#allocation2 + $0x48] sm:$0xff]
  %v4079 = vld [vmem:[#allocation2 + $0x50] sm:$0xff]
  %v4080 = vld [vmem:[#allocation2 + $0x58] sm:$0xff]
  %v4081 = vld [vmem:[#allocation2 + $0x60] sm:$0xff]
  %v4082 = vld [vmem:[#allocation2 + $0x68] sm:$0xff]
  %v4083 = vld [vmem:[#allocation2 + $0x70] sm:$0xff]
  %v4084 = vld [vmem:[#allocation2 + $0x78] sm:$0xff]
  %v4085 = vld [vmem:[#allocation2 + $0x80] sm:$0xff]
  %v4086 = vld [vmem:[#allocation2 + $0x88] sm:$0xff]
  %v4087 = vld [vmem:[#allocation2 + $0x90] sm:$0xff]
  %v4088 = vld [vmem:[#allocation2 + $0x98] sm:$0xff]
  %v4089 = vld [vmem:[#allocation2 + $0xa0] sm:$0xff]
  %v4090 = vld [vmem:[#allocation2 + $0xa8] sm:$0xff]
  %v4091 = vld [vmem:[#allocation2 + $0xb0] sm:$0xff]
  %v4092 = vld [vmem:[#allocation2 + $0xb8] sm:$0xff]
  %v4093 = vld [vmem:[#allocation2 + $0xc0] sm:$0xff]
  %v4094 = vld [vmem:[#allocation2 + $0xc8] sm:$0xff]
  %v4095 = vld [vmem:[#allocation2 + $0xd0] sm:$0xff]
  %v4096 = vld [vmem:[#allocation2 + $0xd8] sm:$0xff]
  %v4097 = vld [vmem:[#allocation2 + $0xe0] sm:$0xff]
  %v4098 = vld [vmem:[#allocation2 + $0xe8] sm:$0xff]
  %v4099 = vld [vmem:[#allocation2 + $0xf0] sm:$0xff]
  %v4100 = vld [vmem:[#allocation2 + $0xf8] sm:$0xff]
  %v4101 = vld [vmem:[#allocation2 + $0x100] sm:$0xff]
  %v4102 = vld [vmem:[#allocation2 + $0x108] sm:$0xff]
  %v4103 = vld [vmem:[#allocation2 + $0x110] sm:$0xff]
  %v4104 = vld [vmem:[#allocation2 + $0x118] sm:$0xff]
  %v4105 = vld [vmem:[#allocation2 + $0x120] sm:$0xff]
  %v4106 = vld [vmem:[#allocation2 + $0x128] sm:$0xff]
  %v4107 = vld [vmem:[#allocation2 + $0x130] sm:$0xff]
  %v4108 = vld [vmem:[#allocation2 + $0x138] sm:$0xff]
  %v4109 = vld [vmem:[#allocation2 + $0x140] sm:$0xff]
  %v4110 = vld [vmem:[#allocation2 + $0x148] sm:$0xff]
  %v4111 = vld [vmem:[#allocation2 + $0x150] sm:$0xff]
  %v4112 = vld [vmem:[#allocation2 + $0x158] sm:$0xff]
  %v4113 = vld [vmem:[#allocation2 + $0x160] sm:$0xff]
  %v4114 = vld [vmem:[#allocation2 + $0x168] sm:$0xff]
  %v4115 = vld [vmem:[#allocation2 + $0x170] sm:$0xff]
  %v4116 = vld [vmem:[#allocation2 + $0x178] sm:$0xff]
  %v4117 = vld [vmem:[#allocation2 + $0x180] sm:$0xff]
  %v4118 = vld [vmem:[#allocation2 + $0x188] sm:$0xff]
  %v4119 = vld [vmem:[#allocation2 + $0x190] sm:$0xff]
  %v4120 = vld [vmem:[#allocation2 + $0x198] sm:$0xff]
  %v4121 = vld [vmem:[#allocation2 + $0x1a0] sm:$0xff]
  %v4122 = vld [vmem:[#allocation2 + $0x1a8] sm:$0xff]
  %v4123 = vld [vmem:[#allocation2 + $0x1b0] sm:$0xff]
  %v4124 = vld [vmem:[#allocation2 + $0x1b8] sm:$0xff]
  %v4125 = vld [vmem:[#allocation2 + $0x1c0] sm:$0xff]
  %v4126 = vld [vmem:[#allocation2 + $0x1c8] sm:$0xff]
  %v4127 = vld [vmem:[#allocation2 + $0x1d0] sm:$0xff]
  %v4128 = vld [vmem:[#allocation2 + $0x1d8] sm:$0xff]
  %v4129 = vld [vmem:[#allocation2 + $0x1e0] sm:$0xff]
  %v4130 = vld [vmem:[#allocation2 + $0x1e8] sm:$0xff]
  %v4131 = vld [vmem:[#allocation2 + $0x1f0] sm:$0xff]
  %v4132 = vld [vmem:[#allocation2 + $0x1f8] sm:$0xff]
  %v4133 = vsel %vm514, %v4069, 0.0
  %v4134 = vsel %vm514, %v4070, 0.0
  %v4135 = vadd.f32 %v4133, %v4134
  %v4136 = vsel %vm514, %v4071, 0.0
  %v4137 = vadd.f32 %v4135, %v4136
  %v4138 = vsel %vm514, %v4072, 0.0
  %v4139 = vadd.f32 %v4137, %v4138
  %v4140 = vsel %vm514, %v4073, 0.0
  %v4141 = vadd.f32 %v4139, %v4140
  %v4142 = vsel %vm514, %v4074, 0.0
  %v4143 = vadd.f32 %v4141, %v4142
  %v4144 = vsel %vm514, %v4075, 0.0
  %v4145 = vadd.f32 %v4143, %v4144
  %v4146 = vsel %vm514, %v4076, 0.0
  %v4147 = vadd.f32 %v4145, %v4146
  %v4148 = vsel %vm514, %v4077, 0.0
  %v4149 = vadd.f32 %v4147, %v4148
  %v4150 = vsel %vm514, %v4078, 0.0
  %v4151 = vadd.f32 %v4149, %v4150
  %v4152 = vsel %vm514, %v4079, 0.0
  %v4153 = vadd.f32 %v4151, %v4152
  %v4154 = vsel %vm514, %v4080, 0.0
  %v4155 = vadd.f32 %v4153, %v4154
  %v4156 = vsel %vm514, %v4081, 0.0
  %v4157 = vadd.f32 %v4155, %v4156
  %v4158 = vsel %vm514, %v4082, 0.0
  %v4159 = vadd.f32 %v4157, %v4158
  %v4160 = vsel %vm514, %v4083, 0.0
  %v4161 = vadd.f32 %v4159, %v4160
  %v4162 = vsel %vm514, %v4084, 0.0
  %v4163 = vadd.f32 %v4161, %v4162
  %v4164 = vsel %vm514, %v4085, 0.0
  %v4165 = vadd.f32 %v4163, %v4164
  %v4166 = vsel %vm514, %v4086, 0.0
  %v4167 = vadd.f32 %v4165, %v4166
  %v4168 = vsel %vm514, %v4087, 0.0
  %v4169 = vadd.f32 %v4167, %v4168
  %v4170 = vsel %vm514, %v4088, 0.0
  %v4171 = vadd.f32 %v4169, %v4170
  %v4172 = vsel %vm514, %v4089, 0.0
  %v4173 = vadd.f32 %v4171, %v4172
  %v4174 = vsel %vm514, %v4090, 0.0
  %v4175 = vadd.f32 %v4173, %v4174
  %v4176 = vsel %vm514, %v4091, 0.0
  %v4177 = vadd.f32 %v4175, %v4176
  %v4178 = vsel %vm514, %v4092, 0.0
  %v4179 = vadd.f32 %v4177, %v4178
  %v4180 = vsel %vm514, %v4093, 0.0
  %v4181 = vadd.f32 %v4179, %v4180
  %v4182 = vsel %vm514, %v4094, 0.0
  %v4183 = vadd.f32 %v4181, %v4182
  %v4184 = vsel %vm514, %v4095, 0.0
  %v4185 = vadd.f32 %v4183, %v4184
  %v4186 = vsel %vm514, %v4096, 0.0
  %v4187 = vadd.f32 %v4185, %v4186
  %v4188 = vsel %vm514, %v4097, 0.0
  %v4189 = vadd.f32 %v4187, %v4188
  %v4190 = vsel %vm514, %v4098, 0.0
  %v4191 = vadd.f32 %v4189, %v4190
  %v4192 = vsel %vm514, %v4099, 0.0
  %v4193 = vadd.f32 %v4191, %v4192
  %v4194 = vsel %vm514, %v4100, 0.0
  %v4195 = vadd.f32 %v4193, %v4194
  %v4196 = vsel %vm514, %v4101, 0.0
  %v4197 = vadd.f32 %v4195, %v4196
  %v4198 = vsel %vm514, %v4102, 0.0
  %v4199 = vadd.f32 %v4197, %v4198
  %v4200 = vsel %vm514, %v4103, 0.0
  %v4201 = vadd.f32 %v4199, %v4200
  %v4202 = vsel %vm514, %v4104, 0.0
  %v4203 = vadd.f32 %v4201, %v4202
  %v4204 = vsel %vm514, %v4105, 0.0
  %v4205 = vadd.f32 %v4203, %v4204
  %v4206 = vsel %vm514, %v4106, 0.0
  %v4207 = vadd.f32 %v4205, %v4206
  %v4208 = vsel %vm514, %v4107, 0.0
  %v4209 = vadd.f32 %v4207, %v4208
  %v4210 = vsel %vm514, %v4108, 0.0
  %v4211 = vadd.f32 %v4209, %v4210
  %v4212 = vsel %vm514, %v4109, 0.0
  %v4213 = vadd.f32 %v4211, %v4212
  %v4214 = vsel %vm514, %v4110, 0.0
  %v4215 = vadd.f32 %v4213, %v4214
  %v4216 = vsel %vm514, %v4111, 0.0
  %v4217 = vadd.f32 %v4215, %v4216
  %v4218 = vsel %vm514, %v4112, 0.0
  %v4219 = vadd.f32 %v4217, %v4218
  %v4220 = vsel %vm514, %v4113, 0.0
  %v4221 = vadd.f32 %v4219, %v4220
  %v4222 = vsel %vm514, %v4114, 0.0
  %v4223 = vadd.f32 %v4221, %v4222
  %v4224 = vsel %vm514, %v4115, 0.0
  %v4225 = vadd.f32 %v4223, %v4224
  %v4226 = vsel %vm514, %v4116, 0.0
  %v4227 = vadd.f32 %v4225, %v4226
  %v4228 = vsel %vm514, %v4117, 0.0
  %v4229 = vadd.f32 %v4227, %v4228
  %v4230 = vsel %vm514, %v4118, 0.0
  %v4231 = vadd.f32 %v4229, %v4230
  %v4232 = vsel %vm514, %v4119, 0.0
  %v4233 = vadd.f32 %v4231, %v4232
  %v4234 = vsel %vm514, %v4120, 0.0
  %v4235 = vadd.f32 %v4233, %v4234
  %v4236 = vsel %vm514, %v4121, 0.0
  %v4237 = vadd.f32 %v4235, %v4236
  %v4238 = vsel %vm514, %v4122, 0.0
  %v4239 = vadd.f32 %v4237, %v4238
  %v4240 = vsel %vm514, %v4123, 0.0
  %v4241 = vadd.f32 %v4239, %v4240
  %v4242 = vsel %vm514, %v4124, 0.0
  %v4243 = vadd.f32 %v4241, %v4242
  %v4244 = vsel %vm514, %v4125, 0.0
  %v4245 = vadd.f32 %v4243, %v4244
  %v4246 = vsel %vm514, %v4126, 0.0
  %v4247 = vadd.f32 %v4245, %v4246
  %v4248 = vsel %vm514, %v4127, 0.0
  %v4249 = vadd.f32 %v4247, %v4248
  %v4250 = vsel %vm514, %v4128, 0.0
  %v4251 = vadd.f32 %v4249, %v4250
  %v4252 = vsel %vm514, %v4129, 0.0
  %v4253 = vadd.f32 %v4251, %v4252
  %v4254 = vsel %vm514, %v4130, 0.0
  %v4255 = vadd.f32 %v4253, %v4254
  %v4256 = vsel %vm514, %v4131, 0.0
  %v4257 = vadd.f32 %v4255, %v4256
  %v4258 = vsel %vm514, %v4132, 0.0
  %v4259 = vadd.f32 %v4257, %v4258
  %v4260 = vrot.slane %v4259, 4
  %v4261 = vadd.f32 %v4259, %v4260
  %v4262 = vrot.slane %v4261, 2
  %v4263 = vadd.f32 %v4261, %v4262
  %v4264 = vrot.slane %v4263, 1
  %v4265 = vadd.f32 %v4263, %v4264
  %v4266 = vmul.f32 %v4265, 0.001953125
  %v4267 = vmul.f32 %v4069, %v4069
  %v4268 = vmul.f32 %v4070, %v4070
  %v4269 = vmul.f32 %v4071, %v4071
  %v4270 = vmul.f32 %v4072, %v4072
  %v4271 = vmul.f32 %v4073, %v4073
  %v4272 = vmul.f32 %v4074, %v4074
  %v4273 = vmul.f32 %v4075, %v4075
  %v4274 = vmul.f32 %v4076, %v4076
  %v4275 = vmul.f32 %v4077, %v4077
  %v4276 = vmul.f32 %v4078, %v4078
  %v4277 = vmul.f32 %v4079, %v4079
  %v4278 = vmul.f32 %v4080, %v4080
  %v4279 = vmul.f32 %v4081, %v4081
  %v4280 = vmul.f32 %v4082, %v4082
  %v4281 = vmul.f32 %v4083, %v4083
  %v4282 = vmul.f32 %v4084, %v4084
  %v4283 = vmul.f32 %v4085, %v4085
  %v4284 = vmul.f32 %v4086, %v4086
  %v4285 = vmul.f32 %v4087, %v4087
  %v4286 = vmul.f32 %v4088, %v4088
  %v4287 = vmul.f32 %v4089, %v4089
  %v4288 = vmul.f32 %v4090, %v4090
  %v4289 = vmul.f32 %v4091, %v4091
  %v4290 = vmul.f32 %v4092, %v4092
  %v4291 = vmul.f32 %v4093, %v4093
  %v4292 = vmul.f32 %v4094, %v4094
  %v4293 = vmul.f32 %v4095, %v4095
  %v4294 = vmul.f32 %v4096, %v4096
  %v4295 = vmul.f32 %v4097, %v4097
  %v4296 = vmul.f32 %v4098, %v4098
  %v4297 = vmul.f32 %v4099, %v4099
  %v4298 = vmul.f32 %v4100, %v4100
  %v4299 = vmul.f32 %v4101, %v4101
  %v4300 = vmul.f32 %v4102, %v4102
  %v4301 = vmul.f32 %v4103, %v4103
  %v4302 = vmul.f32 %v4104, %v4104
  %v4303 = vmul.f32 %v4105, %v4105
  %v4304 = vmul.f32 %v4106, %v4106
  %v4305 = vmul.f32 %v4107, %v4107
  %v4306 = vmul.f32 %v4108, %v4108
  %v4307 = vmul.f32 %v4109, %v4109
  %v4308 = vmul.f32 %v4110, %v4110
  %v4309 = vmul.f32 %v4111, %v4111
  %v4310 = vmul.f32 %v4112, %v4112
  %v4311 = vmul.f32 %v4113, %v4113
  %v4312 = vmul.f32 %v4114, %v4114
  %v4313 = vmul.f32 %v4115, %v4115
  %v4314 = vmul.f32 %v4116, %v4116
  %v4315 = vmul.f32 %v4117, %v4117
  %v4316 = vmul.f32 %v4118, %v4118
  %v4317 = vmul.f32 %v4119, %v4119
  %v4318 = vmul.f32 %v4120, %v4120
  %v4319 = vmul.f32 %v4121, %v4121
  %v4320 = vmul.f32 %v4122, %v4122
  %v4321 = vmul.f32 %v4123, %v4123
  %v4322 = vmul.f32 %v4124, %v4124
  %v4323 = vmul.f32 %v4125, %v4125
  %v4324 = vmul.f32 %v4126, %v4126
  %v4325 = vmul.f32 %v4127, %v4127
  %v4326 = vmul.f32 %v4128, %v4128
  %v4327 = vmul.f32 %v4129, %v4129
  %v4328 = vmul.f32 %v4130, %v4130
  %v4329 = vmul.f32 %v4131, %v4131
  %v4330 = vmul.f32 %v4132, %v4132
  %v4331 = vsel %vm514, %v4267, 0.0
  %v4332 = vsel %vm514, %v4268, 0.0
  %v4333 = vadd.f32 %v4331, %v4332
  %v4334 = vsel %vm514, %v4269, 0.0
  %v4335 = vadd.f32 %v4333, %v4334
  %v4336 = vsel %vm514, %v4270, 0.0
  %v4337 = vadd.f32 %v4335, %v4336
  %v4338 = vsel %vm514, %v4271, 0.0
  %v4339 = vadd.f32 %v4337, %v4338
  %v4340 = vsel %vm514, %v4272, 0.0
  %v4341 = vadd.f32 %v4339, %v4340
  %v4342 = vsel %vm514, %v4273, 0.0
  %v4343 = vadd.f32 %v4341, %v4342
  %v4344 = vsel %vm514, %v4274, 0.0
  %v4345 = vadd.f32 %v4343, %v4344
  %v4346 = vsel %vm514, %v4275, 0.0
  %v4347 = vadd.f32 %v4345, %v4346
  %v4348 = vsel %vm514, %v4276, 0.0
  %v4349 = vadd.f32 %v4347, %v4348
  %v4350 = vsel %vm514, %v4277, 0.0
  %v4351 = vadd.f32 %v4349, %v4350
  %v4352 = vsel %vm514, %v4278, 0.0
  %v4353 = vadd.f32 %v4351, %v4352
  %v4354 = vsel %vm514, %v4279, 0.0
  %v4355 = vadd.f32 %v4353, %v4354
  %v4356 = vsel %vm514, %v4280, 0.0
  %v4357 = vadd.f32 %v4355, %v4356
  %v4358 = vsel %vm514, %v4281, 0.0
  %v4359 = vadd.f32 %v4357, %v4358
  %v4360 = vsel %vm514, %v4282, 0.0
  %v4361 = vadd.f32 %v4359, %v4360
  %v4362 = vsel %vm514, %v4283, 0.0
  %v4363 = vadd.f32 %v4361, %v4362
  %v4364 = vsel %vm514, %v4284, 0.0
  %v4365 = vadd.f32 %v4363, %v4364
  %v4366 = vsel %vm514, %v4285, 0.0
  %v4367 = vadd.f32 %v4365, %v4366
  %v4368 = vsel %vm514, %v4286, 0.0
  %v4369 = vadd.f32 %v4367, %v4368
  %v4370 = vsel %vm514, %v4287, 0.0
  %v4371 = vadd.f32 %v4369, %v4370
  %v4372 = vsel %vm514, %v4288, 0.0
  %v4373 = vadd.f32 %v4371, %v4372
  %v4374 = vsel %vm514, %v4289, 0.0
  %v4375 = vadd.f32 %v4373, %v4374
  %v4376 = vsel %vm514, %v4290, 0.0
  %v4377 = vadd.f32 %v4375, %v4376
  %v4378 = vsel %vm514, %v4291, 0.0
  %v4379 = vadd.f32 %v4377, %v4378
  %v4380 = vsel %vm514, %v4292, 0.0
  %v4381 = vadd.f32 %v4379, %v4380
  %v4382 = vsel %vm514, %v4293, 0.0
  %v4383 = vadd.f32 %v4381, %v4382
  %v4384 = vsel %vm514, %v4294, 0.0
  %v4385 = vadd.f32 %v4383, %v4384
  %v4386 = vsel %vm514, %v4295, 0.0
  %v4387 = vadd.f32 %v4385, %v4386
  %v4388 = vsel %vm514, %v4296, 0.0
  %v4389 = vadd.f32 %v4387, %v4388
  %v4390 = vsel %vm514, %v4297, 0.0
  %v4391 = vadd.f32 %v4389, %v4390
  %v4392 = vsel %vm514, %v4298, 0.0
  %v4393 = vadd.f32 %v4391, %v4392
  %v4394 = vsel %vm514, %v4299, 0.0
  %v4395 = vadd.f32 %v4393, %v4394
  %v4396 = vsel %vm514, %v4300, 0.0
  %v4397 = vadd.f32 %v4395, %v4396
  %v4398 = vsel %vm514, %v4301, 0.0
  %v4399 = vadd.f32 %v4397, %v4398
  %v4400 = vsel %vm514, %v4302, 0.0
  %v4401 = vadd.f32 %v4399, %v4400
  %v4402 = vsel %vm514, %v4303, 0.0
  %v4403 = vadd.f32 %v4401, %v4402
  %v4404 = vsel %vm514, %v4304, 0.0
  %v4405 = vadd.f32 %v4403, %v4404
  %v4406 = vsel %vm514, %v4305, 0.0
  %v4407 = vadd.f32 %v4405, %v4406
  %v4408 = vsel %vm514, %v4306, 0.0
  %v4409 = vadd.f32 %v4407, %v4408
  %v4410 = vsel %vm514, %v4307, 0.0
  %v4411 = vadd.f32 %v4409, %v4410
  %v4412 = vsel %vm514, %v4308, 0.0
  %v4413 = vadd.f32 %v4411, %v4412
  %v4414 = vsel %vm514, %v4309, 0.0
  %v4415 = vadd.f32 %v4413, %v4414
  %v4416 = vsel %vm514, %v4310, 0.0
  %v4417 = vadd.f32 %v4415, %v4416
  %v4418 = vsel %vm514, %v4311, 0.0
  %v4419 = vadd.f32 %v4417, %v4418
  %v4420 = vsel %vm514, %v4312, 0.0
  %v4421 = vadd.f32 %v4419, %v4420
  %v4422 = vsel %vm514, %v4313, 0.0
  %v4423 = vadd.f32 %v4421, %v4422
  %v4424 = vsel %vm514, %v4314, 0.0
  %v4425 = vadd.f32 %v4423, %v4424
  %v4426 = vsel %vm514, %v4315, 0.0
  %v4427 = vadd.f32 %v4425, %v4426
  %v4428 = vsel %vm514, %v4316, 0.0
  %v4429 = vadd.f32 %v4427, %v4428
  %v4430 = vsel %vm514, %v4317, 0.0
  %v4431 = vadd.f32 %v4429, %v4430
  %v4432 = vsel %vm514, %v4318, 0.0
  %v4433 = vadd.f32 %v4431, %v4432
  %v4434 = vsel %vm514, %v4319, 0.0
  %v4435 = vadd.f32 %v4433, %v4434
  %v4436 = vsel %vm514, %v4320, 0.0
  %v4437 = vadd.f32 %v4435, %v4436
  %v4438 = vsel %vm514, %v4321, 0.0
  %v4439 = vadd.f32 %v4437, %v4438
  %v4440 = vsel %vm514, %v4322, 0.0
  %v4441 = vadd.f32 %v4439, %v4440
  %v4442 = vsel %vm514, %v4323, 0.0
  %v4443 = vadd.f32 %v4441, %v4442
  %v4444 = vsel %vm514, %v4324, 0.0
  %v4445 = vadd.f32 %v4443, %v4444
  %v4446 = vsel %vm514, %v4325, 0.0
  %v4447 = vadd.f32 %v4445, %v4446
  %v4448 = vsel %vm514, %v4326, 0.0
  %v4449 = vadd.f32 %v4447, %v4448
  %v4450 = vsel %vm514, %v4327, 0.0
  %v4451 = vadd.f32 %v4449, %v4450
  %v4452 = vsel %vm514, %v4328, 0.0
  %v4453 = vadd.f32 %v4451, %v4452
  %v4454 = vsel %vm514, %v4329, 0.0
  %v4455 = vadd.f32 %v4453, %v4454
  %v4456 = vsel %vm514, %v4330, 0.0
  %v4457 = vadd.f32 %v4455, %v4456
  %v4458 = vrot.slane %v4457, 4
  %v4459 = vadd.f32 %v4457, %v4458
  %v4460 = vrot.slane %v4459, 2
  %v4461 = vadd.f32 %v4459, %v4460
  %v4462 = vrot.slane %v4461, 1
  %v4463 = vadd.f32 %v4461, %v4462
  %v4464 = vmul.f32 %v4463, 0.001953125
  %v4465 = vmul.f32 %v4266, %v4266
  %v4466 = vsub.f32 %v4464, %v4465
  %v4467 = vadd.f32 %v4466, 1e-05
  %v4468 = vrsqrt.pop %v4467
  %v4469 = vld [vmem:[%s3] sm:$0x1]
  %v4470 = vmul.f32 %v4468, %v4469
  %v4471 = vsub.f32 %v4069, %v4266
  %v4472 = vsub.f32 %v4070, %v4266
  %v4473 = vsub.f32 %v4071, %v4266
  %v4474 = vsub.f32 %v4072, %v4266
  %v4475 = vsub.f32 %v4073, %v4266
  %v4476 = vsub.f32 %v4074, %v4266
  %v4477 = vsub.f32 %v4075, %v4266
  %v4478 = vsub.f32 %v4076, %v4266
  %v4479 = vsub.f32 %v4077, %v4266
  %v4480 = vsub.f32 %v4078, %v4266
  %v4481 = vsub.f32 %v4079, %v4266
  %v4482 = vsub.f32 %v4080, %v4266
  %v4483 = vsub.f32 %v4081, %v4266
  %v4484 = vsub.f32 %v4082, %v4266
  %v4485 = vsub.f32 %v4083, %v4266
  %v4486 = vsub.f32 %v4084, %v4266
  %v4487 = vsub.f32 %v4085, %v4266
  %v4488 = vsub.f32 %v4086, %v4266
  %v4489 = vsub.f32 %v4087, %v4266
  %v4490 = vsub.f32 %v4088, %v4266
  %v4491 = vsub.f32 %v4089, %v4266
  %v4492 = vsub.f32 %v4090, %v4266
  %v4493 = vsub.f32 %v4091, %v4266
  %v4494 = vsub.f32 %v4092, %v4266
  %v4495 = vsub.f32 %v4093, %v4266
  %v4496 = vsub.f32 %v4094, %v4266
  %v4497 = vsub.f32 %v4095, %v4266
  %v4498 = vsub.f32 %v4096, %v4266
  %v4499 = vsub.f32 %v4097, %v4266
  %v4500 = vsub.f32 %v4098, %v4266
  %v4501 = vsub.f32 %v4099, %v4266
  %v4502 = vsub.f32 %v4100, %v4266
  %v4503 = vsub.f32 %v4101, %v4266
  %v4504 = vsub.f32 %v4102, %v4266
  %v4505 = vsub.f32 %v4103, %v4266
  %v4506 = vsub.f32 %v4104, %v4266
  %v4507 = vsub.f32 %v4105, %v4266
  %v4508 = vsub.f32 %v4106, %v4266
  %v4509 = vsub.f32 %v4107, %v4266
  %v4510 = vsub.f32 %v4108, %v4266
  %v4511 = vsub.f32 %v4109, %v4266
  %v4512 = vsub.f32 %v4110, %v4266
  %v4513 = vsub.f32 %v4111, %v4266
  %v4514 = vsub.f32 %v4112, %v4266
  %v4515 = vsub.f32 %v4113, %v4266
  %v4516 = vsub.f32 %v4114, %v4266
  %v4517 = vsub.f32 %v4115, %v4266
  %v4518 = vsub.f32 %v4116, %v4266
  %v4519 = vsub.f32 %v4117, %v4266
  %v4520 = vsub.f32 %v4118, %v4266
  %v4521 = vsub.f32 %v4119, %v4266
  %v4522 = vsub.f32 %v4120, %v4266
  %v4523 = vsub.f32 %v4121, %v4266
  %v4524 = vsub.f32 %v4122, %v4266
  %v4525 = vsub.f32 %v4123, %v4266
  %v4526 = vsub.f32 %v4124, %v4266
  %v4527 = vsub.f32 %v4125, %v4266
  %v4528 = vsub.f32 %v4126, %v4266
  %v4529 = vsub.f32 %v4127, %v4266
  %v4530 = vsub.f32 %v4128, %v4266
  %v4531 = vsub.f32 %v4129, %v4266
  %v4532 = vsub.f32 %v4130, %v4266
  %v4533 = vsub.f32 %v4131, %v4266
  %v4534 = vsub.f32 %v4132, %v4266
  %v4535 = vlaneseq
  %v4536 = vshrl.u32 %v4535, 7
  %v4537 = vsub.s32 0, %v4536
  %v4538 = vrot.slane %v4470, %v4537
  %v4539 = vmul.f32 %v4471, %v4538
  %v4540 = vmul.f32 %v4472, %v4538
  %v4541 = vmul.f32 %v4473, %v4538
  %v4542 = vmul.f32 %v4474, %v4538
  %v4543 = vmul.f32 %v4475, %v4538
  %v4544 = vmul.f32 %v4476, %v4538
  %v4545 = vmul.f32 %v4477, %v4538
  %v4546 = vmul.f32 %v4478, %v4538
  %v4547 = vmul.f32 %v4479, %v4538
  %v4548 = vmul.f32 %v4480, %v4538
  %v4549 = vmul.f32 %v4481, %v4538
  %v4550 = vmul.f32 %v4482, %v4538
  %v4551 = vmul.f32 %v4483, %v4538
  %v4552 = vmul.f32 %v4484, %v4538
  %v4553 = vmul.f32 %v4485, %v4538
  %v4554 = vmul.f32 %v4486, %v4538
  %v4555 = vmul.f32 %v4487, %v4538
  %v4556 = vmul.f32 %v4488, %v4538
  %v4557 = vmul.f32 %v4489, %v4538
  %v4558 = vmul.f32 %v4490, %v4538
  %v4559 = vmul.f32 %v4491, %v4538
  %v4560 = vmul.f32 %v4492, %v4538
  %v4561 = vmul.f32 %v4493, %v4538
  %v4562 = vmul.f32 %v4494, %v4538
  %v4563 = vmul.f32 %v4495, %v4538
  %v4564 = vmul.f32 %v4496, %v4538
  %v4565 = vmul.f32 %v4497, %v4538
  %v4566 = vmul.f32 %v4498, %v4538
  %v4567 = vmul.f32 %v4499, %v4538
  %v4568 = vmul.f32 %v4500, %v4538
  %v4569 = vmul.f32 %v4501, %v4538
  %v4570 = vmul.f32 %v4502, %v4538
  %v4571 = vmul.f32 %v4503, %v4538
  %v4572 = vmul.f32 %v4504, %v4538
  %v4573 = vmul.f32 %v4505, %v4538
  %v4574 = vmul.f32 %v4506, %v4538
  %v4575 = vmul.f32 %v4507, %v4538
  %v4576 = vmul.f32 %v4508, %v4538
  %v4577 = vmul.f32 %v4509, %v4538
  %v4578 = vmul.f32 %v4510, %v4538
  %v4579 = vmul.f32 %v4511, %v4538
  %v4580 = vmul.f32 %v4512, %v4538
  %v4581 = vmul.f32 %v4513, %v4538
  %v4582 = vmul.f32 %v4514, %v4538
  %v4583 = vmul.f32 %v4515, %v4538
  %v4584 = vmul.f32 %v4516, %v4538
  %v4585 = vmul.f32 %v4517, %v4538
  %v4586 = vmul.f32 %v4518, %v4538
  %v4587 = vmul.f32 %v4519, %v4538
  %v4588 = vmul.f32 %v4520, %v4538
  %v4589 = vmul.f32 %v4521, %v4538
  %v4590 = vmul.f32 %v4522, %v4538
  %v4591 = vmul.f32 %v4523, %v4538
  %v4592 = vmul.f32 %v4524, %v4538
  %v4593 = vmul.f32 %v4525, %v4538
  %v4594 = vmul.f32 %v4526, %v4538
  %v4595 = vmul.f32 %v4527, %v4538
  %v4596 = vmul.f32 %v4528, %v4538
  %v4597 = vmul.f32 %v4529, %v4538
  %v4598 = vmul.f32 %v4530, %v4538
  %v4599 = vmul.f32 %v4531, %v4538
  %v4600 = vmul.f32 %v4532, %v4538
  %v4601 = vmul.f32 %v4533, %v4538
  %v4602 = vmul.f32 %v4534, %v4538
  %v4603 = vld [vmem:[%s4] sm:$0x1]
  %v4605 = vlaneseq
  %v4606 = vshrl.u32 %v4605, 7
  %v4607 = vsub.s32 0, %v4606
  %v4608 = vrot.slane %v4603, %v4607
  %v4610 = vadd.f32 %v4539, %v4608
  %v4611 = vadd.f32 %v4540, %v4608
  %v4612 = vadd.f32 %v4541, %v4608
  %v4613 = vadd.f32 %v4542, %v4608
  %v4614 = vadd.f32 %v4543, %v4608
  %v4615 = vadd.f32 %v4544, %v4608
  %v4616 = vadd.f32 %v4545, %v4608
  %v4617 = vadd.f32 %v4546, %v4608
  %v4618 = vadd.f32 %v4547, %v4608
  %v4619 = vadd.f32 %v4548, %v4608
  %v4620 = vadd.f32 %v4549, %v4608
  %v4621 = vadd.f32 %v4550, %v4608
  %v4622 = vadd.f32 %v4551, %v4608
  %v4623 = vadd.f32 %v4552, %v4608
  %v4624 = vadd.f32 %v4553, %v4608
  %v4625 = vadd.f32 %v4554, %v4608
  %v4626 = vadd.f32 %v4555, %v4608
  %v4627 = vadd.f32 %v4556, %v4608
  %v4628 = vadd.f32 %v4557, %v4608
  %v4629 = vadd.f32 %v4558, %v4608
  %v4630 = vadd.f32 %v4559, %v4608
  %v4631 = vadd.f32 %v4560, %v4608
  %v4632 = vadd.f32 %v4561, %v4608
  %v4633 = vadd.f32 %v4562, %v4608
  %v4634 = vadd.f32 %v4563, %v4608
  %v4635 = vadd.f32 %v4564, %v4608
  %v4636 = vadd.f32 %v4565, %v4608
  %v4637 = vadd.f32 %v4566, %v4608
  %v4638 = vadd.f32 %v4567, %v4608
  %v4639 = vadd.f32 %v4568, %v4608
  %v4640 = vadd.f32 %v4569, %v4608
  %v4641 = vadd.f32 %v4570, %v4608
  %v4642 = vadd.f32 %v4571, %v4608
  %v4643 = vadd.f32 %v4572, %v4608
  %v4644 = vadd.f32 %v4573, %v4608
  %v4645 = vadd.f32 %v4574, %v4608
  %v4646 = vadd.f32 %v4575, %v4608
  %v4647 = vadd.f32 %v4576, %v4608
  %v4648 = vadd.f32 %v4577, %v4608
  %v4649 = vadd.f32 %v4578, %v4608
  %v4650 = vadd.f32 %v4579, %v4608
  %v4651 = vadd.f32 %v4580, %v4608
  %v4652 = vadd.f32 %v4581, %v4608
  %v4653 = vadd.f32 %v4582, %v4608
  %v4654 = vadd.f32 %v4583, %v4608
  %v4655 = vadd.f32 %v4584, %v4608
  %v4656 = vadd.f32 %v4585, %v4608
  %v4657 = vadd.f32 %v4586, %v4608
  %v4658 = vadd.f32 %v4587, %v4608
  %v4659 = vadd.f32 %v4588, %v4608
  %v4660 = vadd.f32 %v4589, %v4608
  %v4661 = vadd.f32 %v4590, %v4608
  %v4662 = vadd.f32 %v4591, %v4608
  %v4663 = vadd.f32 %v4592, %v4608
  %v4664 = vadd.f32 %v4593, %v4608
  %v4665 = vadd.f32 %v4594, %v4608
  %v4666 = vadd.f32 %v4595, %v4608
  %v4667 = vadd.f32 %v4596, %v4608
  %v4668 = vadd.f32 %v4597, %v4608
  %v4669 = vadd.f32 %v4598, %v4608
  %v4670 = vadd.f32 %v4599, %v4608
  %v4671 = vadd.f32 %v4600, %v4608
  %v4672 = vadd.f32 %v4601, %v4608
  %v4673 = vadd.f32 %v4602, %v4608
  %v4674 = vmax.f32 %v4610, 0.0
  %v4675 = vmax.f32 %v4611, 0.0
  %v4676 = vmax.f32 %v4612, 0.0
  %v4677 = vmax.f32 %v4613, 0.0
  %v4678 = vmax.f32 %v4614, 0.0
  %v4679 = vmax.f32 %v4615, 0.0
  %v4680 = vmax.f32 %v4616, 0.0
  %v4681 = vmax.f32 %v4617, 0.0
  %v4682 = vmax.f32 %v4618, 0.0
  %v4683 = vmax.f32 %v4619, 0.0
  %v4684 = vmax.f32 %v4620, 0.0
  %v4685 = vmax.f32 %v4621, 0.0
  %v4686 = vmax.f32 %v4622, 0.0
  %v4687 = vmax.f32 %v4623, 0.0
  %v4688 = vmax.f32 %v4624, 0.0
  %v4689 = vmax.f32 %v4625, 0.0
  %v4690 = vmax.f32 %v4626, 0.0
  %v4691 = vmax.f32 %v4627, 0.0
  %v4692 = vmax.f32 %v4628, 0.0
  %v4693 = vmax.f32 %v4629, 0.0
  %v4694 = vmax.f32 %v4630, 0.0
  %v4695 = vmax.f32 %v4631, 0.0
  %v4696 = vmax.f32 %v4632, 0.0
  %v4697 = vmax.f32 %v4633, 0.0
  %v4698 = vmax.f32 %v4634, 0.0
  %v4699 = vmax.f32 %v4635, 0.0
  %v4700 = vmax.f32 %v4636, 0.0
  %v4701 = vmax.f32 %v4637, 0.0
  %v4702 = vmax.f32 %v4638, 0.0
  %v4703 = vmax.f32 %v4639, 0.0
  %v4704 = vmax.f32 %v4640, 0.0
  %v4705 = vmax.f32 %v4641, 0.0
  %v4706 = vmax.f32 %v4642, 0.0
  %v4707 = vmax.f32 %v4643, 0.0
  %v4708 = vmax.f32 %v4644, 0.0
  %v4709 = vmax.f32 %v4645, 0.0
  %v4710 = vmax.f32 %v4646, 0.0
  %v4711 = vmax.f32 %v4647, 0.0
  %v4712 = vmax.f32 %v4648, 0.0
  %v4713 = vmax.f32 %v4649, 0.0
  %v4714 = vmax.f32 %v4650, 0.0
  %v4715 = vmax.f32 %v4651, 0.0
  %v4716 = vmax.f32 %v4652, 0.0
  %v4717 = vmax.f32 %v4653, 0.0
  %v4718 = vmax.f32 %v4654, 0.0
  %v4719 = vmax.f32 %v4655, 0.0
  %v4720 = vmax.f32 %v4656, 0.0
  %v4721 = vmax.f32 %v4657, 0.0
  %v4722 = vmax.f32 %v4658, 0.0
  %v4723 = vmax.f32 %v4659, 0.0
  %v4724 = vmax.f32 %v4660, 0.0
  %v4725 = vmax.f32 %v4661, 0.0
  %v4726 = vmax.f32 %v4662, 0.0
  %v4727 = vmax.f32 %v4663, 0.0
  %v4728 = vmax.f32 %v4664, 0.0
  %v4729 = vmax.f32 %v4665, 0.0
  %v4730 = vmax.f32 %v4666, 0.0
  %v4731 = vmax.f32 %v4667, 0.0
  %v4732 = vmax.f32 %v4668, 0.0
  %v4733 = vmax.f32 %v4669, 0.0
  %v4734 = vmax.f32 %v4670, 0.0
  %v4735 = vmax.f32 %v4671, 0.0
  %v4736 = vmax.f32 %v4672, 0.0
  %v4737 = vmax.f32 %v4673, 0.0
  %4738 = vst.msk [vmem:[#allocation2] sm:$0xff] %vm514, %v4674
  %4739 = vst.msk [vmem:[#allocation2 + $0x8] sm:$0xff] %vm514, %v4675
  %4740 = vst.msk [vmem:[#allocation2 + $0x10] sm:$0xff] %vm514, %v4676
  %4741 = vst.msk [vmem:[#allocation2 + $0x18] sm:$0xff] %vm514, %v4677
  %4742 = vst.msk [vmem:[#allocation2 + $0x20] sm:$0xff] %vm514, %v4678
  %4743 = vst.msk [vmem:[#allocation2 + $0x28] sm:$0xff] %vm514, %v4679
  %4744 = vst.msk [vmem:[#allocation2 + $0x30] sm:$0xff] %vm514, %v4680
  %4745 = vst.msk [vmem:[#allocation2 + $0x38] sm:$0xff] %vm514, %v4681
  %4746 = vst.msk [vmem:[#allocation2 + $0x40] sm:$0xff] %vm514, %v4682
  %4747 = vst.msk [vmem:[#allocation2 + $0x48] sm:$0xff] %vm514, %v4683
  %4748 = vst.msk [vmem:[#allocation2 + $0x50] sm:$0xff] %vm514, %v4684
  %4749 = vst.msk [vmem:[#allocation2 + $0x58] sm:$0xff] %vm514, %v4685
  %4750 = vst.msk [vmem:[#allocation2 + $0x60] sm:$0xff] %vm514, %v4686
  %4751 = vst.msk [vmem:[#allocation2 + $0x68] sm:$0xff] %vm514, %v4687
  %4752 = vst.msk [vmem:[#allocation2 + $0x70] sm:$0xff] %vm514, %v4688
  %4753 = vst.msk [vmem:[#allocation2 + $0x78] sm:$0xff] %vm514, %v4689
  %4754 = vst.msk [vmem:[#allocation2 + $0x80] sm:$0xff] %vm514, %v4690
  %4755 = vst.msk [vmem:[#allocation2 + $0x88] sm:$0xff] %vm514, %v4691
  %4756 = vst.msk [vmem:[#allocation2 + $0x90] sm:$0xff] %vm514, %v4692
  %4757 = vst.msk [vmem:[#allocation2 + $0x98] sm:$0xff] %vm514, %v4693
  %4758 = vst.msk [vmem:[#allocation2 + $0xa0] sm:$0xff] %vm514, %v4694
  %4759 = vst.msk [vmem:[#allocation2 + $0xa8] sm:$0xff] %vm514, %v4695
  %4760 = vst.msk [vmem:[#allocation2 + $0xb0] sm:$0xff] %vm514, %v4696
  %4761 = vst.msk [vmem:[#allocation2 + $0xb8] sm:$0xff] %vm514, %v4697
  %4762 = vst.msk [vmem:[#allocation2 + $0xc0] sm:$0xff] %vm514, %v4698
  %4763 = vst.msk [vmem:[#allocation2 + $0xc8] sm:$0xff] %vm514, %v4699
  %4764 = vst.msk [vmem:[#allocation2 + $0xd0] sm:$0xff] %vm514, %v4700
  %4765 = vst.msk [vmem:[#allocation2 + $0xd8] sm:$0xff] %vm514, %v4701
  %4766 = vst.msk [vmem:[#allocation2 + $0xe0] sm:$0xff] %vm514, %v4702
  %4767 = vst.msk [vmem:[#allocation2 + $0xe8] sm:$0xff] %vm514, %v4703
  %4768 = vst.msk [vmem:[#allocation2 + $0xf0] sm:$0xff] %vm514, %v4704
  %4769 = vst.msk [vmem:[#allocation2 + $0xf8] sm:$0xff] %vm514, %v4705
  %4770 = vst.msk [vmem:[#allocation2 + $0x100] sm:$0xff] %vm514, %v4706
  %4771 = vst.msk [vmem:[#allocation2 + $0x108] sm:$0xff] %vm514, %v4707
  %4772 = vst.msk [vmem:[#allocation2 + $0x110] sm:$0xff] %vm514, %v4708
  %4773 = vst.msk [vmem:[#allocation2 + $0x118] sm:$0xff] %vm514, %v4709
  %4774 = vst.msk [vmem:[#allocation2 + $0x120] sm:$0xff] %vm514, %v4710
  %4775 = vst.msk [vmem:[#allocation2 + $0x128] sm:$0xff] %vm514, %v4711
  %4776 = vst.msk [vmem:[#allocation2 + $0x130] sm:$0xff] %vm514, %v4712
  %4777 = vst.msk [vmem:[#allocation2 + $0x138] sm:$0xff] %vm514, %v4713
  %4778 = vst.msk [vmem:[#allocation2 + $0x140] sm:$0xff] %vm514, %v4714
  %4779 = vst.msk [vmem:[#allocation2 + $0x148] sm:$0xff] %vm514, %v4715
  %4780 = vst.msk [vmem:[#allocation2 + $0x150] sm:$0xff] %vm514, %v4716
  %4781 = vst.msk [vmem:[#allocation2 + $0x158] sm:$0xff] %vm514, %v4717
  %4782 = vst.msk [vmem:[#allocation2 + $0x160] sm:$0xff] %vm514, %v4718
  %4783 = vst.msk [vmem:[#allocation2 + $0x168] sm:$0xff] %vm514, %v4719
  %4784 = vst.msk [vmem:[#allocation2 + $0x170] sm:$0xff] %vm514, %v4720
  %4785 = vst.msk [vmem:[#allocation2 + $0x178] sm:$0xff] %vm514, %v4721
  %4786 = vst.msk [vmem:[#allocation2 + $0x180] sm:$0xff] %vm514, %v4722
  %4787 = vst.msk [vmem:[#allocation2 + $0x188] sm:$0xff] %vm514, %v4723
  %4788 = vst.msk [vmem:[#allocation2 + $0x190] sm:$0xff] %vm514, %v4724
  %4789 = vst.msk [vmem:[#allocation2 + $0x198] sm:$0xff] %vm514, %v4725
  %4790 = vst.msk [vmem:[#allocation2 + $0x1a0] sm:$0xff] %vm514, %v4726
  %4791 = vst.msk [vmem:[#allocation2 + $0x1a8] sm:$0xff] %vm514, %v4727
  %4792 = vst.msk [vmem:[#allocation2 + $0x1b0] sm:$0xff] %vm514, %v4728
  %4793 = vst.msk [vmem:[#allocation2 + $0x1b8] sm:$0xff] %vm514, %v4729
  %4794 = vst.msk [vmem:[#allocation2 + $0x1c0] sm:$0xff] %vm514, %v4730
  %4795 = vst.msk [vmem:[#allocation2 + $0x1c8] sm:$0xff] %vm514, %v4731
  %4796 = vst.msk [vmem:[#allocation2 + $0x1d0] sm:$0xff] %vm514, %v4732
  %4797 = vst.msk [vmem:[#allocation2 + $0x1d8] sm:$0xff] %vm514, %v4733
  %4798 = vst.msk [vmem:[#allocation2 + $0x1e0] sm:$0xff] %vm514, %v4734
  %4799 = vst.msk [vmem:[#allocation2 + $0x1e8] sm:$0xff] %vm514, %v4735
  %4800 = vst.msk [vmem:[#allocation2 + $0x1f0] sm:$0xff] %vm514, %v4736
  %4801 = vst.msk [vmem:[#allocation2 + $0x1f8] sm:$0xff] %vm514, %v4737
  %v4802 = vld [vmem:[#allocation2] sm:$0xff]
  %v4803 = vld [vmem:[#allocation2 + $0x8] sm:$0xff]
  %v4804 = vld [vmem:[#allocation2 + $0x10] sm:$0xff]
  %v4805 = vld [vmem:[#allocation2 + $0x18] sm:$0xff]
  %v4806 = vld [vmem:[#allocation2 + $0x20] sm:$0xff]
  %v4807 = vld [vmem:[#allocation2 + $0x28] sm:$0xff]
  %v4808 = vld [vmem:[#allocation2 + $0x30] sm:$0xff]
  %v4809 = vld [vmem:[#allocation2 + $0x38] sm:$0xff]
  %v4810 = vld [vmem:[#allocation2 + $0x40] sm:$0xff]
  %v4811 = vld [vmem:[#allocation2 + $0x48] sm:$0xff]
  %v4812 = vld [vmem:[#allocation2 + $0x50] sm:$0xff]
  %v4813 = vld [vmem:[#allocation2 + $0x58] sm:$0xff]
  %v4814 = vld [vmem:[#allocation2 + $0x60] sm:$0xff]
  %v4815 = vld [vmem:[#allocation2 + $0x68] sm:$0xff]
  %v4816 = vld [vmem:[#allocation2 + $0x70] sm:$0xff]
  %v4817 = vld [vmem:[#allocation2 + $0x78] sm:$0xff]
  %v4818 = vld [vmem:[#allocation2 + $0x80] sm:$0xff]
  %v4819 = vld [vmem:[#allocation2 + $0x88] sm:$0xff]
  %v4820 = vld [vmem:[#allocation2 + $0x90] sm:$0xff]
  %v4821 = vld [vmem:[#allocation2 + $0x98] sm:$0xff]
  %v4822 = vld [vmem:[#allocation2 + $0xa0] sm:$0xff]
  %v4823 = vld [vmem:[#allocation2 + $0xa8] sm:$0xff]
  %v4824 = vld [vmem:[#allocation2 + $0xb0] sm:$0xff]
  %v4825 = vld [vmem:[#allocation2 + $0xb8] sm:$0xff]
  %v4826 = vld [vmem:[#allocation2 + $0xc0] sm:$0xff]
  %v4827 = vld [vmem:[#allocation2 + $0xc8] sm:$0xff]
  %v4828 = vld [vmem:[#allocation2 + $0xd0] sm:$0xff]
  %v4829 = vld [vmem:[#allocation2 + $0xd8] sm:$0xff]
  %v4830 = vld [vmem:[#allocation2 + $0xe0] sm:$0xff]
  %v4831 = vld [vmem:[#allocation2 + $0xe8] sm:$0xff]
  %v4832 = vld [vmem:[#allocation2 + $0xf0] sm:$0xff]
  %v4833 = vld [vmem:[#allocation2 + $0xf8] sm:$0xff]
  %4834 = vst.msk [vmem:[#allocation3 + $0x18] sm:$0xff] %vm514, %v4802
  %4835 = vst.msk [vmem:[#allocation3 + $0x20] sm:$0xff] %vm514, %v4803
  %4836 = vst.msk [vmem:[#allocation3 + $0x28] sm:$0xff] %vm514, %v4804
  %4837 = vst.msk [vmem:[#allocation3 + $0x30] sm:$0xff] %vm514, %v4805
  %4838 = vst.msk [vmem:[#allocation3 + $0x38] sm:$0xff] %vm514, %v4806
  %4839 = vst.msk [vmem:[#allocation3 + $0x40] sm:$0xff] %vm514, %v4807
  %4840 = vst.msk [vmem:[#allocation3 + $0x48] sm:$0xff] %vm514, %v4808
  %4841 = vst.msk [vmem:[#allocation3 + $0x50] sm:$0xff] %vm514, %v4809
  %4842 = vst.msk [vmem:[#allocation3 + $0x58] sm:$0xff] %vm514, %v4810
  %4843 = vst.msk [vmem:[#allocation3 + $0x60] sm:$0xff] %vm514, %v4811
  %4844 = vst.msk [vmem:[#allocation3 + $0x68] sm:$0xff] %vm514, %v4812
  %4845 = vst.msk [vmem:[#allocation3 + $0x70] sm:$0xff] %vm514, %v4813
  %4846 = vst.msk [vmem:[#allocation3 + $0x78] sm:$0xff] %vm514, %v4814
  %4847 = vst.msk [vmem:[#allocation3 + $0x80] sm:$0xff] %vm514, %v4815
  %4848 = vst.msk [vmem:[#allocation3 + $0x88] sm:$0xff] %vm514, %v4816
  %4849 = vst.msk [vmem:[#allocation3 + $0x90] sm:$0xff] %vm514, %v4817
  %4850 = vst.msk [vmem:[#allocation3 + $0x98] sm:$0xff] %vm514, %v4818
  %4851 = vst.msk [vmem:[#allocation3 + $0xa0] sm:$0xff] %vm514, %v4819
  %4852 = vst.msk [vmem:[#allocation3 + $0xa8] sm:$0xff] %vm514, %v4820
  %4853 = vst.msk [vmem:[#allocation3 + $0xb0] sm:$0xff] %vm514, %v4821
  %4854 = vst.msk [vmem:[#allocation3 + $0xb8] sm:$0xff] %vm514, %v4822
  %4855 = vst.msk [vmem:[#allocation3 + $0xc0] sm:$0xff] %vm514, %v4823
  %4856 = vst.msk [vmem:[#allocation3 + $0xc8] sm:$0xff] %vm514, %v4824
  %4857 = vst.msk [vmem:[#allocation3 + $0xd0] sm:$0xff] %vm514, %v4825
  %4858 = vst.msk [vmem:[#allocation3 + $0xd8] sm:$0xff] %vm514, %v4826
  %4859 = vst.msk [vmem:[#allocation3 + $0xe0] sm:$0xff] %vm514, %v4827
  %4860 = vst.msk [vmem:[#allocation3 + $0xe8] sm:$0xff] %vm514, %v4828
  %4861 = vst.msk [vmem:[#allocation3 + $0xf0] sm:$0xff] %vm514, %v4829
  %4862 = vst.msk [vmem:[#allocation3 + $0xf8] sm:$0xff] %vm514, %v4830
  %4863 = vst.msk [vmem:[#allocation3 + $0x100] sm:$0xff] %vm514, %v4831
  %4864 = vst.msk [vmem:[#allocation3 + $0x108] sm:$0xff] %vm514, %v4832
  %4865 = vst.msk [vmem:[#allocation3 + $0x110] sm:$0xff] %vm514, %v4833
  %v4866 = vld [vmem:[#allocation3 + $0x7] sm:$0xff]
  %v4867 = vld [vmem:[#allocation3 + $0xf] sm:$0xff]
  %v4868 = vld [vmem:[#allocation3 + $0x17] sm:$0xff]
  %v4869 = vld [vmem:[#allocation3 + $0x1f] sm:$0xff]
  %v4870 = vld [vmem:[#allocation3 + $0x27] sm:$0xff]
  %v4871 = vld [vmem:[#allocation3 + $0x2f] sm:$0xff]
  %v4872 = vld [vmem:[#allocation3 + $0x37] sm:$0xff]
  %v4873 = vld [vmem:[#allocation3 + $0x3f] sm:$0xff]
  %v4874 = vld [vmem:[#allocation3 + $0x47] sm:$0xff]
  %v4875 = vld [vmem:[#allocation3 + $0x4f] sm:$0xff]
  %v4876 = vld [vmem:[#allocation3 + $0x57] sm:$0xff]
  %v4877 = vld [vmem:[#allocation3 + $0x5f] sm:$0xff]
  %v4878 = vld [vmem:[#allocation3 + $0x67] sm:$0xff]
  %v4879 = vld [vmem:[#allocation3 + $0x6f] sm:$0xff]
  %v4880 = vld [vmem:[#allocation3 + $0x77] sm:$0xff]
  %v4881 = vld [vmem:[#allocation3 + $0x7f] sm:$0xff]
  %v4882 = vld [vmem:[#allocation3 + $0x87] sm:$0xff]
  %v4883 = vld [vmem:[#allocation3 + $0x8f] sm:$0xff]
  %v4884 = vld [vmem:[#allocation3 + $0x97] sm:$0xff]
  %v4885 = vld [vmem:[#allocation3 + $0x9f] sm:$0xff]
  %v4886 = vld [vmem:[#allocation3 + $0xa7] sm:$0xff]
  %v4887 = vld [vmem:[#allocation3 + $0xaf] sm:$0xff]
  %v4888 = vld [vmem:[#allocation3 + $0xb7] sm:$0xff]
  %v4889 = vld [vmem:[#allocation3 + $0xbf] sm:$0xff]
  %v4890 = vld [vmem:[#allocation3 + $0xc7] sm:$0xff]
  %v4891 = vld [vmem:[#allocation3 + $0xcf] sm:$0xff]
  %v4892 = vld [vmem:[#allocation3 + $0xd7] sm:$0xff]
  %v4893 = vld [vmem:[#allocation3 + $0xdf] sm:$0xff]
  %v4894 = vld [vmem:[#allocation3 + $0xe7] sm:$0xff]
  %v4895 = vld [vmem:[#allocation3 + $0xef] sm:$0xff]
  %v4896 = vld [vmem:[#allocation3 + $0xf7] sm:$0xff]
  %v4897 = vld [vmem:[#allocation3 + $0xff] sm:$0xff]
  %v4898 = vsel %vm649, %v4866, 0.0
  %v4899 = vsel %vm650, %v4867, 0.0
  %v4900 = vsel %vm651, %v4868, 0.0
  %v4901 = vsel %vm652, %v4869, 0.0
  %v4902 = vsel %vm653, %v4870, 0.0
  %v4903 = vsel %vm654, %v4871, 0.0
  %v4904 = vsel %vm655, %v4872, 0.0
  %v4905 = vsel %vm656, %v4873, 0.0
  %v4906 = vsel %vm657, %v4874, 0.0
  %v4907 = vsel %vm658, %v4875, 0.0
  %v4908 = vsel %vm659, %v4876, 0.0
  %v4909 = vsel %vm660, %v4877, 0.0
  %v4910 = vsel %vm661, %v4878, 0.0
  %v4911 = vsel %vm662, %v4879, 0.0
  %v4912 = vsel %vm663, %v4880, 0.0
  %v4913 = vsel %vm664, %v4881, 0.0
  %v4914 = vsel %vm665, %v4882, 0.0
  %v4915 = vsel %vm666, %v4883, 0.0
  %v4916 = vsel %vm667, %v4884, 0.0
  %v4917 = vsel %vm668, %v4885, 0.0
  %v4918 = vsel %vm669, %v4886, 0.0
  %v4919 = vsel %vm670, %v4887, 0.0
  %v4920 = vsel %vm671, %v4888, 0.0
  %v4921 = vsel %vm672, %v4889, 0.0
  %v4922 = vsel %vm673, %v4890, 0.0
  %v4923 = vsel %vm674, %v4891, 0.0
  %v4924 = vsel %vm675, %v4892, 0.0
  %v4925 = vsel %vm676, %v4893, 0.0
  %v4926 = vsel %vm677, %v4894, 0.0
  %v4927 = vsel %vm678, %v4895, 0.0
  %v4928 = vsel %vm679, %v4896, 0.0
  %v4929 = vsel %vm680, %v4897, 0.0
  %v4930 = vpack.c.bf16 %v4899, %v4898
  %v4931 = vpack.c.bf16 %v4901, %v4900
  %v4932 = vpack.c.bf16 %v4903, %v4902
  %v4933 = vpack.c.bf16 %v4905, %v4904
  %v4934 = vpack.c.bf16 %v4907, %v4906
  %v4935 = vpack.c.bf16 %v4909, %v4908
  %v4936 = vpack.c.bf16 %v4911, %v4910
  %v4937 = vpack.c.bf16 %v4913, %v4912
  %v4938 = vpack.c.bf16 %v4915, %v4914
  %v4939 = vpack.c.bf16 %v4917, %v4916
  %v4940 = vpack.c.bf16 %v4919, %v4918
  %v4941 = vpack.c.bf16 %v4921, %v4920
  %v4942 = vpack.c.bf16 %v4923, %v4922
  %v4943 = vpack.c.bf16 %v4925, %v4924
  %v4944 = vpack.c.bf16 %v4927, %v4926
  %v4945 = vpack.c.bf16 %v4929, %v4928
  %4946 = vst.msk [vmem:[#allocation4] sm:$0xff] %vm514, %v4930
  %4947 = vst.msk [vmem:[#allocation4 + $0x18] sm:$0xff] %vm514, %v4931
  %4948 = vst.msk [vmem:[#allocation4 + $0x30] sm:$0xff] %vm514, %v4932
  %4949 = vst.msk [vmem:[#allocation4 + $0x48] sm:$0xff] %vm514, %v4933
  %4950 = vst.msk [vmem:[#allocation4 + $0x60] sm:$0xff] %vm514, %v4934
  %4951 = vst.msk [vmem:[#allocation4 + $0x78] sm:$0xff] %vm514, %v4935
  %4952 = vst.msk [vmem:[#allocation4 + $0x90] sm:$0xff] %vm514, %v4936
  %4953 = vst.msk [vmem:[#allocation4 + $0xa8] sm:$0xff] %vm514, %v4937
  %4954 = vst.msk [vmem:[#allocation4 + $0xc0] sm:$0xff] %vm514, %v4938
  %4955 = vst.msk [vmem:[#allocation4 + $0xd8] sm:$0xff] %vm514, %v4939
  %4956 = vst.msk [vmem:[#allocation4 + $0xf0] sm:$0xff] %vm514, %v4940
  %4957 = vst.msk [vmem:[#allocation4 + $0x108] sm:$0xff] %vm514, %v4941
  %4958 = vst.msk [vmem:[#allocation4 + $0x120] sm:$0xff] %vm514, %v4942
  %4959 = vst.msk [vmem:[#allocation4 + $0x138] sm:$0xff] %vm514, %v4943
  %4960 = vst.msk [vmem:[#allocation4 + $0x150] sm:$0xff] %vm514, %v4944
  %4961 = vst.msk [vmem:[#allocation4 + $0x168] sm:$0xff] %vm514, %v4945
  %v4962 = vld [vmem:[#allocation3 + $0x8] sm:$0xff]
  %v4963 = vld [vmem:[#allocation3 + $0x10] sm:$0xff]
  %v4964 = vld [vmem:[#allocation3 + $0x18] sm:$0xff]
  %v4965 = vld [vmem:[#allocation3 + $0x20] sm:$0xff]
  %v4966 = vld [vmem:[#allocation3 + $0x28] sm:$0xff]
  %v4967 = vld [vmem:[#allocation3 + $0x30] sm:$0xff]
  %v4968 = vld [vmem:[#allocation3 + $0x38] sm:$0xff]
  %v4969 = vld [vmem:[#allocation3 + $0x40] sm:$0xff]
  %v4970 = vld [vmem:[#allocation3 + $0x48] sm:$0xff]
  %v4971 = vld [vmem:[#allocation3 + $0x50] sm:$0xff]
  %v4972 = vld [vmem:[#allocation3 + $0x58] sm:$0xff]
  %v4973 = vld [vmem:[#allocation3 + $0x60] sm:$0xff]
  %v4974 = vld [vmem:[#allocation3 + $0x68] sm:$0xff]
  %v4975 = vld [vmem:[#allocation3 + $0x70] sm:$0xff]
  %v4976 = vld [vmem:[#allocation3 + $0x78] sm:$0xff]
  %v4977 = vld [vmem:[#allocation3 + $0x80] sm:$0xff]
  %v4978 = vld [vmem:[#allocation3 + $0x88] sm:$0xff]
  %v4979 = vld [vmem:[#allocation3 + $0x90] sm:$0xff]
  %v4980 = vld [vmem:[#allocation3 + $0x98] sm:$0xff]
  %v4981 = vld [vmem:[#allocation3 + $0xa0] sm:$0xff]
  %v4982 = vld [vmem:[#allocation3 + $0xa8] sm:$0xff]
  %v4983 = vld [vmem:[#allocation3 + $0xb0] sm:$0xff]
  %v4984 = vld [vmem:[#allocation3 + $0xb8] sm:$0xff]
  %v4985 = vld [vmem:[#allocation3 + $0xc0] sm:$0xff]
  %v4986 = vld [vmem:[#allocation3 + $0xc8] sm:$0xff]
  %v4987 = vld [vmem:[#allocation3 + $0xd0] sm:$0xff]
  %v4988 = vld [vmem:[#allocation3 + $0xd8] sm:$0xff]
  %v4989 = vld [vmem:[#allocation3 + $0xe0] sm:$0xff]
  %v4990 = vld [vmem:[#allocation3 + $0xe8] sm:$0xff]
  %v4991 = vld [vmem:[#allocation3 + $0xf0] sm:$0xff]
  %v4992 = vld [vmem:[#allocation3 + $0xf8] sm:$0xff]
  %v4993 = vld [vmem:[#allocation3 + $0x100] sm:$0xff]
  %v4994 = vpack.c.bf16 %v4963, %v4962
  %v4995 = vpack.c.bf16 %v4965, %v4964
  %v4996 = vpack.c.bf16 %v4967, %v4966
  %v4997 = vpack.c.bf16 %v4969, %v4968
  %v4998 = vpack.c.bf16 %v4971, %v4970
  %v4999 = vpack.c.bf16 %v4973, %v4972
  %v5000 = vpack.c.bf16 %v4975, %v4974
  %v5001 = vpack.c.bf16 %v4977, %v4976
  %v5002 = vpack.c.bf16 %v4979, %v4978
  %v5003 = vpack.c.bf16 %v4981, %v4980
  %v5004 = vpack.c.bf16 %v4983, %v4982
  %v5005 = vpack.c.bf16 %v4985, %v4984
  %v5006 = vpack.c.bf16 %v4987, %v4986
  %v5007 = vpack.c.bf16 %v4989, %v4988
  %v5008 = vpack.c.bf16 %v4991, %v4990
  %v5009 = vpack.c.bf16 %v4993, %v4992
  %5026 = vrot.lane.b32.xlu0 %v4994, 32
  %v5027 = vpop.permute.xlu0 %5026
  %5028 = vrot.lane.b32.xlu0 %v4995, 32
  %v5029 = vpop.permute.xlu0 %5028
  %5030 = vrot.lane.b32.xlu0 %v4996, 32
  %v5031 = vpop.permute.xlu0 %5030
  %5032 = vrot.lane.b32.xlu0 %v4997, 32
  %v5033 = vpop.permute.xlu0 %5032
  %5034 = vrot.lane.b32.xlu0 %v4998, 32
  %v5035 = vpop.permute.xlu0 %5034
  %5036 = vrot.lane.b32.xlu0 %v4999, 32
  %v5037 = vpop.permute.xlu0 %5036
  %5038 = vrot.lane.b32.xlu0 %v5000, 32
  %v5039 = vpop.permute.xlu0 %5038
  %5040 = vrot.lane.b32.xlu0 %v5001, 32
  %v5041 = vpop.permute.xlu0 %5040
  %5042 = vrot.lane.b32.xlu0 %v5002, 32
  %v5043 = vpop.permute.xlu0 %5042
  %5044 = vrot.lane.b32.xlu0 %v5003, 32
  %v5045 = vpop.permute.xlu0 %5044
  %5046 = vrot.lane.b32.xlu0 %v5004, 32
  %v5047 = vpop.permute.xlu0 %5046
  %5048 = vrot.lane.b32.xlu0 %v5005, 32
  %v5049 = vpop.permute.xlu0 %5048
  %5050 = vrot.lane.b32.xlu0 %v5006, 32
  %v5051 = vpop.permute.xlu0 %5050
  %5052 = vrot.lane.b32.xlu0 %v5007, 32
  %v5053 = vpop.permute.xlu0 %5052
  %5054 = vrot.lane.b32.xlu0 %v5008, 32
  %v5055 = vpop.permute.xlu0 %5054
  %5056 = vrot.lane.b32.xlu0 %v5009, 32
  %v5057 = vpop.permute.xlu0 %5056
  %5074 = vst.msk [vmem:[#allocation4] sm:$0xff] %vm857, %v5027
  %5075 = vst.msk [vmem:[#allocation4 + $0x18] sm:$0xff] %vm857, %v5029
  %5076 = vst.msk [vmem:[#allocation4 + $0x30] sm:$0xff] %vm857, %v5031
  %5077 = vst.msk [vmem:[#allocation4 + $0x48] sm:$0xff] %vm857, %v5033
  %5078 = vst.msk [vmem:[#allocation4 + $0x60] sm:$0xff] %vm857, %v5035
  %5079 = vst.msk [vmem:[#allocation4 + $0x78] sm:$0xff] %vm857, %v5037
  %5080 = vst.msk [vmem:[#allocation4 + $0x90] sm:$0xff] %vm857, %v5039
  %5081 = vst.msk [vmem:[#allocation4 + $0xa8] sm:$0xff] %vm857, %v5041
  %5082 = vst.msk [vmem:[#allocation4 + $0xc0] sm:$0xff] %vm857, %v5043
  %5083 = vst.msk [vmem:[#allocation4 + $0xd8] sm:$0xff] %vm857, %v5045
  %5084 = vst.msk [vmem:[#allocation4 + $0xf0] sm:$0xff] %vm857, %v5047
  %5085 = vst.msk [vmem:[#allocation4 + $0x108] sm:$0xff] %vm857, %v5049
  %5086 = vst.msk [vmem:[#allocation4 + $0x120] sm:$0xff] %vm857, %v5051
  %5087 = vst.msk [vmem:[#allocation4 + $0x138] sm:$0xff] %vm857, %v5053
  %5088 = vst.msk [vmem:[#allocation4 + $0x150] sm:$0xff] %vm857, %v5055
  %5089 = vst.msk [vmem:[#allocation4 + $0x168] sm:$0xff] %vm857, %v5057
  %v5090 = vld [vmem:[#allocation3 + $0x9] sm:$0xff]
  %v5091 = vld [vmem:[#allocation3 + $0x11] sm:$0xff]
  %v5092 = vld [vmem:[#allocation3 + $0x19] sm:$0xff]
  %v5093 = vld [vmem:[#allocation3 + $0x21] sm:$0xff]
  %v5094 = vld [vmem:[#allocation3 + $0x29] sm:$0xff]
  %v5095 = vld [vmem:[#allocation3 + $0x31] sm:$0xff]
  %v5096 = vld [vmem:[#allocation3 + $0x39] sm:$0xff]
  %v5097 = vld [vmem:[#allocation3 + $0x41] sm:$0xff]
  %v5098 = vld [vmem:[#allocation3 + $0x49] sm:$0xff]
  %v5099 = vld [vmem:[#allocation3 + $0x51] sm:$0xff]
  %v5100 = vld [vmem:[#allocation3 + $0x59] sm:$0xff]
  %v5101 = vld [vmem:[#allocation3 + $0x61] sm:$0xff]
  %v5102 = vld [vmem:[#allocation3 + $0x69] sm:$0xff]
  %v5103 = vld [vmem:[#allocation3 + $0x71] sm:$0xff]
  %v5104 = vld [vmem:[#allocation3 + $0x79] sm:$0xff]
  %v5105 = vld [vmem:[#allocation3 + $0x81] sm:$0xff]
  %v5106 = vld [vmem:[#allocation3 + $0x89] sm:$0xff]
  %v5107 = vld [vmem:[#allocation3 + $0x91] sm:$0xff]
  %v5108 = vld [vmem:[#allocation3 + $0x99] sm:$0xff]
  %v5109 = vld [vmem:[#allocation3 + $0xa1] sm:$0xff]
  %v5110 = vld [vmem:[#allocation3 + $0xa9] sm:$0xff]
  %v5111 = vld [vmem:[#allocation3 + $0xb1] sm:$0xff]
  %v5112 = vld [vmem:[#allocation3 + $0xb9] sm:$0xff]
  %v5113 = vld [vmem:[#allocation3 + $0xc1] sm:$0xff]
  %v5114 = vld [vmem:[#allocation3 + $0xc9] sm:$0xff]
  %v5115 = vld [vmem:[#allocation3 + $0xd1] sm:$0xff]
  %v5116 = vld [vmem:[#allocation3 + $0xd9] sm:$0xff]
  %v5117 = vld [vmem:[#allocation3 + $0xe1] sm:$0xff]
  %v5118 = vld [vmem:[#allocation3 + $0xe9] sm:$0xff]
  %v5119 = vld [vmem:[#allocation3 + $0xf1] sm:$0xff]
  %v5120 = vld [vmem:[#allocation3 + $0xf9] sm:$0xff]
  %v5121 = vld [vmem:[#allocation3 + $0x101] sm:$0xff]
  %v5122 = vsel %vm938, %v5090, 0.0
  %v5123 = vsel %vm939, %v5091, 0.0
  %v5124 = vsel %vm940, %v5092, 0.0
  %v5125 = vsel %vm941, %v5093, 0.0
  %v5126 = vsel %vm942, %v5094, 0.0
  %v5127 = vsel %vm943, %v5095, 0.0
  %v5128 = vsel %vm944, %v5096, 0.0
  %v5129 = vsel %vm945, %v5097, 0.0
  %v5130 = vsel %vm946, %v5098, 0.0
  %v5131 = vsel %vm947, %v5099, 0.0
  %v5132 = vsel %vm948, %v5100, 0.0
  %v5133 = vsel %vm949, %v5101, 0.0
  %v5134 = vsel %vm950, %v5102, 0.0
  %v5135 = vsel %vm951, %v5103, 0.0
  %v5136 = vsel %vm952, %v5104, 0.0
  %v5137 = vsel %vm953, %v5105, 0.0
  %v5138 = vsel %vm954, %v5106, 0.0
  %v5139 = vsel %vm955, %v5107, 0.0
  %v5140 = vsel %vm956, %v5108, 0.0
  %v5141 = vsel %vm957, %v5109, 0.0
  %v5142 = vsel %vm958, %v5110, 0.0
  %v5143 = vsel %vm959, %v5111, 0.0
  %v5144 = vsel %vm960, %v5112, 0.0
  %v5145 = vsel %vm961, %v5113, 0.0
  %v5146 = vsel %vm962, %v5114, 0.0
  %v5147 = vsel %vm963, %v5115, 0.0
  %v5148 = vsel %vm964, %v5116, 0.0
  %v5149 = vsel %vm965, %v5117, 0.0
  %v5150 = vsel %vm966, %v5118, 0.0
  %v5151 = vsel %vm967, %v5119, 0.0
  %v5152 = vsel %vm968, %v5120, 0.0
  %v5153 = vsel %vm969, %v5121, 0.0
  %v5154 = vpack.c.bf16 %v5123, %v5122
  %v5155 = vpack.c.bf16 %v5125, %v5124
  %v5156 = vpack.c.bf16 %v5127, %v5126
  %v5157 = vpack.c.bf16 %v5129, %v5128
  %v5158 = vpack.c.bf16 %v5131, %v5130
  %v5159 = vpack.c.bf16 %v5133, %v5132
  %v5160 = vpack.c.bf16 %v5135, %v5134
  %v5161 = vpack.c.bf16 %v5137, %v5136
  %v5162 = vpack.c.bf16 %v5139, %v5138
  %v5163 = vpack.c.bf16 %v5141, %v5140
  %v5164 = vpack.c.bf16 %v5143, %v5142
  %v5165 = vpack.c.bf16 %v5145, %v5144
  %v5166 = vpack.c.bf16 %v5147, %v5146
  %v5167 = vpack.c.bf16 %v5149, %v5148
  %v5168 = vpack.c.bf16 %v5151, %v5150
  %v5169 = vpack.c.bf16 %v5153, %v5152
  %5186 = vrot.lane.b32.xlu0 %v5154, 64
  %v5187 = vpop.permute.xlu0 %5186
  %5188 = vrot.lane.b32.xlu0 %v5155, 64
  %v5189 = vpop.permute.xlu0 %5188
  %5190 = vrot.lane.b32.xlu0 %v5156, 64
  %v5191 = vpop.permute.xlu0 %5190
  %5192 = vrot.lane.b32.xlu0 %v5157, 64
  %v5193 = vpop.permute.xlu0 %5192
  %5194 = vrot.lane.b32.xlu0 %v5158, 64
  %v5195 = vpop.permute.xlu0 %5194
  %5196 = vrot.lane.b32.xlu0 %v5159, 64
  %v5197 = vpop.permute.xlu0 %5196
  %5198 = vrot.lane.b32.xlu0 %v5160, 64
  %v5199 = vpop.permute.xlu0 %5198
  %5200 = vrot.lane.b32.xlu0 %v5161, 64
  %v5201 = vpop.permute.xlu0 %5200
  %5202 = vrot.lane.b32.xlu0 %v5162, 64
  %v5203 = vpop.permute.xlu0 %5202
  %5204 = vrot.lane.b32.xlu0 %v5163, 64
  %v5205 = vpop.permute.xlu0 %5204
  %5206 = vrot.lane.b32.xlu0 %v5164, 64
  %v5207 = vpop.permute.xlu0 %5206
  %5208 = vrot.lane.b32.xlu0 %v5165, 64
  %v5209 = vpop.permute.xlu0 %5208
  %5210 = vrot.lane.b32.xlu0 %v5166, 64
  %v5211 = vpop.permute.xlu0 %5210
  %5212 = vrot.lane.b32.xlu0 %v5167, 64
  %v5213 = vpop.permute.xlu0 %5212
  %5214 = vrot.lane.b32.xlu0 %v5168, 64
  %v5215 = vpop.permute.xlu0 %5214
  %5216 = vrot.lane.b32.xlu0 %v5169, 64
  %v5217 = vpop.permute.xlu0 %5216
  %5234 = vst.msk [vmem:[#allocation4] sm:$0xff] %vm1082, %v5187
  %5235 = vst.msk [vmem:[#allocation4 + $0x18] sm:$0xff] %vm1082, %v5189
  %5236 = vst.msk [vmem:[#allocation4 + $0x30] sm:$0xff] %vm1082, %v5191
  %5237 = vst.msk [vmem:[#allocation4 + $0x48] sm:$0xff] %vm1082, %v5193
  %5238 = vst.msk [vmem:[#allocation4 + $0x60] sm:$0xff] %vm1082, %v5195
  %5239 = vst.msk [vmem:[#allocation4 + $0x78] sm:$0xff] %vm1082, %v5197
  %5240 = vst.msk [vmem:[#allocation4 + $0x90] sm:$0xff] %vm1082, %v5199
  %5241 = vst.msk [vmem:[#allocation4 + $0xa8] sm:$0xff] %vm1082, %v5201
  %5242 = vst.msk [vmem:[#allocation4 + $0xc0] sm:$0xff] %vm1082, %v5203
  %5243 = vst.msk [vmem:[#allocation4 + $0xd8] sm:$0xff] %vm1082, %v5205
  %5244 = vst.msk [vmem:[#allocation4 + $0xf0] sm:$0xff] %vm1082, %v5207
  %5245 = vst.msk [vmem:[#allocation4 + $0x108] sm:$0xff] %vm1082, %v5209
  %5246 = vst.msk [vmem:[#allocation4 + $0x120] sm:$0xff] %vm1082, %v5211
  %5247 = vst.msk [vmem:[#allocation4 + $0x138] sm:$0xff] %vm1082, %v5213
  %5248 = vst.msk [vmem:[#allocation4 + $0x150] sm:$0xff] %vm1082, %v5215
  %5249 = vst.msk [vmem:[#allocation4 + $0x168] sm:$0xff] %vm1082, %v5217
  %v5250 = vld [vmem:[#allocation3 + $0x17] sm:$0xff]
  %v5251 = vld [vmem:[#allocation3 + $0x1f] sm:$0xff]
  %v5252 = vld [vmem:[#allocation3 + $0x27] sm:$0xff]
  %v5253 = vld [vmem:[#allocation3 + $0x2f] sm:$0xff]
  %v5254 = vld [vmem:[#allocation3 + $0x37] sm:$0xff]
  %v5255 = vld [vmem:[#allocation3 + $0x3f] sm:$0xff]
  %v5256 = vld [vmem:[#allocation3 + $0x47] sm:$0xff]
  %v5257 = vld [vmem:[#allocation3 + $0x4f] sm:$0xff]
  %v5258 = vld [vmem:[#allocation3 + $0x57] sm:$0xff]
  %v5259 = vld [vmem:[#allocation3 + $0x5f] sm:$0xff]
  %v5260 = vld [vmem:[#allocation3 + $0x67] sm:$0xff]
  %v5261 = vld [vmem:[#allocation3 + $0x6f] sm:$0xff]
  %v5262 = vld [vmem:[#allocation3 + $0x77] sm:$0xff]
  %v5263 = vld [vmem:[#allocation3 + $0x7f] sm:$0xff]
  %v5264 = vld [vmem:[#allocation3 + $0x87] sm:$0xff]
  %v5265 = vld [vmem:[#allocation3 + $0x8f] sm:$0xff]
  %v5266 = vld [vmem:[#allocation3 + $0x97] sm:$0xff]
  %v5267 = vld [vmem:[#allocation3 + $0x9f] sm:$0xff]
  %v5268 = vld [vmem:[#allocation3 + $0xa7] sm:$0xff]
  %v5269 = vld [vmem:[#allocation3 + $0xaf] sm:$0xff]
  %v5270 = vld [vmem:[#allocation3 + $0xb7] sm:$0xff]
  %v5271 = vld [vmem:[#allocation3 + $0xbf] sm:$0xff]
  %v5272 = vld [vmem:[#allocation3 + $0xc7] sm:$0xff]
  %v5273 = vld [vmem:[#allocation3 + $0xcf] sm:$0xff]
  %v5274 = vld [vmem:[#allocation3 + $0xd7] sm:$0xff]
  %v5275 = vld [vmem:[#allocation3 + $0xdf] sm:$0xff]
  %v5276 = vld [vmem:[#allocation3 + $0xe7] sm:$0xff]
  %v5277 = vld [vmem:[#allocation3 + $0xef] sm:$0xff]
  %v5278 = vld [vmem:[#allocation3 + $0xf7] sm:$0xff]
  %v5279 = vld [vmem:[#allocation3 + $0xff] sm:$0xff]
  %v5280 = vld [vmem:[#allocation3 + $0x107] sm:$0xff]
  %v5281 = vld [vmem:[#allocation3 + $0x10f] sm:$0xff]
  %v5282 = vsel %vm649, %v5250, 0.0
  %v5283 = vsel %vm650, %v5251, 0.0
  %v5284 = vsel %vm651, %v5252, 0.0
  %v5285 = vsel %vm652, %v5253, 0.0
  %v5286 = vsel %vm653, %v5254, 0.0
  %v5287 = vsel %vm654, %v5255, 0.0
  %v5288 = vsel %vm655, %v5256, 0.0
  %v5289 = vsel %vm656, %v5257, 0.0
  %v5290 = vsel %vm657, %v5258, 0.0
  %v5291 = vsel %vm658, %v5259, 0.0
  %v5292 = vsel %vm659, %v5260, 0.0
  %v5293 = vsel %vm660, %v5261, 0.0
  %v5294 = vsel %vm661, %v5262, 0.0
  %v5295 = vsel %vm662, %v5263, 0.0
  %v5296 = vsel %vm663, %v5264, 0.0
  %v5297 = vsel %vm664, %v5265, 0.0
  %v5298 = vsel %vm665, %v5266, 0.0
  %v5299 = vsel %vm666, %v5267, 0.0
  %v5300 = vsel %vm667, %v5268, 0.0
  %v5301 = vsel %vm668, %v5269, 0.0
  %v5302 = vsel %vm669, %v5270, 0.0
  %v5303 = vsel %vm670, %v5271, 0.0
  %v5304 = vsel %vm671, %v5272, 0.0
  %v5305 = vsel %vm672, %v5273, 0.0
  %v5306 = vsel %vm673, %v5274, 0.0
  %v5307 = vsel %vm674, %v5275, 0.0
  %v5308 = vsel %vm675, %v5276, 0.0
  %v5309 = vsel %vm676, %v5277, 0.0
  %v5310 = vsel %vm677, %v5278, 0.0
  %v5311 = vsel %vm678, %v5279, 0.0
  %v5312 = vsel %vm679, %v5280, 0.0
  %v5313 = vsel %vm680, %v5281, 0.0
  %v5314 = vpack.c.bf16 %v5283, %v5282
  %v5315 = vpack.c.bf16 %v5285, %v5284
  %v5316 = vpack.c.bf16 %v5287, %v5286
  %v5317 = vpack.c.bf16 %v5289, %v5288
  %v5318 = vpack.c.bf16 %v5291, %v5290
  %v5319 = vpack.c.bf16 %v5293, %v5292
  %v5320 = vpack.c.bf16 %v5295, %v5294
  %v5321 = vpack.c.bf16 %v5297, %v5296
  %v5322 = vpack.c.bf16 %v5299, %v5298
  %v5323 = vpack.c.bf16 %v5301, %v5300
  %v5324 = vpack.c.bf16 %v5303, %v5302
  %v5325 = vpack.c.bf16 %v5305, %v5304
  %v5326 = vpack.c.bf16 %v5307, %v5306
  %v5327 = vpack.c.bf16 %v5309, %v5308
  %v5328 = vpack.c.bf16 %v5311, %v5310
  %v5329 = vpack.c.bf16 %v5313, %v5312
  %5346 = vrot.lane.b32.xlu0 %v5314, 96
  %v5347 = vpop.permute.xlu0 %5346
  %5348 = vrot.lane.b32.xlu0 %v5315, 96
  %v5349 = vpop.permute.xlu0 %5348
  %5350 = vrot.lane.b32.xlu0 %v5316, 96
  %v5351 = vpop.permute.xlu0 %5350
  %5352 = vrot.lane.b32.xlu0 %v5317, 96
  %v5353 = vpop.permute.xlu0 %5352
  %5354 = vrot.lane.b32.xlu0 %v5318, 96
  %v5355 = vpop.permute.xlu0 %5354
  %5356 = vrot.lane.b32.xlu0 %v5319, 96
  %v5357 = vpop.permute.xlu0 %5356
  %5358 = vrot.lane.b32.xlu0 %v5320, 96
  %v5359 = vpop.permute.xlu0 %5358
  %5360 = vrot.lane.b32.xlu0 %v5321, 96
  %v5361 = vpop.permute.xlu0 %5360
  %5362 = vrot.lane.b32.xlu0 %v5322, 96
  %v5363 = vpop.permute.xlu0 %5362
  %5364 = vrot.lane.b32.xlu0 %v5323, 96
  %v5365 = vpop.permute.xlu0 %5364
  %5366 = vrot.lane.b32.xlu0 %v5324, 96
  %v5367 = vpop.permute.xlu0 %5366
  %5368 = vrot.lane.b32.xlu0 %v5325, 96
  %v5369 = vpop.permute.xlu0 %5368
  %5370 = vrot.lane.b32.xlu0 %v5326, 96
  %v5371 = vpop.permute.xlu0 %5370
  %5372 = vrot.lane.b32.xlu0 %v5327, 96
  %v5373 = vpop.permute.xlu0 %5372
  %5374 = vrot.lane.b32.xlu0 %v5328, 96
  %v5375 = vpop.permute.xlu0 %5374
  %5376 = vrot.lane.b32.xlu0 %v5329, 96
  %v5377 = vpop.permute.xlu0 %5376
  %5394 = vst.msk [vmem:[#allocation4] sm:$0xff] %vm1243, %v5347
  %5395 = vst.msk [vmem:[#allocation4 + $0x18] sm:$0xff] %vm1243, %v5349
  %5396 = vst.msk [vmem:[#allocation4 + $0x30] sm:$0xff] %vm1243, %v5351
  %5397 = vst.msk [vmem:[#allocation4 + $0x48] sm:$0xff] %vm1243, %v5353
  %5398 = vst.msk [vmem:[#allocation4 + $0x60] sm:$0xff] %vm1243, %v5355
  %5399 = vst.msk [vmem:[#allocation4 + $0x78] sm:$0xff] %vm1243, %v5357
  %5400 = vst.msk [vmem:[#allocation4 + $0x90] sm:$0xff] %vm1243, %v5359
  %5401 = vst.msk [vmem:[#allocation4 + $0xa8] sm:$0xff] %vm1243, %v5361
  %5402 = vst.msk [vmem:[#allocation4 + $0xc0] sm:$0xff] %vm1243, %v5363
  %5403 = vst.msk [vmem:[#allocation4 + $0xd8] sm:$0xff] %vm1243, %v5365
  %5404 = vst.msk [vmem:[#allocation4 + $0xf0] sm:$0xff] %vm1243, %v5367
  %5405 = vst.msk [vmem:[#allocation4 + $0x108] sm:$0xff] %vm1243, %v5369
  %5406 = vst.msk [vmem:[#allocation4 + $0x120] sm:$0xff] %vm1243, %v5371
  %5407 = vst.msk [vmem:[#allocation4 + $0x138] sm:$0xff] %vm1243, %v5373
  %5408 = vst.msk [vmem:[#allocation4 + $0x150] sm:$0xff] %vm1243, %v5375
  %5409 = vst.msk [vmem:[#allocation4 + $0x168] sm:$0xff] %vm1243, %v5377
  %v5410 = vld [vmem:[#allocation3 + $0x18] sm:$0xff]
  %v5411 = vld [vmem:[#allocation3 + $0x20] sm:$0xff]
  %v5412 = vld [vmem:[#allocation3 + $0x28] sm:$0xff]
  %v5413 = vld [vmem:[#allocation3 + $0x30] sm:$0xff]
  %v5414 = vld [vmem:[#allocation3 + $0x38] sm:$0xff]
  %v5415 = vld [vmem:[#allocation3 + $0x40] sm:$0xff]
  %v5416 = vld [vmem:[#allocation3 + $0x48] sm:$0xff]
  %v5417 = vld [vmem:[#allocation3 + $0x50] sm:$0xff]
  %v5418 = vld [vmem:[#allocation3 + $0x58] sm:$0xff]
  %v5419 = vld [vmem:[#allocation3 + $0x60] sm:$0xff]
  %v5420 = vld [vmem:[#allocation3 + $0x68] sm:$0xff]
  %v5421 = vld [vmem:[#allocation3 + $0x70] sm:$0xff]
  %v5422 = vld [vmem:[#allocation3 + $0x78] sm:$0xff]
  %v5423 = vld [vmem:[#allocation3 + $0x80] sm:$0xff]
  %v5424 = vld [vmem:[#allocation3 + $0x88] sm:$0xff]
  %v5425 = vld [vmem:[#allocation3 + $0x90] sm:$0xff]
  %v5426 = vld [vmem:[#allocation3 + $0x98] sm:$0xff]
  %v5427 = vld [vmem:[#allocation3 + $0xa0] sm:$0xff]
  %v5428 = vld [vmem:[#allocation3 + $0xa8] sm:$0xff]
  %v5429 = vld [vmem:[#allocation3 + $0xb0] sm:$0xff]
  %v5430 = vld [vmem:[#allocation3 + $0xb8] sm:$0xff]
  %v5431 = vld [vmem:[#allocation3 + $0xc0] sm:$0xff]
  %v5432 = vld [vmem:[#allocation3 + $0xc8] sm:$0xff]
  %v5433 = vld [vmem:[#allocation3 + $0xd0] sm:$0xff]
  %v5434 = vld [vmem:[#allocation3 + $0xd8] sm:$0xff]
  %v5435 = vld [vmem:[#allocation3 + $0xe0] sm:$0xff]
  %v5436 = vld [vmem:[#allocation3 + $0xe8] sm:$0xff]
  %v5437 = vld [vmem:[#allocation3 + $0xf0] sm:$0xff]
  %v5438 = vld [vmem:[#allocation3 + $0xf8] sm:$0xff]
  %v5439 = vld [vmem:[#allocation3 + $0x100] sm:$0xff]
  %v5440 = vld [vmem:[#allocation3 + $0x108] sm:$0xff]
  %v5441 = vld [vmem:[#allocation3 + $0x110] sm:$0xff]
  %v5442 = vpack.c.bf16 %v5411, %v5410
  %v5443 = vpack.c.bf16 %v5413, %v5412
  %v5444 = vpack.c.bf16 %v5415, %v5414
  %v5445 = vpack.c.bf16 %v5417, %v5416
  %v5446 = vpack.c.bf16 %v5419, %v5418
  %v5447 = vpack.c.bf16 %v5421, %v5420
  %v5448 = vpack.c.bf16 %v5423, %v5422
  %v5449 = vpack.c.bf16 %v5425, %v5424
  %v5450 = vpack.c.bf16 %v5427, %v5426
  %v5451 = vpack.c.bf16 %v5429, %v5428
  %v5452 = vpack.c.bf16 %v5431, %v5430
  %v5453 = vpack.c.bf16 %v5433, %v5432
  %v5454 = vpack.c.bf16 %v5435, %v5434
  %v5455 = vpack.c.bf16 %v5437, %v5436
  %v5456 = vpack.c.bf16 %v5439, %v5438
  %v5457 = vpack.c.bf16 %v5441, %v5440
  %5458 = vst.msk [vmem:[#allocation4 + $0x8] sm:$0xff] %vm514, %v5442
  %5459 = vst.msk [vmem:[#allocation4 + $0x20] sm:$0xff] %vm514, %v5443
  %5460 = vst.msk [vmem:[#allocation4 + $0x38] sm:$0xff] %vm514, %v5444
  %5461 = vst.msk [vmem:[#allocation4 + $0x50] sm:$0xff] %vm514, %v5445
  %5462 = vst.msk [vmem:[#allocation4 + $0x68] sm:$0xff] %vm514, %v5446
  %5463 = vst.msk [vmem:[#allocation4 + $0x80] sm:$0xff] %vm514, %v5447
  %5464 = vst.msk [vmem:[#allocation4 + $0x98] sm:$0xff] %vm514, %v5448
  %5465 = vst.msk [vmem:[#allocation4 + $0xb0] sm:$0xff] %vm514, %v5449
  %5466 = vst.msk [vmem:[#allocation4 + $0xc8] sm:$0xff] %vm514, %v5450
  %5467 = vst.msk [vmem:[#allocation4 + $0xe0] sm:$0xff] %vm514, %v5451
  %5468 = vst.msk [vmem:[#allocation4 + $0xf8] sm:$0xff] %vm514, %v5452
  %5469 = vst.msk [vmem:[#allocation4 + $0x110] sm:$0xff] %vm514, %v5453
  %5470 = vst.msk [vmem:[#allocation4 + $0x128] sm:$0xff] %vm514, %v5454
  %5471 = vst.msk [vmem:[#allocation4 + $0x140] sm:$0xff] %vm514, %v5455
  %5472 = vst.msk [vmem:[#allocation4 + $0x158] sm:$0xff] %vm514, %v5456
  %5473 = vst.msk [vmem:[#allocation4 + $0x170] sm:$0xff] %vm514, %v5457
  %v5474 = vld [vmem:[#allocation3 + $0x19] sm:$0xff]
  %v5475 = vld [vmem:[#allocation3 + $0x21] sm:$0xff]
  %v5476 = vld [vmem:[#allocation3 + $0x29] sm:$0xff]
  %v5477 = vld [vmem:[#allocation3 + $0x31] sm:$0xff]
  %v5478 = vld [vmem:[#allocation3 + $0x39] sm:$0xff]
  %v5479 = vld [vmem:[#allocation3 + $0x41] sm:$0xff]
  %v5480 = vld [vmem:[#allocation3 + $0x49] sm:$0xff]
  %v5481 = vld [vmem:[#allocation3 + $0x51] sm:$0xff]
  %v5482 = vld [vmem:[#allocation3 + $0x59] sm:$0xff]
  %v5483 = vld [vmem:[#allocation3 + $0x61] sm:$0xff]
  %v5484 = vld [vmem:[#allocation3 + $0x69] sm:$0xff]
  %v5485 = vld [vmem:[#allocation3 + $0x71] sm:$0xff]
  %v5486 = vld [vmem:[#allocation3 + $0x79] sm:$0xff]
  %v5487 = vld [vmem:[#allocation3 + $0x81] sm:$0xff]
  %v5488 = vld [vmem:[#allocation3 + $0x89] sm:$0xff]
  %v5489 = vld [vmem:[#allocation3 + $0x91] sm:$0xff]
  %v5490 = vld [vmem:[#allocation3 + $0x99] sm:$0xff]
  %v5491 = vld [vmem:[#allocation3 + $0xa1] sm:$0xff]
  %v5492 = vld [vmem:[#allocation3 + $0xa9] sm:$0xff]
  %v5493 = vld [vmem:[#allocation3 + $0xb1] sm:$0xff]
  %v5494 = vld [vmem:[#allocation3 + $0xb9] sm:$0xff]
  %v5495 = vld [vmem:[#allocation3 + $0xc1] sm:$0xff]
  %v5496 = vld [vmem:[#allocation3 + $0xc9] sm:$0xff]
  %v5497 = vld [vmem:[#allocation3 + $0xd1] sm:$0xff]
  %v5498 = vld [vmem:[#allocation3 + $0xd9] sm:$0xff]
  %v5499 = vld [vmem:[#allocation3 + $0xe1] sm:$0xff]
  %v5500 = vld [vmem:[#allocation3 + $0xe9] sm:$0xff]
  %v5501 = vld [vmem:[#allocation3 + $0xf1] sm:$0xff]
  %v5502 = vld [vmem:[#allocation3 + $0xf9] sm:$0xff]
  %v5503 = vld [vmem:[#allocation3 + $0x101] sm:$0xff]
  %v5504 = vld [vmem:[#allocation3 + $0x109] sm:$0xff]
  %v5505 = vld [vmem:[#allocation3 + $0x111] sm:$0xff]
  %v5506 = vsel %vm938, %v5474, 0.0
  %v5507 = vsel %vm939, %v5475, 0.0
  %v5508 = vsel %vm940, %v5476, 0.0
  %v5509 = vsel %vm941, %v5477, 0.0
  %v5510 = vsel %vm942, %v5478, 0.0
  %v5511 = vsel %vm943, %v5479, 0.0
  %v5512 = vsel %vm944, %v5480, 0.0
  %v5513 = vsel %vm945, %v5481, 0.0
  %v5514 = vsel %vm946, %v5482, 0.0
  %v5515 = vsel %vm947, %v5483, 0.0
  %v5516 = vsel %vm948, %v5484, 0.0
  %v5517 = vsel %vm949, %v5485, 0.0
  %v5518 = vsel %vm950, %v5486, 0.0
  %v5519 = vsel %vm951, %v5487, 0.0
  %v5520 = vsel %vm952, %v5488, 0.0
  %v5521 = vsel %vm953, %v5489, 0.0
  %v5522 = vsel %vm954, %v5490, 0.0
  %v5523 = vsel %vm955, %v5491, 0.0
  %v5524 = vsel %vm956, %v5492, 0.0
  %v5525 = vsel %vm957, %v5493, 0.0
  %v5526 = vsel %vm958, %v5494, 0.0
  %v5527 = vsel %vm959, %v5495, 0.0
  %v5528 = vsel %vm960, %v5496, 0.0
  %v5529 = vsel %vm961, %v5497, 0.0
  %v5530 = vsel %vm962, %v5498, 0.0
  %v5531 = vsel %vm963, %v5499, 0.0
  %v5532 = vsel %vm964, %v5500, 0.0
  %v5533 = vsel %vm965, %v5501, 0.0
  %v5534 = vsel %vm966, %v5502, 0.0
  %v5535 = vsel %vm967, %v5503, 0.0
  %v5536 = vsel %vm968, %v5504, 0.0
  %v5537 = vsel %vm969, %v5505, 0.0
  %v5538 = vpack.c.bf16 %v5507, %v5506
  %v5539 = vpack.c.bf16 %v5509, %v5508
  %v5540 = vpack.c.bf16 %v5511, %v5510
  %v5541 = vpack.c.bf16 %v5513, %v5512
  %v5542 = vpack.c.bf16 %v5515, %v5514
  %v5543 = vpack.c.bf16 %v5517, %v5516
  %v5544 = vpack.c.bf16 %v5519, %v5518
  %v5545 = vpack.c.bf16 %v5521, %v5520
  %v5546 = vpack.c.bf16 %v5523, %v5522
  %v5547 = vpack.c.bf16 %v5525, %v5524
  %v5548 = vpack.c.bf16 %v5527, %v5526
  %v5549 = vpack.c.bf16 %v5529, %v5528
  %v5550 = vpack.c.bf16 %v5531, %v5530
  %v5551 = vpack.c.bf16 %v5533, %v5532
  %v5552 = vpack.c.bf16 %v5535, %v5534
  %v5553 = vpack.c.bf16 %v5537, %v5536
  %5570 = vrot.lane.b32.xlu0 %v5538, 32
  %v5571 = vpop.permute.xlu0 %5570
  %5572 = vrot.lane.b32.xlu0 %v5539, 32
  %v5573 = vpop.permute.xlu0 %5572
  %5574 = vrot.lane.b32.xlu0 %v5540, 32
  %v5575 = vpop.permute.xlu0 %5574
  %5576 = vrot.lane.b32.xlu0 %v5541, 32
  %v5577 = vpop.permute.xlu0 %5576
  %5578 = vrot.lane.b32.xlu0 %v5542, 32
  %v5579 = vpop.permute.xlu0 %5578
  %5580 = vrot.lane.b32.xlu0 %v5543, 32
  %v5581 = vpop.permute.xlu0 %5580
  %5582 = vrot.lane.b32.xlu0 %v5544, 32
  %v5583 = vpop.permute.xlu0 %5582
  %5584 = vrot.lane.b32.xlu0 %v5545, 32
  %v5585 = vpop.permute.xlu0 %5584
  %5586 = vrot.lane.b32.xlu0 %v5546, 32
  %v5587 = vpop.permute.xlu0 %5586
  %5588 = vrot.lane.b32.xlu0 %v5547, 32
  %v5589 = vpop.permute.xlu0 %5588
  %5590 = vrot.lane.b32.xlu0 %v5548, 32
  %v5591 = vpop.permute.xlu0 %5590
  %5592 = vrot.lane.b32.xlu0 %v5549, 32
  %v5593 = vpop.permute.xlu0 %5592
  %5594 = vrot.lane.b32.xlu0 %v5550, 32
  %v5595 = vpop.permute.xlu0 %5594
  %5596 = vrot.lane.b32.xlu0 %v5551, 32
  %v5597 = vpop.permute.xlu0 %5596
  %5598 = vrot.lane.b32.xlu0 %v5552, 32
  %v5599 = vpop.permute.xlu0 %5598
  %5600 = vrot.lane.b32.xlu0 %v5553, 32
  %v5601 = vpop.permute.xlu0 %5600
  %5618 = vst.msk [vmem:[#allocation4 + $0x8] sm:$0xff] %vm857, %v5571
  %5619 = vst.msk [vmem:[#allocation4 + $0x20] sm:$0xff] %vm857, %v5573
  %5620 = vst.msk [vmem:[#allocation4 + $0x38] sm:$0xff] %vm857, %v5575
  %5621 = vst.msk [vmem:[#allocation4 + $0x50] sm:$0xff] %vm857, %v5577
  %5622 = vst.msk [vmem:[#allocation4 + $0x68] sm:$0xff] %vm857, %v5579
  %5623 = vst.msk [vmem:[#allocation4 + $0x80] sm:$0xff] %vm857, %v5581
  %5624 = vst.msk [vmem:[#allocation4 + $0x98] sm:$0xff] %vm857, %v5583
  %5625 = vst.msk [vmem:[#allocation4 + $0xb0] sm:$0xff] %vm857, %v5585
  %5626 = vst.msk [vmem:[#allocation4 + $0xc8] sm:$0xff] %vm857, %v5587
  %5627 = vst.msk [vmem:[#allocation4 + $0xe0] sm:$0xff] %vm857, %v5589
  %5628 = vst.msk [vmem:[#allocation4 + $0xf8] sm:$0xff] %vm857, %v5591
  %5629 = vst.msk [vmem:[#allocation4 + $0x110] sm:$0xff] %vm857, %v5593
  %5630 = vst.msk [vmem:[#allocation4 + $0x128] sm:$0xff] %vm857, %v5595
  %5631 = vst.msk [vmem:[#allocation4 + $0x140] sm:$0xff] %vm857, %v5597
  %5632 = vst.msk [vmem:[#allocation4 + $0x158] sm:$0xff] %vm857, %v5599
  %5633 = vst.msk [vmem:[#allocation4 + $0x170] sm:$0xff] %vm857, %v5601
  %v5634 = vld [vmem:[#allocation3 + $0x27] sm:$0xff]
  %v5635 = vld [vmem:[#allocation3 + $0x2f] sm:$0xff]
  %v5636 = vld [vmem:[#allocation3 + $0x37] sm:$0xff]
  %v5637 = vld [vmem:[#allocation3 + $0x3f] sm:$0xff]
  %v5638 = vld [vmem:[#allocation3 + $0x47] sm:$0xff]
  %v5639 = vld [vmem:[#allocation3 + $0x4f] sm:$0xff]
  %v5640 = vld [vmem:[#allocation3 + $0x57] sm:$0xff]
  %v5641 = vld [vmem:[#allocation3 + $0x5f] sm:$0xff]
  %v5642 = vld [vmem:[#allocation3 + $0x67] sm:$0xff]
  %v5643 = vld [vmem:[#allocation3 + $0x6f] sm:$0xff]
  %v5644 = vld [vmem:[#allocation3 + $0x77] sm:$0xff]
  %v5645 = vld [vmem:[#allocation3 + $0x7f] sm:$0xff]
  %v5646 = vld [vmem:[#allocation3 + $0x87] sm:$0xff]
  %v5647 = vld [vmem:[#allocation3 + $0x8f] sm:$0xff]
  %v5648 = vld [vmem:[#allocation3 + $0x97] sm:$0xff]
  %v5649 = vld [vmem:[#allocation3 + $0x9f] sm:$0xff]
  %v5650 = vld [vmem:[#allocation3 + $0xa7] sm:$0xff]
  %v5651 = vld [vmem:[#allocation3 + $0xaf] sm:$0xff]
  %v5652 = vld [vmem:[#allocation3 + $0xb7] sm:$0xff]
  %v5653 = vld [vmem:[#allocation3 + $0xbf] sm:$0xff]
  %v5654 = vld [vmem:[#allocation3 + $0xc7] sm:$0xff]
  %v5655 = vld [vmem:[#allocation3 + $0xcf] sm:$0xff]
  %v5656 = vld [vmem:[#allocation3 + $0xd7] sm:$0xff]
  %v5657 = vld [vmem:[#allocation3 + $0xdf] sm:$0xff]
  %v5658 = vld [vmem:[#allocation3 + $0xe7] sm:$0xff]
  %v5659 = vld [vmem:[#allocation3 + $0xef] sm:$0xff]
  %v5660 = vld [vmem:[#allocation3 + $0xf7] sm:$0xff]
  %v5661 = vld [vmem:[#allocation3 + $0xff] sm:$0xff]
  %v5662 = vld [vmem:[#allocation3 + $0x107] sm:$0xff]
  %v5663 = vld [vmem:[#allocation3 + $0x10f] sm:$0xff]
  %v5664 = vld [vmem:[#allocation3 + $0x117] sm:$0xff]
  %v5665 = vld [vmem:[#allocation3 + $0x11f] sm:$0xff]
  %v5666 = vsel %vm649, %v5634, 0.0
  %v5667 = vsel %vm650, %v5635, 0.0
  %v5668 = vsel %vm651, %v5636, 0.0
  %v5669 = vsel %vm652, %v5637, 0.0
  %v5670 = vsel %vm653, %v5638, 0.0
  %v5671 = vsel %vm654, %v5639, 0.0
  %v5672 = vsel %vm655, %v5640, 0.0
  %v5673 = vsel %vm656, %v5641, 0.0
  %v5674 = vsel %vm657, %v5642, 0.0
  %v5675 = vsel %vm658, %v5643, 0.0
  %v5676 = vsel %vm659, %v5644, 0.0
  %v5677 = vsel %vm660, %v5645, 0.0
  %v5678 = vsel %vm661, %v5646, 0.0
  %v5679 = vsel %vm662, %v5647, 0.0
  %v5680 = vsel %vm663, %v5648, 0.0
  %v5681 = vsel %vm664, %v5649, 0.0
  %v5682 = vsel %vm665, %v5650, 0.0
  %v5683 = vsel %vm666, %v5651, 0.0
  %v5684 = vsel %vm667, %v5652, 0.0
  %v5685 = vsel %vm668, %v5653, 0.0
  %v5686 = vsel %vm669, %v5654, 0.0
  %v5687 = vsel %vm670, %v5655, 0.0
  %v5688 = vsel %vm671, %v5656, 0.0
  %v5689 = vsel %vm672, %v5657, 0.0
  %v5690 = vsel %vm673, %v5658, 0.0
  %v5691 = vsel %vm674, %v5659, 0.0
  %v5692 = vsel %vm675, %v5660, 0.0
  %v5693 = vsel %vm676, %v5661, 0.0
  %v5694 = vsel %vm677, %v5662, 0.0
  %v5695 = vsel %vm678, %v5663, 0.0
  %v5696 = vsel %vm679, %v5664, 0.0
  %v5697 = vsel %vm680, %v5665, 0.0
  %v5698 = vpack.c.bf16 %v5667, %v5666
  %v5699 = vpack.c.bf16 %v5669, %v5668
  %v5700 = vpack.c.bf16 %v5671, %v5670
  %v5701 = vpack.c.bf16 %v5673, %v5672
  %v5702 = vpack.c.bf16 %v5675, %v5674
  %v5703 = vpack.c.bf16 %v5677, %v5676
  %v5704 = vpack.c.bf16 %v5679, %v5678
  %v5705 = vpack.c.bf16 %v5681, %v5680
  %v5706 = vpack.c.bf16 %v5683, %v5682
  %v5707 = vpack.c.bf16 %v5685, %v5684
  %v5708 = vpack.c.bf16 %v5687, %v5686
  %v5709 = vpack.c.bf16 %v5689, %v5688
  %v5710 = vpack.c.bf16 %v5691, %v5690
  %v5711 = vpack.c.bf16 %v5693, %v5692
  %v5712 = vpack.c.bf16 %v5695, %v5694
  %v5713 = vpack.c.bf16 %v5697, %v5696
  %5730 = vrot.lane.b32.xlu0 %v5698, 64
  %v5731 = vpop.permute.xlu0 %5730
  %5732 = vrot.lane.b32.xlu0 %v5699, 64
  %v5733 = vpop.permute.xlu0 %5732
  %5734 = vrot.lane.b32.xlu0 %v5700, 64
  %v5735 = vpop.permute.xlu0 %5734
  %5736 = vrot.lane.b32.xlu0 %v5701, 64
  %v5737 = vpop.permute.xlu0 %5736
  %5738 = vrot.lane.b32.xlu0 %v5702, 64
  %v5739 = vpop.permute.xlu0 %5738
  %5740 = vrot.lane.b32.xlu0 %v5703, 64
  %v5741 = vpop.permute.xlu0 %5740
  %5742 = vrot.lane.b32.xlu0 %v5704, 64
  %v5743 = vpop.permute.xlu0 %5742
  %5744 = vrot.lane.b32.xlu0 %v5705, 64
  %v5745 = vpop.permute.xlu0 %5744
  %5746 = vrot.lane.b32.xlu0 %v5706, 64
  %v5747 = vpop.permute.xlu0 %5746
  %5748 = vrot.lane.b32.xlu0 %v5707, 64
  %v5749 = vpop.permute.xlu0 %5748
  %5750 = vrot.lane.b32.xlu0 %v5708, 64
  %v5751 = vpop.permute.xlu0 %5750
  %5752 = vrot.lane.b32.xlu0 %v5709, 64
  %v5753 = vpop.permute.xlu0 %5752
  %5754 = vrot.lane.b32.xlu0 %v5710, 64
  %v5755 = vpop.permute.xlu0 %5754
  %5756 = vrot.lane.b32.xlu0 %v5711, 64
  %v5757 = vpop.permute.xlu0 %5756
  %5758 = vrot.lane.b32.xlu0 %v5712, 64
  %v5759 = vpop.permute.xlu0 %5758
  %5760 = vrot.lane.b32.xlu0 %v5713, 64
  %v5761 = vpop.permute.xlu0 %5760
  %5778 = vst.msk [vmem:[#allocation4 + $0x8] sm:$0xff] %vm1082, %v5731
  %5779 = vst.msk [vmem:[#allocation4 + $0x20] sm:$0xff] %vm1082, %v5733
  %5780 = vst.msk [vmem:[#allocation4 + $0x38] sm:$0xff] %vm1082, %v5735
  %5781 = vst.msk [vmem:[#allocation4 + $0x50] sm:$0xff] %vm1082, %v5737
  %5782 = vst.msk [vmem:[#allocation4 + $0x68] sm:$0xff] %vm1082, %v5739
  %5783 = vst.msk [vmem:[#allocation4 + $0x80] sm:$0xff] %vm1082, %v5741
  %5784 = vst.msk [vmem:[#allocation4 + $0x98] sm:$0xff] %vm1082, %v5743
  %5785 = vst.msk [vmem:[#allocation4 + $0xb0] sm:$0xff] %vm1082, %v5745
  %5786 = vst.msk [vmem:[#allocation4 + $0xc8] sm:$0xff] %vm1082, %v5747
  %5787 = vst.msk [vmem:[#allocation4 + $0xe0] sm:$0xff] %vm1082, %v5749
  %5788 = vst.msk [vmem:[#allocation4 + $0xf8] sm:$0xff] %vm1082, %v5751
  %5789 = vst.msk [vmem:[#allocation4 + $0x110] sm:$0xff] %vm1082, %v5753
  %5790 = vst.msk [vmem:[#allocation4 + $0x128] sm:$0xff] %vm1082, %v5755
  %5791 = vst.msk [vmem:[#allocation4 + $0x140] sm:$0xff] %vm1082, %v5757
  %5792 = vst.msk [vmem:[#allocation4 + $0x158] sm:$0xff] %vm1082, %v5759
  %5793 = vst.msk [vmem:[#allocation4 + $0x170] sm:$0xff] %vm1082, %v5761
  %v5794 = vld [vmem:[#allocation3 + $0x28] sm:$0xff]
  %v5795 = vld [vmem:[#allocation3 + $0x30] sm:$0xff]
  %v5796 = vld [vmem:[#allocation3 + $0x38] sm:$0xff]
  %v5797 = vld [vmem:[#allocation3 + $0x40] sm:$0xff]
  %v5798 = vld [vmem:[#allocation3 + $0x48] sm:$0xff]
  %v5799 = vld [vmem:[#allocation3 + $0x50] sm:$0xff]
  %v5800 = vld [vmem:[#allocation3 + $0x58] sm:$0xff]
  %v5801 = vld [vmem:[#allocation3 + $0x60] sm:$0xff]
  %v5802 = vld [vmem:[#allocation3 + $0x68] sm:$0xff]
  %v5803 = vld [vmem:[#allocation3 + $0x70] sm:$0xff]
  %v5804 = vld [vmem:[#allocation3 + $0x78] sm:$0xff]
  %v5805 = vld [vmem:[#allocation3 + $0x80] sm:$0xff]
  %v5806 = vld [vmem:[#allocation3 + $0x88] sm:$0xff]
  %v5807 = vld [vmem:[#allocation3 + $0x90] sm:$0xff]
  %v5808 = vld [vmem:[#allocation3 + $0x98] sm:$0xff]
  %v5809 = vld [vmem:[#allocation3 + $0xa0] sm:$0xff]
  %v5810 = vld [vmem:[#allocation3 + $0xa8] sm:$0xff]
  %v5811 = vld [vmem:[#allocation3 + $0xb0] sm:$0xff]
  %v5812 = vld [vmem:[#allocation3 + $0xb8] sm:$0xff]
  %v5813 = vld [vmem:[#allocation3 + $0xc0] sm:$0xff]
  %v5814 = vld [vmem:[#allocation3 + $0xc8] sm:$0xff]
  %v5815 = vld [vmem:[#allocation3 + $0xd0] sm:$0xff]
  %v5816 = vld [vmem:[#allocation3 + $0xd8] sm:$0xff]
  %v5817 = vld [vmem:[#allocation3 + $0xe0] sm:$0xff]
  %v5818 = vld [vmem:[#allocation3 + $0xe8] sm:$0xff]
  %v5819 = vld [vmem:[#allocation3 + $0xf0] sm:$0xff]
  %v5820 = vld [vmem:[#allocation3 + $0xf8] sm:$0xff]
  %v5821 = vld [vmem:[#allocation3 + $0x100] sm:$0xff]
  %v5822 = vld [vmem:[#allocation3 + $0x108] sm:$0xff]
  %v5823 = vld [vmem:[#allocation3 + $0x110] sm:$0xff]
  %v5824 = vld [vmem:[#allocation3 + $0x118] sm:$0xff]
  %v5825 = vld [vmem:[#allocation3 + $0x120] sm:$0xff]
  %v5826 = vpack.c.bf16 %v5795, %v5794
  %v5827 = vpack.c.bf16 %v5797, %v5796
  %v5828 = vpack.c.bf16 %v5799, %v5798
  %v5829 = vpack.c.bf16 %v5801, %v5800
  %v5830 = vpack.c.bf16 %v5803, %v5802
  %v5831 = vpack.c.bf16 %v5805, %v5804
  %v5832 = vpack.c.bf16 %v5807, %v5806
  %v5833 = vpack.c.bf16 %v5809, %v5808
  %v5834 = vpack.c.bf16 %v5811, %v5810
  %v5835 = vpack.c.bf16 %v5813, %v5812
  %v5836 = vpack.c.bf16 %v5815, %v5814
  %v5837 = vpack.c.bf16 %v5817, %v5816
  %v5838 = vpack.c.bf16 %v5819, %v5818
  %v5839 = vpack.c.bf16 %v5821, %v5820
  %v5840 = vpack.c.bf16 %v5823, %v5822
  %v5841 = vpack.c.bf16 %v5825, %v5824
  %5858 = vrot.lane.b32.xlu0 %v5826, 96
  %v5859 = vpop.permute.xlu0 %5858
  %5860 = vrot.lane.b32.xlu0 %v5827, 96
  %v5861 = vpop.permute.xlu0 %5860
  %5862 = vrot.lane.b32.xlu0 %v5828, 96
  %v5863 = vpop.permute.xlu0 %5862
  %5864 = vrot.lane.b32.xlu0 %v5829, 96
  %v5865 = vpop.permute.xlu0 %5864
  %5866 = vrot.lane.b32.xlu0 %v5830, 96
  %v5867 = vpop.permute.xlu0 %5866
  %5868 = vrot.lane.b32.xlu0 %v5831, 96
  %v5869 = vpop.permute.xlu0 %5868
  %5870 = vrot.lane.b32.xlu0 %v5832, 96
  %v5871 = vpop.permute.xlu0 %5870
  %5872 = vrot.lane.b32.xlu0 %v5833, 96
  %v5873 = vpop.permute.xlu0 %5872
  %5874 = vrot.lane.b32.xlu0 %v5834, 96
  %v5875 = vpop.permute.xlu0 %5874
  %5876 = vrot.lane.b32.xlu0 %v5835, 96
  %v5877 = vpop.permute.xlu0 %5876
  %5878 = vrot.lane.b32.xlu0 %v5836, 96
  %v5879 = vpop.permute.xlu0 %5878
  %5880 = vrot.lane.b32.xlu0 %v5837, 96
  %v5881 = vpop.permute.xlu0 %5880
  %5882 = vrot.lane.b32.xlu0 %v5838, 96
  %v5883 = vpop.permute.xlu0 %5882
  %5884 = vrot.lane.b32.xlu0 %v5839, 96
  %v5885 = vpop.permute.xlu0 %5884
  %5886 = vrot.lane.b32.xlu0 %v5840, 96
  %v5887 = vpop.permute.xlu0 %5886
  %5888 = vrot.lane.b32.xlu0 %v5841, 96
  %v5889 = vpop.permute.xlu0 %5888
  %5906 = vst.msk [vmem:[#allocation4 + $0x8] sm:$0xff] %vm1243, %v5859
  %5907 = vst.msk [vmem:[#allocation4 + $0x20] sm:$0xff] %vm1243, %v5861
  %5908 = vst.msk [vmem:[#allocation4 + $0x38] sm:$0xff] %vm1243, %v5863
  %5909 = vst.msk [vmem:[#allocation4 + $0x50] sm:$0xff] %vm1243, %v5865
  %5910 = vst.msk [vmem:[#allocation4 + $0x68] sm:$0xff] %vm1243, %v5867
  %5911 = vst.msk [vmem:[#allocation4 + $0x80] sm:$0xff] %vm1243, %v5869
  %5912 = vst.msk [vmem:[#allocation4 + $0x98] sm:$0xff] %vm1243, %v5871
  %5913 = vst.msk [vmem:[#allocation4 + $0xb0] sm:$0xff] %vm1243, %v5873
  %5914 = vst.msk [vmem:[#allocation4 + $0xc8] sm:$0xff] %vm1243, %v5875
  %5915 = vst.msk [vmem:[#allocation4 + $0xe0] sm:$0xff] %vm1243, %v5877
  %5916 = vst.msk [vmem:[#allocation4 + $0xf8] sm:$0xff] %vm1243, %v5879
  %5917 = vst.msk [vmem:[#allocation4 + $0x110] sm:$0xff] %vm1243, %v5881
  %5918 = vst.msk [vmem:[#allocation4 + $0x128] sm:$0xff] %vm1243, %v5883
  %5919 = vst.msk [vmem:[#allocation4 + $0x140] sm:$0xff] %vm1243, %v5885
  %5920 = vst.msk [vmem:[#allocation4 + $0x158] sm:$0xff] %vm1243, %v5887
  %5921 = vst.msk [vmem:[#allocation4 + $0x170] sm:$0xff] %vm1243, %v5889
  %v5922 = vld [vmem:[#allocation3 + $0x29] sm:$0xff]
  %v5923 = vld [vmem:[#allocation3 + $0x31] sm:$0xff]
  %v5924 = vld [vmem:[#allocation3 + $0x39] sm:$0xff]
  %v5925 = vld [vmem:[#allocation3 + $0x41] sm:$0xff]
  %v5926 = vld [vmem:[#allocation3 + $0x49] sm:$0xff]
  %v5927 = vld [vmem:[#allocation3 + $0x51] sm:$0xff]
  %v5928 = vld [vmem:[#allocation3 + $0x59] sm:$0xff]
  %v5929 = vld [vmem:[#allocation3 + $0x61] sm:$0xff]
  %v5930 = vld [vmem:[#allocation3 + $0x69] sm:$0xff]
  %v5931 = vld [vmem:[#allocation3 + $0x71] sm:$0xff]
  %v5932 = vld [vmem:[#allocation3 + $0x79] sm:$0xff]
  %v5933 = vld [vmem:[#allocation3 + $0x81] sm:$0xff]
  %v5934 = vld [vmem:[#allocation3 + $0x89] sm:$0xff]
  %v5935 = vld [vmem:[#allocation3 + $0x91] sm:$0xff]
  %v5936 = vld [vmem:[#allocation3 + $0x99] sm:$0xff]
  %v5937 = vld [vmem:[#allocation3 + $0xa1] sm:$0xff]
  %v5938 = vld [vmem:[#allocation3 + $0xa9] sm:$0xff]
  %v5939 = vld [vmem:[#allocation3 + $0xb1] sm:$0xff]
  %v5940 = vld [vmem:[#allocation3 + $0xb9] sm:$0xff]
  %v5941 = vld [vmem:[#allocation3 + $0xc1] sm:$0xff]
  %v5942 = vld [vmem:[#allocation3 + $0xc9] sm:$0xff]
  %v5943 = vld [vmem:[#allocation3 + $0xd1] sm:$0xff]
  %v5944 = vld [vmem:[#allocation3 + $0xd9] sm:$0xff]
  %v5945 = vld [vmem:[#allocation3 + $0xe1] sm:$0xff]
  %v5946 = vld [vmem:[#allocation3 + $0xe9] sm:$0xff]
  %v5947 = vld [vmem:[#allocation3 + $0xf1] sm:$0xff]
  %v5948 = vld [vmem:[#allocation3 + $0xf9] sm:$0xff]
  %v5949 = vld [vmem:[#allocation3 + $0x101] sm:$0xff]
  %v5950 = vld [vmem:[#allocation3 + $0x109] sm:$0xff]
  %v5951 = vld [vmem:[#allocation3 + $0x111] sm:$0xff]
  %v5952 = vld [vmem:[#allocation3 + $0x119] sm:$0xff]
  %v5953 = vld [vmem:[#allocation3 + $0x121] sm:$0xff]
  %v5954 = vsel %vm938, %v5922, 0.0
  %v5955 = vsel %vm939, %v5923, 0.0
  %v5956 = vsel %vm940, %v5924, 0.0
  %v5957 = vsel %vm941, %v5925, 0.0
  %v5958 = vsel %vm942, %v5926, 0.0
  %v5959 = vsel %vm943, %v5927, 0.0
  %v5960 = vsel %vm944, %v5928, 0.0
  %v5961 = vsel %vm945, %v5929, 0.0
  %v5962 = vsel %vm946, %v5930, 0.0
  %v5963 = vsel %vm947, %v5931, 0.0
  %v5964 = vsel %vm948, %v5932, 0.0
  %v5965 = vsel %vm949, %v5933, 0.0
  %v5966 = vsel %vm950, %v5934, 0.0
  %v5967 = vsel %vm951, %v5935, 0.0
  %v5968 = vsel %vm952, %v5936, 0.0
  %v5969 = vsel %vm953, %v5937, 0.0
  %v5970 = vsel %vm954, %v5938, 0.0
  %v5971 = vsel %vm955, %v5939, 0.0
  %v5972 = vsel %vm956, %v5940, 0.0
  %v5973 = vsel %vm957, %v5941, 0.0
  %v5974 = vsel %vm958, %v5942, 0.0
  %v5975 = vsel %vm959, %v5943, 0.0
  %v5976 = vsel %vm960, %v5944, 0.0
  %v5977 = vsel %vm961, %v5945, 0.0
  %v5978 = vsel %vm962, %v5946, 0.0
  %v5979 = vsel %vm963, %v5947, 0.0
  %v5980 = vsel %vm964, %v5948, 0.0
  %v5981 = vsel %vm965, %v5949, 0.0
  %v5982 = vsel %vm966, %v5950, 0.0
  %v5983 = vsel %vm967, %v5951, 0.0
  %v5984 = vsel %vm968, %v5952, 0.0
  %v5985 = vsel %vm969, %v5953, 0.0
  %v5986 = vpack.c.bf16 %v5955, %v5954
  %v5987 = vpack.c.bf16 %v5957, %v5956
  %v5988 = vpack.c.bf16 %v5959, %v5958
  %v5989 = vpack.c.bf16 %v5961, %v5960
  %v5990 = vpack.c.bf16 %v5963, %v5962
  %v5991 = vpack.c.bf16 %v5965, %v5964
  %v5992 = vpack.c.bf16 %v5967, %v5966
  %v5993 = vpack.c.bf16 %v5969, %v5968
  %v5994 = vpack.c.bf16 %v5971, %v5970
  %v5995 = vpack.c.bf16 %v5973, %v5972
  %v5996 = vpack.c.bf16 %v5975, %v5974
  %v5997 = vpack.c.bf16 %v5977, %v5976
  %v5998 = vpack.c.bf16 %v5979, %v5978
  %v5999 = vpack.c.bf16 %v5981, %v5980
  %v6000 = vpack.c.bf16 %v5983, %v5982
  %v6001 = vpack.c.bf16 %v5985, %v5984
  %6002 = vst.msk [vmem:[#allocation4 + $0x10] sm:$0xff] %vm514, %v5986
  %6003 = vst.msk [vmem:[#allocation4 + $0x28] sm:$0xff] %vm514, %v5987
  %6004 = vst.msk [vmem:[#allocation4 + $0x40] sm:$0xff] %vm514, %v5988
  %6005 = vst.msk [vmem:[#allocation4 + $0x58] sm:$0xff] %vm514, %v5989
  %6006 = vst.msk [vmem:[#allocation4 + $0x70] sm:$0xff] %vm514, %v5990
  %6007 = vst.msk [vmem:[#allocation4 + $0x88] sm:$0xff] %vm514, %v5991
  %6008 = vst.msk [vmem:[#allocation4 + $0xa0] sm:$0xff] %vm514, %v5992
  %6009 = vst.msk [vmem:[#allocation4 + $0xb8] sm:$0xff] %vm514, %v5993
  %6010 = vst.msk [vmem:[#allocation4 + $0xd0] sm:$0xff] %vm514, %v5994
  %6011 = vst.msk [vmem:[#allocation4 + $0xe8] sm:$0xff] %vm514, %v5995
  %6012 = vst.msk [vmem:[#allocation4 + $0x100] sm:$0xff] %vm514, %v5996
  %6013 = vst.msk [vmem:[#allocation4 + $0x118] sm:$0xff] %vm514, %v5997
  %6014 = vst.msk [vmem:[#allocation4 + $0x130] sm:$0xff] %vm514, %v5998
  %6015 = vst.msk [vmem:[#allocation4 + $0x148] sm:$0xff] %vm514, %v5999
  %6016 = vst.msk [vmem:[#allocation4 + $0x160] sm:$0xff] %vm514, %v6000
  %6017 = vst.msk [vmem:[#allocation4 + $0x178] sm:$0xff] %vm514, %v6001
  %v6018 = vld [vmem:[#allocation2 + $0x100] sm:$0xff]
  %v6019 = vld [vmem:[#allocation2 + $0x108] sm:$0xff]
  %v6020 = vld [vmem:[#allocation2 + $0x110] sm:$0xff]
  %v6021 = vld [vmem:[#allocation2 + $0x118] sm:$0xff]
  %v6022 = vld [vmem:[#allocation2 + $0x120] sm:$0xff]
  %v6023 = vld [vmem:[#allocation2 + $0x128] sm:$0xff]
  %v6024 = vld [vmem:[#allocation2 + $0x130] sm:$0xff]
  %v6025 = vld [vmem:[#allocation2 + $0x138] sm:$0xff]
  %v6026 = vld [vmem:[#allocation2 + $0x140] sm:$0xff]
  %v6027 = vld [vmem:[#allocation2 + $0x148] sm:$0xff]
  %v6028 = vld [vmem:[#allocation2 + $0x150] sm:$0xff]
  %v6029 = vld [vmem:[#allocation2 + $0x158] sm:$0xff]
  %v6030 = vld [vmem:[#allocation2 + $0x160] sm:$0xff]
  %v6031 = vld [vmem:[#allocation2 + $0x168] sm:$0xff]
  %v6032 = vld [vmem:[#allocation2 + $0x170] sm:$0xff]
  %v6033 = vld [vmem:[#allocation2 + $0x178] sm:$0xff]
  %v6034 = vld [vmem:[#allocation2 + $0x180] sm:$0xff]
  %v6035 = vld [vmem:[#allocation2 + $0x188] sm:$0xff]
  %v6036 = vld [vmem:[#allocation2 + $0x190] sm:$0xff]
  %v6037 = vld [vmem:[#allocation2 + $0x198] sm:$0xff]
  %v6038 = vld [vmem:[#allocation2 + $0x1a0] sm:$0xff]
  %v6039 = vld [vmem:[#allocation2 + $0x1a8] sm:$0xff]
  %v6040 = vld [vmem:[#allocation2 + $0x1b0] sm:$0xff]
  %v6041 = vld [vmem:[#allocation2 + $0x1b8] sm:$0xff]
  %v6042 = vld [vmem:[#allocation2 + $0x1c0] sm:$0xff]
  %v6043 = vld [vmem:[#allocation2 + $0x1c8] sm:$0xff]
  %v6044 = vld [vmem:[#allocation2 + $0x1d0] sm:$0xff]
  %v6045 = vld [vmem:[#allocation2 + $0x1d8] sm:$0xff]
  %v6046 = vld [vmem:[#allocation2 + $0x1e0] sm:$0xff]
  %v6047 = vld [vmem:[#allocation2 + $0x1e8] sm:$0xff]
  %v6048 = vld [vmem:[#allocation2 + $0x1f0] sm:$0xff]
  %v6049 = vld [vmem:[#allocation2 + $0x1f8] sm:$0xff]
  %6050 = vst.msk [vmem:[#allocation3 + $0x18] sm:$0xff] %vm514, %v6018
  %6051 = vst.msk [vmem:[#allocation3 + $0x20] sm:$0xff] %vm514, %v6019
  %6052 = vst.msk [vmem:[#allocation3 + $0x28] sm:$0xff] %vm514, %v6020
  %6053 = vst.msk [vmem:[#allocation3 + $0x30] sm:$0xff] %vm514, %v6021
  %6054 = vst.msk [vmem:[#allocation3 + $0x38] sm:$0xff] %vm514, %v6022
  %6055 = vst.msk [vmem:[#allocation3 + $0x40] sm:$0xff] %vm514, %v6023
  %6056 = vst.msk [vmem:[#allocation3 + $0x48] sm:$0xff] %vm514, %v6024
  %6057 = vst.msk [vmem:[#allocation3 + $0x50] sm:$0xff] %vm514, %v6025
  %6058 = vst.msk [vmem:[#allocation3 + $0x58] sm:$0xff] %vm514, %v6026
  %6059 = vst.msk [vmem:[#allocation3 + $0x60] sm:$0xff] %vm514, %v6027
  %6060 = vst.msk [vmem:[#allocation3 + $0x68] sm:$0xff] %vm514, %v6028
  %6061 = vst.msk [vmem:[#allocation3 + $0x70] sm:$0xff] %vm514, %v6029
  %6062 = vst.msk [vmem:[#allocation3 + $0x78] sm:$0xff] %vm514, %v6030
  %6063 = vst.msk [vmem:[#allocation3 + $0x80] sm:$0xff] %vm514, %v6031
  %6064 = vst.msk [vmem:[#allocation3 + $0x88] sm:$0xff] %vm514, %v6032
  %6065 = vst.msk [vmem:[#allocation3 + $0x90] sm:$0xff] %vm514, %v6033
  %6066 = vst.msk [vmem:[#allocation3 + $0x98] sm:$0xff] %vm514, %v6034
  %6067 = vst.msk [vmem:[#allocation3 + $0xa0] sm:$0xff] %vm514, %v6035
  %6068 = vst.msk [vmem:[#allocation3 + $0xa8] sm:$0xff] %vm514, %v6036
  %6069 = vst.msk [vmem:[#allocation3 + $0xb0] sm:$0xff] %vm514, %v6037
  %6070 = vst.msk [vmem:[#allocation3 + $0xb8] sm:$0xff] %vm514, %v6038
  %6071 = vst.msk [vmem:[#allocation3 + $0xc0] sm:$0xff] %vm514, %v6039
  %6072 = vst.msk [vmem:[#allocation3 + $0xc8] sm:$0xff] %vm514, %v6040
  %6073 = vst.msk [vmem:[#allocation3 + $0xd0] sm:$0xff] %vm514, %v6041
  %6074 = vst.msk [vmem:[#allocation3 + $0xd8] sm:$0xff] %vm514, %v6042
  %6075 = vst.msk [vmem:[#allocation3 + $0xe0] sm:$0xff] %vm514, %v6043
  %6076 = vst.msk [vmem:[#allocation3 + $0xe8] sm:$0xff] %vm514, %v6044
  %6077 = vst.msk [vmem:[#allocation3 + $0xf0] sm:$0xff] %vm514, %v6045
  %6078 = vst.msk [vmem:[#allocation3 + $0xf8] sm:$0xff] %vm514, %v6046
  %6079 = vst.msk [vmem:[#allocation3 + $0x100] sm:$0xff] %vm514, %v6047
  %6080 = vst.msk [vmem:[#allocation3 + $0x108] sm:$0xff] %vm514, %v6048
  %6081 = vst.msk [vmem:[#allocation3 + $0x110] sm:$0xff] %vm514, %v6049
  %v6082 = vld [vmem:[#allocation3 + $0x7] sm:$0xff]
  %v6083 = vld [vmem:[#allocation3 + $0xf] sm:$0xff]
  %v6084 = vld [vmem:[#allocation3 + $0x17] sm:$0xff]
  %v6085 = vld [vmem:[#allocation3 + $0x1f] sm:$0xff]
  %v6086 = vld [vmem:[#allocation3 + $0x27] sm:$0xff]
  %v6087 = vld [vmem:[#allocation3 + $0x2f] sm:$0xff]
  %v6088 = vld [vmem:[#allocation3 + $0x37] sm:$0xff]
  %v6089 = vld [vmem:[#allocation3 + $0x3f] sm:$0xff]
  %v6090 = vld [vmem:[#allocation3 + $0x47] sm:$0xff]
  %v6091 = vld [vmem:[#allocation3 + $0x4f] sm:$0xff]
  %v6092 = vld [vmem:[#allocation3 + $0x57] sm:$0xff]
  %v6093 = vld [vmem:[#allocation3 + $0x5f] sm:$0xff]
  %v6094 = vld [vmem:[#allocation3 + $0x67] sm:$0xff]
  %v6095 = vld [vmem:[#allocation3 + $0x6f] sm:$0xff]
  %v6096 = vld [vmem:[#allocation3 + $0x77] sm:$0xff]
  %v6097 = vld [vmem:[#allocation3 + $0x7f] sm:$0xff]
  %v6098 = vld [vmem:[#allocation3 + $0x87] sm:$0xff]
  %v6099 = vld [vmem:[#allocation3 + $0x8f] sm:$0xff]
  %v6100 = vld [vmem:[#allocation3 + $0x97] sm:$0xff]
  %v6101 = vld [vmem:[#allocation3 + $0x9f] sm:$0xff]
  %v6102 = vld [vmem:[#allocation3 + $0xa7] sm:$0xff]
  %v6103 = vld [vmem:[#allocation3 + $0xaf] sm:$0xff]
  %v6104 = vld [vmem:[#allocation3 + $0xb7] sm:$0xff]
  %v6105 = vld [vmem:[#allocation3 + $0xbf] sm:$0xff]
  %v6106 = vld [vmem:[#allocation3 + $0xc7] sm:$0xff]
  %v6107 = vld [vmem:[#allocation3 + $0xcf] sm:$0xff]
  %v6108 = vld [vmem:[#allocation3 + $0xd7] sm:$0xff]
  %v6109 = vld [vmem:[#allocation3 + $0xdf] sm:$0xff]
  %v6110 = vld [vmem:[#allocation3 + $0xe7] sm:$0xff]
  %v6111 = vld [vmem:[#allocation3 + $0xef] sm:$0xff]
  %v6112 = vld [vmem:[#allocation3 + $0xf7] sm:$0xff]
  %v6113 = vld [vmem:[#allocation3 + $0xff] sm:$0xff]
  %v6114 = vsel %vm649, %v6082, 0.0
  %v6115 = vsel %vm650, %v6083, 0.0
  %v6116 = vsel %vm651, %v6084, 0.0
  %v6117 = vsel %vm652, %v6085, 0.0
  %v6118 = vsel %vm653, %v6086, 0.0
  %v6119 = vsel %vm654, %v6087, 0.0
  %v6120 = vsel %vm655, %v6088, 0.0
  %v6121 = vsel %vm656, %v6089, 0.0
  %v6122 = vsel %vm657, %v6090, 0.0
  %v6123 = vsel %vm658, %v6091, 0.0
  %v6124 = vsel %vm659, %v6092, 0.0
  %v6125 = vsel %vm660, %v6093, 0.0
  %v6126 = vsel %vm661, %v6094, 0.0
  %v6127 = vsel %vm662, %v6095, 0.0
  %v6128 = vsel %vm663, %v6096, 0.0
  %v6129 = vsel %vm664, %v6097, 0.0
  %v6130 = vsel %vm665, %v6098, 0.0
  %v6131 = vsel %vm666, %v6099, 0.0
  %v6132 = vsel %vm667, %v6100, 0.0
  %v6133 = vsel %vm668, %v6101, 0.0
  %v6134 = vsel %vm669, %v6102, 0.0
  %v6135 = vsel %vm670, %v6103, 0.0
  %v6136 = vsel %vm671, %v6104, 0.0
  %v6137 = vsel %vm672, %v6105, 0.0
  %v6138 = vsel %vm673, %v6106, 0.0
  %v6139 = vsel %vm674, %v6107, 0.0
  %v6140 = vsel %vm675, %v6108, 0.0
  %v6141 = vsel %vm676, %v6109, 0.0
  %v6142 = vsel %vm677, %v6110, 0.0
  %v6143 = vsel %vm678, %v6111, 0.0
  %v6144 = vsel %vm679, %v6112, 0.0
  %v6145 = vsel %vm680, %v6113, 0.0
  %v6146 = vpack.c.bf16 %v6115, %v6114
  %v6147 = vpack.c.bf16 %v6117, %v6116
  %v6148 = vpack.c.bf16 %v6119, %v6118
  %v6149 = vpack.c.bf16 %v6121, %v6120
  %v6150 = vpack.c.bf16 %v6123, %v6122
  %v6151 = vpack.c.bf16 %v6125, %v6124
  %v6152 = vpack.c.bf16 %v6127, %v6126
  %v6153 = vpack.c.bf16 %v6129, %v6128
  %v6154 = vpack.c.bf16 %v6131, %v6130
  %v6155 = vpack.c.bf16 %v6133, %v6132
  %v6156 = vpack.c.bf16 %v6135, %v6134
  %v6157 = vpack.c.bf16 %v6137, %v6136
  %v6158 = vpack.c.bf16 %v6139, %v6138
  %v6159 = vpack.c.bf16 %v6141, %v6140
  %v6160 = vpack.c.bf16 %v6143, %v6142
  %v6161 = vpack.c.bf16 %v6145, %v6144
  %6162 = vst.msk [vmem:[#allocation4 + $0x180] sm:$0xff] %vm514, %v6146
  %6163 = vst.msk [vmem:[#allocation4 + $0x198] sm:$0xff] %vm514, %v6147
  %6164 = vst.msk [vmem:[#allocation4 + $0x1b0] sm:$0xff] %vm514, %v6148
  %6165 = vst.msk [vmem:[#allocation4 + $0x1c8] sm:$0xff] %vm514, %v6149
  %6166 = vst.msk [vmem:[#allocation4 + $0x1e0] sm:$0xff] %vm514, %v6150
  %6167 = vst.msk [vmem:[#allocation4 + $0x1f8] sm:$0xff] %vm514, %v6151
  %6168 = vst.msk [vmem:[#allocation4 + $0x210] sm:$0xff] %vm514, %v6152
  %6169 = vst.msk [vmem:[#allocation4 + $0x228] sm:$0xff] %vm514, %v6153
  %6170 = vst.msk [vmem:[#allocation4 + $0x240] sm:$0xff] %vm514, %v6154
  %6171 = vst.msk [vmem:[#allocation4 + $0x258] sm:$0xff] %vm514, %v6155
  %6172 = vst.msk [vmem:[#allocation4 + $0x270] sm:$0xff] %vm514, %v6156
  %6173 = vst.msk [vmem:[#allocation4 + $0x288] sm:$0xff] %vm514, %v6157
  %6174 = vst.msk [vmem:[#allocation4 + $0x2a0] sm:$0xff] %vm514, %v6158
  %6175 = vst.msk [vmem:[#allocation4 + $0x2b8] sm:$0xff] %vm514, %v6159
  %6176 = vst.msk [vmem:[#allocation4 + $0x2d0] sm:$0xff] %vm514, %v6160
  %6177 = vst.msk [vmem:[#allocation4 + $0x2e8] sm:$0xff] %vm514, %v6161
  %v6178 = vld [vmem:[#allocation3 + $0x8] sm:$0xff]
  %v6179 = vld [vmem:[#allocation3 + $0x10] sm:$0xff]
  %v6180 = vld [vmem:[#allocation3 + $0x18] sm:$0xff]
  %v6181 = vld [vmem:[#allocation3 + $0x20] sm:$0xff]
  %v6182 = vld [vmem:[#allocation3 + $0x28] sm:$0xff]
  %v6183 = vld [vmem:[#allocation3 + $0x30] sm:$0xff]
  %v6184 = vld [vmem:[#allocation3 + $0x38] sm:$0xff]
  %v6185 = vld [vmem:[#allocation3 + $0x40] sm:$0xff]
  %v6186 = vld [vmem:[#allocation3 + $0x48] sm:$0xff]
  %v6187 = vld [vmem:[#allocation3 + $0x50] sm:$0xff]
  %v6188 = vld [vmem:[#allocation3 + $0x58] sm:$0xff]
  %v6189 = vld [vmem:[#allocation3 + $0x60] sm:$0xff]
  %v6190 = vld [vmem:[#allocation3 + $0x68] sm:$0xff]
  %v6191 = vld [vmem:[#allocation3 + $0x70] sm:$0xff]
  %v6192 = vld [vmem:[#allocation3 + $0x78] sm:$0xff]
  %v6193 = vld [vmem:[#allocation3 + $0x80] sm:$0xff]
  %v6194 = vld [vmem:[#allocation3 + $0x88] sm:$0xff]
  %v6195 = vld [vmem:[#allocation3 + $0x90] sm:$0xff]
  %v6196 = vld [vmem:[#allocation3 + $0x98] sm:$0xff]
  %v6197 = vld [vmem:[#allocation3 + $0xa0] sm:$0xff]
  %v6198 = vld [vmem:[#allocation3 + $0xa8] sm:$0xff]
  %v6199 = vld [vmem:[#allocation3 + $0xb0] sm:$0xff]
  %v6200 = vld [vmem:[#allocation3 + $0xb8] sm:$0xff]
  %v6201 = vld [vmem:[#allocation3 + $0xc0] sm:$0xff]
  %v6202 = vld [vmem:[#allocation3 + $0xc8] sm:$0xff]
  %v6203 = vld [vmem:[#allocation3 + $0xd0] sm:$0xff]
  %v6204 = vld [vmem:[#allocation3 + $0xd8] sm:$0xff]
  %v6205 = vld [vmem:[#allocation3 + $0xe0] sm:$0xff]
  %v6206 = vld [vmem:[#allocation3 + $0xe8] sm:$0xff]
  %v6207 = vld [vmem:[#allocation3 + $0xf0] sm:$0xff]
  %v6208 = vld [vmem:[#allocation3 + $0xf8] sm:$0xff]
  %v6209 = vld [vmem:[#allocation3 + $0x100] sm:$0xff]
  %v6210 = vpack.c.bf16 %v6179, %v6178
  %v6211 = vpack.c.bf16 %v6181, %v6180
  %v6212 = vpack.c.bf16 %v6183, %v6182
  %v6213 = vpack.c.bf16 %v6185, %v6184
  %v6214 = vpack.c.bf16 %v6187, %v6186
  %v6215 = vpack.c.bf16 %v6189, %v6188
  %v6216 = vpack.c.bf16 %v6191, %v6190
  %v6217 = vpack.c.bf16 %v6193, %v6192
  %v6218 = vpack.c.bf16 %v6195, %v6194
  %v6219 = vpack.c.bf16 %v6197, %v6196
  %v6220 = vpack.c.bf16 %v6199, %v6198
  %v6221 = vpack.c.bf16 %v6201, %v6200
  %v6222 = vpack.c.bf16 %v6203, %v6202
  %v6223 = vpack.c.bf16 %v6205, %v6204
  %v6224 = vpack.c.bf16 %v6207, %v6206
  %v6225 = vpack.c.bf16 %v6209, %v6208
  %6242 = vrot.lane.b32.xlu0 %v6210, 32
  %v6243 = vpop.permute.xlu0 %6242
  %6244 = vrot.lane.b32.xlu0 %v6211, 32
  %v6245 = vpop.permute.xlu0 %6244
  %6246 = vrot.lane.b32.xlu0 %v6212, 32
  %v6247 = vpop.permute.xlu0 %6246
  %6248 = vrot.lane.b32.xlu0 %v6213, 32
  %v6249 = vpop.permute.xlu0 %6248
  %6250 = vrot.lane.b32.xlu0 %v6214, 32
  %v6251 = vpop.permute.xlu0 %6250
  %6252 = vrot.lane.b32.xlu0 %v6215, 32
  %v6253 = vpop.permute.xlu0 %6252
  %6254 = vrot.lane.b32.xlu0 %v6216, 32
  %v6255 = vpop.permute.xlu0 %6254
  %6256 = vrot.lane.b32.xlu0 %v6217, 32
  %v6257 = vpop.permute.xlu0 %6256
  %6258 = vrot.lane.b32.xlu0 %v6218, 32
  %v6259 = vpop.permute.xlu0 %6258
  %6260 = vrot.lane.b32.xlu0 %v6219, 32
  %v6261 = vpop.permute.xlu0 %6260
  %6262 = vrot.lane.b32.xlu0 %v6220, 32
  %v6263 = vpop.permute.xlu0 %6262
  %6264 = vrot.lane.b32.xlu0 %v6221, 32
  %v6265 = vpop.permute.xlu0 %6264
  %6266 = vrot.lane.b32.xlu0 %v6222, 32
  %v6267 = vpop.permute.xlu0 %6266
  %6268 = vrot.lane.b32.xlu0 %v6223, 32
  %v6269 = vpop.permute.xlu0 %6268
  %6270 = vrot.lane.b32.xlu0 %v6224, 32
  %v6271 = vpop.permute.xlu0 %6270
  %6272 = vrot.lane.b32.xlu0 %v6225, 32
  %v6273 = vpop.permute.xlu0 %6272
  %6290 = vst.msk [vmem:[#allocation4 + $0x180] sm:$0xff] %vm857, %v6243
  %6291 = vst.msk [vmem:[#allocation4 + $0x198] sm:$0xff] %vm857, %v6245
  %6292 = vst.msk [vmem:[#allocation4 + $0x1b0] sm:$0xff] %vm857, %v6247
  %6293 = vst.msk [vmem:[#allocation4 + $0x1c8] sm:$0xff] %vm857, %v6249
  %6294 = vst.msk [vmem:[#allocation4 + $0x1e0] sm:$0xff] %vm857, %v6251
  %6295 = vst.msk [vmem:[#allocation4 + $0x1f8] sm:$0xff] %vm857, %v6253
  %6296 = vst.msk [vmem:[#allocation4 + $0x210] sm:$0xff] %vm857, %v6255
  %6297 = vst.msk [vmem:[#allocation4 + $0x228] sm:$0xff] %vm857, %v6257
  %6298 = vst.msk [vmem:[#allocation4 + $0x240] sm:$0xff] %vm857, %v6259
  %6299 = vst.msk [vmem:[#allocation4 + $0x258] sm:$0xff] %vm857, %v6261
  %6300 = vst.msk [vmem:[#allocation4 + $0x270] sm:$0xff] %vm857, %v6263
  %6301 = vst.msk [vmem:[#allocation4 + $0x288] sm:$0xff] %vm857, %v6265
  %6302 = vst.msk [vmem:[#allocation4 + $0x2a0] sm:$0xff] %vm857, %v6267
  %6303 = vst.msk [vmem:[#allocation4 + $0x2b8] sm:$0xff] %vm857, %v6269
  %6304 = vst.msk [vmem:[#allocation4 + $0x2d0] sm:$0xff] %vm857, %v6271
  %6305 = vst.msk [vmem:[#allocation4 + $0x2e8] sm:$0xff] %vm857, %v6273
  %v6306 = vld [vmem:[#allocation3 + $0x9] sm:$0xff]
  %v6307 = vld [vmem:[#allocation3 + $0x11] sm:$0xff]
  %v6308 = vld [vmem:[#allocation3 + $0x19] sm:$0xff]
  %v6309 = vld [vmem:[#allocation3 + $0x21] sm:$0xff]
  %v6310 = vld [vmem:[#allocation3 + $0x29] sm:$0xff]
  %v6311 = vld [vmem:[#allocation3 + $0x31] sm:$0xff]
  %v6312 = vld [vmem:[#allocation3 + $0x39] sm:$0xff]
  %v6313 = vld [vmem:[#allocation3 + $0x41] sm:$0xff]
  %v6314 = vld [vmem:[#allocation3 + $0x49] sm:$0xff]
  %v6315 = vld [vmem:[#allocation3 + $0x51] sm:$0xff]
  %v6316 = vld [vmem:[#allocation3 + $0x59] sm:$0xff]
  %v6317 = vld [vmem:[#allocation3 + $0x61] sm:$0xff]
  %v6318 = vld [vmem:[#allocation3 + $0x69] sm:$0xff]
  %v6319 = vld [vmem:[#allocation3 + $0x71] sm:$0xff]
  %v6320 = vld [vmem:[#allocation3 + $0x79] sm:$0xff]
  %v6321 = vld [vmem:[#allocation3 + $0x81] sm:$0xff]
  %v6322 = vld [vmem:[#allocation3 + $0x89] sm:$0xff]
  %v6323 = vld [vmem:[#allocation3 + $0x91] sm:$0xff]
  %v6324 = vld [vmem:[#allocation3 + $0x99] sm:$0xff]
  %v6325 = vld [vmem:[#allocation3 + $0xa1] sm:$0xff]
  %v6326 = vld [vmem:[#allocation3 + $0xa9] sm:$0xff]
  %v6327 = vld [vmem:[#allocation3 + $0xb1] sm:$0xff]
  %v6328 = vld [vmem:[#allocation3 + $0xb9] sm:$0xff]
  %v6329 = vld [vmem:[#allocation3 + $0xc1] sm:$0xff]
  %v6330 = vld [vmem:[#allocation3 + $0xc9] sm:$0xff]
  %v6331 = vld [vmem:[#allocation3 + $0xd1] sm:$0xff]
  %v6332 = vld [vmem:[#allocation3 + $0xd9] sm:$0xff]
  %v6333 = vld [vmem:[#allocation3 + $0xe1] sm:$0xff]
  %v6334 = vld [vmem:[#allocation3 + $0xe9] sm:$0xff]
  %v6335 = vld [vmem:[#allocation3 + $0xf1] sm:$0xff]
  %v6336 = vld [vmem:[#allocation3 + $0xf9] sm:$0xff]
  %v6337 = vld [vmem:[#allocation3 + $0x101] sm:$0xff]
  %v6338 = vsel %vm938, %v6306, 0.0
  %v6339 = vsel %vm939, %v6307, 0.0
  %v6340 = vsel %vm940, %v6308, 0.0
  %v6341 = vsel %vm941, %v6309, 0.0
  %v6342 = vsel %vm942, %v6310, 0.0
  %v6343 = vsel %vm943, %v6311, 0.0
  %v6344 = vsel %vm944, %v6312, 0.0
  %v6345 = vsel %vm945, %v6313, 0.0
  %v6346 = vsel %vm946, %v6314, 0.0
  %v6347 = vsel %vm947, %v6315, 0.0
  %v6348 = vsel %vm948, %v6316, 0.0
  %v6349 = vsel %vm949, %v6317, 0.0
  %v6350 = vsel %vm950, %v6318, 0.0
  %v6351 = vsel %vm951, %v6319, 0.0
  %v6352 = vsel %vm952, %v6320, 0.0
  %v6353 = vsel %vm953, %v6321, 0.0
  %v6354 = vsel %vm954, %v6322, 0.0
  %v6355 = vsel %vm955, %v6323, 0.0
  %v6356 = vsel %vm956, %v6324, 0.0
  %v6357 = vsel %vm957, %v6325, 0.0
  %v6358 = vsel %vm958, %v6326, 0.0
  %v6359 = vsel %vm959, %v6327, 0.0
  %v6360 = vsel %vm960, %v6328, 0.0
  %v6361 = vsel %vm961, %v6329, 0.0
  %v6362 = vsel %vm962, %v6330, 0.0
  %v6363 = vsel %vm963, %v6331, 0.0
  %v6364 = vsel %vm964, %v6332, 0.0
  %v6365 = vsel %vm965, %v6333, 0.0
  %v6366 = vsel %vm966, %v6334, 0.0
  %v6367 = vsel %vm967, %v6335, 0.0
  %v6368 = vsel %vm968, %v6336, 0.0
  %v6369 = vsel %vm969, %v6337, 0.0
  %v6370 = vpack.c.bf16 %v6339, %v6338
  %v6371 = vpack.c.bf16 %v6341, %v6340
  %v6372 = vpack.c.bf16 %v6343, %v6342
  %v6373 = vpack.c.bf16 %v6345, %v6344
  %v6374 = vpack.c.bf16 %v6347, %v6346
  %v6375 = vpack.c.bf16 %v6349, %v6348
  %v6376 = vpack.c.bf16 %v6351, %v6350
  %v6377 = vpack.c.bf16 %v6353, %v6352
  %v6378 = vpack.c.bf16 %v6355, %v6354
  %v6379 = vpack.c.bf16 %v6357, %v6356
  %v6380 = vpack.c.bf16 %v6359, %v6358
  %v6381 = vpack.c.bf16 %v6361, %v6360
  %v6382 = vpack.c.bf16 %v6363, %v6362
  %v6383 = vpack.c.bf16 %v6365, %v6364
  %v6384 = vpack.c.bf16 %v6367, %v6366
  %v6385 = vpack.c.bf16 %v6369, %v6368
  %6402 = vrot.lane.b32.xlu0 %v6370, 64
  %v6403 = vpop.permute.xlu0 %6402
  %6404 = vrot.lane.b32.xlu0 %v6371, 64
  %v6405 = vpop.permute.xlu0 %6404
  %6406 = vrot.lane.b32.xlu0 %v6372, 64
  %v6407 = vpop.permute.xlu0 %6406
  %6408 = vrot.lane.b32.xlu0 %v6373, 64
  %v6409 = vpop.permute.xlu0 %6408
  %6410 = vrot.lane.b32.xlu0 %v6374, 64
  %v6411 = vpop.permute.xlu0 %6410
  %6412 = vrot.lane.b32.xlu0 %v6375, 64
  %v6413 = vpop.permute.xlu0 %6412
  %6414 = vrot.lane.b32.xlu0 %v6376, 64
  %v6415 = vpop.permute.xlu0 %6414
  %6416 = vrot.lane.b32.xlu0 %v6377, 64
  %v6417 = vpop.permute.xlu0 %6416
  %6418 = vrot.lane.b32.xlu0 %v6378, 64
  %v6419 = vpop.permute.xlu0 %6418
  %6420 = vrot.lane.b32.xlu0 %v6379, 64
  %v6421 = vpop.permute.xlu0 %6420
  %6422 = vrot.lane.b32.xlu0 %v6380, 64
  %v6423 = vpop.permute.xlu0 %6422
  %6424 = vrot.lane.b32.xlu0 %v6381, 64
  %v6425 = vpop.permute.xlu0 %6424
  %6426 = vrot.lane.b32.xlu0 %v6382, 64
  %v6427 = vpop.permute.xlu0 %6426
  %6428 = vrot.lane.b32.xlu0 %v6383, 64
  %v6429 = vpop.permute.xlu0 %6428
  %6430 = vrot.lane.b32.xlu0 %v6384, 64
  %v6431 = vpop.permute.xlu0 %6430
  %6432 = vrot.lane.b32.xlu0 %v6385, 64
  %v6433 = vpop.permute.xlu0 %6432
  %6450 = vst.msk [vmem:[#allocation4 + $0x180] sm:$0xff] %vm1082, %v6403
  %6451 = vst.msk [vmem:[#allocation4 + $0x198] sm:$0xff] %vm1082, %v6405
  %6452 = vst.msk [vmem:[#allocation4 + $0x1b0] sm:$0xff] %vm1082, %v6407
  %6453 = vst.msk [vmem:[#allocation4 + $0x1c8] sm:$0xff] %vm1082, %v6409
  %6454 = vst.msk [vmem:[#allocation4 + $0x1e0] sm:$0xff] %vm1082, %v6411
  %6455 = vst.msk [vmem:[#allocation4 + $0x1f8] sm:$0xff] %vm1082, %v6413
  %6456 = vst.msk [vmem:[#allocation4 + $0x210] sm:$0xff] %vm1082, %v6415
  %6457 = vst.msk [vmem:[#allocation4 + $0x228] sm:$0xff] %vm1082, %v6417
  %6458 = vst.msk [vmem:[#allocation4 + $0x240] sm:$0xff] %vm1082, %v6419
  %6459 = vst.msk [vmem:[#allocation4 + $0x258] sm:$0xff] %vm1082, %v6421
  %6460 = vst.msk [vmem:[#allocation4 + $0x270] sm:$0xff] %vm1082, %v6423
  %6461 = vst.msk [vmem:[#allocation4 + $0x288] sm:$0xff] %vm1082, %v6425
  %6462 = vst.msk [vmem:[#allocation4 + $0x2a0] sm:$0xff] %vm1082, %v6427
  %6463 = vst.msk [vmem:[#allocation4 + $0x2b8] sm:$0xff] %vm1082, %v6429
  %6464 = vst.msk [vmem:[#allocation4 + $0x2d0] sm:$0xff] %vm1082, %v6431
  %6465 = vst.msk [vmem:[#allocation4 + $0x2e8] sm:$0xff] %vm1082, %v6433
  %v6466 = vld [vmem:[#allocation3 + $0x17] sm:$0xff]
  %v6467 = vld [vmem:[#allocation3 + $0x1f] sm:$0xff]
  %v6468 = vld [vmem:[#allocation3 + $0x27] sm:$0xff]
  %v6469 = vld [vmem:[#allocation3 + $0x2f] sm:$0xff]
  %v6470 = vld [vmem:[#allocation3 + $0x37] sm:$0xff]
  %v6471 = vld [vmem:[#allocation3 + $0x3f] sm:$0xff]
  %v6472 = vld [vmem:[#allocation3 + $0x47] sm:$0xff]
  %v6473 = vld [vmem:[#allocation3 + $0x4f] sm:$0xff]
  %v6474 = vld [vmem:[#allocation3 + $0x57] sm:$0xff]
  %v6475 = vld [vmem:[#allocation3 + $0x5f] sm:$0xff]
  %v6476 = vld [vmem:[#allocation3 + $0x67] sm:$0xff]
  %v6477 = vld [vmem:[#allocation3 + $0x6f] sm:$0xff]
  %v6478 = vld [vmem:[#allocation3 + $0x77] sm:$0xff]
  %v6479 = vld [vmem:[#allocation3 + $0x7f] sm:$0xff]
  %v6480 = vld [vmem:[#allocation3 + $0x87] sm:$0xff]
  %v6481 = vld [vmem:[#allocation3 + $0x8f] sm:$0xff]
  %v6482 = vld [vmem:[#allocation3 + $0x97] sm:$0xff]
  %v6483 = vld [vmem:[#allocation3 + $0x9f] sm:$0xff]
  %v6484 = vld [vmem:[#allocation3 + $0xa7] sm:$0xff]
  %v6485 = vld [vmem:[#allocation3 + $0xaf] sm:$0xff]
  %v6486 = vld [vmem:[#allocation3 + $0xb7] sm:$0xff]
  %v6487 = vld [vmem:[#allocation3 + $0xbf] sm:$0xff]
  %v6488 = vld [vmem:[#allocation3 + $0xc7] sm:$0xff]
  %v6489 = vld [vmem:[#allocation3 + $0xcf] sm:$0xff]
  %v6490 = vld [vmem:[#allocation3 + $0xd7] sm:$0xff]
  %v6491 = vld [vmem:[#allocation3 + $0xdf] sm:$0xff]
  %v6492 = vld [vmem:[#allocation3 + $0xe7] sm:$0xff]
  %v6493 = vld [vmem:[#allocation3 + $0xef] sm:$0xff]
  %v6494 = vld [vmem:[#allocation3 + $0xf7] sm:$0xff]
  %v6495 = vld [vmem:[#allocation3 + $0xff] sm:$0xff]
  %v6496 = vld [vmem:[#allocation3 + $0x107] sm:$0xff]
  %v6497 = vld [vmem:[#allocation3 + $0x10f] sm:$0xff]
  %v6498 = vsel %vm649, %v6466, 0.0
  %v6499 = vsel %vm650, %v6467, 0.0
  %v6500 = vsel %vm651, %v6468, 0.0
  %v6501 = vsel %vm652, %v6469, 0.0
  %v6502 = vsel %vm653, %v6470, 0.0
  %v6503 = vsel %vm654, %v6471, 0.0
  %v6504 = vsel %vm655, %v6472, 0.0
  %v6505 = vsel %vm656, %v6473, 0.0
  %v6506 = vsel %vm657, %v6474, 0.0
  %v6507 = vsel %vm658, %v6475, 0.0
  %v6508 = vsel %vm659, %v6476, 0.0
  %v6509 = vsel %vm660, %v6477, 0.0
  %v6510 = vsel %vm661, %v6478, 0.0
  %v6511 = vsel %vm662, %v6479, 0.0
  %v6512 = vsel %vm663, %v6480, 0.0
  %v6513 = vsel %vm664, %v6481, 0.0
  %v6514 = vsel %vm665, %v6482, 0.0
  %v6515 = vsel %vm666, %v6483, 0.0
  %v6516 = vsel %vm667, %v6484, 0.0
  %v6517 = vsel %vm668, %v6485, 0.0
  %v6518 = vsel %vm669, %v6486, 0.0
  %v6519 = vsel %vm670, %v6487, 0.0
  %v6520 = vsel %vm671, %v6488, 0.0
  %v6521 = vsel %vm672, %v6489, 0.0
  %v6522 = vsel %vm673, %v6490, 0.0
  %v6523 = vsel %vm674, %v6491, 0.0
  %v6524 = vsel %vm675, %v6492, 0.0
  %v6525 = vsel %vm676, %v6493, 0.0
  %v6526 = vsel %vm677, %v6494, 0.0
  %v6527 = vsel %vm678, %v6495, 0.0
  %v6528 = vsel %vm679, %v6496, 0.0
  %v6529 = vsel %vm680, %v6497, 0.0
  %v6530 = vpack.c.bf16 %v6499, %v6498
  %v6531 = vpack.c.bf16 %v6501, %v6500
  %v6532 = vpack.c.bf16 %v6503, %v6502
  %v6533 = vpack.c.bf16 %v6505, %v6504
  %v6534 = vpack.c.bf16 %v6507, %v6506
  %v6535 = vpack.c.bf16 %v6509, %v6508
  %v6536 = vpack.c.bf16 %v6511, %v6510
  %v6537 = vpack.c.bf16 %v6513, %v6512
  %v6538 = vpack.c.bf16 %v6515, %v6514
  %v6539 = vpack.c.bf16 %v6517, %v6516
  %v6540 = vpack.c.bf16 %v6519, %v6518
  %v6541 = vpack.c.bf16 %v6521, %v6520
  %v6542 = vpack.c.bf16 %v6523, %v6522
  %v6543 = vpack.c.bf16 %v6525, %v6524
  %v6544 = vpack.c.bf16 %v6527, %v6526
  %v6545 = vpack.c.bf16 %v6529, %v6528
  %6562 = vrot.lane.b32.xlu0 %v6530, 96
  %v6563 = vpop.permute.xlu0 %6562
  %6564 = vrot.lane.b32.xlu0 %v6531, 96
  %v6565 = vpop.permute.xlu0 %6564
  %6566 = vrot.lane.b32.xlu0 %v6532, 96
  %v6567 = vpop.permute.xlu0 %6566
  %6568 = vrot.lane.b32.xlu0 %v6533, 96
  %v6569 = vpop.permute.xlu0 %6568
  %6570 = vrot.lane.b32.xlu0 %v6534, 96
  %v6571 = vpop.permute.xlu0 %6570
  %6572 = vrot.lane.b32.xlu0 %v6535, 96
  %v6573 = vpop.permute.xlu0 %6572
  %6574 = vrot.lane.b32.xlu0 %v6536, 96
  %v6575 = vpop.permute.xlu0 %6574
  %6576 = vrot.lane.b32.xlu0 %v6537, 96
  %v6577 = vpop.permute.xlu0 %6576
  %6578 = vrot.lane.b32.xlu0 %v6538, 96
  %v6579 = vpop.permute.xlu0 %6578
  %6580 = vrot.lane.b32.xlu0 %v6539, 96
  %v6581 = vpop.permute.xlu0 %6580
  %6582 = vrot.lane.b32.xlu0 %v6540, 96
  %v6583 = vpop.permute.xlu0 %6582
  %6584 = vrot.lane.b32.xlu0 %v6541, 96
  %v6585 = vpop.permute.xlu0 %6584
  %6586 = vrot.lane.b32.xlu0 %v6542, 96
  %v6587 = vpop.permute.xlu0 %6586
  %6588 = vrot.lane.b32.xlu0 %v6543, 96
  %v6589 = vpop.permute.xlu0 %6588
  %6590 = vrot.lane.b32.xlu0 %v6544, 96
  %v6591 = vpop.permute.xlu0 %6590
  %6592 = vrot.lane.b32.xlu0 %v6545, 96
  %v6593 = vpop.permute.xlu0 %6592
  %6610 = vst.msk [vmem:[#allocation4 + $0x180] sm:$0xff] %vm1243, %v6563
  %6611 = vst.msk [vmem:[#allocation4 + $0x198] sm:$0xff] %vm1243, %v6565
  %6612 = vst.msk [vmem:[#allocation4 + $0x1b0] sm:$0xff] %vm1243, %v6567
  %6613 = vst.msk [vmem:[#allocation4 + $0x1c8] sm:$0xff] %vm1243, %v6569
  %6614 = vst.msk [vmem:[#allocation4 + $0x1e0] sm:$0xff] %vm1243, %v6571
  %6615 = vst.msk [vmem:[#allocation4 + $0x1f8] sm:$0xff] %vm1243, %v6573
  %6616 = vst.msk [vmem:[#allocation4 + $0x210] sm:$0xff] %vm1243, %v6575
  %6617 = vst.msk [vmem:[#allocation4 + $0x228] sm:$0xff] %vm1243, %v6577
  %6618 = vst.msk [vmem:[#allocation4 + $0x240] sm:$0xff] %vm1243, %v6579
  %6619 = vst.msk [vmem:[#allocation4 + $0x258] sm:$0xff] %vm1243, %v6581
  %6620 = vst.msk [vmem:[#allocation4 + $0x270] sm:$0xff] %vm1243, %v6583
  %6621 = vst.msk [vmem:[#allocation4 + $0x288] sm:$0xff] %vm1243, %v6585
  %6622 = vst.msk [vmem:[#allocation4 + $0x2a0] sm:$0xff] %vm1243, %v6587
  %6623 = vst.msk [vmem:[#allocation4 + $0x2b8] sm:$0xff] %vm1243, %v6589
  %6624 = vst.msk [vmem:[#allocation4 + $0x2d0] sm:$0xff] %vm1243, %v6591
  %6625 = vst.msk [vmem:[#allocation4 + $0x2e8] sm:$0xff] %vm1243, %v6593
  %v6626 = vld [vmem:[#allocation3 + $0x18] sm:$0xff]
  %v6627 = vld [vmem:[#allocation3 + $0x20] sm:$0xff]
  %v6628 = vld [vmem:[#allocation3 + $0x28] sm:$0xff]
  %v6629 = vld [vmem:[#allocation3 + $0x30] sm:$0xff]
  %v6630 = vld [vmem:[#allocation3 + $0x38] sm:$0xff]
  %v6631 = vld [vmem:[#allocation3 + $0x40] sm:$0xff]
  %v6632 = vld [vmem:[#allocation3 + $0x48] sm:$0xff]
  %v6633 = vld [vmem:[#allocation3 + $0x50] sm:$0xff]
  %v6634 = vld [vmem:[#allocation3 + $0x58] sm:$0xff]
  %v6635 = vld [vmem:[#allocation3 + $0x60] sm:$0xff]
  %v6636 = vld [vmem:[#allocation3 + $0x68] sm:$0xff]
  %v6637 = vld [vmem:[#allocation3 + $0x70] sm:$0xff]
  %v6638 = vld [vmem:[#allocation3 + $0x78] sm:$0xff]
  %v6639 = vld [vmem:[#allocation3 + $0x80] sm:$0xff]
  %v6640 = vld [vmem:[#allocation3 + $0x88] sm:$0xff]
  %v6641 = vld [vmem:[#allocation3 + $0x90] sm:$0xff]
  %v6642 = vld [vmem:[#allocation3 + $0x98] sm:$0xff]
  %v6643 = vld [vmem:[#allocation3 + $0xa0] sm:$0xff]
  %v6644 = vld [vmem:[#allocation3 + $0xa8] sm:$0xff]
  %v6645 = vld [vmem:[#allocation3 + $0xb0] sm:$0xff]
  %v6646 = vld [vmem:[#allocation3 + $0xb8] sm:$0xff]
  %v6647 = vld [vmem:[#allocation3 + $0xc0] sm:$0xff]
  %v6648 = vld [vmem:[#allocation3 + $0xc8] sm:$0xff]
  %v6649 = vld [vmem:[#allocation3 + $0xd0] sm:$0xff]
  %v6650 = vld [vmem:[#allocation3 + $0xd8] sm:$0xff]
  %v6651 = vld [vmem:[#allocation3 + $0xe0] sm:$0xff]
  %v6652 = vld [vmem:[#allocation3 + $0xe8] sm:$0xff]
  %v6653 = vld [vmem:[#allocation3 + $0xf0] sm:$0xff]
  %v6654 = vld [vmem:[#allocation3 + $0xf8] sm:$0xff]
  %v6655 = vld [vmem:[#allocation3 + $0x100] sm:$0xff]
  %v6656 = vld [vmem:[#allocation3 + $0x108] sm:$0xff]
  %v6657 = vld [vmem:[#allocation3 + $0x110] sm:$0xff]
  %v6658 = vpack.c.bf16 %v6627, %v6626
  %v6659 = vpack.c.bf16 %v6629, %v6628
  %v6660 = vpack.c.bf16 %v6631, %v6630
  %v6661 = vpack.c.bf16 %v6633, %v6632
  %v6662 = vpack.c.bf16 %v6635, %v6634
  %v6663 = vpack.c.bf16 %v6637, %v6636
  %v6664 = vpack.c.bf16 %v6639, %v6638
  %v6665 = vpack.c.bf16 %v6641, %v6640
  %v6666 = vpack.c.bf16 %v6643, %v6642
  %v6667 = vpack.c.bf16 %v6645, %v6644
  %v6668 = vpack.c.bf16 %v6647, %v6646
  %v6669 = vpack.c.bf16 %v6649, %v6648
  %v6670 = vpack.c.bf16 %v6651, %v6650
  %v6671 = vpack.c.bf16 %v6653, %v6652
  %v6672 = vpack.c.bf16 %v6655, %v6654
  %v6673 = vpack.c.bf16 %v6657, %v6656
  %6674 = vst.msk [vmem:[#allocation4 + $0x188] sm:$0xff] %vm514, %v6658
  %6675 = vst.msk [vmem:[#allocation4 + $0x1a0] sm:$0xff] %vm514, %v6659
  %6676 = vst.msk [vmem:[#allocation4 + $0x1b8] sm:$0xff] %vm514, %v6660
  %6677 = vst.msk [vmem:[#allocation4 + $0x1d0] sm:$0xff] %vm514, %v6661
  %6678 = vst.msk [vmem:[#allocation4 + $0x1e8] sm:$0xff] %vm514, %v6662
  %6679 = vst.msk [vmem:[#allocation4 + $0x200] sm:$0xff] %vm514, %v6663
  %6680 = vst.msk [vmem:[#allocation4 + $0x218] sm:$0xff] %vm514, %v6664
  %6681 = vst.msk [vmem:[#allocation4 + $0x230] sm:$0xff] %vm514, %v6665
  %6682 = vst.msk [vmem:[#allocation4 + $0x248] sm:$0xff] %vm514, %v6666
  %6683 = vst.msk [vmem:[#allocation4 + $0x260] sm:$0xff] %vm514, %v6667
  %6684 = vst.msk [vmem:[#allocation4 + $0x278] sm:$0xff] %vm514, %v6668
  %6685 = vst.msk [vmem:[#allocation4 + $0x290] sm:$0xff] %vm514, %v6669
  %6686 = vst.msk [vmem:[#allocation4 + $0x2a8] sm:$0xff] %vm514, %v6670
  %6687 = vst.msk [vmem:[#allocation4 + $0x2c0] sm:$0xff] %vm514, %v6671
  %6688 = vst.msk [vmem:[#allocation4 + $0x2d8] sm:$0xff] %vm514, %v6672
  %6689 = vst.msk [vmem:[#allocation4 + $0x2f0] sm:$0xff] %vm514, %v6673
  %v6690 = vld [vmem:[#allocation3 + $0x19] sm:$0xff]
  %v6691 = vld [vmem:[#allocation3 + $0x21] sm:$0xff]
  %v6692 = vld [vmem:[#allocation3 + $0x29] sm:$0xff]
  %v6693 = vld [vmem:[#allocation3 + $0x31] sm:$0xff]
  %v6694 = vld [vmem:[#allocation3 + $0x39] sm:$0xff]
  %v6695 = vld [vmem:[#allocation3 + $0x41] sm:$0xff]
  %v6696 = vld [vmem:[#allocation3 + $0x49] sm:$0xff]
  %v6697 = vld [vmem:[#allocation3 + $0x51] sm:$0xff]
  %v6698 = vld [vmem:[#allocation3 + $0x59] sm:$0xff]
  %v6699 = vld [vmem:[#allocation3 + $0x61] sm:$0xff]
  %v6700 = vld [vmem:[#allocation3 + $0x69] sm:$0xff]
  %v6701 = vld [vmem:[#allocation3 + $0x71] sm:$0xff]
  %v6702 = vld [vmem:[#allocation3 + $0x79] sm:$0xff]
  %v6703 = vld [vmem:[#allocation3 + $0x81] sm:$0xff]
  %v6704 = vld [vmem:[#allocation3 + $0x89] sm:$0xff]
  %v6705 = vld [vmem:[#allocation3 + $0x91] sm:$0xff]
  %v6706 = vld [vmem:[#allocation3 + $0x99] sm:$0xff]
  %v6707 = vld [vmem:[#allocation3 + $0xa1] sm:$0xff]
  %v6708 = vld [vmem:[#allocation3 + $0xa9] sm:$0xff]
  %v6709 = vld [vmem:[#allocation3 + $0xb1] sm:$0xff]
  %v6710 = vld [vmem:[#allocation3 + $0xb9] sm:$0xff]
  %v6711 = vld [vmem:[#allocation3 + $0xc1] sm:$0xff]
  %v6712 = vld [vmem:[#allocation3 + $0xc9] sm:$0xff]
  %v6713 = vld [vmem:[#allocation3 + $0xd1] sm:$0xff]
  %v6714 = vld [vmem:[#allocation3 + $0xd9] sm:$0xff]
  %v6715 = vld [vmem:[#allocation3 + $0xe1] sm:$0xff]
  %v6716 = vld [vmem:[#allocation3 + $0xe9] sm:$0xff]
  %v6717 = vld [vmem:[#allocation3 + $0xf1] sm:$0xff]
  %v6718 = vld [vmem:[#allocation3 + $0xf9] sm:$0xff]
  %v6719 = vld [vmem:[#allocation3 + $0x101] sm:$0xff]
  %v6720 = vld [vmem:[#allocation3 + $0x109] sm:$0xff]
  %v6721 = vld [vmem:[#allocation3 + $0x111] sm:$0xff]
  %v6722 = vsel %vm938, %v6690, 0.0
  %v6723 = vsel %vm939, %v6691, 0.0
  %v6724 = vsel %vm940, %v6692, 0.0
  %v6725 = vsel %vm941, %v6693, 0.0
  %v6726 = vsel %vm942, %v6694, 0.0
  %v6727 = vsel %vm943, %v6695, 0.0
  %v6728 = vsel %vm944, %v6696, 0.0
  %v6729 = vsel %vm945, %v6697, 0.0
  %v6730 = vsel %vm946, %v6698, 0.0
  %v6731 = vsel %vm947, %v6699, 0.0
  %v6732 = vsel %vm948, %v6700, 0.0
  %v6733 = vsel %vm949, %v6701, 0.0
  %v6734 = vsel %vm950, %v6702, 0.0
  %v6735 = vsel %vm951, %v6703, 0.0
  %v6736 = vsel %vm952, %v6704, 0.0
  %v6737 = vsel %vm953, %v6705, 0.0
  %v6738 = vsel %vm954, %v6706, 0.0
  %v6739 = vsel %vm955, %v6707, 0.0
  %v6740 = vsel %vm956, %v6708, 0.0
  %v6741 = vsel %vm957, %v6709, 0.0
  %v6742 = vsel %vm958, %v6710, 0.0
  %v6743 = vsel %vm959, %v6711, 0.0
  %v6744 = vsel %vm960, %v6712, 0.0
  %v6745 = vsel %vm961, %v6713, 0.0
  %v6746 = vsel %vm962, %v6714, 0.0
  %v6747 = vsel %vm963, %v6715, 0.0
  %v6748 = vsel %vm964, %v6716, 0.0
  %v6749 = vsel %vm965, %v6717, 0.0
  %v6750 = vsel %vm966, %v6718, 0.0
  %v6751 = vsel %vm967, %v6719, 0.0
  %v6752 = vsel %vm968, %v6720, 0.0
  %v6753 = vsel %vm969, %v6721, 0.0
  %v6754 = vpack.c.bf16 %v6723, %v6722
  %v6755 = vpack.c.bf16 %v6725, %v6724
  %v6756 = vpack.c.bf16 %v6727, %v6726
  %v6757 = vpack.c.bf16 %v6729, %v6728
  %v6758 = vpack.c.bf16 %v6731, %v6730
  %v6759 = vpack.c.bf16 %v6733, %v6732
  %v6760 = vpack.c.bf16 %v6735, %v6734
  %v6761 = vpack.c.bf16 %v6737, %v6736
  %v6762 = vpack.c.bf16 %v6739, %v6738
  %v6763 = vpack.c.bf16 %v6741, %v6740
  %v6764 = vpack.c.bf16 %v6743, %v6742
  %v6765 = vpack.c.bf16 %v6745, %v6744
  %v6766 = vpack.c.bf16 %v6747, %v6746
  %v6767 = vpack.c.bf16 %v6749, %v6748
  %v6768 = vpack.c.bf16 %v6751, %v6750
  %v6769 = vpack.c.bf16 %v6753, %v6752
  %6786 = vrot.lane.b32.xlu0 %v6754, 32
  %v6787 = vpop.permute.xlu0 %6786
  %6788 = vrot.lane.b32.xlu0 %v6755, 32
  %v6789 = vpop.permute.xlu0 %6788
  %6790 = vrot.lane.b32.xlu0 %v6756, 32
  %v6791 = vpop.permute.xlu0 %6790
  %6792 = vrot.lane.b32.xlu0 %v6757, 32
  %v6793 = vpop.permute.xlu0 %6792
  %6794 = vrot.lane.b32.xlu0 %v6758, 32
  %v6795 = vpop.permute.xlu0 %6794
  %6796 = vrot.lane.b32.xlu0 %v6759, 32
  %v6797 = vpop.permute.xlu0 %6796
  %6798 = vrot.lane.b32.xlu0 %v6760, 32
  %v6799 = vpop.permute.xlu0 %6798
  %6800 = vrot.lane.b32.xlu0 %v6761, 32
  %v6801 = vpop.permute.xlu0 %6800
  %6802 = vrot.lane.b32.xlu0 %v6762, 32
  %v6803 = vpop.permute.xlu0 %6802
  %6804 = vrot.lane.b32.xlu0 %v6763, 32
  %v6805 = vpop.permute.xlu0 %6804
  %6806 = vrot.lane.b32.xlu0 %v6764, 32
  %v6807 = vpop.permute.xlu0 %6806
  %6808 = vrot.lane.b32.xlu0 %v6765, 32
  %v6809 = vpop.permute.xlu0 %6808
  %6810 = vrot.lane.b32.xlu0 %v6766, 32
  %v6811 = vpop.permute.xlu0 %6810
  %6812 = vrot.lane.b32.xlu0 %v6767, 32
  %v6813 = vpop.permute.xlu0 %6812
  %6814 = vrot.lane.b32.xlu0 %v6768, 32
  %v6815 = vpop.permute.xlu0 %6814
  %6816 = vrot.lane.b32.xlu0 %v6769, 32
  %v6817 = vpop.permute.xlu0 %6816
  %6834 = vst.msk [vmem:[#allocation4 + $0x188] sm:$0xff] %vm857, %v6787
  %6835 = vst.msk [vmem:[#allocation4 + $0x1a0] sm:$0xff] %vm857, %v6789
  %6836 = vst.msk [vmem:[#allocation4 + $0x1b8] sm:$0xff] %vm857, %v6791
  %6837 = vst.msk [vmem:[#allocation4 + $0x1d0] sm:$0xff] %vm857, %v6793
  %6838 = vst.msk [vmem:[#allocation4 + $0x1e8] sm:$0xff] %vm857, %v6795
  %6839 = vst.msk [vmem:[#allocation4 + $0x200] sm:$0xff] %vm857, %v6797
  %6840 = vst.msk [vmem:[#allocation4 + $0x218] sm:$0xff] %vm857, %v6799
  %6841 = vst.msk [vmem:[#allocation4 + $0x230] sm:$0xff] %vm857, %v6801
  %6842 = vst.msk [vmem:[#allocation4 + $0x248] sm:$0xff] %vm857, %v6803
  %6843 = vst.msk [vmem:[#allocation4 + $0x260] sm:$0xff] %vm857, %v6805
  %6844 = vst.msk [vmem:[#allocation4 + $0x278] sm:$0xff] %vm857, %v6807
  %6845 = vst.msk [vmem:[#allocation4 + $0x290] sm:$0xff] %vm857, %v6809
  %6846 = vst.msk [vmem:[#allocation4 + $0x2a8] sm:$0xff] %vm857, %v6811
  %6847 = vst.msk [vmem:[#allocation4 + $0x2c0] sm:$0xff] %vm857, %v6813
  %6848 = vst.msk [vmem:[#allocation4 + $0x2d8] sm:$0xff] %vm857, %v6815
  %6849 = vst.msk [vmem:[#allocation4 + $0x2f0] sm:$0xff] %vm857, %v6817
  %v6850 = vld [vmem:[#allocation3 + $0x27] sm:$0xff]
  %v6851 = vld [vmem:[#allocation3 + $0x2f] sm:$0xff]
  %v6852 = vld [vmem:[#allocation3 + $0x37] sm:$0xff]
  %v6853 = vld [vmem:[#allocation3 + $0x3f] sm:$0xff]
  %v6854 = vld [vmem:[#allocation3 + $0x47] sm:$0xff]
  %v6855 = vld [vmem:[#allocation3 + $0x4f] sm:$0xff]
  %v6856 = vld [vmem:[#allocation3 + $0x57] sm:$0xff]
  %v6857 = vld [vmem:[#allocation3 + $0x5f] sm:$0xff]
  %v6858 = vld [vmem:[#allocation3 + $0x67] sm:$0xff]
  %v6859 = vld [vmem:[#allocation3 + $0x6f] sm:$0xff]
  %v6860 = vld [vmem:[#allocation3 + $0x77] sm:$0xff]
  %v6861 = vld [vmem:[#allocation3 + $0x7f] sm:$0xff]
  %v6862 = vld [vmem:[#allocation3 + $0x87] sm:$0xff]
  %v6863 = vld [vmem:[#allocation3 + $0x8f] sm:$0xff]
  %v6864 = vld [vmem:[#allocation3 + $0x97] sm:$0xff]
  %v6865 = vld [vmem:[#allocation3 + $0x9f] sm:$0xff]
  %v6866 = vld [vmem:[#allocation3 + $0xa7] sm:$0xff]
  %v6867 = vld [vmem:[#allocation3 + $0xaf] sm:$0xff]
  %v6868 = vld [vmem:[#allocation3 + $0xb7] sm:$0xff]
  %v6869 = vld [vmem:[#allocation3 + $0xbf] sm:$0xff]
  %v6870 = vld [vmem:[#allocation3 + $0xc7] sm:$0xff]
  %v6871 = vld [vmem:[#allocation3 + $0xcf] sm:$0xff]
  %v6872 = vld [vmem:[#allocation3 + $0xd7] sm:$0xff]
  %v6873 = vld [vmem:[#allocation3 + $0xdf] sm:$0xff]
  %v6874 = vld [vmem:[#allocation3 + $0xe7] sm:$0xff]
  %v6875 = vld [vmem:[#allocation3 + $0xef] sm:$0xff]
  %v6876 = vld [vmem:[#allocation3 + $0xf7] sm:$0xff]
  %v6877 = vld [vmem:[#allocation3 + $0xff] sm:$0xff]
  %v6878 = vld [vmem:[#allocation3 + $0x107] sm:$0xff]
  %v6879 = vld [vmem:[#allocation3 + $0x10f] sm:$0xff]
  %v6880 = vld [vmem:[#allocation3 + $0x117] sm:$0xff]
  %v6881 = vld [vmem:[#allocation3 + $0x11f] sm:$0xff]
  %v6882 = vsel %vm649, %v6850, 0.0
  %v6883 = vsel %vm650, %v6851, 0.0
  %v6884 = vsel %vm651, %v6852, 0.0
  %v6885 = vsel %vm652, %v6853, 0.0
  %v6886 = vsel %vm653, %v6854, 0.0
  %v6887 = vsel %vm654, %v6855, 0.0
  %v6888 = vsel %vm655, %v6856, 0.0
  %v6889 = vsel %vm656, %v6857, 0.0
  %v6890 = vsel %vm657, %v6858, 0.0
  %v6891 = vsel %vm658, %v6859, 0.0
  %v6892 = vsel %vm659, %v6860, 0.0
  %v6893 = vsel %vm660, %v6861, 0.0
  %v6894 = vsel %vm661, %v6862, 0.0
  %v6895 = vsel %vm662, %v6863, 0.0
  %v6896 = vsel %vm663, %v6864, 0.0
  %v6897 = vsel %vm664, %v6865, 0.0
  %v6898 = vsel %vm665, %v6866, 0.0
  %v6899 = vsel %vm666, %v6867, 0.0
  %v6900 = vsel %vm667, %v6868, 0.0
  %v6901 = vsel %vm668, %v6869, 0.0
  %v6902 = vsel %vm669, %v6870, 0.0
  %v6903 = vsel %vm670, %v6871, 0.0
  %v6904 = vsel %vm671, %v6872, 0.0
  %v6905 = vsel %vm672, %v6873, 0.0
  %v6906 = vsel %vm673, %v6874, 0.0
  %v6907 = vsel %vm674, %v6875, 0.0
  %v6908 = vsel %vm675, %v6876, 0.0
  %v6909 = vsel %vm676, %v6877, 0.0
  %v6910 = vsel %vm677, %v6878, 0.0
  %v6911 = vsel %vm678, %v6879, 0.0
  %v6912 = vsel %vm679, %v6880, 0.0
  %v6913 = vsel %vm680, %v6881, 0.0
  %v6914 = vpack.c.bf16 %v6883, %v6882
  %v6915 = vpack.c.bf16 %v6885, %v6884
  %v6916 = vpack.c.bf16 %v6887, %v6886
  %v6917 = vpack.c.bf16 %v6889, %v6888
  %v6918 = vpack.c.bf16 %v6891, %v6890
  %v6919 = vpack.c.bf16 %v6893, %v6892
  %v6920 = vpack.c.bf16 %v6895, %v6894
  %v6921 = vpack.c.bf16 %v6897, %v6896
  %v6922 = vpack.c.bf16 %v6899, %v6898
  %v6923 = vpack.c.bf16 %v6901, %v6900
  %v6924 = vpack.c.bf16 %v6903, %v6902
  %v6925 = vpack.c.bf16 %v6905, %v6904
  %v6926 = vpack.c.bf16 %v6907, %v6906
  %v6927 = vpack.c.bf16 %v6909, %v6908
  %v6928 = vpack.c.bf16 %v6911, %v6910
  %v6929 = vpack.c.bf16 %v6913, %v6912
  %6946 = vrot.lane.b32.xlu0 %v6914, 64
  %v6947 = vpop.permute.xlu0 %6946
  %6948 = vrot.lane.b32.xlu0 %v6915, 64
  %v6949 = vpop.permute.xlu0 %6948
  %6950 = vrot.lane.b32.xlu0 %v6916, 64
  %v6951 = vpop.permute.xlu0 %6950
  %6952 = vrot.lane.b32.xlu0 %v6917, 64
  %v6953 = vpop.permute.xlu0 %6952
  %6954 = vrot.lane.b32.xlu0 %v6918, 64
  %v6955 = vpop.permute.xlu0 %6954
  %6956 = vrot.lane.b32.xlu0 %v6919, 64
  %v6957 = vpop.permute.xlu0 %6956
  %6958 = vrot.lane.b32.xlu0 %v6920, 64
  %v6959 = vpop.permute.xlu0 %6958
  %6960 = vrot.lane.b32.xlu0 %v6921, 64
  %v6961 = vpop.permute.xlu0 %6960
  %6962 = vrot.lane.b32.xlu0 %v6922, 64
  %v6963 = vpop.permute.xlu0 %6962
  %6964 = vrot.lane.b32.xlu0 %v6923, 64
  %v6965 = vpop.permute.xlu0 %6964
  %6966 = vrot.lane.b32.xlu0 %v6924, 64
  %v6967 = vpop.permute.xlu0 %6966
  %6968 = vrot.lane.b32.xlu0 %v6925, 64
  %v6969 = vpop.permute.xlu0 %6968
  %6970 = vrot.lane.b32.xlu0 %v6926, 64
  %v6971 = vpop.permute.xlu0 %6970
  %6972 = vrot.lane.b32.xlu0 %v6927, 64
  %v6973 = vpop.permute.xlu0 %6972
  %6974 = vrot.lane.b32.xlu0 %v6928, 64
  %v6975 = vpop.permute.xlu0 %6974
  %6976 = vrot.lane.b32.xlu0 %v6929, 64
  %v6977 = vpop.permute.xlu0 %6976
  %6994 = vst.msk [vmem:[#allocation4 + $0x188] sm:$0xff] %vm1082, %v6947
  %6995 = vst.msk [vmem:[#allocation4 + $0x1a0] sm:$0xff] %vm1082, %v6949
  %6996 = vst.msk [vmem:[#allocation4 + $0x1b8] sm:$0xff] %vm1082, %v6951
  %6997 = vst.msk [vmem:[#allocation4 + $0x1d0] sm:$0xff] %vm1082, %v6953
  %6998 = vst.msk [vmem:[#allocation4 + $0x1e8] sm:$0xff] %vm1082, %v6955
  %6999 = vst.msk [vmem:[#allocation4 + $0x200] sm:$0xff] %vm1082, %v6957
  %7000 = vst.msk [vmem:[#allocation4 + $0x218] sm:$0xff] %vm1082, %v6959
  %7001 = vst.msk [vmem:[#allocation4 + $0x230] sm:$0xff] %vm1082, %v6961
  %7002 = vst.msk [vmem:[#allocation4 + $0x248] sm:$0xff] %vm1082, %v6963
  %7003 = vst.msk [vmem:[#allocation4 + $0x260] sm:$0xff] %vm1082, %v6965
  %7004 = vst.msk [vmem:[#allocation4 + $0x278] sm:$0xff] %vm1082, %v6967
  %7005 = vst.msk [vmem:[#allocation4 + $0x290] sm:$0xff] %vm1082, %v6969
  %7006 = vst.msk [vmem:[#allocation4 + $0x2a8] sm:$0xff] %vm1082, %v6971
  %7007 = vst.msk [vmem:[#allocation4 + $0x2c0] sm:$0xff] %vm1082, %v6973
  %7008 = vst.msk [vmem:[#allocation4 + $0x2d8] sm:$0xff] %vm1082, %v6975
  %7009 = vst.msk [vmem:[#allocation4 + $0x2f0] sm:$0xff] %vm1082, %v6977
  %v7010 = vld [vmem:[#allocation3 + $0x28] sm:$0xff]
  %v7011 = vld [vmem:[#allocation3 + $0x30] sm:$0xff]
  %v7012 = vld [vmem:[#allocation3 + $0x38] sm:$0xff]
  %v7013 = vld [vmem:[#allocation3 + $0x40] sm:$0xff]
  %v7014 = vld [vmem:[#allocation3 + $0x48] sm:$0xff]
  %v7015 = vld [vmem:[#allocation3 + $0x50] sm:$0xff]
  %v7016 = vld [vmem:[#allocation3 + $0x58] sm:$0xff]
  %v7017 = vld [vmem:[#allocation3 + $0x60] sm:$0xff]
  %v7018 = vld [vmem:[#allocation3 + $0x68] sm:$0xff]
  %v7019 = vld [vmem:[#allocation3 + $0x70] sm:$0xff]
  %v7020 = vld [vmem:[#allocation3 + $0x78] sm:$0xff]
  %v7021 = vld [vmem:[#allocation3 + $0x80] sm:$0xff]
  %v7022 = vld [vmem:[#allocation3 + $0x88] sm:$0xff]
  %v7023 = vld [vmem:[#allocation3 + $0x90] sm:$0xff]
  %v7024 = vld [vmem:[#allocation3 + $0x98] sm:$0xff]
  %v7025 = vld [vmem:[#allocation3 + $0xa0] sm:$0xff]
  %v7026 = vld [vmem:[#allocation3 + $0xa8] sm:$0xff]
  %v7027 = vld [vmem:[#allocation3 + $0xb0] sm:$0xff]
  %v7028 = vld [vmem:[#allocation3 + $0xb8] sm:$0xff]
  %v7029 = vld [vmem:[#allocation3 + $0xc0] sm:$0xff]
  %v7030 = vld [vmem:[#allocation3 + $0xc8] sm:$0xff]
  %v7031 = vld [vmem:[#allocation3 + $0xd0] sm:$0xff]
  %v7032 = vld [vmem:[#allocation3 + $0xd8] sm:$0xff]
  %v7033 = vld [vmem:[#allocation3 + $0xe0] sm:$0xff]
  %v7034 = vld [vmem:[#allocation3 + $0xe8] sm:$0xff]
  %v7035 = vld [vmem:[#allocation3 + $0xf0] sm:$0xff]
  %v7036 = vld [vmem:[#allocation3 + $0xf8] sm:$0xff]
  %v7037 = vld [vmem:[#allocation3 + $0x100] sm:$0xff]
  %v7038 = vld [vmem:[#allocation3 + $0x108] sm:$0xff]
  %v7039 = vld [vmem:[#allocation3 + $0x110] sm:$0xff]
  %v7040 = vld [vmem:[#allocation3 + $0x118] sm:$0xff]
  %v7041 = vld [vmem:[#allocation3 + $0x120] sm:$0xff]
  %v7042 = vpack.c.bf16 %v7011, %v7010
  %v7043 = vpack.c.bf16 %v7013, %v7012
  %v7044 = vpack.c.bf16 %v7015, %v7014
  %v7045 = vpack.c.bf16 %v7017, %v7016
  %v7046 = vpack.c.bf16 %v7019, %v7018
  %v7047 = vpack.c.bf16 %v7021, %v7020
  %v7048 = vpack.c.bf16 %v7023, %v7022
  %v7049 = vpack.c.bf16 %v7025, %v7024
  %v7050 = vpack.c.bf16 %v7027, %v7026
  %v7051 = vpack.c.bf16 %v7029, %v7028
  %v7052 = vpack.c.bf16 %v7031, %v7030
  %v7053 = vpack.c.bf16 %v7033, %v7032
  %v7054 = vpack.c.bf16 %v7035, %v7034
  %v7055 = vpack.c.bf16 %v7037, %v7036
  %v7056 = vpack.c.bf16 %v7039, %v7038
  %v7057 = vpack.c.bf16 %v7041, %v7040
  %7074 = vrot.lane.b32.xlu0 %v7042, 96
  %v7075 = vpop.permute.xlu0 %7074
  %7076 = vrot.lane.b32.xlu0 %v7043, 96
  %v7077 = vpop.permute.xlu0 %7076
  %7078 = vrot.lane.b32.xlu0 %v7044, 96
  %v7079 = vpop.permute.xlu0 %7078
  %7080 = vrot.lane.b32.xlu0 %v7045, 96
  %v7081 = vpop.permute.xlu0 %7080
  %7082 = vrot.lane.b32.xlu0 %v7046, 96
  %v7083 = vpop.permute.xlu0 %7082
  %7084 = vrot.lane.b32.xlu0 %v7047, 96
  %v7085 = vpop.permute.xlu0 %7084
  %7086 = vrot.lane.b32.xlu0 %v7048, 96
  %v7087 = vpop.permute.xlu0 %7086
  %7088 = vrot.lane.b32.xlu0 %v7049, 96
  %v7089 = vpop.permute.xlu0 %7088
  %7090 = vrot.lane.b32.xlu0 %v7050, 96
  %v7091 = vpop.permute.xlu0 %7090
  %7092 = vrot.lane.b32.xlu0 %v7051, 96
  %v7093 = vpop.permute.xlu0 %7092
  %7094 = vrot.lane.b32.xlu0 %v7052, 96
  %v7095 = vpop.permute.xlu0 %7094
  %7096 = vrot.lane.b32.xlu0 %v7053, 96
  %v7097 = vpop.permute.xlu0 %7096
  %7098 = vrot.lane.b32.xlu0 %v7054, 96
  %v7099 = vpop.permute.xlu0 %7098
  %7100 = vrot.lane.b32.xlu0 %v7055, 96
  %v7101 = vpop.permute.xlu0 %7100
  %7102 = vrot.lane.b32.xlu0 %v7056, 96
  %v7103 = vpop.permute.xlu0 %7102
  %7104 = vrot.lane.b32.xlu0 %v7057, 96
  %v7105 = vpop.permute.xlu0 %7104
  %7122 = vst.msk [vmem:[#allocation4 + $0x188] sm:$0xff] %vm1243, %v7075
  %7123 = vst.msk [vmem:[#allocation4 + $0x1a0] sm:$0xff] %vm1243, %v7077
  %7124 = vst.msk [vmem:[#allocation4 + $0x1b8] sm:$0xff] %vm1243, %v7079
  %7125 = vst.msk [vmem:[#allocation4 + $0x1d0] sm:$0xff] %vm1243, %v7081
  %7126 = vst.msk [vmem:[#allocation4 + $0x1e8] sm:$0xff] %vm1243, %v7083
  %7127 = vst.msk [vmem:[#allocation4 + $0x200] sm:$0xff] %vm1243, %v7085
  %7128 = vst.msk [vmem:[#allocation4 + $0x218] sm:$0xff] %vm1243, %v7087
  %7129 = vst.msk [vmem:[#allocation4 + $0x230] sm:$0xff] %vm1243, %v7089
  %7130 = vst.msk [vmem:[#allocation4 + $0x248] sm:$0xff] %vm1243, %v7091
  %7131 = vst.msk [vmem:[#allocation4 + $0x260] sm:$0xff] %vm1243, %v7093
  %7132 = vst.msk [vmem:[#allocation4 + $0x278] sm:$0xff] %vm1243, %v7095
  %7133 = vst.msk [vmem:[#allocation4 + $0x290] sm:$0xff] %vm1243, %v7097
  %7134 = vst.msk [vmem:[#allocation4 + $0x2a8] sm:$0xff] %vm1243, %v7099
  %7135 = vst.msk [vmem:[#allocation4 + $0x2c0] sm:$0xff] %vm1243, %v7101
  %7136 = vst.msk [vmem:[#allocation4 + $0x2d8] sm:$0xff] %vm1243, %v7103
  %7137 = vst.msk [vmem:[#allocation4 + $0x2f0] sm:$0xff] %vm1243, %v7105
  %v7138 = vld [vmem:[#allocation3 + $0x29] sm:$0xff]
  %v7139 = vld [vmem:[#allocation3 + $0x31] sm:$0xff]
  %v7140 = vld [vmem:[#allocation3 + $0x39] sm:$0xff]
  %v7141 = vld [vmem:[#allocation3 + $0x41] sm:$0xff]
  %v7142 = vld [vmem:[#allocation3 + $0x49] sm:$0xff]
  %v7143 = vld [vmem:[#allocation3 + $0x51] sm:$0xff]
  %v7144 = vld [vmem:[#allocation3 + $0x59] sm:$0xff]
  %v7145 = vld [vmem:[#allocation3 + $0x61] sm:$0xff]
  %v7146 = vld [vmem:[#allocation3 + $0x69] sm:$0xff]
  %v7147 = vld [vmem:[#allocation3 + $0x71] sm:$0xff]
  %v7148 = vld [vmem:[#allocation3 + $0x79] sm:$0xff]
  %v7149 = vld [vmem:[#allocation3 + $0x81] sm:$0xff]
  %v7150 = vld [vmem:[#allocation3 + $0x89] sm:$0xff]
  %v7151 = vld [vmem:[#allocation3 + $0x91] sm:$0xff]
  %v7152 = vld [vmem:[#allocation3 + $0x99] sm:$0xff]
  %v7153 = vld [vmem:[#allocation3 + $0xa1] sm:$0xff]
  %v7154 = vld [vmem:[#allocation3 + $0xa9] sm:$0xff]
  %v7155 = vld [vmem:[#allocation3 + $0xb1] sm:$0xff]
  %v7156 = vld [vmem:[#allocation3 + $0xb9] sm:$0xff]
  %v7157 = vld [vmem:[#allocation3 + $0xc1] sm:$0xff]
  %v7158 = vld [vmem:[#allocation3 + $0xc9] sm:$0xff]
  %v7159 = vld [vmem:[#allocation3 + $0xd1] sm:$0xff]
  %v7160 = vld [vmem:[#allocation3 + $0xd9] sm:$0xff]
  %v7161 = vld [vmem:[#allocation3 + $0xe1] sm:$0xff]
  %v7162 = vld [vmem:[#allocation3 + $0xe9] sm:$0xff]
  %v7163 = vld [vmem:[#allocation3 + $0xf1] sm:$0xff]
  %v7164 = vld [vmem:[#allocation3 + $0xf9] sm:$0xff]
  %v7165 = vld [vmem:[#allocation3 + $0x101] sm:$0xff]
  %v7166 = vld [vmem:[#allocation3 + $0x109] sm:$0xff]
  %v7167 = vld [vmem:[#allocation3 + $0x111] sm:$0xff]
  %v7168 = vld [vmem:[#allocation3 + $0x119] sm:$0xff]
  %v7169 = vld [vmem:[#allocation3 + $0x121] sm:$0xff]
  %v7170 = vsel %vm938, %v7138, 0.0
  %v7171 = vsel %vm939, %v7139, 0.0
  %v7172 = vsel %vm940, %v7140, 0.0
  %v7173 = vsel %vm941, %v7141, 0.0
  %v7174 = vsel %vm942, %v7142, 0.0
  %v7175 = vsel %vm943, %v7143, 0.0
  %v7176 = vsel %vm944, %v7144, 0.0
  %v7177 = vsel %vm945, %v7145, 0.0
  %v7178 = vsel %vm946, %v7146, 0.0
  %v7179 = vsel %vm947, %v7147, 0.0
  %v7180 = vsel %vm948, %v7148, 0.0
  %v7181 = vsel %vm949, %v7149, 0.0
  %v7182 = vsel %vm950, %v7150, 0.0
  %v7183 = vsel %vm951, %v7151, 0.0
  %v7184 = vsel %vm952, %v7152, 0.0
  %v7185 = vsel %vm953, %v7153, 0.0
  %v7186 = vsel %vm954, %v7154, 0.0
  %v7187 = vsel %vm955, %v7155, 0.0
  %v7188 = vsel %vm956, %v7156, 0.0
  %v7189 = vsel %vm957, %v7157, 0.0
  %v7190 = vsel %vm958, %v7158, 0.0
  %v7191 = vsel %vm959, %v7159, 0.0
  %v7192 = vsel %vm960, %v7160, 0.0
  %v7193 = vsel %vm961, %v7161, 0.0
  %v7194 = vsel %vm962, %v7162, 0.0
  %v7195 = vsel %vm963, %v7163, 0.0
  %v7196 = vsel %vm964, %v7164, 0.0
  %v7197 = vsel %vm965, %v7165, 0.0
  %v7198 = vsel %vm966, %v7166, 0.0
  %v7199 = vsel %vm967, %v7167, 0.0
  %v7200 = vsel %vm968, %v7168, 0.0
  %v7201 = vsel %vm969, %v7169, 0.0
  %v7202 = vpack.c.bf16 %v7171, %v7170
  %v7203 = vpack.c.bf16 %v7173, %v7172
  %v7204 = vpack.c.bf16 %v7175, %v7174
  %v7205 = vpack.c.bf16 %v7177, %v7176
  %v7206 = vpack.c.bf16 %v7179, %v7178
  %v7207 = vpack.c.bf16 %v7181, %v7180
  %v7208 = vpack.c.bf16 %v7183, %v7182
  %v7209 = vpack.c.bf16 %v7185, %v7184
  %v7210 = vpack.c.bf16 %v7187, %v7186
  %v7211 = vpack.c.bf16 %v7189, %v7188
  %v7212 = vpack.c.bf16 %v7191, %v7190
  %v7213 = vpack.c.bf16 %v7193, %v7192
  %v7214 = vpack.c.bf16 %v7195, %v7194
  %v7215 = vpack.c.bf16 %v7197, %v7196
  %v7216 = vpack.c.bf16 %v7199, %v7198
  %v7217 = vpack.c.bf16 %v7201, %v7200
  %7218 = vst.msk [vmem:[#allocation4 + $0x190] sm:$0xff] %vm514, %v7202
  %7219 = vst.msk [vmem:[#allocation4 + $0x1a8] sm:$0xff] %vm514, %v7203
  %7220 = vst.msk [vmem:[#allocation4 + $0x1c0] sm:$0xff] %vm514, %v7204
  %7221 = vst.msk [vmem:[#allocation4 + $0x1d8] sm:$0xff] %vm514, %v7205
  %7222 = vst.msk [vmem:[#allocation4 + $0x1f0] sm:$0xff] %vm514, %v7206
  %7223 = vst.msk [vmem:[#allocation4 + $0x208] sm:$0xff] %vm514, %v7207
  %7224 = vst.msk [vmem:[#allocation4 + $0x220] sm:$0xff] %vm514, %v7208
  %7225 = vst.msk [vmem:[#allocation4 + $0x238] sm:$0xff] %vm514, %v7209
  %7226 = vst.msk [vmem:[#allocation4 + $0x250] sm:$0xff] %vm514, %v7210
  %7227 = vst.msk [vmem:[#allocation4 + $0x268] sm:$0xff] %vm514, %v7211
  %7228 = vst.msk [vmem:[#allocation4 + $0x280] sm:$0xff] %vm514, %v7212
  %7229 = vst.msk [vmem:[#allocation4 + $0x298] sm:$0xff] %vm514, %v7213
  %7230 = vst.msk [vmem:[#allocation4 + $0x2b0] sm:$0xff] %vm514, %v7214
  %7231 = vst.msk [vmem:[#allocation4 + $0x2c8] sm:$0xff] %vm514, %v7215
  %7232 = vst.msk [vmem:[#allocation4 + $0x2e0] sm:$0xff] %vm514, %v7216
  %7233 = vst.msk [vmem:[#allocation4 + $0x2f8] sm:$0xff] %vm514, %v7217
  %v7234 = vld [vmem:[#allocation4] sm:$0xff]
  %v7235 = vld [vmem:[#allocation4 + $0x8] sm:$0xff]
  %v7236 = vld [vmem:[#allocation4 + $0x10] sm:$0xff]
  %v7237 = vld [vmem:[#allocation4 + $0x18] sm:$0xff]
  %v7238 = vld [vmem:[#allocation4 + $0x20] sm:$0xff]
  %v7239 = vld [vmem:[#allocation4 + $0x28] sm:$0xff]
  %v7240 = vld [vmem:[#allocation4 + $0x30] sm:$0xff]
  %v7241 = vld [vmem:[#allocation4 + $0x38] sm:$0xff]
  %v7242 = vld [vmem:[#allocation4 + $0x40] sm:$0xff]
  %v7243 = vld [vmem:[#allocation4 + $0x48] sm:$0xff]
  %v7244 = vld [vmem:[#allocation4 + $0x50] sm:$0xff]
  %v7245 = vld [vmem:[#allocation4 + $0x58] sm:$0xff]
  %v7246 = vld [vmem:[#allocation4 + $0x60] sm:$0xff]
  %v7247 = vld [vmem:[#allocation4 + $0x68] sm:$0xff]
  %v7248 = vld [vmem:[#allocation4 + $0x70] sm:$0xff]
  %v7249 = vld [vmem:[#allocation4 + $0x78] sm:$0xff]
  %v7250 = vld [vmem:[#allocation4 + $0x80] sm:$0xff]
  %v7251 = vld [vmem:[#allocation4 + $0x88] sm:$0xff]
  %v7252 = vld [vmem:[#allocation4 + $0x90] sm:$0xff]
  %v7253 = vld [vmem:[#allocation4 + $0x98] sm:$0xff]
  %v7254 = vld [vmem:[#allocation4 + $0xa0] sm:$0xff]
  %v7255 = vld [vmem:[#allocation4 + $0xa8] sm:$0xff]
  %v7256 = vld [vmem:[#allocation4 + $0xb0] sm:$0xff]
  %v7257 = vld [vmem:[#allocation4 + $0xb8] sm:$0xff]
  %v7258 = vld [vmem:[#allocation4 + $0xc0] sm:$0xff]
  %v7259 = vld [vmem:[#allocation4 + $0xc8] sm:$0xff]
  %v7260 = vld [vmem:[#allocation4 + $0xd0] sm:$0xff]
  %v7261 = vld [vmem:[#allocation4 + $0xd8] sm:$0xff]
  %v7262 = vld [vmem:[#allocation4 + $0xe0] sm:$0xff]
  %v7263 = vld [vmem:[#allocation4 + $0xe8] sm:$0xff]
  %v7264 = vld [vmem:[#allocation4 + $0xf0] sm:$0xff]
  %v7265 = vld [vmem:[#allocation4 + $0xf8] sm:$0xff]
  %v7266 = vld [vmem:[#allocation4 + $0x100] sm:$0xff]
  %v7267 = vld [vmem:[#allocation4 + $0x108] sm:$0xff]
  %v7268 = vld [vmem:[#allocation4 + $0x110] sm:$0xff]
  %v7269 = vld [vmem:[#allocation4 + $0x118] sm:$0xff]
  %v7270 = vld [vmem:[#allocation4 + $0x120] sm:$0xff]
  %v7271 = vld [vmem:[#allocation4 + $0x128] sm:$0xff]
  %v7272 = vld [vmem:[#allocation4 + $0x130] sm:$0xff]
  %v7273 = vld [vmem:[#allocation4 + $0x138] sm:$0xff]
  %v7274 = vld [vmem:[#allocation4 + $0x140] sm:$0xff]
  %v7275 = vld [vmem:[#allocation4 + $0x148] sm:$0xff]
  %v7276 = vld [vmem:[#allocation4 + $0x150] sm:$0xff]
  %v7277 = vld [vmem:[#allocation4 + $0x158] sm:$0xff]
  %v7278 = vld [vmem:[#allocation4 + $0x160] sm:$0xff]
  %v7279 = vld [vmem:[#allocation4 + $0x168] sm:$0xff]
  %v7280 = vld [vmem:[#allocation4 + $0x170] sm:$0xff]
  %v7281 = vld [vmem:[#allocation4 + $0x178] sm:$0xff]
  %v7282 = vld [vmem:[#allocation4 + $0x180] sm:$0xff]
  %v7283 = vld [vmem:[#allocation4 + $0x188] sm:$0xff]
  %v7284 = vld [vmem:[#allocation4 + $0x190] sm:$0xff]
  %v7285 = vld [vmem:[#allocation4 + $0x198] sm:$0xff]
  %v7286 = vld [vmem:[#allocation4 + $0x1a0] sm:$0xff]
  %v7287 = vld [vmem:[#allocation4 + $0x1a8] sm:$0xff]
  %v7288 = vld [vmem:[#allocation4 + $0x1b0] sm:$0xff]
  %v7289 = vld [vmem:[#allocation4 + $0x1b8] sm:$0xff]
  %v7290 = vld [vmem:[#allocation4 + $0x1c0] sm:$0xff]
  %v7291 = vld [vmem:[#allocation4 + $0x1c8] sm:$0xff]
  %v7292 = vld [vmem:[#allocation4 + $0x1d0] sm:$0xff]
  %v7293 = vld [vmem:[#allocation4 + $0x1d8] sm:$0xff]
  %v7294 = vld [vmem:[#allocation4 + $0x1e0] sm:$0xff]
  %v7295 = vld [vmem:[#allocation4 + $0x1e8] sm:$0xff]
  %v7296 = vld [vmem:[#allocation4 + $0x1f0] sm:$0xff]
  %v7297 = vld [vmem:[#allocation4 + $0x1f8] sm:$0xff]
  %v7298 = vld [vmem:[#allocation4 + $0x200] sm:$0xff]
  %v7299 = vld [vmem:[#allocation4 + $0x208] sm:$0xff]
  %v7300 = vld [vmem:[#allocation4 + $0x210] sm:$0xff]
  %v7301 = vld [vmem:[#allocation4 + $0x218] sm:$0xff]
  %v7302 = vld [vmem:[#allocation4 + $0x220] sm:$0xff]
  %v7303 = vld [vmem:[#allocation4 + $0x228] sm:$0xff]
  %v7304 = vld [vmem:[#allocation4 + $0x230] sm:$0xff]
  %v7305 = vld [vmem:[#allocation4 + $0x238] sm:$0xff]
  %v7306 = vld [vmem:[#allocation4 + $0x240] sm:$0xff]
  %v7307 = vld [vmem:[#allocation4 + $0x248] sm:$0xff]
  %v7308 = vld [vmem:[#allocation4 + $0x250] sm:$0xff]
  %v7309 = vld [vmem:[#allocation4 + $0x258] sm:$0xff]
  %v7310 = vld [vmem:[#allocation4 + $0x260] sm:$0xff]
  %v7311 = vld [vmem:[#allocation4 + $0x268] sm:$0xff]
  %v7312 = vld [vmem:[#allocation4 + $0x270] sm:$0xff]
  %v7313 = vld [vmem:[#allocation4 + $0x278] sm:$0xff]
  %v7314 = vld [vmem:[#allocation4 + $0x280] sm:$0xff]
  %v7315 = vld [vmem:[#allocation4 + $0x288] sm:$0xff]
  %v7316 = vld [vmem:[#allocation4 + $0x290] sm:$0xff]
  %v7317 = vld [vmem:[#allocation4 + $0x298] sm:$0xff]
  %v7318 = vld [vmem:[#allocation4 + $0x2a0] sm:$0xff]
  %v7319 = vld [vmem:[#allocation4 + $0x2a8] sm:$0xff]
  %v7320 = vld [vmem:[#allocation4 + $0x2b0] sm:$0xff]
  %v7321 = vld [vmem:[#allocation4 + $0x2b8] sm:$0xff]
  %v7322 = vld [vmem:[#allocation4 + $0x2c0] sm:$0xff]
  %v7323 = vld [vmem:[#allocation4 + $0x2c8] sm:$0xff]
  %v7324 = vld [vmem:[#allocation4 + $0x2d0] sm:$0xff]
  %v7325 = vld [vmem:[#allocation4 + $0x2d8] sm:$0xff]
  %v7326 = vld [vmem:[#allocation4 + $0x2e0] sm:$0xff]
  %v7327 = vld [vmem:[#allocation4 + $0x2e8] sm:$0xff]
  %v7328 = vld [vmem:[#allocation4 + $0x2f0] sm:$0xff]
  %v7329 = vld [vmem:[#allocation4 + $0x2f8] sm:$0xff]
  %v7330 = vld [vmem:[%s5] sm:$0xf]
  %v7331 = vld [vmem:[%s5 + $0x4] sm:$0xf]
  %v7332 = vld [vmem:[%s5 + $0x8] sm:$0xf]
  %v7333 = vld [vmem:[%s5 + $0xc] sm:$0xf]
  %v7334 = vld [vmem:[%s5 + $0x10] sm:$0xf]
  %v7335 = vld [vmem:[%s5 + $0x14] sm:$0xf]
  %v7336 = vld [vmem:[%s5 + $0x18] sm:$0xf]
  %v7337 = vld [vmem:[%s5 + $0x1c] sm:$0xf]
  %v7338 = vld [vmem:[%s5 + $0x20] sm:$0xf]
  %v7339 = vld [vmem:[%s5 + $0x24] sm:$0xf]
  %v7340 = vld [vmem:[%s5 + $0x28] sm:$0xf]
  %v7341 = vld [vmem:[%s5 + $0x2c] sm:$0xf]
  %v7342 = vld [vmem:[%s5 + $0x30] sm:$0xf]
  %v7343 = vld [vmem:[%s5 + $0x34] sm:$0xf]
  %v7344 = vld [vmem:[%s5 + $0x38] sm:$0xf]
  %v7345 = vld [vmem:[%s5 + $0x3c] sm:$0xf]
  %v7346 = vld [vmem:[%s5 + $0x40] sm:$0xf]
  %v7347 = vld [vmem:[%s5 + $0x44] sm:$0xf]
  %v7348 = vld [vmem:[%s5 + $0x48] sm:$0xf]
  %v7349 = vld [vmem:[%s5 + $0x4c] sm:$0xf]
  %v7350 = vld [vmem:[%s5 + $0x50] sm:$0xf]
  %v7351 = vld [vmem:[%s5 + $0x54] sm:$0xf]
  %v7352 = vld [vmem:[%s5 + $0x58] sm:$0xf]
  %v7353 = vld [vmem:[%s5 + $0x5c] sm:$0xf]
  %v7354 = vld [vmem:[%s5 + $0x60] sm:$0xf]
  %v7355 = vld [vmem:[%s5 + $0x64] sm:$0xf]
  %v7356 = vld [vmem:[%s5 + $0x68] sm:$0xf]
  %v7357 = vld [vmem:[%s5 + $0x6c] sm:$0xf]
  %v7358 = vld [vmem:[%s5 + $0x70] sm:$0xf]
  %v7359 = vld [vmem:[%s5 + $0x74] sm:$0xf]
  %v7360 = vld [vmem:[%s5 + $0x78] sm:$0xf]
  %v7361 = vld [vmem:[%s5 + $0x7c] sm:$0xf]
  %v7362 = vld [vmem:[%s5 + $0x80] sm:$0xf]
  %v7363 = vld [vmem:[%s5 + $0x84] sm:$0xf]
  %v7364 = vld [vmem:[%s5 + $0x88] sm:$0xf]
  %v7365 = vld [vmem:[%s5 + $0x8c] sm:$0xf]
  %v7366 = vld [vmem:[%s6] sm:$0x1]
  %v7368 = vlaneseq
  %v7369 = vshrl.u32 %v7368, 7
  %v7370 = vsub.s32 0, %v7369
  %v7371 = vrot.slane %v7366, %v7370
  %v7409 = vunpack.c.l.b16 %v7330
  %v7410 = vunpack.c.l.b16 %v7331
  %v7411 = vunpack.c.l.b16 %v7332
  %v7412 = vunpack.c.l.b16 %v7333
  %v7413 = vunpack.c.l.b16 %v7334
  %v7414 = vunpack.c.l.b16 %v7335
  %v7415 = vunpack.c.l.b16 %v7336
  %v7416 = vunpack.c.l.b16 %v7337
  %v7417 = vunpack.c.l.b16 %v7338
  %v7418 = vunpack.c.l.b16 %v7339
  %v7419 = vunpack.c.l.b16 %v7340
  %v7420 = vunpack.c.l.b16 %v7341
  %v7421 = vunpack.c.l.b16 %v7342
  %v7422 = vunpack.c.l.b16 %v7343
  %v7423 = vunpack.c.l.b16 %v7344
  %v7424 = vunpack.c.l.b16 %v7345
  %v7425 = vunpack.c.l.b16 %v7346
  %v7426 = vunpack.c.l.b16 %v7347
  %v7427 = vunpack.c.l.b16 %v7348
  %v7428 = vunpack.c.l.b16 %v7349
  %v7429 = vunpack.c.l.b16 %v7350
  %v7430 = vunpack.c.l.b16 %v7351
  %v7431 = vunpack.c.l.b16 %v7352
  %v7432 = vunpack.c.l.b16 %v7353
  %v7433 = vunpack.c.l.b16 %v7354
  %v7434 = vunpack.c.l.b16 %v7355
  %v7435 = vunpack.c.l.b16 %v7356
  %v7436 = vunpack.c.l.b16 %v7357
  %v7437 = vunpack.c.l.b16 %v7358
  %v7438 = vunpack.c.l.b16 %v7359
  %v7439 = vunpack.c.l.b16 %v7360
  %v7440 = vunpack.c.l.b16 %v7361
  %v7441 = vunpack.c.l.b16 %v7362
  %v7442 = vunpack.c.l.b16 %v7363
  %v7443 = vunpack.c.l.b16 %v7364
  %v7444 = vunpack.c.l.b16 %v7365
  %v7445 = vpack.c.b16 %v7410, %v7409
  %v7446 = vpack.c.b16 %v7412, %v7411
  %v7447 = vpack.c.b16 %v7414, %v7413
  %v7448 = vpack.c.b16 %v7416, %v7415
  %v7449 = vpack.c.b16 %v7418, %v7417
  %v7450 = vpack.c.b16 %v7420, %v7419
  %v7451 = vpack.c.b16 %v7422, %v7421
  %v7452 = vpack.c.b16 %v7424, %v7423
  %v7453 = vpack.c.b16 %v7426, %v7425
  %v7454 = vpack.c.b16 %v7428, %v7427
  %v7455 = vpack.c.b16 %v7430, %v7429
  %v7456 = vpack.c.b16 %v7432, %v7431
  %v7457 = vpack.c.b16 %v7434, %v7433
  %v7458 = vpack.c.b16 %v7436, %v7435
  %v7459 = vpack.c.b16 %v7438, %v7437
  %v7460 = vpack.c.b16 %v7440, %v7439
  %v7461 = vpack.c.b16 %v7442, %v7441
  %v7462 = vpack.c.b16 %v7444, %v7443
  %v7482 = vsel %vm514, %v7236, 0
  %v7485 = vsel %vm514, %v7239, 0
  %v7488 = vsel %vm514, %v7242, 0
  %v7491 = vsel %vm514, %v7245, 0
  %v7494 = vsel %vm514, %v7248, 0
  %v7497 = vsel %vm514, %v7251, 0
  %v7500 = vsel %vm514, %v7254, 0
  %v7503 = vsel %vm514, %v7257, 0
  %v7506 = vsel %vm514, %v7260, 0
  %v7509 = vsel %vm514, %v7263, 0
  %v7512 = vsel %vm514, %v7266, 0
  %v7515 = vsel %vm514, %v7269, 0
  %v7518 = vsel %vm514, %v7272, 0
  %v7521 = vsel %vm514, %v7275, 0
  %v7524 = vsel %vm514, %v7278, 0
  %v7527 = vsel %vm514, %v7281, 0
  %v7530 = vsel %vm514, %v7284, 0
  %v7533 = vsel %vm514, %v7287, 0
  %v7536 = vsel %vm514, %v7290, 0
  %v7539 = vsel %vm514, %v7293, 0
  %v7542 = vsel %vm514, %v7296, 0
  %v7545 = vsel %vm514, %v7299, 0
  %v7548 = vsel %vm514, %v7302, 0
  %v7551 = vsel %vm514, %v7305, 0
  %v7554 = vsel %vm514, %v7308, 0
  %v7557 = vsel %vm514, %v7311, 0
  %v7560 = vsel %vm514, %v7314, 0
  %v7563 = vsel %vm514, %v7317, 0
  %v7566 = vsel %vm514, %v7320, 0
  %v7569 = vsel %vm514, %v7323, 0
  %v7572 = vsel %vm514, %v7326, 0
  %v7575 = vsel %vm514, %v7329, 0
  %7577 = vmatprep.subr.bf16.mxu0 0
  %7578 = vmatpush1.bf16.msra.mxu0 %v7445
  %7579 = vmatprep.subr.bf16.mxu0 0
  %7580 = vmatpush1.bf16.msra.mxu0 %v7446
  %7581 = vmatprep.subr.bf16.mxu0 0
  %7582 = vmatpush1.bf16.msra.mxu0 %v7447
  %7583 = vmatprep.subr.bf16.mxu0 0
  %7584 = vmatpush1.bf16.msra.mxu0 %v7448
  %7585 = vmatprep.subr.bf16.mxu0 0
  %7586 = vmatpush1.bf16.msra.mxu0 %v7449
  %7587 = vmatprep.subr.bf16.mxu0 0
  %7588 = vmatpush1.bf16.msra.mxu0 %v7450
  %7589 = vmatprep.subr.bf16.mxu0 0
  %7590 = vmatpush1.bf16.msra.mxu0 %v7451
  %7591 = vmatprep.subr.bf16.mxu0 0
  %7592 = vmatpush1.bf16.msra.mxu0 %v7452
  %7593 = vmatprep.subr.bf16.mxu0 0
  %7594 = vmatpush1.bf16.msra.mxu0 %v7453
  %7595 = vmatprep.subr.bf16.mxu0 0
  %7596 = vmatpush1.bf16.msra.mxu0 %v7454
  %7597 = vmatprep.subr.bf16.mxu0 0
  %7598 = vmatpush1.bf16.msra.mxu0 %v7455
  %7599 = vmatprep.subr.bf16.mxu0 0
  %7600 = vmatpush1.bf16.msra.mxu0 %v7456
  %7601 = vmatprep.subr.bf16.mxu0 0
  %7602 = vmatpush1.bf16.msra.mxu0 %v7457
  %7603 = vmatprep.subr.bf16.mxu0 0
  %7604 = vmatpush1.bf16.msra.mxu0 %v7458
  %7605 = vmatprep.subr.bf16.mxu0 0
  %7606 = vmatpush1.bf16.msra.mxu0 %v7459
  %7607 = vmatprep.subr.bf16.mxu0 0
  %7608 = vmatpush1.bf16.msra.mxu0 %v7460
  %7609 = vmatprep.mubr.bf16.mxu0 %v7235
  %7610 = vmatmul.mubr.bf16.gmra.mrb[0].mxu0 %v7234
  %v7611 = vpop.f32.mrb[0].mxu0
  %v7612 = vadd.f32 %v7371, %v7611
  %v7613 = vpop.f32.mrb[0].mxu0
  %v7614 = vpop.f32.mrb[0].mxu0
  %v7615 = vadd.f32 %v7371, %v7614
  %v7616 = vpop.f32.mrb[0].mxu0
  %7617 = vmatprep.mubr.bf16.mxu0 %v7238
  %7618 = vmatmul.mubr.bf16.gmra.mrb[0].mxu0 %v7237
  %v7619 = vpop.f32.mrb[0].mxu0
  %v7620 = vadd.f32 %v7371, %v7619
  %v7621 = vpop.f32.mrb[0].mxu0
  %v7622 = vpop.f32.mrb[0].mxu0
  %v7623 = vadd.f32 %v7371, %v7622
  %v7624 = vpop.f32.mrb[0].mxu0
  %7625 = vmatprep.mubr.bf16.mxu0 %v7241
  %7626 = vmatmul.mubr.bf16.gmra.mrb[0].mxu0 %v7240
  %v7627 = vpop.f32.mrb[0].mxu0
  %v7628 = vadd.f32 %v7371, %v7627
  %v7629 = vpop.f32.mrb[0].mxu0
  %v7630 = vpop.f32.mrb[0].mxu0
  %v7631 = vadd.f32 %v7371, %v7630
  %v7632 = vpop.f32.mrb[0].mxu0
  %7633 = vmatprep.mubr.bf16.mxu0 %v7244
  %7634 = vmatmul.mubr.bf16.gmra.mrb[0].mxu0 %v7243
  %v7635 = vpop.f32.mrb[0].mxu0
  %v7636 = vadd.f32 %v7371, %v7635
  %v7637 = vpop.f32.mrb[0].mxu0
  %v7638 = vpop.f32.mrb[0].mxu0
  %v7639 = vadd.f32 %v7371, %v7638
  %v7640 = vpop.f32.mrb[0].mxu0
  %7641 = vmatprep.mubr.bf16.mxu0 %v7247
  %7642 = vmatmul.mubr.bf16.gmra.mrb[0].mxu0 %v7246
  %v7643 = vpop.f32.mrb[0].mxu0
  %v7644 = vadd.f32 %v7371, %v7643
  %v7645 = vpop.f32.mrb[0].mxu0
  %v7646 = vpop.f32.mrb[0].mxu0
  %v7647 = vadd.f32 %v7371, %v7646
  %v7648 = vpop.f32.mrb[0].mxu0
  %7649 = vmatprep.mubr.bf16.mxu0 %v7250
  %7650 = vmatmul.mubr.bf16.gmra.mrb[0].mxu0 %v7249
  %v7651 = vpop.f32.mrb[0].mxu0
  %v7652 = vadd.f32 %v7371, %v7651
  %v7653 = vpop.f32.mrb[0].mxu0
  %v7654 = vpop.f32.mrb[0].mxu0
  %v7655 = vadd.f32 %v7371, %v7654
  %v7656 = vpop.f32.mrb[0].mxu0
  %7657 = vmatprep.mubr.bf16.mxu0 %v7253
  %7658 = vmatmul.mubr.bf16.gmra.mrb[0].mxu0 %v7252
  %v7659 = vpop.f32.mrb[0].mxu0
  %v7660 = vadd.f32 %v7371, %v7659
  %v7661 = vpop.f32.mrb[0].mxu0
  %v7662 = vpop.f32.mrb[0].mxu0
  %v7663 = vadd.f32 %v7371, %v7662
  %v7664 = vpop.f32.mrb[0].mxu0
  %7665 = vmatprep.mubr.bf16.mxu0 %v7256
  %7666 = vmatmul.mubr.bf16.gmra.mrb[0].mxu0 %v7255
  %v7667 = vpop.f32.mrb[0].mxu0
  %v7668 = vadd.f32 %v7371, %v7667
  %v7669 = vpop.f32.mrb[0].mxu0
  %v7670 = vpop.f32.mrb[0].mxu0
  %v7671 = vadd.f32 %v7371, %v7670
  %v7672 = vpop.f32.mrb[0].mxu0
  %7673 = vmatprep.mubr.bf16.mxu0 %v7259
  %7674 = vmatmul.mubr.bf16.gmra.mrb[0].mxu0 %v7258
  %v7675 = vpop.f32.mrb[0].mxu0
  %v7676 = vadd.f32 %v7371, %v7675
  %v7677 = vpop.f32.mrb[0].mxu0
  %v7678 = vpop.f32.mrb[0].mxu0
  %v7679 = vadd.f32 %v7371, %v7678
  %v7680 = vpop.f32.mrb[0].mxu0
  %7681 = vmatprep.mubr.bf16.mxu0 %v7262
  %7682 = vmatmul.mubr.bf16.gmra.mrb[0].mxu0 %v7261
  %v7683 = vpop.f32.mrb[0].mxu0
  %v7684 = vadd.f32 %v7371, %v7683
  %v7685 = vpop.f32.mrb[0].mxu0
  %v7686 = vpop.f32.mrb[0].mxu0
  %v7687 = vadd.f32 %v7371, %v7686
  %v7688 = vpop.f32.mrb[0].mxu0
  %7689 = vmatprep.mubr.bf16.mxu0 %v7265
  %7690 = vmatmul.mubr.bf16.gmra.mrb[0].mxu0 %v7264
  %v7691 = vpop.f32.mrb[0].mxu0
  %v7692 = vadd.f32 %v7371, %v7691
  %v7693 = vpop.f32.mrb[0].mxu0
  %v7694 = vpop.f32.mrb[0].mxu0
  %v7695 = vadd.f32 %v7371, %v7694
  %v7696 = vpop.f32.mrb[0].mxu0
  %7697 = vmatprep.mubr.bf16.mxu0 %v7268
  %7698 = vmatmul.mubr.bf16.gmra.mrb[0].mxu0 %v7267
  %v7699 = vpop.f32.mrb[0].mxu0
  %v7700 = vadd.f32 %v7371, %v7699
  %v7701 = vpop.f32.mrb[0].mxu0
  %v7702 = vpop.f32.mrb[0].mxu0
  %v7703 = vadd.f32 %v7371, %v7702
  %v7704 = vpop.f32.mrb[0].mxu0
  %7705 = vmatprep.mubr.bf16.mxu0 %v7271
  %7706 = vmatmul.mubr.bf16.gmra.mrb[0].mxu0 %v7270
  %v7707 = vpop.f32.mrb[0].mxu0
  %v7708 = vadd.f32 %v7371, %v7707
  %v7709 = vpop.f32.mrb[0].mxu0
  %v7710 = vpop.f32.mrb[0].mxu0
  %v7711 = vadd.f32 %v7371, %v7710
  %v7712 = vpop.f32.mrb[0].mxu0
  %7713 = vmatprep.mubr.bf16.mxu0 %v7274
  %7714 = vmatmul.mubr.bf16.gmra.mrb[0].mxu0 %v7273
  %v7715 = vpop.f32.mrb[0].mxu0
  %v7716 = vadd.f32 %v7371, %v7715
  %v7717 = vpop.f32.mrb[0].mxu0
  %v7718 = vpop.f32.mrb[0].mxu0
  %v7719 = vadd.f32 %v7371, %v7718
  %v7720 = vpop.f32.mrb[0].mxu0
  %7721 = vmatprep.mubr.bf16.mxu0 %v7277
  %7722 = vmatmul.mubr.bf16.gmra.mrb[0].mxu0 %v7276
  %v7723 = vpop.f32.mrb[0].mxu0
  %v7724 = vadd.f32 %v7371, %v7723
  %v7725 = vpop.f32.mrb[0].mxu0
  %v7726 = vpop.f32.mrb[0].mxu0
  %v7727 = vadd.f32 %v7371, %v7726
  %v7728 = vpop.f32.mrb[0].mxu0
  %7729 = vmatprep.mubr.bf16.mxu0 %v7280
  %7730 = vmatmul.mubr.bf16.gmra.mrb[0].mxu0 %v7279
  %v7731 = vpop.f32.mrb[0].mxu0
  %v7732 = vadd.f32 %v7371, %v7731
  %v7733 = vpop.f32.mrb[0].mxu0
  %v7734 = vpop.f32.mrb[0].mxu0
  %v7735 = vadd.f32 %v7371, %v7734
  %v7736 = vpop.f32.mrb[0].mxu0
  %7737 = vmatprep.mubr.bf16.mxu0 %v7283
  %7738 = vmatmul.mubr.bf16.gmra.mrb[0].mxu0 %v7282
  %v7739 = vpop.f32.mrb[0].mxu0
  %v7740 = vadd.f32 %v7371, %v7739
  %v7741 = vpop.f32.mrb[0].mxu0
  %v7742 = vpop.f32.mrb[0].mxu0
  %v7743 = vadd.f32 %v7371, %v7742
  %v7744 = vpop.f32.mrb[0].mxu0
  %7745 = vmatprep.mubr.bf16.mxu0 %v7286
  %7746 = vmatmul.mubr.bf16.gmra.mrb[0].mxu0 %v7285
  %v7747 = vpop.f32.mrb[0].mxu0
  %v7748 = vadd.f32 %v7371, %v7747
  %v7749 = vpop.f32.mrb[0].mxu0
  %v7750 = vpop.f32.mrb[0].mxu0
  %v7751 = vadd.f32 %v7371, %v7750
  %v7752 = vpop.f32.mrb[0].mxu0
  %7753 = vmatprep.mubr.bf16.mxu0 %v7289
  %7754 = vmatmul.mubr.bf16.gmra.mrb[0].mxu0 %v7288
  %v7755 = vpop.f32.mrb[0].mxu0
  %v7756 = vadd.f32 %v7371, %v7755
  %v7757 = vpop.f32.mrb[0].mxu0
  %v7758 = vpop.f32.mrb[0].mxu0
  %v7759 = vadd.f32 %v7371, %v7758
  %v7760 = vpop.f32.mrb[0].mxu0
  %7761 = vmatprep.mubr.bf16.mxu0 %v7292
  %7762 = vmatmul.mubr.bf16.gmra.mrb[0].mxu0 %v7291
  %v7763 = vpop.f32.mrb[0].mxu0
  %v7764 = vadd.f32 %v7371, %v7763
  %v7765 = vpop.f32.mrb[0].mxu0
  %v7766 = vpop.f32.mrb[0].mxu0
  %v7767 = vadd.f32 %v7371, %v7766
  %v7768 = vpop.f32.mrb[0].mxu0
  %7769 = vmatprep.mubr.bf16.mxu0 %v7295
  %7770 = vmatmul.mubr.bf16.gmra.mrb[0].mxu0 %v7294
  %v7771 = vpop.f32.mrb[0].mxu0
  %v7772 = vadd.f32 %v7371, %v7771
  %v7773 = vpop.f32.mrb[0].mxu0
  %v7774 = vpop.f32.mrb[0].mxu0
  %v7775 = vadd.f32 %v7371, %v7774
  %v7776 = vpop.f32.mrb[0].mxu0
  %7777 = vmatprep.mubr.bf16.mxu0 %v7298
  %7778 = vmatmul.mubr.bf16.gmra.mrb[0].mxu0 %v7297
  %v7779 = vpop.f32.mrb[0].mxu0
  %v7780 = vadd.f32 %v7371, %v7779
  %v7781 = vpop.f32.mrb[0].mxu0
  %v7782 = vpop.f32.mrb[0].mxu0
  %v7783 = vadd.f32 %v7371, %v7782
  %v7784 = vpop.f32.mrb[0].mxu0
  %7785 = vmatprep.mubr.bf16.mxu0 %v7301
  %7786 = vmatmul.mubr.bf16.gmra.mrb[0].mxu0 %v7300
  %v7787 = vpop.f32.mrb[0].mxu0
  %v7788 = vadd.f32 %v7371, %v7787
  %v7789 = vpop.f32.mrb[0].mxu0
  %v7790 = vpop.f32.mrb[0].mxu0
  %v7791 = vadd.f32 %v7371, %v7790
  %v7792 = vpop.f32.mrb[0].mxu0
  %7793 = vmatprep.mubr.bf16.mxu0 %v7304
  %7794 = vmatmul.mubr.bf16.gmra.mrb[0].mxu0 %v7303
  %v7795 = vpop.f32.mrb[0].mxu0
  %v7796 = vadd.f32 %v7371, %v7795
  %v7797 = vpop.f32.mrb[0].mxu0
  %v7798 = vpop.f32.mrb[0].mxu0
  %v7799 = vadd.f32 %v7371, %v7798
  %v7800 = vpop.f32.mrb[0].mxu0
  %7801 = vmatprep.mubr.bf16.mxu0 %v7307
  %7802 = vmatmul.mubr.bf16.gmra.mrb[0].mxu0 %v7306
  %v7803 = vpop.f32.mrb[0].mxu0
  %v7804 = vadd.f32 %v7371, %v7803
  %v7805 = vpop.f32.mrb[0].mxu0
  %v7806 = vpop.f32.mrb[0].mxu0
  %v7807 = vadd.f32 %v7371, %v7806
  %v7808 = vpop.f32.mrb[0].mxu0
  %7809 = vmatprep.mubr.bf16.mxu0 %v7310
  %7810 = vmatmul.mubr.bf16.gmra.mrb[0].mxu0 %v7309
  %v7811 = vpop.f32.mrb[0].mxu0
  %v7812 = vadd.f32 %v7371, %v7811
  %v7813 = vpop.f32.mrb[0].mxu0
  %v7814 = vpop.f32.mrb[0].mxu0
  %v7815 = vadd.f32 %v7371, %v7814
  %v7816 = vpop.f32.mrb[0].mxu0
  %7817 = vmatprep.mubr.bf16.mxu0 %v7313
  %7818 = vmatmul.mubr.bf16.gmra.mrb[0].mxu0 %v7312
  %v7819 = vpop.f32.mrb[0].mxu0
  %v7820 = vadd.f32 %v7371, %v7819
  %v7821 = vpop.f32.mrb[0].mxu0
  %v7822 = vpop.f32.mrb[0].mxu0
  %v7823 = vadd.f32 %v7371, %v7822
  %v7824 = vpop.f32.mrb[0].mxu0
  %7825 = vmatprep.mubr.bf16.mxu0 %v7316
  %7826 = vmatmul.mubr.bf16.gmra.mrb[0].mxu0 %v7315
  %v7827 = vpop.f32.mrb[0].mxu0
  %v7828 = vadd.f32 %v7371, %v7827
  %v7829 = vpop.f32.mrb[0].mxu0
  %v7830 = vpop.f32.mrb[0].mxu0
  %v7831 = vadd.f32 %v7371, %v7830
  %v7832 = vpop.f32.mrb[0].mxu0
  %7833 = vmatprep.mubr.bf16.mxu0 %v7319
  %7834 = vmatmul.mubr.bf16.gmra.mrb[0].mxu0 %v7318
  %v7835 = vpop.f32.mrb[0].mxu0
  %v7836 = vadd.f32 %v7371, %v7835
  %v7837 = vpop.f32.mrb[0].mxu0
  %v7838 = vpop.f32.mrb[0].mxu0
  %v7839 = vadd.f32 %v7371, %v7838
  %v7840 = vpop.f32.mrb[0].mxu0
  %7841 = vmatprep.mubr.bf16.mxu0 %v7322
  %7842 = vmatmul.mubr.bf16.gmra.mrb[0].mxu0 %v7321
  %v7843 = vpop.f32.mrb[0].mxu0
  %v7844 = vadd.f32 %v7371, %v7843
  %v7845 = vpop.f32.mrb[0].mxu0
  %v7846 = vpop.f32.mrb[0].mxu0
  %v7847 = vadd.f32 %v7371, %v7846
  %v7848 = vpop.f32.mrb[0].mxu0
  %7849 = vmatprep.mubr.bf16.mxu0 %v7325
  %7850 = vmatmul.mubr.bf16.gmra.mrb[0].mxu0 %v7324
  %v7851 = vpop.f32.mrb[0].mxu0
  %v7852 = vadd.f32 %v7371, %v7851
  %v7853 = vpop.f32.mrb[0].mxu0
  %v7854 = vpop.f32.mrb[0].mxu0
  %v7855 = vadd.f32 %v7371, %v7854
  %v7856 = vpop.f32.mrb[0].mxu0
  %7857 = vmatprep.mubr.bf16.mxu0 %v7328
  %7858 = vmatmul.mubr.bf16.gmra.mrb[0].mxu0 %v7327
  %v7859 = vpop.f32.mrb[0].mxu0
  %v7860 = vadd.f32 %v7371, %v7859
  %v7861 = vpop.f32.mrb[0].mxu0
  %v7862 = vpop.f32.mrb[0].mxu0
  %v7863 = vadd.f32 %v7371, %v7862
  %v7864 = vpop.f32.mrb[0].mxu0
  %7865 = vdwg.mxu0
  %7866 = vmatprep.subr.bf16.mxu0 0
  %7867 = vmatpush1.bf16.msra.mxu0 %v7461
  %7868 = vmatprep.subr.bf16.mxu0 0
  %7869 = vmatpush1.bf16.msra.mxu0 %v7462
  %7870 = vmatprep.subr.bf16.mxu0 0
  %7871 = vmatpush1.bf16.msra.mxu0 0
  %7872 = vmatprep.subr.bf16.mxu0 0
  %7873 = vmatpush1.bf16.msra.mxu0 0
  %7874 = vmatprep.subr.bf16.mxu0 0
  %7875 = vmatpush1.bf16.msra.mxu0 0
  %7876 = vmatprep.subr.bf16.mxu0 0
  %7877 = vmatpush1.bf16.msra.mxu0 0
  %7878 = vmatprep.subr.bf16.mxu0 0
  %7879 = vmatpush1.bf16.msra.mxu0 0
  %7880 = vmatprep.subr.bf16.mxu0 0
  %7881 = vmatpush1.bf16.msra.mxu0 0
  %7882 = vmatprep.subr.bf16.mxu0 0
  %7883 = vmatpush1.bf16.msra.mxu0 0
  %7884 = vmatprep.subr.bf16.mxu0 0
  %7885 = vmatpush1.bf16.msra.mxu0 0
  %7886 = vmatprep.subr.bf16.mxu0 0
  %7887 = vmatpush1.bf16.msra.mxu0 0
  %7888 = vmatprep.subr.bf16.mxu0 0
  %7889 = vmatpush1.bf16.msra.mxu0 0
  %7890 = vmatprep.subr.bf16.mxu0 0
  %7891 = vmatpush1.bf16.msra.mxu0 0
  %7892 = vmatprep.subr.bf16.mxu0 0
  %7893 = vmatpush1.bf16.msra.mxu0 0
  %7894 = vmatprep.subr.bf16.mxu0 0
  %7895 = vmatpush1.bf16.msra.mxu0 0
  %7896 = vmatprep.subr.bf16.mxu0 0
  %7897 = vmatpush1.bf16.msra.mxu0 0
  %7898 = vmatprep.mubr.bf16.mxu0 0
  %7899 = vmatmul.mubr.bf16.gmra.mrb[0].mxu0 %v7482
  %v7900 = vpop.f32.mrb[0].mxu0
  %v7901 = vadd.f32 %v7612, %v7900
  %v7902 = vpop.f32.mrb[0].mxu0
  %v7903 = vpop.f32.mrb[0].mxu0
  %v7904 = vadd.f32 %v7615, %v7903
  %v7905 = vpop.f32.mrb[0].mxu0
  %7906 = vmatprep.mubr.bf16.mxu0 0
  %7907 = vmatmul.mubr.bf16.gmra.mrb[0].mxu0 %v7485
  %v7908 = vpop.f32.mrb[0].mxu0
  %v7909 = vadd.f32 %v7620, %v7908
  %v7910 = vpop.f32.mrb[0].mxu0
  %v7911 = vpop.f32.mrb[0].mxu0
  %v7912 = vadd.f32 %v7623, %v7911
  %v7913 = vpop.f32.mrb[0].mxu0
  %7914 = vmatprep.mubr.bf16.mxu0 0
  %7915 = vmatmul.mubr.bf16.gmra.mrb[0].mxu0 %v7488
  %v7916 = vpop.f32.mrb[0].mxu0
  %v7917 = vadd.f32 %v7628, %v7916
  %v7918 = vpop.f32.mrb[0].mxu0
  %v7919 = vpop.f32.mrb[0].mxu0
  %v7920 = vadd.f32 %v7631, %v7919
  %v7921 = vpop.f32.mrb[0].mxu0
  %7922 = vmatprep.mubr.bf16.mxu0 0
  %7923 = vmatmul.mubr.bf16.gmra.mrb[0].mxu0 %v7491
  %v7924 = vpop.f32.mrb[0].mxu0
  %v7925 = vadd.f32 %v7636, %v7924
  %v7926 = vpop.f32.mrb[0].mxu0
  %v7927 = vpop.f32.mrb[0].mxu0
  %v7928 = vadd.f32 %v7639, %v7927
  %v7929 = vpop.f32.mrb[0].mxu0
  %7930 = vmatprep.mubr.bf16.mxu0 0
  %7931 = vmatmul.mubr.bf16.gmra.mrb[0].mxu0 %v7494
  %v7932 = vpop.f32.mrb[0].mxu0
  %v7933 = vadd.f32 %v7644, %v7932
  %v7934 = vpop.f32.mrb[0].mxu0
  %v7935 = vpop.f32.mrb[0].mxu0
  %v7936 = vadd.f32 %v7647, %v7935
  %v7937 = vpop.f32.mrb[0].mxu0
  %7938 = vmatprep.mubr.bf16.mxu0 0
  %7939 = vmatmul.mubr.bf16.gmra.mrb[0].mxu0 %v7497
  %v7940 = vpop.f32.mrb[0].mxu0
  %v7941 = vadd.f32 %v7652, %v7940
  %v7942 = vpop.f32.mrb[0].mxu0
  %v7943 = vpop.f32.mrb[0].mxu0
  %v7944 = vadd.f32 %v7655, %v7943
  %v7945 = vpop.f32.mrb[0].mxu0
  %7946 = vmatprep.mubr.bf16.mxu0 0
  %7947 = vmatmul.mubr.bf16.gmra.mrb[0].mxu0 %v7500
  %v7948 = vpop.f32.mrb[0].mxu0
  %v7949 = vadd.f32 %v7660, %v7948
  %v7950 = vpop.f32.mrb[0].mxu0
  %v7951 = vpop.f32.mrb[0].mxu0
  %v7952 = vadd.f32 %v7663, %v7951
  %v7953 = vpop.f32.mrb[0].mxu0
  %7954 = vmatprep.mubr.bf16.mxu0 0
  %7955 = vmatmul.mubr.bf16.gmra.mrb[0].mxu0 %v7503
  %v7956 = vpop.f32.mrb[0].mxu0
  %v7957 = vadd.f32 %v7668, %v7956
  %v7958 = vpop.f32.mrb[0].mxu0
  %v7959 = vpop.f32.mrb[0].mxu0
  %v7960 = vadd.f32 %v7671, %v7959
  %v7961 = vpop.f32.mrb[0].mxu0
  %7962 = vmatprep.mubr.bf16.mxu0 0
  %7963 = vmatmul.mubr.bf16.gmra.mrb[0].mxu0 %v7506
  %v7964 = vpop.f32.mrb[0].mxu0
  %v7965 = vadd.f32 %v7676, %v7964
  %v7966 = vpop.f32.mrb[0].mxu0
  %v7967 = vpop.f32.mrb[0].mxu0
  %v7968 = vadd.f32 %v7679, %v7967
  %v7969 = vpop.f32.mrb[0].mxu0
  %7970 = vmatprep.mubr.bf16.mxu0 0
  %7971 = vmatmul.mubr.bf16.gmra.mrb[0].mxu0 %v7509
  %v7972 = vpop.f32.mrb[0].mxu0
  %v7973 = vadd.f32 %v7684, %v7972
  %v7974 = vpop.f32.mrb[0].mxu0
  %v7975 = vpop.f32.mrb[0].mxu0
  %v7976 = vadd.f32 %v7687, %v7975
  %v7977 = vpop.f32.mrb[0].mxu0
  %7978 = vmatprep.mubr.bf16.mxu0 0
  %7979 = vmatmul.mubr.bf16.gmra.mrb[0].mxu0 %v7512
  %v7980 = vpop.f32.mrb[0].mxu0
  %v7981 = vadd.f32 %v7692, %v7980
  %v7982 = vpop.f32.mrb[0].mxu0
  %v7983 = vpop.f32.mrb[0].mxu0
  %v7984 = vadd.f32 %v7695, %v7983
  %v7985 = vpop.f32.mrb[0].mxu0
  %7986 = vmatprep.mubr.bf16.mxu0 0
  %7987 = vmatmul.mubr.bf16.gmra.mrb[0].mxu0 %v7515
  %v7988 = vpop.f32.mrb[0].mxu0
  %v7989 = vadd.f32 %v7700, %v7988
  %v7990 = vpop.f32.mrb[0].mxu0
  %v7991 = vpop.f32.mrb[0].mxu0
  %v7992 = vadd.f32 %v7703, %v7991
  %v7993 = vpop.f32.mrb[0].mxu0
  %7994 = vmatprep.mubr.bf16.mxu0 0
  %7995 = vmatmul.mubr.bf16.gmra.mrb[0].mxu0 %v7518
  %v7996 = vpop.f32.mrb[0].mxu0
  %v7997 = vadd.f32 %v7708, %v7996
  %v7998 = vpop.f32.mrb[0].mxu0
  %v7999 = vpop.f32.mrb[0].mxu0
  %v8000 = vadd.f32 %v7711, %v7999
  %v8001 = vpop.f32.mrb[0].mxu0
  %8002 = vmatprep.mubr.bf16.mxu0 0
  %8003 = vmatmul.mubr.bf16.gmra.mrb[0].mxu0 %v7521
  %v8004 = vpop.f32.mrb[0].mxu0
  %v8005 = vadd.f32 %v7716, %v8004
  %v8006 = vpop.f32.mrb[0].mxu0
  %v8007 = vpop.f32.mrb[0].mxu0
  %v8008 = vadd.f32 %v7719, %v8007
  %v8009 = vpop.f32.mrb[0].mxu0
  %8010 = vmatprep.mubr.bf16.mxu0 0
  %8011 = vmatmul.mubr.bf16.gmra.mrb[0].mxu0 %v7524
  %v8012 = vpop.f32.mrb[0].mxu0
  %v8013 = vadd.f32 %v7724, %v8012
  %v8014 = vpop.f32.mrb[0].mxu0
  %v8015 = vpop.f32.mrb[0].mxu0
  %v8016 = vadd.f32 %v7727, %v8015
  %v8017 = vpop.f32.mrb[0].mxu0
  %8018 = vmatprep.mubr.bf16.mxu0 0
  %8019 = vmatmul.mubr.bf16.gmra.mrb[0].mxu0 %v7527
  %v8020 = vpop.f32.mrb[0].mxu0
  %v8021 = vadd.f32 %v7732, %v8020
  %v8022 = vpop.f32.mrb[0].mxu0
  %v8023 = vpop.f32.mrb[0].mxu0
  %v8024 = vadd.f32 %v7735, %v8023
  %v8025 = vpop.f32.mrb[0].mxu0
  %8026 = vmatprep.mubr.bf16.mxu0 0
  %8027 = vmatmul.mubr.bf16.gmra.mrb[0].mxu0 %v7530
  %v8028 = vpop.f32.mrb[0].mxu0
  %v8029 = vadd.f32 %v7740, %v8028
  %v8030 = vpop.f32.mrb[0].mxu0
  %v8031 = vpop.f32.mrb[0].mxu0
  %v8032 = vadd.f32 %v7743, %v8031
  %v8033 = vpop.f32.mrb[0].mxu0
  %8034 = vmatprep.mubr.bf16.mxu0 0
  %8035 = vmatmul.mubr.bf16.gmra.mrb[0].mxu0 %v7533
  %v8036 = vpop.f32.mrb[0].mxu0
  %v8037 = vadd.f32 %v7748, %v8036
  %v8038 = vpop.f32.mrb[0].mxu0
  %v8039 = vpop.f32.mrb[0].mxu0
  %v8040 = vadd.f32 %v7751, %v8039
  %v8041 = vpop.f32.mrb[0].mxu0
  %8042 = vmatprep.mubr.bf16.mxu0 0
  %8043 = vmatmul.mubr.bf16.gmra.mrb[0].mxu0 %v7536
  %v8044 = vpop.f32.mrb[0].mxu0
  %v8045 = vadd.f32 %v7756, %v8044
  %v8046 = vpop.f32.mrb[0].mxu0
  %v8047 = vpop.f32.mrb[0].mxu0
  %v8048 = vadd.f32 %v7759, %v8047
  %v8049 = vpop.f32.mrb[0].mxu0
  %8050 = vmatprep.mubr.bf16.mxu0 0
  %8051 = vmatmul.mubr.bf16.gmra.mrb[0].mxu0 %v7539
  %v8052 = vpop.f32.mrb[0].mxu0
  %v8053 = vadd.f32 %v7764, %v8052
  %v8054 = vpop.f32.mrb[0].mxu0
  %v8055 = vpop.f32.mrb[0].mxu0
  %v8056 = vadd.f32 %v7767, %v8055
  %v8057 = vpop.f32.mrb[0].mxu0
  %8058 = vmatprep.mubr.bf16.mxu0 0
  %8059 = vmatmul.mubr.bf16.gmra.mrb[0].mxu0 %v7542
  %v8060 = vpop.f32.mrb[0].mxu0
  %v8061 = vadd.f32 %v7772, %v8060
  %v8062 = vpop.f32.mrb[0].mxu0
  %v8063 = vpop.f32.mrb[0].mxu0
  %v8064 = vadd.f32 %v7775, %v8063
  %v8065 = vpop.f32.mrb[0].mxu0
  %8066 = vmatprep.mubr.bf16.mxu0 0
  %8067 = vmatmul.mubr.bf16.gmra.mrb[0].mxu0 %v7545
  %v8068 = vpop.f32.mrb[0].mxu0
  %v8069 = vadd.f32 %v7780, %v8068
  %v8070 = vpop.f32.mrb[0].mxu0
  %v8071 = vpop.f32.mrb[0].mxu0
  %v8072 = vadd.f32 %v7783, %v8071
  %v8073 = vpop.f32.mrb[0].mxu0
  %8074 = vmatprep.mubr.bf16.mxu0 0
  %8075 = vmatmul.mubr.bf16.gmra.mrb[0].mxu0 %v7548
  %v8076 = vpop.f32.mrb[0].mxu0
  %v8077 = vadd.f32 %v7788, %v8076
  %v8078 = vpop.f32.mrb[0].mxu0
  %v8079 = vpop.f32.mrb[0].mxu0
  %v8080 = vadd.f32 %v7791, %v8079
  %v8081 = vpop.f32.mrb[0].mxu0
  %8082 = vmatprep.mubr.bf16.mxu0 0
  %8083 = vmatmul.mubr.bf16.gmra.mrb[0].mxu0 %v7551
  %v8084 = vpop.f32.mrb[0].mxu0
  %v8085 = vadd.f32 %v7796, %v8084
  %v8086 = vpop.f32.mrb[0].mxu0
  %v8087 = vpop.f32.mrb[0].mxu0
  %v8088 = vadd.f32 %v7799, %v8087
  %v8089 = vpop.f32.mrb[0].mxu0
  %8090 = vmatprep.mubr.bf16.mxu0 0
  %8091 = vmatmul.mubr.bf16.gmra.mrb[0].mxu0 %v7554
  %v8092 = vpop.f32.mrb[0].mxu0
  %v8093 = vadd.f32 %v7804, %v8092
  %v8094 = vpop.f32.mrb[0].mxu0
  %v8095 = vpop.f32.mrb[0].mxu0
  %v8096 = vadd.f32 %v7807, %v8095
  %v8097 = vpop.f32.mrb[0].mxu0
  %8098 = vmatprep.mubr.bf16.mxu0 0
  %8099 = vmatmul.mubr.bf16.gmra.mrb[0].mxu0 %v7557
  %v8100 = vpop.f32.mrb[0].mxu0
  %v8101 = vadd.f32 %v7812, %v8100
  %v8102 = vpop.f32.mrb[0].mxu0
  %v8103 = vpop.f32.mrb[0].mxu0
  %v8104 = vadd.f32 %v7815, %v8103
  %v8105 = vpop.f32.mrb[0].mxu0
  %8106 = vmatprep.mubr.bf16.mxu0 0
  %8107 = vmatmul.mubr.bf16.gmra.mrb[0].mxu0 %v7560
  %v8108 = vpop.f32.mrb[0].mxu0
  %v8109 = vadd.f32 %v7820, %v8108
  %v8110 = vpop.f32.mrb[0].mxu0
  %v8111 = vpop.f32.mrb[0].mxu0
  %v8112 = vadd.f32 %v7823, %v8111
  %v8113 = vpop.f32.mrb[0].mxu0
  %8114 = vmatprep.mubr.bf16.mxu0 0
  %8115 = vmatmul.mubr.bf16.gmra.mrb[0].mxu0 %v7563
  %v8116 = vpop.f32.mrb[0].mxu0
  %v8117 = vadd.f32 %v7828, %v8116
  %v8118 = vpop.f32.mrb[0].mxu0
  %v8119 = vpop.f32.mrb[0].mxu0
  %v8120 = vadd.f32 %v7831, %v8119
  %v8121 = vpop.f32.mrb[0].mxu0
  %8122 = vmatprep.mubr.bf16.mxu0 0
  %8123 = vmatmul.mubr.bf16.gmra.mrb[0].mxu0 %v7566
  %v8124 = vpop.f32.mrb[0].mxu0
  %v8125 = vadd.f32 %v7836, %v8124
  %v8126 = vpop.f32.mrb[0].mxu0
  %v8127 = vpop.f32.mrb[0].mxu0
  %v8128 = vadd.f32 %v7839, %v8127
  %v8129 = vpop.f32.mrb[0].mxu0
  %8130 = vmatprep.mubr.bf16.mxu0 0
  %8131 = vmatmul.mubr.bf16.gmra.mrb[0].mxu0 %v7569
  %v8132 = vpop.f32.mrb[0].mxu0
  %v8133 = vadd.f32 %v7844, %v8132
  %v8134 = vpop.f32.mrb[0].mxu0
  %v8135 = vpop.f32.mrb[0].mxu0
  %v8136 = vadd.f32 %v7847, %v8135
  %v8137 = vpop.f32.mrb[0].mxu0
  %8138 = vmatprep.mubr.bf16.mxu0 0
  %8139 = vmatmul.mubr.bf16.gmra.mrb[0].mxu0 %v7572
  %v8140 = vpop.f32.mrb[0].mxu0
  %v8141 = vadd.f32 %v7852, %v8140
  %v8142 = vpop.f32.mrb[0].mxu0
  %v8143 = vpop.f32.mrb[0].mxu0
  %v8144 = vadd.f32 %v7855, %v8143
  %v8145 = vpop.f32.mrb[0].mxu0
  %8146 = vmatprep.mubr.bf16.mxu0 0
  %8147 = vmatmul.mubr.bf16.gmra.mrb[0].mxu0 %v7575
  %v8148 = vpop.f32.mrb[0].mxu0
  %v8149 = vadd.f32 %v7860, %v8148
  %v8150 = vpop.f32.mrb[0].mxu0
  %v8151 = vpop.f32.mrb[0].mxu0
  %v8152 = vadd.f32 %v7863, %v8151
  %v8153 = vpop.f32.mrb[0].mxu0
  %8154 = vdwg.mxu0
  %8155 = vst.msk [vmem:[%s9] sm:$0xff] %vm514, %v7901
  %8156 = vst.msk [vmem:[%s9 + $0x8] sm:$0xff] %vm514, %v7904
  %8157 = vst.msk [vmem:[%s9 + $0x10] sm:$0xff] %vm514, %v7909
  %8158 = vst.msk [vmem:[%s9 + $0x18] sm:$0xff] %vm514, %v7912
  %8159 = vst.msk [vmem:[%s9 + $0x20] sm:$0xff] %vm514, %v7917
  %8160 = vst.msk [vmem:[%s9 + $0x28] sm:$0xff] %vm514, %v7920
  %8161 = vst.msk [vmem:[%s9 + $0x30] sm:$0xff] %vm514, %v7925
  %8162 = vst.msk [vmem:[%s9 + $0x38] sm:$0xff] %vm514, %v7928
  %8163 = vst.msk [vmem:[%s9 + $0x40] sm:$0xff] %vm514, %v7933
  %8164 = vst.msk [vmem:[%s9 + $0x48] sm:$0xff] %vm514, %v7936
  %8165 = vst.msk [vmem:[%s9 + $0x50] sm:$0xff] %vm514, %v7941
  %8166 = vst.msk [vmem:[%s9 + $0x58] sm:$0xff] %vm514, %v7944
  %8167 = vst.msk [vmem:[%s9 + $0x60] sm:$0xff] %vm514, %v7949
  %8168 = vst.msk [vmem:[%s9 + $0x68] sm:$0xff] %vm514, %v7952
  %8169 = vst.msk [vmem:[%s9 + $0x70] sm:$0xff] %vm514, %v7957
  %8170 = vst.msk [vmem:[%s9 + $0x78] sm:$0xff] %vm514, %v7960
  %8171 = vst.msk [vmem:[%s9 + $0x80] sm:$0xff] %vm514, %v7965
  %8172 = vst.msk [vmem:[%s9 + $0x88] sm:$0xff] %vm514, %v7968
  %8173 = vst.msk [vmem:[%s9 + $0x90] sm:$0xff] %vm514, %v7973
  %8174 = vst.msk [vmem:[%s9 + $0x98] sm:$0xff] %vm514, %v7976
  %8175 = vst.msk [vmem:[%s9 + $0xa0] sm:$0xff] %vm514, %v7981
  %8176 = vst.msk [vmem:[%s9 + $0xa8] sm:$0xff] %vm514, %v7984
  %8177 = vst.msk [vmem:[%s9 + $0xb0] sm:$0xff] %vm514, %v7989
  %8178 = vst.msk [vmem:[%s9 + $0xb8] sm:$0xff] %vm514, %v7992
  %8179 = vst.msk [vmem:[%s9 + $0xc0] sm:$0xff] %vm514, %v7997
  %8180 = vst.msk [vmem:[%s9 + $0xc8] sm:$0xff] %vm514, %v8000
  %8181 = vst.msk [vmem:[%s9 + $0xd0] sm:$0xff] %vm514, %v8005
  %8182 = vst.msk [vmem:[%s9 + $0xd8] sm:$0xff] %vm514, %v8008
  %8183 = vst.msk [vmem:[%s9 + $0xe0] sm:$0xff] %vm514, %v8013
  %8184 = vst.msk [vmem:[%s9 + $0xe8] sm:$0xff] %vm514, %v8016
  %8185 = vst.msk [vmem:[%s9 + $0xf0] sm:$0xff] %vm514, %v8021
  %8186 = vst.msk [vmem:[%s9 + $0xf8] sm:$0xff] %vm514, %v8024
  %8187 = vst.msk [vmem:[%s9 + $0x100] sm:$0xff] %vm514, %v8029
  %8188 = vst.msk [vmem:[%s9 + $0x108] sm:$0xff] %vm514, %v8032
  %8189 = vst.msk [vmem:[%s9 + $0x110] sm:$0xff] %vm514, %v8037
  %8190 = vst.msk [vmem:[%s9 + $0x118] sm:$0xff] %vm514, %v8040
  %8191 = vst.msk [vmem:[%s9 + $0x120] sm:$0xff] %vm514, %v8045
  %8192 = vst.msk [vmem:[%s9 + $0x128] sm:$0xff] %vm514, %v8048
  %8193 = vst.msk [vmem:[%s9 + $0x130] sm:$0xff] %vm514, %v8053
  %8194 = vst.msk [vmem:[%s9 + $0x138] sm:$0xff] %vm514, %v8056
  %8195 = vst.msk [vmem:[%s9 + $0x140] sm:$0xff] %vm514, %v8061
  %8196 = vst.msk [vmem:[%s9 + $0x148] sm:$0xff] %vm514, %v8064
  %8197 = vst.msk [vmem:[%s9 + $0x150] sm:$0xff] %vm514, %v8069
  %8198 = vst.msk [vmem:[%s9 + $0x158] sm:$0xff] %vm514, %v8072
  %8199 = vst.msk [vmem:[%s9 + $0x160] sm:$0xff] %vm514, %v8077
  %8200 = vst.msk [vmem:[%s9 + $0x168] sm:$0xff] %vm514, %v8080
  %8201 = vst.msk [vmem:[%s9 + $0x170] sm:$0xff] %vm514, %v8085
  %8202 = vst.msk [vmem:[%s9 + $0x178] sm:$0xff] %vm514, %v8088
  %8203 = vst.msk [vmem:[%s9 + $0x180] sm:$0xff] %vm514, %v8093
  %8204 = vst.msk [vmem:[%s9 + $0x188] sm:$0xff] %vm514, %v8096
  %8205 = vst.msk [vmem:[%s9 + $0x190] sm:$0xff] %vm514, %v8101
  %8206 = vst.msk [vmem:[%s9 + $0x198] sm:$0xff] %vm514, %v8104
  %8207 = vst.msk [vmem:[%s9 + $0x1a0] sm:$0xff] %vm514, %v8109
  %8208 = vst.msk [vmem:[%s9 + $0x1a8] sm:$0xff] %vm514, %v8112
  %8209 = vst.msk [vmem:[%s9 + $0x1b0] sm:$0xff] %vm514, %v8117
  %8210 = vst.msk [vmem:[%s9 + $0x1b8] sm:$0xff] %vm514, %v8120
  %8211 = vst.msk [vmem:[%s9 + $0x1c0] sm:$0xff] %vm514, %v8125
  %8212 = vst.msk [vmem:[%s9 + $0x1c8] sm:$0xff] %vm514, %v8128
  %8213 = vst.msk [vmem:[%s9 + $0x1d0] sm:$0xff] %vm514, %v8133
  %8214 = vst.msk [vmem:[%s9 + $0x1d8] sm:$0xff] %vm514, %v8136
  %8215 = vst.msk [vmem:[%s9 + $0x1e0] sm:$0xff] %vm514, %v8141
  %8216 = vst.msk [vmem:[%s9 + $0x1e8] sm:$0xff] %vm514, %v8144
  %8217 = vst.msk [vmem:[%s9 + $0x1f0] sm:$0xff] %vm514, %v8149
  %8218 = vst.msk [vmem:[%s9 + $0x1f8] sm:$0xff] %vm514, %v8152
  %v8219 = vld [vmem:[%s9] sm:$0xff]
  %v8220 = vld [vmem:[%s9 + $0x8] sm:$0xff]
  %v8221 = vld [vmem:[%s9 + $0x10] sm:$0xff]
  %v8222 = vld [vmem:[%s9 + $0x18] sm:$0xff]
  %v8223 = vld [vmem:[%s9 + $0x20] sm:$0xff]
  %v8224 = vld [vmem:[%s9 + $0x28] sm:$0xff]
  %v8225 = vld [vmem:[%s9 + $0x30] sm:$0xff]
  %v8226 = vld [vmem:[%s9 + $0x38] sm:$0xff]
  %v8227 = vld [vmem:[%s9 + $0x40] sm:$0xff]
  %v8228 = vld [vmem:[%s9 + $0x48] sm:$0xff]
  %v8229 = vld [vmem:[%s9 + $0x50] sm:$0xff]
  %v8230 = vld [vmem:[%s9 + $0x58] sm:$0xff]
  %v8231 = vld [vmem:[%s9 + $0x60] sm:$0xff]
  %v8232 = vld [vmem:[%s9 + $0x68] sm:$0xff]
  %v8233 = vld [vmem:[%s9 + $0x70] sm:$0xff]
  %v8234 = vld [vmem:[%s9 + $0x78] sm:$0xff]
  %v8235 = vld [vmem:[%s9 + $0x80] sm:$0xff]
  %v8236 = vld [vmem:[%s9 + $0x88] sm:$0xff]
  %v8237 = vld [vmem:[%s9 + $0x90] sm:$0xff]
  %v8238 = vld [vmem:[%s9 + $0x98] sm:$0xff]
  %v8239 = vld [vmem:[%s9 + $0xa0] sm:$0xff]
  %v8240 = vld [vmem:[%s9 + $0xa8] sm:$0xff]
  %v8241 = vld [vmem:[%s9 + $0xb0] sm:$0xff]
  %v8242 = vld [vmem:[%s9 + $0xb8] sm:$0xff]
  %v8243 = vld [vmem:[%s9 + $0xc0] sm:$0xff]
  %v8244 = vld [vmem:[%s9 + $0xc8] sm:$0xff]
  %v8245 = vld [vmem:[%s9 + $0xd0] sm:$0xff]
  %v8246 = vld [vmem:[%s9 + $0xd8] sm:$0xff]
  %v8247 = vld [vmem:[%s9 + $0xe0] sm:$0xff]
  %v8248 = vld [vmem:[%s9 + $0xe8] sm:$0xff]
  %v8249 = vld [vmem:[%s9 + $0xf0] sm:$0xff]
  %v8250 = vld [vmem:[%s9 + $0xf8] sm:$0xff]
  %v8251 = vld [vmem:[%s9 + $0x100] sm:$0xff]
  %v8252 = vld [vmem:[%s9 + $0x108] sm:$0xff]
  %v8253 = vld [vmem:[%s9 + $0x110] sm:$0xff]
  %v8254 = vld [vmem:[%s9 + $0x118] sm:$0xff]
  %v8255 = vld [vmem:[%s9 + $0x120] sm:$0xff]
  %v8256 = vld [vmem:[%s9 + $0x128] sm:$0xff]
  %v8257 = vld [vmem:[%s9 + $0x130] sm:$0xff]
  %v8258 = vld [vmem:[%s9 + $0x138] sm:$0xff]
  %v8259 = vld [vmem:[%s9 + $0x140] sm:$0xff]
  %v8260 = vld [vmem:[%s9 + $0x148] sm:$0xff]
  %v8261 = vld [vmem:[%s9 + $0x150] sm:$0xff]
  %v8262 = vld [vmem:[%s9 + $0x158] sm:$0xff]
  %v8263 = vld [vmem:[%s9 + $0x160] sm:$0xff]
  %v8264 = vld [vmem:[%s9 + $0x168] sm:$0xff]
  %v8265 = vld [vmem:[%s9 + $0x170] sm:$0xff]
  %v8266 = vld [vmem:[%s9 + $0x178] sm:$0xff]
  %v8267 = vld [vmem:[%s9 + $0x180] sm:$0xff]
  %v8268 = vld [vmem:[%s9 + $0x188] sm:$0xff]
  %v8269 = vld [vmem:[%s9 + $0x190] sm:$0xff]
  %v8270 = vld [vmem:[%s9 + $0x198] sm:$0xff]
  %v8271 = vld [vmem:[%s9 + $0x1a0] sm:$0xff]
  %v8272 = vld [vmem:[%s9 + $0x1a8] sm:$0xff]
  %v8273 = vld [vmem:[%s9 + $0x1b0] sm:$0xff]
  %v8274 = vld [vmem:[%s9 + $0x1b8] sm:$0xff]
  %v8275 = vld [vmem:[%s9 + $0x1c0] sm:$0xff]
  %v8276 = vld [vmem:[%s9 + $0x1c8] sm:$0xff]
  %v8277 = vld [vmem:[%s9 + $0x1d0] sm:$0xff]
  %v8278 = vld [vmem:[%s9 + $0x1d8] sm:$0xff]
  %v8279 = vld [vmem:[%s9 + $0x1e0] sm:$0xff]
  %v8280 = vld [vmem:[%s9 + $0x1e8] sm:$0xff]
  %v8281 = vld [vmem:[%s9 + $0x1f0] sm:$0xff]
  %v8282 = vld [vmem:[%s9 + $0x1f8] sm:$0xff]
  %v8283 = vsel %vm514, %v8219, 0.0
  %v8284 = vsel %vm514, %v8220, 0.0
  %v8285 = vadd.f32 %v8283, %v8284
  %v8286 = vsel %vm514, %v8221, 0.0
  %v8287 = vadd.f32 %v8285, %v8286
  %v8288 = vsel %vm514, %v8222, 0.0
  %v8289 = vadd.f32 %v8287, %v8288
  %v8290 = vsel %vm514, %v8223, 0.0
  %v8291 = vadd.f32 %v8289, %v8290
  %v8292 = vsel %vm514, %v8224, 0.0
  %v8293 = vadd.f32 %v8291, %v8292
  %v8294 = vsel %vm514, %v8225, 0.0
  %v8295 = vadd.f32 %v8293, %v8294
  %v8296 = vsel %vm514, %v8226, 0.0
  %v8297 = vadd.f32 %v8295, %v8296
  %v8298 = vsel %vm514, %v8227, 0.0
  %v8299 = vadd.f32 %v8297, %v8298
  %v8300 = vsel %vm514, %v8228, 0.0
  %v8301 = vadd.f32 %v8299, %v8300
  %v8302 = vsel %vm514, %v8229, 0.0
  %v8303 = vadd.f32 %v8301, %v8302
  %v8304 = vsel %vm514, %v8230, 0.0
  %v8305 = vadd.f32 %v8303, %v8304
  %v8306 = vsel %vm514, %v8231, 0.0
  %v8307 = vadd.f32 %v8305, %v8306
  %v8308 = vsel %vm514, %v8232, 0.0
  %v8309 = vadd.f32 %v8307, %v8308
  %v8310 = vsel %vm514, %v8233, 0.0
  %v8311 = vadd.f32 %v8309, %v8310
  %v8312 = vsel %vm514, %v8234, 0.0
  %v8313 = vadd.f32 %v8311, %v8312
  %v8314 = vsel %vm514, %v8235, 0.0
  %v8315 = vadd.f32 %v8313, %v8314
  %v8316 = vsel %vm514, %v8236, 0.0
  %v8317 = vadd.f32 %v8315, %v8316
  %v8318 = vsel %vm514, %v8237, 0.0
  %v8319 = vadd.f32 %v8317, %v8318
  %v8320 = vsel %vm514, %v8238, 0.0
  %v8321 = vadd.f32 %v8319, %v8320
  %v8322 = vsel %vm514, %v8239, 0.0
  %v8323 = vadd.f32 %v8321, %v8322
  %v8324 = vsel %vm514, %v8240, 0.0
  %v8325 = vadd.f32 %v8323, %v8324
  %v8326 = vsel %vm514, %v8241, 0.0
  %v8327 = vadd.f32 %v8325, %v8326
  %v8328 = vsel %vm514, %v8242, 0.0
  %v8329 = vadd.f32 %v8327, %v8328
  %v8330 = vsel %vm514, %v8243, 0.0
  %v8331 = vadd.f32 %v8329, %v8330
  %v8332 = vsel %vm514, %v8244, 0.0
  %v8333 = vadd.f32 %v8331, %v8332
  %v8334 = vsel %vm514, %v8245, 0.0
  %v8335 = vadd.f32 %v8333, %v8334
  %v8336 = vsel %vm514, %v8246, 0.0
  %v8337 = vadd.f32 %v8335, %v8336
  %v8338 = vsel %vm514, %v8247, 0.0
  %v8339 = vadd.f32 %v8337, %v8338
  %v8340 = vsel %vm514, %v8248, 0.0
  %v8341 = vadd.f32 %v8339, %v8340
  %v8342 = vsel %vm514, %v8249, 0.0
  %v8343 = vadd.f32 %v8341, %v8342
  %v8344 = vsel %vm514, %v8250, 0.0
  %v8345 = vadd.f32 %v8343, %v8344
  %v8346 = vsel %vm514, %v8251, 0.0
  %v8347 = vadd.f32 %v8345, %v8346
  %v8348 = vsel %vm514, %v8252, 0.0
  %v8349 = vadd.f32 %v8347, %v8348
  %v8350 = vsel %vm514, %v8253, 0.0
  %v8351 = vadd.f32 %v8349, %v8350
  %v8352 = vsel %vm514, %v8254, 0.0
  %v8353 = vadd.f32 %v8351, %v8352
  %v8354 = vsel %vm514, %v8255, 0.0
  %v8355 = vadd.f32 %v8353, %v8354
  %v8356 = vsel %vm514, %v8256, 0.0
  %v8357 = vadd.f32 %v8355, %v8356
  %v8358 = vsel %vm514, %v8257, 0.0
  %v8359 = vadd.f32 %v8357, %v8358
  %v8360 = vsel %vm514, %v8258, 0.0
  %v8361 = vadd.f32 %v8359, %v8360
  %v8362 = vsel %vm514, %v8259, 0.0
  %v8363 = vadd.f32 %v8361, %v8362
  %v8364 = vsel %vm514, %v8260, 0.0
  %v8365 = vadd.f32 %v8363, %v8364
  %v8366 = vsel %vm514, %v8261, 0.0
  %v8367 = vadd.f32 %v8365, %v8366
  %v8368 = vsel %vm514, %v8262, 0.0
  %v8369 = vadd.f32 %v8367, %v8368
  %v8370 = vsel %vm514, %v8263, 0.0
  %v8371 = vadd.f32 %v8369, %v8370
  %v8372 = vsel %vm514, %v8264, 0.0
  %v8373 = vadd.f32 %v8371, %v8372
  %v8374 = vsel %vm514, %v8265, 0.0
  %v8375 = vadd.f32 %v8373, %v8374
  %v8376 = vsel %vm514, %v8266, 0.0
  %v8377 = vadd.f32 %v8375, %v8376
  %v8378 = vsel %vm514, %v8267, 0.0
  %v8379 = vadd.f32 %v8377, %v8378
  %v8380 = vsel %vm514, %v8268, 0.0
  %v8381 = vadd.f32 %v8379, %v8380
  %v8382 = vsel %vm514, %v8269, 0.0
  %v8383 = vadd.f32 %v8381, %v8382
  %v8384 = vsel %vm514, %v8270, 0.0
  %v8385 = vadd.f32 %v8383, %v8384
  %v8386 = vsel %vm514, %v8271, 0.0
  %v8387 = vadd.f32 %v8385, %v8386
  %v8388 = vsel %vm514, %v8272, 0.0
  %v8389 = vadd.f32 %v8387, %v8388
  %v8390 = vsel %vm514, %v8273, 0.0
  %v8391 = vadd.f32 %v8389, %v8390
  %v8392 = vsel %vm514, %v8274, 0.0
  %v8393 = vadd.f32 %v8391, %v8392
  %v8394 = vsel %vm514, %v8275, 0.0
  %v8395 = vadd.f32 %v8393, %v8394
  %v8396 = vsel %vm514, %v8276, 0.0
  %v8397 = vadd.f32 %v8395, %v8396
  %v8398 = vsel %vm514, %v8277, 0.0
  %v8399 = vadd.f32 %v8397, %v8398
  %v8400 = vsel %vm514, %v8278, 0.0
  %v8401 = vadd.f32 %v8399, %v8400
  %v8402 = vsel %vm514, %v8279, 0.0
  %v8403 = vadd.f32 %v8401, %v8402
  %v8404 = vsel %vm514, %v8280, 0.0
  %v8405 = vadd.f32 %v8403, %v8404
  %v8406 = vsel %vm514, %v8281, 0.0
  %v8407 = vadd.f32 %v8405, %v8406
  %v8408 = vsel %vm514, %v8282, 0.0
  %v8409 = vadd.f32 %v8407, %v8408
  %v8410 = vrot.slane %v8409, 4
  %v8411 = vadd.f32 %v8409, %v8410
  %v8412 = vrot.slane %v8411, 2
  %v8413 = vadd.f32 %v8411, %v8412
  %v8414 = vrot.slane %v8413, 1
  %v8415 = vadd.f32 %v8413, %v8414
  %v8416 = vmul.f32 %v8415, 0.001953125
  %v8417 = vmul.f32 %v8219, %v8219
  %v8418 = vmul.f32 %v8220, %v8220
  %v8419 = vmul.f32 %v8221, %v8221
  %v8420 = vmul.f32 %v8222, %v8222
  %v8421 = vmul.f32 %v8223, %v8223
  %v8422 = vmul.f32 %v8224, %v8224
  %v8423 = vmul.f32 %v8225, %v8225
  %v8424 = vmul.f32 %v8226, %v8226
  %v8425 = vmul.f32 %v8227, %v8227
  %v8426 = vmul.f32 %v8228, %v8228
  %v8427 = vmul.f32 %v8229, %v8229
  %v8428 = vmul.f32 %v8230, %v8230
  %v8429 = vmul.f32 %v8231, %v8231
  %v8430 = vmul.f32 %v8232, %v8232
  %v8431 = vmul.f32 %v8233, %v8233
  %v8432 = vmul.f32 %v8234, %v8234
  %v8433 = vmul.f32 %v8235, %v8235
  %v8434 = vmul.f32 %v8236, %v8236
  %v8435 = vmul.f32 %v8237, %v8237
  %v8436 = vmul.f32 %v8238, %v8238
  %v8437 = vmul.f32 %v8239, %v8239
  %v8438 = vmul.f32 %v8240, %v8240
  %v8439 = vmul.f32 %v8241, %v8241
  %v8440 = vmul.f32 %v8242, %v8242
  %v8441 = vmul.f32 %v8243, %v8243
  %v8442 = vmul.f32 %v8244, %v8244
  %v8443 = vmul.f32 %v8245, %v8245
  %v8444 = vmul.f32 %v8246, %v8246
  %v8445 = vmul.f32 %v8247, %v8247
  %v8446 = vmul.f32 %v8248, %v8248
  %v8447 = vmul.f32 %v8249, %v8249
  %v8448 = vmul.f32 %v8250, %v8250
  %v8449 = vmul.f32 %v8251, %v8251
  %v8450 = vmul.f32 %v8252, %v8252
  %v8451 = vmul.f32 %v8253, %v8253
  %v8452 = vmul.f32 %v8254, %v8254
  %v8453 = vmul.f32 %v8255, %v8255
  %v8454 = vmul.f32 %v8256, %v8256
  %v8455 = vmul.f32 %v8257, %v8257
  %v8456 = vmul.f32 %v8258, %v8258
  %v8457 = vmul.f32 %v8259, %v8259
  %v8458 = vmul.f32 %v8260, %v8260
  %v8459 = vmul.f32 %v8261, %v8261
  %v8460 = vmul.f32 %v8262, %v8262
  %v8461 = vmul.f32 %v8263, %v8263
  %v8462 = vmul.f32 %v8264, %v8264
  %v8463 = vmul.f32 %v8265, %v8265
  %v8464 = vmul.f32 %v8266, %v8266
  %v8465 = vmul.f32 %v8267, %v8267
  %v8466 = vmul.f32 %v8268, %v8268
  %v8467 = vmul.f32 %v8269, %v8269
  %v8468 = vmul.f32 %v8270, %v8270
  %v8469 = vmul.f32 %v8271, %v8271
  %v8470 = vmul.f32 %v8272, %v8272
  %v8471 = vmul.f32 %v8273, %v8273
  %v8472 = vmul.f32 %v8274, %v8274
  %v8473 = vmul.f32 %v8275, %v8275
  %v8474 = vmul.f32 %v8276, %v8276
  %v8475 = vmul.f32 %v8277, %v8277
  %v8476 = vmul.f32 %v8278, %v8278
  %v8477 = vmul.f32 %v8279, %v8279
  %v8478 = vmul.f32 %v8280, %v8280
  %v8479 = vmul.f32 %v8281, %v8281
  %v8480 = vmul.f32 %v8282, %v8282
  %v8481 = vsel %vm514, %v8417, 0.0
  %v8482 = vsel %vm514, %v8418, 0.0
  %v8483 = vadd.f32 %v8481, %v8482
  %v8484 = vsel %vm514, %v8419, 0.0
  %v8485 = vadd.f32 %v8483, %v8484
  %v8486 = vsel %vm514, %v8420, 0.0
  %v8487 = vadd.f32 %v8485, %v8486
  %v8488 = vsel %vm514, %v8421, 0.0
  %v8489 = vadd.f32 %v8487, %v8488
  %v8490 = vsel %vm514, %v8422, 0.0
  %v8491 = vadd.f32 %v8489, %v8490
  %v8492 = vsel %vm514, %v8423, 0.0
  %v8493 = vadd.f32 %v8491, %v8492
  %v8494 = vsel %vm514, %v8424, 0.0
  %v8495 = vadd.f32 %v8493, %v8494
  %v8496 = vsel %vm514, %v8425, 0.0
  %v8497 = vadd.f32 %v8495, %v8496
  %v8498 = vsel %vm514, %v8426, 0.0
  %v8499 = vadd.f32 %v8497, %v8498
  %v8500 = vsel %vm514, %v8427, 0.0
  %v8501 = vadd.f32 %v8499, %v8500
  %v8502 = vsel %vm514, %v8428, 0.0
  %v8503 = vadd.f32 %v8501, %v8502
  %v8504 = vsel %vm514, %v8429, 0.0
  %v8505 = vadd.f32 %v8503, %v8504
  %v8506 = vsel %vm514, %v8430, 0.0
  %v8507 = vadd.f32 %v8505, %v8506
  %v8508 = vsel %vm514, %v8431, 0.0
  %v8509 = vadd.f32 %v8507, %v8508
  %v8510 = vsel %vm514, %v8432, 0.0
  %v8511 = vadd.f32 %v8509, %v8510
  %v8512 = vsel %vm514, %v8433, 0.0
  %v8513 = vadd.f32 %v8511, %v8512
  %v8514 = vsel %vm514, %v8434, 0.0
  %v8515 = vadd.f32 %v8513, %v8514
  %v8516 = vsel %vm514, %v8435, 0.0
  %v8517 = vadd.f32 %v8515, %v8516
  %v8518 = vsel %vm514, %v8436, 0.0
  %v8519 = vadd.f32 %v8517, %v8518
  %v8520 = vsel %vm514, %v8437, 0.0
  %v8521 = vadd.f32 %v8519, %v8520
  %v8522 = vsel %vm514, %v8438, 0.0
  %v8523 = vadd.f32 %v8521, %v8522
  %v8524 = vsel %vm514, %v8439, 0.0
  %v8525 = vadd.f32 %v8523, %v8524
  %v8526 = vsel %vm514, %v8440, 0.0
  %v8527 = vadd.f32 %v8525, %v8526
  %v8528 = vsel %vm514, %v8441, 0.0
  %v8529 = vadd.f32 %v8527, %v8528
  %v8530 = vsel %vm514, %v8442, 0.0
  %v8531 = vadd.f32 %v8529, %v8530
  %v8532 = vsel %vm514, %v8443, 0.0
  %v8533 = vadd.f32 %v8531, %v8532
  %v8534 = vsel %vm514, %v8444, 0.0
  %v8535 = vadd.f32 %v8533, %v8534
  %v8536 = vsel %vm514, %v8445, 0.0
  %v8537 = vadd.f32 %v8535, %v8536
  %v8538 = vsel %vm514, %v8446, 0.0
  %v8539 = vadd.f32 %v8537, %v8538
  %v8540 = vsel %vm514, %v8447, 0.0
  %v8541 = vadd.f32 %v8539, %v8540
  %v8542 = vsel %vm514, %v8448, 0.0
  %v8543 = vadd.f32 %v8541, %v8542
  %v8544 = vsel %vm514, %v8449, 0.0
  %v8545 = vadd.f32 %v8543, %v8544
  %v8546 = vsel %vm514, %v8450, 0.0
  %v8547 = vadd.f32 %v8545, %v8546
  %v8548 = vsel %vm514, %v8451, 0.0
  %v8549 = vadd.f32 %v8547, %v8548
  %v8550 = vsel %vm514, %v8452, 0.0
  %v8551 = vadd.f32 %v8549, %v8550
  %v8552 = vsel %vm514, %v8453, 0.0
  %v8553 = vadd.f32 %v8551, %v8552
  %v8554 = vsel %vm514, %v8454, 0.0
  %v8555 = vadd.f32 %v8553, %v8554
  %v8556 = vsel %vm514, %v8455, 0.0
  %v8557 = vadd.f32 %v8555, %v8556
  %v8558 = vsel %vm514, %v8456, 0.0
  %v8559 = vadd.f32 %v8557, %v8558
  %v8560 = vsel %vm514, %v8457, 0.0
  %v8561 = vadd.f32 %v8559, %v8560
  %v8562 = vsel %vm514, %v8458, 0.0
  %v8563 = vadd.f32 %v8561, %v8562
  %v8564 = vsel %vm514, %v8459, 0.0
  %v8565 = vadd.f32 %v8563, %v8564
  %v8566 = vsel %vm514, %v8460, 0.0
  %v8567 = vadd.f32 %v8565, %v8566
  %v8568 = vsel %vm514, %v8461, 0.0
  %v8569 = vadd.f32 %v8567, %v8568
  %v8570 = vsel %vm514, %v8462, 0.0
  %v8571 = vadd.f32 %v8569, %v8570
  %v8572 = vsel %vm514, %v8463, 0.0
  %v8573 = vadd.f32 %v8571, %v8572
  %v8574 = vsel %vm514, %v8464, 0.0
  %v8575 = vadd.f32 %v8573, %v8574
  %v8576 = vsel %vm514, %v8465, 0.0
  %v8577 = vadd.f32 %v8575, %v8576
  %v8578 = vsel %vm514, %v8466, 0.0
  %v8579 = vadd.f32 %v8577, %v8578
  %v8580 = vsel %vm514, %v8467, 0.0
  %v8581 = vadd.f32 %v8579, %v8580
  %v8582 = vsel %vm514, %v8468, 0.0
  %v8583 = vadd.f32 %v8581, %v8582
  %v8584 = vsel %vm514, %v8469, 0.0
  %v8585 = vadd.f32 %v8583, %v8584
  %v8586 = vsel %vm514, %v8470, 0.0
  %v8587 = vadd.f32 %v8585, %v8586
  %v8588 = vsel %vm514, %v8471, 0.0
  %v8589 = vadd.f32 %v8587, %v8588
  %v8590 = vsel %vm514, %v8472, 0.0
  %v8591 = vadd.f32 %v8589, %v8590
  %v8592 = vsel %vm514, %v8473, 0.0
  %v8593 = vadd.f32 %v8591, %v8592
  %v8594 = vsel %vm514, %v8474, 0.0
  %v8595 = vadd.f32 %v8593, %v8594
  %v8596 = vsel %vm514, %v8475, 0.0
  %v8597 = vadd.f32 %v8595, %v8596
  %v8598 = vsel %vm514, %v8476, 0.0
  %v8599 = vadd.f32 %v8597, %v8598
  %v8600 = vsel %vm514, %v8477, 0.0
  %v8601 = vadd.f32 %v8599, %v8600
  %v8602 = vsel %vm514, %v8478, 0.0
  %v8603 = vadd.f32 %v8601, %v8602
  %v8604 = vsel %vm514, %v8479, 0.0
  %v8605 = vadd.f32 %v8603, %v8604
  %v8606 = vsel %vm514, %v8480, 0.0
  %v8607 = vadd.f32 %v8605, %v8606
  %v8608 = vrot.slane %v8607, 4
  %v8609 = vadd.f32 %v8607, %v8608
  %v8610 = vrot.slane %v8609, 2
  %v8611 = vadd.f32 %v8609, %v8610
  %v8612 = vrot.slane %v8611, 1
  %v8613 = vadd.f32 %v8611, %v8612
  %v8614 = vmul.f32 %v8613, 0.001953125
  %v8615 = vmul.f32 %v8416, %v8416
  %v8616 = vsub.f32 %v8614, %v8615
  %v8617 = vadd.f32 %v8616, 1e-05
  %v8618 = vrsqrt.pop %v8617
  %v8619 = vld [vmem:[%s7] sm:$0x1]
  %v8620 = vmul.f32 %v8618, %v8619
  %v8621 = vsub.f32 %v8219, %v8416
  %v8622 = vsub.f32 %v8220, %v8416
  %v8623 = vsub.f32 %v8221, %v8416
  %v8624 = vsub.f32 %v8222, %v8416
  %v8625 = vsub.f32 %v8223, %v8416
  %v8626 = vsub.f32 %v8224, %v8416
  %v8627 = vsub.f32 %v8225, %v8416
  %v8628 = vsub.f32 %v8226, %v8416
  %v8629 = vsub.f32 %v8227, %v8416
  %v8630 = vsub.f32 %v8228, %v8416
  %v8631 = vsub.f32 %v8229, %v8416
  %v8632 = vsub.f32 %v8230, %v8416
  %v8633 = vsub.f32 %v8231, %v8416
  %v8634 = vsub.f32 %v8232, %v8416
  %v8635 = vsub.f32 %v8233, %v8416
  %v8636 = vsub.f32 %v8234, %v8416
  %v8637 = vsub.f32 %v8235, %v8416
  %v8638 = vsub.f32 %v8236, %v8416
  %v8639 = vsub.f32 %v8237, %v8416
  %v8640 = vsub.f32 %v8238, %v8416
  %v8641 = vsub.f32 %v8239, %v8416
  %v8642 = vsub.f32 %v8240, %v8416
  %v8643 = vsub.f32 %v8241, %v8416
  %v8644 = vsub.f32 %v8242, %v8416
  %v8645 = vsub.f32 %v8243, %v8416
  %v8646 = vsub.f32 %v8244, %v8416
  %v8647 = vsub.f32 %v8245, %v8416
  %v8648 = vsub.f32 %v8246, %v8416
  %v8649 = vsub.f32 %v8247, %v8416
  %v8650 = vsub.f32 %v8248, %v8416
  %v8651 = vsub.f32 %v8249, %v8416
  %v8652 = vsub.f32 %v8250, %v8416
  %v8653 = vsub.f32 %v8251, %v8416
  %v8654 = vsub.f32 %v8252, %v8416
  %v8655 = vsub.f32 %v8253, %v8416
  %v8656 = vsub.f32 %v8254, %v8416
  %v8657 = vsub.f32 %v8255, %v8416
  %v8658 = vsub.f32 %v8256, %v8416
  %v8659 = vsub.f32 %v8257, %v8416
  %v8660 = vsub.f32 %v8258, %v8416
  %v8661 = vsub.f32 %v8259, %v8416
  %v8662 = vsub.f32 %v8260, %v8416
  %v8663 = vsub.f32 %v8261, %v8416
  %v8664 = vsub.f32 %v8262, %v8416
  %v8665 = vsub.f32 %v8263, %v8416
  %v8666 = vsub.f32 %v8264, %v8416
  %v8667 = vsub.f32 %v8265, %v8416
  %v8668 = vsub.f32 %v8266, %v8416
  %v8669 = vsub.f32 %v8267, %v8416
  %v8670 = vsub.f32 %v8268, %v8416
  %v8671 = vsub.f32 %v8269, %v8416
  %v8672 = vsub.f32 %v8270, %v8416
  %v8673 = vsub.f32 %v8271, %v8416
  %v8674 = vsub.f32 %v8272, %v8416
  %v8675 = vsub.f32 %v8273, %v8416
  %v8676 = vsub.f32 %v8274, %v8416
  %v8677 = vsub.f32 %v8275, %v8416
  %v8678 = vsub.f32 %v8276, %v8416
  %v8679 = vsub.f32 %v8277, %v8416
  %v8680 = vsub.f32 %v8278, %v8416
  %v8681 = vsub.f32 %v8279, %v8416
  %v8682 = vsub.f32 %v8280, %v8416
  %v8683 = vsub.f32 %v8281, %v8416
  %v8684 = vsub.f32 %v8282, %v8416
  %v8685 = vlaneseq
  %v8686 = vshrl.u32 %v8685, 7
  %v8687 = vsub.s32 0, %v8686
  %v8688 = vrot.slane %v8620, %v8687
  %v8689 = vmul.f32 %v8621, %v8688
  %v8690 = vmul.f32 %v8622, %v8688
  %v8691 = vmul.f32 %v8623, %v8688
  %v8692 = vmul.f32 %v8624, %v8688
  %v8693 = vmul.f32 %v8625, %v8688
  %v8694 = vmul.f32 %v8626, %v8688
  %v8695 = vmul.f32 %v8627, %v8688
  %v8696 = vmul.f32 %v8628, %v8688
  %v8697 = vmul.f32 %v8629, %v8688
  %v8698 = vmul.f32 %v8630, %v8688
  %v8699 = vmul.f32 %v8631, %v8688
  %v8700 = vmul.f32 %v8632, %v8688
  %v8701 = vmul.f32 %v8633, %v8688
  %v8702 = vmul.f32 %v8634, %v8688
  %v8703 = vmul.f32 %v8635, %v8688
  %v8704 = vmul.f32 %v8636, %v8688
  %v8705 = vmul.f32 %v8637, %v8688
  %v8706 = vmul.f32 %v8638, %v8688
  %v8707 = vmul.f32 %v8639, %v8688
  %v8708 = vmul.f32 %v8640, %v8688
  %v8709 = vmul.f32 %v8641, %v8688
  %v8710 = vmul.f32 %v8642, %v8688
  %v8711 = vmul.f32 %v8643, %v8688
  %v8712 = vmul.f32 %v8644, %v8688
  %v8713 = vmul.f32 %v8645, %v8688
  %v8714 = vmul.f32 %v8646, %v8688
  %v8715 = vmul.f32 %v8647, %v8688
  %v8716 = vmul.f32 %v8648, %v8688
  %v8717 = vmul.f32 %v8649, %v8688
  %v8718 = vmul.f32 %v8650, %v8688
  %v8719 = vmul.f32 %v8651, %v8688
  %v8720 = vmul.f32 %v8652, %v8688
  %v8721 = vmul.f32 %v8653, %v8688
  %v8722 = vmul.f32 %v8654, %v8688
  %v8723 = vmul.f32 %v8655, %v8688
  %v8724 = vmul.f32 %v8656, %v8688
  %v8725 = vmul.f32 %v8657, %v8688
  %v8726 = vmul.f32 %v8658, %v8688
  %v8727 = vmul.f32 %v8659, %v8688
  %v8728 = vmul.f32 %v8660, %v8688
  %v8729 = vmul.f32 %v8661, %v8688
  %v8730 = vmul.f32 %v8662, %v8688
  %v8731 = vmul.f32 %v8663, %v8688
  %v8732 = vmul.f32 %v8664, %v8688
  %v8733 = vmul.f32 %v8665, %v8688
  %v8734 = vmul.f32 %v8666, %v8688
  %v8735 = vmul.f32 %v8667, %v8688
  %v8736 = vmul.f32 %v8668, %v8688
  %v8737 = vmul.f32 %v8669, %v8688
  %v8738 = vmul.f32 %v8670, %v8688
  %v8739 = vmul.f32 %v8671, %v8688
  %v8740 = vmul.f32 %v8672, %v8688
  %v8741 = vmul.f32 %v8673, %v8688
  %v8742 = vmul.f32 %v8674, %v8688
  %v8743 = vmul.f32 %v8675, %v8688
  %v8744 = vmul.f32 %v8676, %v8688
  %v8745 = vmul.f32 %v8677, %v8688
  %v8746 = vmul.f32 %v8678, %v8688
  %v8747 = vmul.f32 %v8679, %v8688
  %v8748 = vmul.f32 %v8680, %v8688
  %v8749 = vmul.f32 %v8681, %v8688
  %v8750 = vmul.f32 %v8682, %v8688
  %v8751 = vmul.f32 %v8683, %v8688
  %v8752 = vmul.f32 %v8684, %v8688
  %v8753 = vld [vmem:[%s8] sm:$0x1]
  %v8755 = vlaneseq
  %v8756 = vshrl.u32 %v8755, 7
  %v8757 = vsub.s32 0, %v8756
  %v8758 = vrot.slane %v8753, %v8757
  %v8760 = vadd.f32 %v8689, %v8758
  %v8761 = vadd.f32 %v8690, %v8758
  %v8762 = vadd.f32 %v8691, %v8758
  %v8763 = vadd.f32 %v8692, %v8758
  %v8764 = vadd.f32 %v8693, %v8758
  %v8765 = vadd.f32 %v8694, %v8758
  %v8766 = vadd.f32 %v8695, %v8758
  %v8767 = vadd.f32 %v8696, %v8758
  %v8768 = vadd.f32 %v8697, %v8758
  %v8769 = vadd.f32 %v8698, %v8758
  %v8770 = vadd.f32 %v8699, %v8758
  %v8771 = vadd.f32 %v8700, %v8758
  %v8772 = vadd.f32 %v8701, %v8758
  %v8773 = vadd.f32 %v8702, %v8758
  %v8774 = vadd.f32 %v8703, %v8758
  %v8775 = vadd.f32 %v8704, %v8758
  %v8776 = vadd.f32 %v8705, %v8758
  %v8777 = vadd.f32 %v8706, %v8758
  %v8778 = vadd.f32 %v8707, %v8758
  %v8779 = vadd.f32 %v8708, %v8758
  %v8780 = vadd.f32 %v8709, %v8758
  %v8781 = vadd.f32 %v8710, %v8758
  %v8782 = vadd.f32 %v8711, %v8758
  %v8783 = vadd.f32 %v8712, %v8758
  %v8784 = vadd.f32 %v8713, %v8758
  %v8785 = vadd.f32 %v8714, %v8758
  %v8786 = vadd.f32 %v8715, %v8758
  %v8787 = vadd.f32 %v8716, %v8758
  %v8788 = vadd.f32 %v8717, %v8758
  %v8789 = vadd.f32 %v8718, %v8758
  %v8790 = vadd.f32 %v8719, %v8758
  %v8791 = vadd.f32 %v8720, %v8758
  %v8792 = vadd.f32 %v8721, %v8758
  %v8793 = vadd.f32 %v8722, %v8758
  %v8794 = vadd.f32 %v8723, %v8758
  %v8795 = vadd.f32 %v8724, %v8758
  %v8796 = vadd.f32 %v8725, %v8758
  %v8797 = vadd.f32 %v8726, %v8758
  %v8798 = vadd.f32 %v8727, %v8758
  %v8799 = vadd.f32 %v8728, %v8758
  %v8800 = vadd.f32 %v8729, %v8758
  %v8801 = vadd.f32 %v8730, %v8758
  %v8802 = vadd.f32 %v8731, %v8758
  %v8803 = vadd.f32 %v8732, %v8758
  %v8804 = vadd.f32 %v8733, %v8758
  %v8805 = vadd.f32 %v8734, %v8758
  %v8806 = vadd.f32 %v8735, %v8758
  %v8807 = vadd.f32 %v8736, %v8758
  %v8808 = vadd.f32 %v8737, %v8758
  %v8809 = vadd.f32 %v8738, %v8758
  %v8810 = vadd.f32 %v8739, %v8758
  %v8811 = vadd.f32 %v8740, %v8758
  %v8812 = vadd.f32 %v8741, %v8758
  %v8813 = vadd.f32 %v8742, %v8758
  %v8814 = vadd.f32 %v8743, %v8758
  %v8815 = vadd.f32 %v8744, %v8758
  %v8816 = vadd.f32 %v8745, %v8758
  %v8817 = vadd.f32 %v8746, %v8758
  %v8818 = vadd.f32 %v8747, %v8758
  %v8819 = vadd.f32 %v8748, %v8758
  %v8820 = vadd.f32 %v8749, %v8758
  %v8821 = vadd.f32 %v8750, %v8758
  %v8822 = vadd.f32 %v8751, %v8758
  %v8823 = vadd.f32 %v8752, %v8758
  %v8824 = vld [vmem:[%s0] sm:$0xff]
  %v8825 = vld [vmem:[%s0 + $0x8] sm:$0xff]
  %v8826 = vld [vmem:[%s0 + $0x10] sm:$0xff]
  %v8827 = vld [vmem:[%s0 + $0x18] sm:$0xff]
  %v8828 = vld [vmem:[%s0 + $0x20] sm:$0xff]
  %v8829 = vld [vmem:[%s0 + $0x28] sm:$0xff]
  %v8830 = vld [vmem:[%s0 + $0x30] sm:$0xff]
  %v8831 = vld [vmem:[%s0 + $0x38] sm:$0xff]
  %v8832 = vld [vmem:[%s0 + $0x40] sm:$0xff]
  %v8833 = vld [vmem:[%s0 + $0x48] sm:$0xff]
  %v8834 = vld [vmem:[%s0 + $0x50] sm:$0xff]
  %v8835 = vld [vmem:[%s0 + $0x58] sm:$0xff]
  %v8836 = vld [vmem:[%s0 + $0x60] sm:$0xff]
  %v8837 = vld [vmem:[%s0 + $0x68] sm:$0xff]
  %v8838 = vld [vmem:[%s0 + $0x70] sm:$0xff]
  %v8839 = vld [vmem:[%s0 + $0x78] sm:$0xff]
  %v8840 = vld [vmem:[%s0 + $0x80] sm:$0xff]
  %v8841 = vld [vmem:[%s0 + $0x88] sm:$0xff]
  %v8842 = vld [vmem:[%s0 + $0x90] sm:$0xff]
  %v8843 = vld [vmem:[%s0 + $0x98] sm:$0xff]
  %v8844 = vld [vmem:[%s0 + $0xa0] sm:$0xff]
  %v8845 = vld [vmem:[%s0 + $0xa8] sm:$0xff]
  %v8846 = vld [vmem:[%s0 + $0xb0] sm:$0xff]
  %v8847 = vld [vmem:[%s0 + $0xb8] sm:$0xff]
  %v8848 = vld [vmem:[%s0 + $0xc0] sm:$0xff]
  %v8849 = vld [vmem:[%s0 + $0xc8] sm:$0xff]
  %v8850 = vld [vmem:[%s0 + $0xd0] sm:$0xff]
  %v8851 = vld [vmem:[%s0 + $0xd8] sm:$0xff]
  %v8852 = vld [vmem:[%s0 + $0xe0] sm:$0xff]
  %v8853 = vld [vmem:[%s0 + $0xe8] sm:$0xff]
  %v8854 = vld [vmem:[%s0 + $0xf0] sm:$0xff]
  %v8855 = vld [vmem:[%s0 + $0xf8] sm:$0xff]
  %v8856 = vld [vmem:[%s0 + $0x100] sm:$0xff]
  %v8857 = vld [vmem:[%s0 + $0x108] sm:$0xff]
  %v8858 = vld [vmem:[%s0 + $0x110] sm:$0xff]
  %v8859 = vld [vmem:[%s0 + $0x118] sm:$0xff]
  %v8860 = vld [vmem:[%s0 + $0x120] sm:$0xff]
  %v8861 = vld [vmem:[%s0 + $0x128] sm:$0xff]
  %v8862 = vld [vmem:[%s0 + $0x130] sm:$0xff]
  %v8863 = vld [vmem:[%s0 + $0x138] sm:$0xff]
  %v8864 = vld [vmem:[%s0 + $0x140] sm:$0xff]
  %v8865 = vld [vmem:[%s0 + $0x148] sm:$0xff]
  %v8866 = vld [vmem:[%s0 + $0x150] sm:$0xff]
  %v8867 = vld [vmem:[%s0 + $0x158] sm:$0xff]
  %v8868 = vld [vmem:[%s0 + $0x160] sm:$0xff]
  %v8869 = vld [vmem:[%s0 + $0x168] sm:$0xff]
  %v8870 = vld [vmem:[%s0 + $0x170] sm:$0xff]
  %v8871 = vld [vmem:[%s0 + $0x178] sm:$0xff]
  %v8872 = vld [vmem:[%s0 + $0x180] sm:$0xff]
  %v8873 = vld [vmem:[%s0 + $0x188] sm:$0xff]
  %v8874 = vld [vmem:[%s0 + $0x190] sm:$0xff]
  %v8875 = vld [vmem:[%s0 + $0x198] sm:$0xff]
  %v8876 = vld [vmem:[%s0 + $0x1a0] sm:$0xff]
  %v8877 = vld [vmem:[%s0 + $0x1a8] sm:$0xff]
  %v8878 = vld [vmem:[%s0 + $0x1b0] sm:$0xff]
  %v8879 = vld [vmem:[%s0 + $0x1b8] sm:$0xff]
  %v8880 = vld [vmem:[%s0 + $0x1c0] sm:$0xff]
  %v8881 = vld [vmem:[%s0 + $0x1c8] sm:$0xff]
  %v8882 = vld [vmem:[%s0 + $0x1d0] sm:$0xff]
  %v8883 = vld [vmem:[%s0 + $0x1d8] sm:$0xff]
  %v8884 = vld [vmem:[%s0 + $0x1e0] sm:$0xff]
  %v8885 = vld [vmem:[%s0 + $0x1e8] sm:$0xff]
  %v8886 = vld [vmem:[%s0 + $0x1f0] sm:$0xff]
  %v8887 = vld [vmem:[%s0 + $0x1f8] sm:$0xff]
  %v8888 = vadd.f32 %v8760, %v8824
  %v8889 = vadd.f32 %v8761, %v8825
  %v8890 = vadd.f32 %v8762, %v8826
  %v8891 = vadd.f32 %v8763, %v8827
  %v8892 = vadd.f32 %v8764, %v8828
  %v8893 = vadd.f32 %v8765, %v8829
  %v8894 = vadd.f32 %v8766, %v8830
  %v8895 = vadd.f32 %v8767, %v8831
  %v8896 = vadd.f32 %v8768, %v8832
  %v8897 = vadd.f32 %v8769, %v8833
  %v8898 = vadd.f32 %v8770, %v8834
  %v8899 = vadd.f32 %v8771, %v8835
  %v8900 = vadd.f32 %v8772, %v8836
  %v8901 = vadd.f32 %v8773, %v8837
  %v8902 = vadd.f32 %v8774, %v8838
  %v8903 = vadd.f32 %v8775, %v8839
  %v8904 = vadd.f32 %v8776, %v8840
  %v8905 = vadd.f32 %v8777, %v8841
  %v8906 = vadd.f32 %v8778, %v8842
  %v8907 = vadd.f32 %v8779, %v8843
  %v8908 = vadd.f32 %v8780, %v8844
  %v8909 = vadd.f32 %v8781, %v8845
  %v8910 = vadd.f32 %v8782, %v8846
  %v8911 = vadd.f32 %v8783, %v8847
  %v8912 = vadd.f32 %v8784, %v8848
  %v8913 = vadd.f32 %v8785, %v8849
  %v8914 = vadd.f32 %v8786, %v8850
  %v8915 = vadd.f32 %v8787, %v8851
  %v8916 = vadd.f32 %v8788, %v8852
  %v8917 = vadd.f32 %v8789, %v8853
  %v8918 = vadd.f32 %v8790, %v8854
  %v8919 = vadd.f32 %v8791, %v8855
  %v8920 = vadd.f32 %v8792, %v8856
  %v8921 = vadd.f32 %v8793, %v8857
  %v8922 = vadd.f32 %v8794, %v8858
  %v8923 = vadd.f32 %v8795, %v8859
  %v8924 = vadd.f32 %v8796, %v8860
  %v8925 = vadd.f32 %v8797, %v8861
  %v8926 = vadd.f32 %v8798, %v8862
  %v8927 = vadd.f32 %v8799, %v8863
  %v8928 = vadd.f32 %v8800, %v8864
  %v8929 = vadd.f32 %v8801, %v8865
  %v8930 = vadd.f32 %v8802, %v8866
  %v8931 = vadd.f32 %v8803, %v8867
  %v8932 = vadd.f32 %v8804, %v8868
  %v8933 = vadd.f32 %v8805, %v8869
  %v8934 = vadd.f32 %v8806, %v8870
  %v8935 = vadd.f32 %v8807, %v8871
  %v8936 = vadd.f32 %v8808, %v8872
  %v8937 = vadd.f32 %v8809, %v8873
  %v8938 = vadd.f32 %v8810, %v8874
  %v8939 = vadd.f32 %v8811, %v8875
  %v8940 = vadd.f32 %v8812, %v8876
  %v8941 = vadd.f32 %v8813, %v8877
  %v8942 = vadd.f32 %v8814, %v8878
  %v8943 = vadd.f32 %v8815, %v8879
  %v8944 = vadd.f32 %v8816, %v8880
  %v8945 = vadd.f32 %v8817, %v8881
  %v8946 = vadd.f32 %v8818, %v8882
  %v8947 = vadd.f32 %v8819, %v8883
  %v8948 = vadd.f32 %v8820, %v8884
  %v8949 = vadd.f32 %v8821, %v8885
  %v8950 = vadd.f32 %v8822, %v8886
  %v8951 = vadd.f32 %v8823, %v8887
  %v8952 = vmax.f32 %v8888, 0.0
  %v8953 = vmax.f32 %v8889, 0.0
  %v8954 = vmax.f32 %v8890, 0.0
  %v8955 = vmax.f32 %v8891, 0.0
  %v8956 = vmax.f32 %v8892, 0.0
  %v8957 = vmax.f32 %v8893, 0.0
  %v8958 = vmax.f32 %v8894, 0.0
  %v8959 = vmax.f32 %v8895, 0.0
  %v8960 = vmax.f32 %v8896, 0.0
  %v8961 = vmax.f32 %v8897, 0.0
  %v8962 = vmax.f32 %v8898, 0.0
  %v8963 = vmax.f32 %v8899, 0.0
  %v8964 = vmax.f32 %v8900, 0.0
  %v8965 = vmax.f32 %v8901, 0.0
  %v8966 = vmax.f32 %v8902, 0.0
  %v8967 = vmax.f32 %v8903, 0.0
  %v8968 = vmax.f32 %v8904, 0.0
  %v8969 = vmax.f32 %v8905, 0.0
  %v8970 = vmax.f32 %v8906, 0.0
  %v8971 = vmax.f32 %v8907, 0.0
  %v8972 = vmax.f32 %v8908, 0.0
  %v8973 = vmax.f32 %v8909, 0.0
  %v8974 = vmax.f32 %v8910, 0.0
  %v8975 = vmax.f32 %v8911, 0.0
  %v8976 = vmax.f32 %v8912, 0.0
  %v8977 = vmax.f32 %v8913, 0.0
  %v8978 = vmax.f32 %v8914, 0.0
  %v8979 = vmax.f32 %v8915, 0.0
  %v8980 = vmax.f32 %v8916, 0.0
  %v8981 = vmax.f32 %v8917, 0.0
  %v8982 = vmax.f32 %v8918, 0.0
  %v8983 = vmax.f32 %v8919, 0.0
  %v8984 = vmax.f32 %v8920, 0.0
  %v8985 = vmax.f32 %v8921, 0.0
  %v8986 = vmax.f32 %v8922, 0.0
  %v8987 = vmax.f32 %v8923, 0.0
  %v8988 = vmax.f32 %v8924, 0.0
  %v8989 = vmax.f32 %v8925, 0.0
  %v8990 = vmax.f32 %v8926, 0.0
  %v8991 = vmax.f32 %v8927, 0.0
  %v8992 = vmax.f32 %v8928, 0.0
  %v8993 = vmax.f32 %v8929, 0.0
  %v8994 = vmax.f32 %v8930, 0.0
  %v8995 = vmax.f32 %v8931, 0.0
  %v8996 = vmax.f32 %v8932, 0.0
  %v8997 = vmax.f32 %v8933, 0.0
  %v8998 = vmax.f32 %v8934, 0.0
  %v8999 = vmax.f32 %v8935, 0.0
  %v9000 = vmax.f32 %v8936, 0.0
  %v9001 = vmax.f32 %v8937, 0.0
  %v9002 = vmax.f32 %v8938, 0.0
  %v9003 = vmax.f32 %v8939, 0.0
  %v9004 = vmax.f32 %v8940, 0.0
  %v9005 = vmax.f32 %v8941, 0.0
  %v9006 = vmax.f32 %v8942, 0.0
  %v9007 = vmax.f32 %v8943, 0.0
  %v9008 = vmax.f32 %v8944, 0.0
  %v9009 = vmax.f32 %v8945, 0.0
  %v9010 = vmax.f32 %v8946, 0.0
  %v9011 = vmax.f32 %v8947, 0.0
  %v9012 = vmax.f32 %v8948, 0.0
  %v9013 = vmax.f32 %v8949, 0.0
  %v9014 = vmax.f32 %v8950, 0.0
  %v9015 = vmax.f32 %v8951, 0.0
  %9016 = vst.msk [vmem:[%s9] sm:$0xff] %vm514, %v8952
  %9017 = vst.msk [vmem:[%s9 + $0x8] sm:$0xff] %vm514, %v8953
  %9018 = vst.msk [vmem:[%s9 + $0x10] sm:$0xff] %vm514, %v8954
  %9019 = vst.msk [vmem:[%s9 + $0x18] sm:$0xff] %vm514, %v8955
  %9020 = vst.msk [vmem:[%s9 + $0x20] sm:$0xff] %vm514, %v8956
  %9021 = vst.msk [vmem:[%s9 + $0x28] sm:$0xff] %vm514, %v8957
  %9022 = vst.msk [vmem:[%s9 + $0x30] sm:$0xff] %vm514, %v8958
  %9023 = vst.msk [vmem:[%s9 + $0x38] sm:$0xff] %vm514, %v8959
  %9024 = vst.msk [vmem:[%s9 + $0x40] sm:$0xff] %vm514, %v8960
  %9025 = vst.msk [vmem:[%s9 + $0x48] sm:$0xff] %vm514, %v8961
  %9026 = vst.msk [vmem:[%s9 + $0x50] sm:$0xff] %vm514, %v8962
  %9027 = vst.msk [vmem:[%s9 + $0x58] sm:$0xff] %vm514, %v8963
  %9028 = vst.msk [vmem:[%s9 + $0x60] sm:$0xff] %vm514, %v8964
  %9029 = vst.msk [vmem:[%s9 + $0x68] sm:$0xff] %vm514, %v8965
  %9030 = vst.msk [vmem:[%s9 + $0x70] sm:$0xff] %vm514, %v8966
  %9031 = vst.msk [vmem:[%s9 + $0x78] sm:$0xff] %vm514, %v8967
  %9032 = vst.msk [vmem:[%s9 + $0x80] sm:$0xff] %vm514, %v8968
  %9033 = vst.msk [vmem:[%s9 + $0x88] sm:$0xff] %vm514, %v8969
  %9034 = vst.msk [vmem:[%s9 + $0x90] sm:$0xff] %vm514, %v8970
  %9035 = vst.msk [vmem:[%s9 + $0x98] sm:$0xff] %vm514, %v8971
  %9036 = vst.msk [vmem:[%s9 + $0xa0] sm:$0xff] %vm514, %v8972
  %9037 = vst.msk [vmem:[%s9 + $0xa8] sm:$0xff] %vm514, %v8973
  %9038 = vst.msk [vmem:[%s9 + $0xb0] sm:$0xff] %vm514, %v8974
  %9039 = vst.msk [vmem:[%s9 + $0xb8] sm:$0xff] %vm514, %v8975
  %9040 = vst.msk [vmem:[%s9 + $0xc0] sm:$0xff] %vm514, %v8976
  %9041 = vst.msk [vmem:[%s9 + $0xc8] sm:$0xff] %vm514, %v8977
  %9042 = vst.msk [vmem:[%s9 + $0xd0] sm:$0xff] %vm514, %v8978
  %9043 = vst.msk [vmem:[%s9 + $0xd8] sm:$0xff] %vm514, %v8979
  %9044 = vst.msk [vmem:[%s9 + $0xe0] sm:$0xff] %vm514, %v8980
  %9045 = vst.msk [vmem:[%s9 + $0xe8] sm:$0xff] %vm514, %v8981
  %9046 = vst.msk [vmem:[%s9 + $0xf0] sm:$0xff] %vm514, %v8982
  %9047 = vst.msk [vmem:[%s9 + $0xf8] sm:$0xff] %vm514, %v8983
  %9048 = vst.msk [vmem:[%s9 + $0x100] sm:$0xff] %vm514, %v8984
  %9049 = vst.msk [vmem:[%s9 + $0x108] sm:$0xff] %vm514, %v8985
  %9050 = vst.msk [vmem:[%s9 + $0x110] sm:$0xff] %vm514, %v8986
  %9051 = vst.msk [vmem:[%s9 + $0x118] sm:$0xff] %vm514, %v8987
  %9052 = vst.msk [vmem:[%s9 + $0x120] sm:$0xff] %vm514, %v8988
  %9053 = vst.msk [vmem:[%s9 + $0x128] sm:$0xff] %vm514, %v8989
  %9054 = vst.msk [vmem:[%s9 + $0x130] sm:$0xff] %vm514, %v8990
  %9055 = vst.msk [vmem:[%s9 + $0x138] sm:$0xff] %vm514, %v8991
  %9056 = vst.msk [vmem:[%s9 + $0x140] sm:$0xff] %vm514, %v8992
  %9057 = vst.msk [vmem:[%s9 + $0x148] sm:$0xff] %vm514, %v8993
  %9058 = vst.msk [vmem:[%s9 + $0x150] sm:$0xff] %vm514, %v8994
  %9059 = vst.msk [vmem:[%s9 + $0x158] sm:$0xff] %vm514, %v8995
  %9060 = vst.msk [vmem:[%s9 + $0x160] sm:$0xff] %vm514, %v8996
  %9061 = vst.msk [vmem:[%s9 + $0x168] sm:$0xff] %vm514, %v8997
  %9062 = vst.msk [vmem:[%s9 + $0x170] sm:$0xff] %vm514, %v8998
  %9063 = vst.msk [vmem:[%s9 + $0x178] sm:$0xff] %vm514, %v8999
  %9064 = vst.msk [vmem:[%s9 + $0x180] sm:$0xff] %vm514, %v9000
  %9065 = vst.msk [vmem:[%s9 + $0x188] sm:$0xff] %vm514, %v9001
  %9066 = vst.msk [vmem:[%s9 + $0x190] sm:$0xff] %vm514, %v9002
  %9067 = vst.msk [vmem:[%s9 + $0x198] sm:$0xff] %vm514, %v9003
  %9068 = vst.msk [vmem:[%s9 + $0x1a0] sm:$0xff] %vm514, %v9004
  %9069 = vst.msk [vmem:[%s9 + $0x1a8] sm:$0xff] %vm514, %v9005
  %9070 = vst.msk [vmem:[%s9 + $0x1b0] sm:$0xff] %vm514, %v9006
  %9071 = vst.msk [vmem:[%s9 + $0x1b8] sm:$0xff] %vm514, %v9007
  %9072 = vst.msk [vmem:[%s9 + $0x1c0] sm:$0xff] %vm514, %v9008
  %9073 = vst.msk [vmem:[%s9 + $0x1c8] sm:$0xff] %vm514, %v9009
  %9074 = vst.msk [vmem:[%s9 + $0x1d0] sm:$0xff] %vm514, %v9010
  %9075 = vst.msk [vmem:[%s9 + $0x1d8] sm:$0xff] %vm514, %v9011
  %9076 = vst.msk [vmem:[%s9 + $0x1e0] sm:$0xff] %vm514, %v9012
  %9077 = vst.msk [vmem:[%s9 + $0x1e8] sm:$0xff] %vm514, %v9013
  %9078 = vst.msk [vmem:[%s9 + $0x1f0] sm:$0xff] %vm514, %v9014
  %9079 = vst.msk [vmem:[%s9 + $0x1f8] sm:$0xff] %vm514, %v9015
  // Predicated region
  $region38: #{tpu_custom_call.1} parent=0 // pred_check
    _
  $region39: #{tpu_custom_call.1} parent=0 // pred_check_branch
    %9081 = sbr.rel (0) target = $region41
  $region40: #{tpu_custom_call.1} parent=0 // pred_region
    _
  $region41: #{tpu_custom_call.1} parent=0 // pred_fallthru
    _
  // Predicated region
  $region42: #{tpu_custom_call.1} parent=0 // pred_check
    _
  $region43: #{tpu_custom_call.1} parent=0 // pred_check_branch
    %9083 = sbr.rel (0) target = $region45
  $region44: #{tpu_custom_call.1} parent=0 // pred_region
    _
  $region45: #{tpu_custom_call.1} parent=0 // pred_fallthru
    _

</llo_original>
